<compile_context>
chip_gen: v7x
topology: tpu7x:2x2x1
jax: 0.10.0
libtpu: 0.0.40
codegen_flags: <defaults>
</compile_context>

<pallas_src>
from functools import partial

import numpy as np
import jax
import jax.numpy as jnp
from jax import lax
from jax.experimental import pallas as pl
from jax.experimental.pallas import tpu as pltpu


def _appliances_gru_kernel(flag_ref,                       # scalar prefetch (SMEM)
                           agg_ref, out_train_ref,
                           wih_f_ref, whh_f_ref, bih_f_ref, bhh_f_ref,
                           wih_b_ref, whh_b_ref, bih_b_ref, bhh_b_ref,
                           wl_f_ref, wl_b_ref, bl_ref,
                           o_ref,
                           agg_scr, gi_f_scr, gi_b_scr, hf_scr, hb_scr,
                           *, T, B_pad, H_pad):
    """One grid step = one appliance of the AppliancesRNN stack.

    agg_ref / o_ref / out_train_ref : (T*B_pad, 1)   row index = t*B_pad + b
    wih_* / bih_* / bhh_*           : (1, 3*H_pad)   gate order r|z|n, each gate padded to H_pad
    whh_*                           : (H_pad, 3*H_pad)  bf16 (transposed W_hh)
    wl_f / wl_b                     : (H_pad, 1)     bl : (1, 1)
    """
    a = pl.program_id(0)

    # Appliance 0 initializes the running aggregate (carried across grid iterations).
    @pl.when(a == 0)
    def _init():
        agg_scr[...] = agg_ref[...]

    xv = agg_scr[...]                                        # (T*B_pad, 1)

    # Input projection for every timestep / both directions, computed ONCE per appliance.
    gi_f_scr[...] = xv * wih_f_ref[...] + bih_f_ref[...]     # (T*B_pad, 3*H_pad)
    gi_b_scr[...] = xv * wih_b_ref[...] + bih_b_ref[...]

    h0 = jnp.zeros((B_pad, H_pad), jnp.float32)

    def gru_step(gi_t, h, whhT_ref, bhh_ref):
        # gh = h @ W_hh^T + b_hh   (bf16 MXU operands, f32 accumulate)
        gh = jnp.dot(h.astype(whhT_ref.dtype), whhT_ref[...],
                     preferred_element_type=jnp.float32) + bhh_ref[...]
        r = jax.nn.sigmoid(gi_t[:, 0:H_pad] + gh[:, 0:H_pad])
        z = jax.nn.sigmoid(gi_t[:, H_pad:2 * H_pad] + gh[:, H_pad:2 * H_pad])
        n = jnp.tanh(gi_t[:, 2 * H_pad:3 * H_pad] + r * gh[:, 2 * H_pad:3 * H_pad])
        return (1.0 - z) * n + z * h                         # (B_pad, H_pad)

    # One interleaved loop: forward chain at t = i, backward chain at t = T-1-i.
    def body(i, carry):
        h_f, h_b = carry
        tf = pl.multiple_of(i * B_pad, B_pad)
        tb = pl.multiple_of((T - 1 - i) * B_pad, B_pad)
        h_f = gru_step(gi_f_scr[pl.ds(tf, B_pad), :], h_f, whh_f_ref, bhh_f_ref)
        h_b = gru_step(gi_b_scr[pl.ds(tb, B_pad), :], h_b, whh_b_ref, bhh_b_ref)
        hf_scr[pl.ds(tf, B_pad), :] = h_f
        hb_scr[pl.ds(tb, B_pad), :] = h_b
        return h_f, h_b

    lax.fori_loop(0, T, body, (h0, h0), unroll=True)

    # Epilogue: one batched Linear over all timesteps + min(pred, aggregate), lane-dense.
    y = (jnp.dot(hf_scr[...], wl_f_ref[...], preferred_element_type=jnp.float32)
         + jnp.dot(hb_scr[...], wl_b_ref[...], preferred_element_type=jnp.float32)
         + bl_ref[...])                                      # (T*B_pad, 1)
    pred = jnp.minimum(y, xv)
    o_ref[...] = pred

    # Carry the aggregate to the next appliance (flag chooses pred vs out_train).
    @pl.when(flag_ref[0] != 0)
    def _sub_pred():
        agg_scr[...] = xv - pred

    @pl.when(flag_ref[0] == 0)
    def _sub_truth():
        agg_scr[...] = xv - out_train_ref[...]


def appliances_rnn_forward(packed, aggregate, out_train, p):
    """AppliancesRNN.forward.

    packed    : appliance-stacked, padded kernel params (see pack_appliance_params)
    aggregate : (B, T, 1)
    out_train : (A, B, T, 1)
    returns   : (A*B, T, 1)   (== torch.cat of per-appliance preds along dim 0)
    """
    A = packed["wih_f"].shape[0]
    H_pad = packed["whh_f"].shape[1]
    B, T, _ = aggregate.shape
    B_pad = ((B + 7) // 8) * 8
    TB = T * B_pad

    # Mirrors `np.random.random() > p` in the reference (host-side stochastic flag).
    flag = jnp.asarray([1 if float(np.random.random()) > p else 0], dtype=jnp.int32)

    # (B, T, 1) -> (T*B_pad, 1), row index = t*B_pad + b  (batch padded with zeros)
    x_tm = jnp.transpose(aggregate[..., 0], (1, 0))                    # (T, B)
    x_col = jnp.zeros((T, B_pad), jnp.float32).at[:, :B].set(x_tm).reshape(TB, 1)

    ot_tm = jnp.transpose(out_train[..., 0], (0, 2, 1))                # (A, T, B)
    ot_col = (jnp.zeros((A, T, B_pad), jnp.float32)
              .at[:, :, :B].set(ot_tm).reshape(A, TB, 1))

    kernel = partial(_appliances_gru_kernel, T=T, B_pad=B_pad, H_pad=H_pad)

    gate_row = (None, 1, 3 * H_pad)
    grid_spec = pltpu.PrefetchScalarGridSpec(
        num_scalar_prefetch=1,
        grid=(A,),
        in_specs=[
            pl.BlockSpec((TB, 1), lambda a, f: (0, 0)),                       # aggregate
            pl.BlockSpec((None, TB, 1), lambda a, f: (a, 0, 0)),              # out_train
            pl.BlockSpec(gate_row, lambda a, f: (a, 0, 0)),                   # wih_f
            pl.BlockSpec((None, H_pad, 3 * H_pad), lambda a, f: (a, 0, 0)),   # whh_f^T
            pl.BlockSpec(gate_row, lambda a, f: (a, 0, 0)),                   # bih_f
            pl.BlockSpec(gate_row, lambda a, f: (a, 0, 0)),                   # bhh_f
            pl.BlockSpec(gate_row, lambda a, f: (a, 0, 0)),                   # wih_b
            pl.BlockSpec((None, H_pad, 3 * H_pad), lambda a, f: (a, 0, 0)),   # whh_b^T
            pl.BlockSpec(gate_row, lambda a, f: (a, 0, 0)),                   # bih_b
            pl.BlockSpec(gate_row, lambda a, f: (a, 0, 0)),                   # bhh_b
            pl.BlockSpec((None, H_pad, 1), lambda a, f: (a, 0, 0)),           # wl_f
            pl.BlockSpec((None, H_pad, 1), lambda a, f: (a, 0, 0)),           # wl_b
            pl.BlockSpec((None, 1, 1), lambda a, f: (a, 0, 0)),               # bl
        ],
        out_specs=pl.BlockSpec((None, TB, 1), lambda a, f: (a, 0, 0)),
        scratch_shapes=[
            pltpu.VMEM((TB, 1), jnp.float32),            # running aggregate (carried)
            pltpu.VMEM((TB, 3 * H_pad), jnp.float32),    # gi forward  (all timesteps)
            pltpu.VMEM((TB, 3 * H_pad), jnp.float32),    # gi backward (all timesteps)
            pltpu.VMEM((TB, H_pad), jnp.float32),        # h forward history
            pltpu.VMEM((TB, H_pad), jnp.float32),        # h backward history
        ],
    )

    out = pl.pallas_call(
        kernel,
        out_shape=jax.ShapeDtypeStruct((A, TB, 1), jnp.float32),
        grid_spec=grid_spec,
        compiler_params=pltpu.CompilerParams(
            dimension_semantics=("arbitrary",)),       # aggregate carried across appliances
    )(flag, x_col, ot_col,
      packed["wih_f"], packed["whh_f"], packed["bih_f"], packed["bhh_f"],
      packed["wih_b"], packed["whh_b"], packed["bih_b"], packed["bhh_b"],
      packed["wl_f"], packed["wl_b"], packed["bl"])

    preds = out.reshape(A, T, B_pad, 1)[:, :, :B, :]   # drop batch padding
    preds = jnp.transpose(preds, (0, 2, 1, 3))         # (A, B, T, 1)
    return preds.reshape(A * B, T, 1)


# ----------------------------- parameter handling ------------------------------

def init_custom_rnn_params(key, hidden_size):
    """Deterministic synthetic params, PyTorch-style U(-1/sqrt(H), 1/sqrt(H)) init,
    in native PyTorch GRU / Linear shapes (gate order r|z|n)."""
    H = hidden_size
    k = 1.0 / np.sqrt(H)
    ks = jax.random.split(key, 10)
    u = lambda kk, shape: jax.random.uniform(kk, shape, jnp.float32, -k, k)
    return dict(
        wih_f=u(ks[0], (3 * H, 1)), whh_f=u(ks[1], (3 * H, H)),
        bih_f=u(ks[2], (3 * H,)),   bhh_f=u(ks[3], (3 * H,)),
        wih_b=u(ks[4], (3 * H, 1)), whh_b=u(ks[5], (3 * H, H)),
        bih_b=u(ks[6], (3 * H,)),   bhh_b=u(ks[7], (3 * H,)),
        w_lin=u(ks[8], (1, 2 * H)), b_lin=u(ks[9], (1,)),
    )


def _pad_gate_cols(w, H, H_pad):
    """(..., 3H) -> (..., 3*H_pad): zero-pad each of the r|z|n gate blocks to H_pad."""
    pads = [(0, 0)] * (w.ndim - 1) + [(0, H_pad - H)]
    return jnp.concatenate(
        [jnp.pad(w[..., g * H:(g + 1) * H], pads) for g in range(3)], axis=-1)


def pack_appliance_params(params_list, H, H_pad):
    """Stack per-appliance PyTorch-shaped params into padded kernel operands."""
    def pack_one(p):
        def whhT(w):                       # (3H, H) -> (H_pad, 3*H_pad) bf16 (MXU RHS)
            wt = _pad_gate_cols(w.T, H, H_pad)
            return jnp.pad(wt, ((0, H_pad - H), (0, 0))).astype(jnp.bfloat16)

        def rowvec(v):                     # (3H,) / (3H,1) -> (1, 3*H_pad)
            return _pad_gate_cols(v.reshape(1, 3 * H), H, H_pad)

        def lin_half(w_half):              # (H,) -> (H_pad, 1)
            return jnp.pad(w_half.reshape(H, 1), ((0, H_pad - H), (0, 0)))

        return dict(
            wih_f=rowvec(p["wih_f"]), whh_f=whhT(p["whh_f"]),
            bih_f=rowvec(p["bih_f"]), bhh_f=rowvec(p["bhh_f"]),
            wih_b=rowvec(p["wih_b"]), whh_b=whhT(p["whh_b"]),
            bih_b=rowvec(p["bih_b"]), bhh_b=rowvec(p["bhh_b"]),
            wl_f=lin_half(p["w_lin"][0, :H]), wl_b=lin_half(p["w_lin"][0, H:]),
            bl=p["b_lin"].reshape(1, 1),
        )

    packed = [pack_one(p) for p in params_list]
    return {k: jnp.stack([pp[k] for pp in packed], axis=0) for k in packed[0]}


if __name__ == "__main__":
    B, T, H = 2, 8, 32          # small shapes (module default hidden_size=100 also works)
    NUM_APPLIANCES = 3          # len(order)
    P = 0.6
    H_pad = ((H + 127) // 128) * 128

    key = jax.random.PRNGKey(0)
    k_agg, k_out, k_par = jax.random.split(key, 3)

    aggregate = jax.random.uniform(k_agg, (B, T, 1), jnp.float32, 0.0, 1.0)
    out_train = jax.random.uniform(k_out, (NUM_APPLIANCES, B, T, 1),
                                   jnp.float32, 0.0, 1.0)
    params_list = [init_custom_rnn_params(jax.random.fold_in(k_par, a), H)
                   for a in range(NUM_APPLIANCES)]
    packed = pack_appliance_params(params_list, H, H_pad)

    np.random.seed(0)  # deterministic draw for the `np.random.random() > p` flag
    out = appliances_rnn_forward(packed, aggregate, out_train, P)
    out = jax.block_until_ready(out)

    assert out.shape == (NUM_APPLIANCES * B, T, 1), out.shape
    assert bool(jnp.all(jnp.isfinite(out)))
    print("KERNEL_OK")
</pallas_src>

<mosaic_0001>
module attributes {stable_mosaic.version = 11 : i64} {
  func.func @_appliances_gru_kernel(%arg0: i32, %arg1: memref<1xi32, #tpu.memory_space<smem>>, %arg2: memref<64x1xf32, #tpu.memory_space<vmem>>, %arg3: memref<1x64x1xf32, #tpu.memory_space<vmem>>, %arg4: memref<1x1x384xf32, #tpu.memory_space<vmem>>, %arg5: memref<1x128x384xbf16, #tpu.memory_space<vmem>>, %arg6: memref<1x1x384xf32, #tpu.memory_space<vmem>>, %arg7: memref<1x1x384xf32, #tpu.memory_space<vmem>>, %arg8: memref<1x1x384xf32, #tpu.memory_space<vmem>>, %arg9: memref<1x128x384xbf16, #tpu.memory_space<vmem>>, %arg10: memref<1x1x384xf32, #tpu.memory_space<vmem>>, %arg11: memref<1x1x384xf32, #tpu.memory_space<vmem>>, %arg12: memref<1x128x1xf32, #tpu.memory_space<vmem>>, %arg13: memref<1x128x1xf32, #tpu.memory_space<vmem>>, %arg14: memref<1x1x1xf32, #tpu.memory_space<vmem>>, %arg15: memref<1x64x1xf32, #tpu.memory_space<vmem>>, %arg16: memref<64x1xf32, #tpu.memory_space<vmem>>, %arg17: memref<64x384xf32, #tpu.memory_space<vmem>>, %arg18: memref<64x384xf32, #tpu.memory_space<vmem>>, %arg19: memref<64x128xf32, #tpu.memory_space<vmem>>, %arg20: memref<64x128xf32, #tpu.memory_space<vmem>>) attributes {dimension_semantics = [#tpu.dimension_semantics<arbitrary>], iteration_bounds = array<i64: 3>, scalar_prefetch = 1 : i64, scratch_operands = 5 : i64, tpu.core_type = #tpu.core_type<tc>, window_params = [{pipeline_mode = #tpu.pipeline_mode<synchronous>, transform_indices = @transform_0, window_bounds = array<i64: 64, 1>}, {transform_indices = @transform_1, window_bounds = array<i64: 1, 64, 1>}, {transform_indices = @transform_2, window_bounds = array<i64: 1, 1, 384>}, {transform_indices = @transform_3, window_bounds = array<i64: 1, 128, 384>}, {transform_indices = @transform_4, window_bounds = array<i64: 1, 1, 384>}, {transform_indices = @transform_5, window_bounds = array<i64: 1, 1, 384>}, {transform_indices = @transform_6, window_bounds = array<i64: 1, 1, 384>}, {transform_indices = @transform_7, window_bounds = array<i64: 1, 128, 384>}, {transform_indices = @transform_8, window_bounds = array<i64: 1, 1, 384>}, {transform_indices = @transform_9, window_bounds = array<i64: 1, 1, 384>}, {transform_indices = @transform_10, window_bounds = array<i64: 1, 128, 1>}, {transform_indices = @transform_11, window_bounds = array<i64: 1, 128, 1>}, {transform_indices = @transform_12, window_bounds = array<i64: 1, 1, 1>}, {transform_indices = @transform_13, window_bounds = array<i64: 1, 64, 1>}]} {
    %c0_i32 = arith.constant 0 : i32
    %0 = arith.cmpi eq, %arg0, %c0_i32 : i32
    %1 = arith.extui %0 : i1 to i32
    %c0_i32_0 = arith.constant 0 : i32
    %2 = arith.cmpi ne, %1, %c0_i32_0 : i32
    scf.if %2 {
      %c0_259 = arith.constant 0 : index
      %c0_260 = arith.constant 0 : index
      %698 = vector.load %arg2[%c0_259, %c0_260] : memref<64x1xf32, #tpu.memory_space<vmem>>, vector<64x1xf32>
      %c0_261 = arith.constant 0 : index
      %c0_262 = arith.constant 0 : index
      %699 = vector.load %arg16[%c0_261, %c0_262] : memref<64x1xf32, #tpu.memory_space<vmem>>, vector<64x1xf32>
      tpu.vector_store %arg16[%c0_261, %c0_262], %698 {strides = array<i32>} : memref<64x1xf32, #tpu.memory_space<vmem>>, vector<64x1xf32>,
    } else {
    }
    %c0 = arith.constant 0 : index
    %c0_1 = arith.constant 0 : index
    %3 = vector.load %arg16[%c0, %c0_1] : memref<64x1xf32, #tpu.memory_space<vmem>>, vector<64x1xf32>
    %c0_2 = arith.constant 0 : index
    %c0_3 = arith.constant 0 : index
    %c0_4 = arith.constant 0 : index
    %4 = vector.load %arg4[%c0_2, %c0_3, %c0_4] : memref<1x1x384xf32, #tpu.memory_space<vmem>>, vector<1x1x384xf32>
    %5 = vector.shape_cast %4 : vector<1x1x384xf32> to vector<1x384xf32>
    %6 = vector.broadcast %3 : vector<64x1xf32> to vector<64x384xf32>
    %7 = vector.broadcast %5 : vector<1x384xf32> to vector<64x384xf32>
    %8 = arith.mulf %6, %7 : vector<64x384xf32>
    %c0_5 = arith.constant 0 : index
    %c0_6 = arith.constant 0 : index
    %c0_7 = arith.constant 0 : index
    %9 = vector.load %arg6[%c0_5, %c0_6, %c0_7] : memref<1x1x384xf32, #tpu.memory_space<vmem>>, vector<1x1x384xf32>
    %10 = vector.shape_cast %9 : vector<1x1x384xf32> to vector<1x384xf32>
    %11 = vector.broadcast %10 : vector<1x384xf32> to vector<64x384xf32>
    %12 = arith.addf %8, %11 : vector<64x384xf32>
    %c0_8 = arith.constant 0 : index
    %c0_9 = arith.constant 0 : index
    %13 = vector.load %arg17[%c0_8, %c0_9] : memref<64x384xf32, #tpu.memory_space<vmem>>, vector<64x384xf32>
    tpu.vector_store %arg17[%c0_8, %c0_9], %12 {strides = array<i32>} : memref<64x384xf32, #tpu.memory_space<vmem>>, vector<64x384xf32>,
    %c0_10 = arith.constant 0 : index
    %c0_11 = arith.constant 0 : index
    %c0_12 = arith.constant 0 : index
    %14 = vector.load %arg8[%c0_10, %c0_11, %c0_12] : memref<1x1x384xf32, #tpu.memory_space<vmem>>, vector<1x1x384xf32>
    %15 = vector.shape_cast %14 : vector<1x1x384xf32> to vector<1x384xf32>
    %16 = vector.broadcast %3 : vector<64x1xf32> to vector<64x384xf32>
    %17 = vector.broadcast %15 : vector<1x384xf32> to vector<64x384xf32>
    %18 = arith.mulf %16, %17 : vector<64x384xf32>
    %c0_13 = arith.constant 0 : index
    %c0_14 = arith.constant 0 : index
    %c0_15 = arith.constant 0 : index
    %19 = vector.load %arg10[%c0_13, %c0_14, %c0_15] : memref<1x1x384xf32, #tpu.memory_space<vmem>>, vector<1x1x384xf32>
    %20 = vector.shape_cast %19 : vector<1x1x384xf32> to vector<1x384xf32>
    %21 = vector.broadcast %20 : vector<1x384xf32> to vector<64x384xf32>
    %22 = arith.addf %18, %21 : vector<64x384xf32>
    %c0_16 = arith.constant 0 : index
    %c0_17 = arith.constant 0 : index
    %23 = vector.load %arg18[%c0_16, %c0_17] : memref<64x384xf32, #tpu.memory_space<vmem>>, vector<64x384xf32>
    tpu.vector_store %arg18[%c0_16, %c0_17], %22 {strides = array<i32>} : memref<64x384xf32, #tpu.memory_space<vmem>>, vector<64x384xf32>,
    %cst = arith.constant 0.000000e+00 : f32
    %24 = vector.broadcast %cst : f32 to vector<8x128xf32>
    %c0_i32_18 = arith.constant 0 : i32
    %c8_i32 = arith.constant 8 : i32
    %25 = arith.muli %c0_i32_18, %c8_i32 : i32
    %26 = tpu.assume_multiple %25, 8 : i32
    %c7_i32 = arith.constant 7 : i32
    %27 = arith.subi %c7_i32, %c0_i32_18 : i32
    %c8_i32_19 = arith.constant 8 : i32
    %28 = arith.muli %27, %c8_i32_19 : i32
    %29 = tpu.assume_multiple %28, 8 : i32
    %30 = arith.index_cast %26 : i32 to index
    %c0_20 = arith.constant 0 : index
    %31 = vector.load %arg17[%30, %c0_20] : memref<64x384xf32, #tpu.memory_space<vmem>>, vector<8x384xf32>
    %32 = arith.truncf %24 : vector<8x128xf32> to vector<8x128xbf16>
    %c0_21 = arith.constant 0 : index
    %c0_22 = arith.constant 0 : index
    %c0_23 = arith.constant 0 : index
    %33 = vector.load %arg5[%c0_21, %c0_22, %c0_23] : memref<1x128x384xbf16, #tpu.memory_space<vmem>>, vector<1x128x384xbf16>
    %34 = vector.shape_cast %33 : vector<1x128x384xbf16> to vector<128x384xbf16>
    %cst_24 = arith.constant dense<0.000000e+00> : vector<8x384xf32>
    %35 = tpu.matmul %32, %34, %cst_24 {dimension_numbers = #tpu.dot_dimension_numbers<[1], [0], [0], [1], [0, 0, 1, 1], [], []>} : vector<8x128xbf16>, vector<128x384xbf16>, vector<8x384xf32> -> vector<8x384xf32>
    %c0_25 = arith.constant 0 : index
    %c0_26 = arith.constant 0 : index
    %c0_27 = arith.constant 0 : index
    %36 = vector.load %arg7[%c0_25, %c0_26, %c0_27] : memref<1x1x384xf32, #tpu.memory_space<vmem>>, vector<1x1x384xf32>
    %37 = vector.shape_cast %36 : vector<1x1x384xf32> to vector<1x384xf32>
    %38 = vector.broadcast %37 : vector<1x384xf32> to vector<8x384xf32>
    %39 = arith.addf %35, %38 : vector<8x384xf32>
    %40 = vector.extract_strided_slice %31 {offsets = [0, 0], sizes = [8, 128], strides = [1, 1]} : vector<8x384xf32> to vector<8x128xf32>
    %41 = vector.extract_strided_slice %39 {offsets = [0, 0], sizes = [8, 128], strides = [1, 1]} : vector<8x384xf32> to vector<8x128xf32>
    %42 = arith.addf %40, %41 : vector<8x128xf32>
    %43 = arith.negf %42 : vector<8x128xf32>
    %44 = math.exp %43 : vector<8x128xf32>
    %cst_28 = arith.constant 1.000000e+00 : f32
    %45 = vector.broadcast %cst_28 : f32 to vector<8x128xf32>
    %46 = arith.addf %45, %44 : vector<8x128xf32>
    %47 = arith.divf %45, %46 : vector<8x128xf32>
    %48 = vector.extract_strided_slice %31 {offsets = [0, 128], sizes = [8, 128], strides = [1, 1]} : vector<8x384xf32> to vector<8x128xf32>
    %49 = vector.extract_strided_slice %39 {offsets = [0, 128], sizes = [8, 128], strides = [1, 1]} : vector<8x384xf32> to vector<8x128xf32>
    %50 = arith.addf %48, %49 : vector<8x128xf32>
    %51 = arith.negf %50 : vector<8x128xf32>
    %52 = math.exp %51 : vector<8x128xf32>
    %cst_29 = arith.constant 1.000000e+00 : f32
    %53 = vector.broadcast %cst_29 : f32 to vector<8x128xf32>
    %54 = arith.addf %53, %52 : vector<8x128xf32>
    %55 = arith.divf %53, %54 : vector<8x128xf32>
    %56 = vector.extract_strided_slice %31 {offsets = [0, 256], sizes = [8, 128], strides = [1, 1]} : vector<8x384xf32> to vector<8x128xf32>
    %57 = vector.extract_strided_slice %39 {offsets = [0, 256], sizes = [8, 128], strides = [1, 1]} : vector<8x384xf32> to vector<8x128xf32>
    %58 = arith.mulf %47, %57 : vector<8x128xf32>
    %59 = arith.addf %56, %58 : vector<8x128xf32>
    %60 = math.tanh %59 : vector<8x128xf32>
    %cst_30 = arith.constant 1.000000e+00 : f32
    %61 = vector.broadcast %cst_30 : f32 to vector<8x128xf32>
    %62 = arith.subf %61, %55 : vector<8x128xf32>
    %63 = arith.mulf %62, %60 : vector<8x128xf32>
    %64 = arith.mulf %55, %24 : vector<8x128xf32>
    %65 = arith.addf %63, %64 : vector<8x128xf32>
    %66 = arith.index_cast %29 : i32 to index
    %c0_31 = arith.constant 0 : index
    %67 = vector.load %arg18[%66, %c0_31] : memref<64x384xf32, #tpu.memory_space<vmem>>, vector<8x384xf32>
    %68 = arith.truncf %24 : vector<8x128xf32> to vector<8x128xbf16>
    %c0_32 = arith.constant 0 : index
    %c0_33 = arith.constant 0 : index
    %c0_34 = arith.constant 0 : index
    %69 = vector.load %arg9[%c0_32, %c0_33, %c0_34] : memref<1x128x384xbf16, #tpu.memory_space<vmem>>, vector<1x128x384xbf16>
    %70 = vector.shape_cast %69 : vector<1x128x384xbf16> to vector<128x384xbf16>
    %cst_35 = arith.constant dense<0.000000e+00> : vector<8x384xf32>
    %71 = tpu.matmul %68, %70, %cst_35 {dimension_numbers = #tpu.dot_dimension_numbers<[1], [0], [0], [1], [0, 0, 1, 1], [], []>} : vector<8x128xbf16>, vector<128x384xbf16>, vector<8x384xf32> -> vector<8x384xf32>
    %c0_36 = arith.constant 0 : index
    %c0_37 = arith.constant 0 : index
    %c0_38 = arith.constant 0 : index
    %72 = vector.load %arg11[%c0_36, %c0_37, %c0_38] : memref<1x1x384xf32, #tpu.memory_space<vmem>>, vector<1x1x384xf32>
    %73 = vector.shape_cast %72 : vector<1x1x384xf32> to vector<1x384xf32>
    %74 = vector.broadcast %73 : vector<1x384xf32> to vector<8x384xf32>
    %75 = arith.addf %71, %74 : vector<8x384xf32>
    %76 = vector.extract_strided_slice %67 {offsets = [0, 0], sizes = [8, 128], strides = [1, 1]} : vector<8x384xf32> to vector<8x128xf32>
    %77 = vector.extract_strided_slice %75 {offsets = [0, 0], sizes = [8, 128], strides = [1, 1]} : vector<8x384xf32> to vector<8x128xf32>
    %78 = arith.addf %76, %77 : vector<8x128xf32>
    %79 = arith.negf %78 : vector<8x128xf32>
    %80 = math.exp %79 : vector<8x128xf32>
    %cst_39 = arith.constant 1.000000e+00 : f32
    %81 = vector.broadcast %cst_39 : f32 to vector<8x128xf32>
    %82 = arith.addf %81, %80 : vector<8x128xf32>
    %83 = arith.divf %81, %82 : vector<8x128xf32>
    %84 = vector.extract_strided_slice %67 {offsets = [0, 128], sizes = [8, 128], strides = [1, 1]} : vector<8x384xf32> to vector<8x128xf32>
    %85 = vector.extract_strided_slice %75 {offsets = [0, 128], sizes = [8, 128], strides = [1, 1]} : vector<8x384xf32> to vector<8x128xf32>
    %86 = arith.addf %84, %85 : vector<8x128xf32>
    %87 = arith.negf %86 : vector<8x128xf32>
    %88 = math.exp %87 : vector<8x128xf32>
    %cst_40 = arith.constant 1.000000e+00 : f32
    %89 = vector.broadcast %cst_40 : f32 to vector<8x128xf32>
    %90 = arith.addf %89, %88 : vector<8x128xf32>
    %91 = arith.divf %89, %90 : vector<8x128xf32>
    %92 = vector.extract_strided_slice %67 {offsets = [0, 256], sizes = [8, 128], strides = [1, 1]} : vector<8x384xf32> to vector<8x128xf32>
    %93 = vector.extract_strided_slice %75 {offsets = [0, 256], sizes = [8, 128], strides = [1, 1]} : vector<8x384xf32> to vector<8x128xf32>
    %94 = arith.mulf %83, %93 : vector<8x128xf32>
    %95 = arith.addf %92, %94 : vector<8x128xf32>
    %96 = math.tanh %95 : vector<8x128xf32>
    %cst_41 = arith.constant 1.000000e+00 : f32
    %97 = vector.broadcast %cst_41 : f32 to vector<8x128xf32>
    %98 = arith.subf %97, %91 : vector<8x128xf32>
    %99 = arith.mulf %98, %96 : vector<8x128xf32>
    %100 = arith.mulf %91, %24 : vector<8x128xf32>
    %101 = arith.addf %99, %100 : vector<8x128xf32>
    %102 = arith.index_cast %26 : i32 to index
    %c0_42 = arith.constant 0 : index
    %103 = vector.load %arg19[%102, %c0_42] : memref<64x128xf32, #tpu.memory_space<vmem>>, vector<8x128xf32>
    tpu.vector_store %arg19[%102, %c0_42], %65 {strides = array<i32>} : memref<64x128xf32, #tpu.memory_space<vmem>>, vector<8x128xf32>,
    %104 = arith.index_cast %29 : i32 to index
    %c0_43 = arith.constant 0 : index
    %105 = vector.load %arg20[%104, %c0_43] : memref<64x128xf32, #tpu.memory_space<vmem>>, vector<8x128xf32>
    tpu.vector_store %arg20[%104, %c0_43], %101 {strides = array<i32>} : memref<64x128xf32, #tpu.memory_space<vmem>>, vector<8x128xf32>,
    %c1_i32 = arith.constant 1 : i32
    %c8_i32_44 = arith.constant 8 : i32
    %106 = arith.muli %c1_i32, %c8_i32_44 : i32
    %107 = tpu.assume_multiple %106, 8 : i32
    %c7_i32_45 = arith.constant 7 : i32
    %108 = arith.subi %c7_i32_45, %c1_i32 : i32
    %c8_i32_46 = arith.constant 8 : i32
    %109 = arith.muli %108, %c8_i32_46 : i32
    %110 = tpu.assume_multiple %109, 8 : i32
    %111 = arith.index_cast %107 : i32 to index
    %c0_47 = arith.constant 0 : index
    %112 = vector.load %arg17[%111, %c0_47] : memref<64x384xf32, #tpu.memory_space<vmem>>, vector<8x384xf32>
    %113 = arith.truncf %65 : vector<8x128xf32> to vector<8x128xbf16>
    %c0_48 = arith.constant 0 : index
    %c0_49 = arith.constant 0 : index
    %c0_50 = arith.constant 0 : index
    %114 = vector.load %arg5[%c0_48, %c0_49, %c0_50] : memref<1x128x384xbf16, #tpu.memory_space<vmem>>, vector<1x128x384xbf16>
    %115 = vector.shape_cast %114 : vector<1x128x384xbf16> to vector<128x384xbf16>
    %cst_51 = arith.constant dense<0.000000e+00> : vector<8x384xf32>
    %116 = tpu.matmul %113, %115, %cst_51 {dimension_numbers = #tpu.dot_dimension_numbers<[1], [0], [0], [1], [0, 0, 1, 1], [], []>} : vector<8x128xbf16>, vector<128x384xbf16>, vector<8x384xf32> -> vector<8x384xf32>
    %c0_52 = arith.constant 0 : index
    %c0_53 = arith.constant 0 : index
    %c0_54 = arith.constant 0 : index
    %117 = vector.load %arg7[%c0_52, %c0_53, %c0_54] : memref<1x1x384xf32, #tpu.memory_space<vmem>>, vector<1x1x384xf32>
    %118 = vector.shape_cast %117 : vector<1x1x384xf32> to vector<1x384xf32>
    %119 = vector.broadcast %118 : vector<1x384xf32> to vector<8x384xf32>
    %120 = arith.addf %116, %119 : vector<8x384xf32>
    %121 = vector.extract_strided_slice %112 {offsets = [0, 0], sizes = [8, 128], strides = [1, 1]} : vector<8x384xf32> to vector<8x128xf32>
    %122 = vector.extract_strided_slice %120 {offsets = [0, 0], sizes = [8, 128], strides = [1, 1]} : vector<8x384xf32> to vector<8x128xf32>
    %123 = arith.addf %121, %122 : vector<8x128xf32>
    %124 = arith.negf %123 : vector<8x128xf32>
    %125 = math.exp %124 : vector<8x128xf32>
    %cst_55 = arith.constant 1.000000e+00 : f32
    %126 = vector.broadcast %cst_55 : f32 to vector<8x128xf32>
    %127 = arith.addf %126, %125 : vector<8x128xf32>
    %128 = arith.divf %126, %127 : vector<8x128xf32>
    %129 = vector.extract_strided_slice %112 {offsets = [0, 128], sizes = [8, 128], strides = [1, 1]} : vector<8x384xf32> to vector<8x128xf32>
    %130 = vector.extract_strided_slice %120 {offsets = [0, 128], sizes = [8, 128], strides = [1, 1]} : vector<8x384xf32> to vector<8x128xf32>
    %131 = arith.addf %129, %130 : vector<8x128xf32>
    %132 = arith.negf %131 : vector<8x128xf32>
    %133 = math.exp %132 : vector<8x128xf32>
    %cst_56 = arith.constant 1.000000e+00 : f32
    %134 = vector.broadcast %cst_56 : f32 to vector<8x128xf32>
    %135 = arith.addf %134, %133 : vector<8x128xf32>
    %136 = arith.divf %134, %135 : vector<8x128xf32>
    %137 = vector.extract_strided_slice %112 {offsets = [0, 256], sizes = [8, 128], strides = [1, 1]} : vector<8x384xf32> to vector<8x128xf32>
    %138 = vector.extract_strided_slice %120 {offsets = [0, 256], sizes = [8, 128], strides = [1, 1]} : vector<8x384xf32> to vector<8x128xf32>
    %139 = arith.mulf %128, %138 : vector<8x128xf32>
    %140 = arith.addf %137, %139 : vector<8x128xf32>
    %141 = math.tanh %140 : vector<8x128xf32>
    %cst_57 = arith.constant 1.000000e+00 : f32
    %142 = vector.broadcast %cst_57 : f32 to vector<8x128xf32>
    %143 = arith.subf %142, %136 : vector<8x128xf32>
    %144 = arith.mulf %143, %141 : vector<8x128xf32>
    %145 = arith.mulf %136, %65 : vector<8x128xf32>
    %146 = arith.addf %144, %145 : vector<8x128xf32>
    %147 = arith.index_cast %110 : i32 to index
    %c0_58 = arith.constant 0 : index
    %148 = vector.load %arg18[%147, %c0_58] : memref<64x384xf32, #tpu.memory_space<vmem>>, vector<8x384xf32>
    %149 = arith.truncf %101 : vector<8x128xf32> to vector<8x128xbf16>
    %c0_59 = arith.constant 0 : index
    %c0_60 = arith.constant 0 : index
    %c0_61 = arith.constant 0 : index
    %150 = vector.load %arg9[%c0_59, %c0_60, %c0_61] : memref<1x128x384xbf16, #tpu.memory_space<vmem>>, vector<1x128x384xbf16>
    %151 = vector.shape_cast %150 : vector<1x128x384xbf16> to vector<128x384xbf16>
    %cst_62 = arith.constant dense<0.000000e+00> : vector<8x384xf32>
    %152 = tpu.matmul %149, %151, %cst_62 {dimension_numbers = #tpu.dot_dimension_numbers<[1], [0], [0], [1], [0, 0, 1, 1], [], []>} : vector<8x128xbf16>, vector<128x384xbf16>, vector<8x384xf32> -> vector<8x384xf32>
    %c0_63 = arith.constant 0 : index
    %c0_64 = arith.constant 0 : index
    %c0_65 = arith.constant 0 : index
    %153 = vector.load %arg11[%c0_63, %c0_64, %c0_65] : memref<1x1x384xf32, #tpu.memory_space<vmem>>, vector<1x1x384xf32>
    %154 = vector.shape_cast %153 : vector<1x1x384xf32> to vector<1x384xf32>
    %155 = vector.broadcast %154 : vector<1x384xf32> to vector<8x384xf32>
    %156 = arith.addf %152, %155 : vector<8x384xf32>
    %157 = vector.extract_strided_slice %148 {offsets = [0, 0], sizes = [8, 128], strides = [1, 1]} : vector<8x384xf32> to vector<8x128xf32>
    %158 = vector.extract_strided_slice %156 {offsets = [0, 0], sizes = [8, 128], strides = [1, 1]} : vector<8x384xf32> to vector<8x128xf32>
    %159 = arith.addf %157, %158 : vector<8x128xf32>
    %160 = arith.negf %159 : vector<8x128xf32>
    %161 = math.exp %160 : vector<8x128xf32>
    %cst_66 = arith.constant 1.000000e+00 : f32
    %162 = vector.broadcast %cst_66 : f32 to vector<8x128xf32>
    %163 = arith.addf %162, %161 : vector<8x128xf32>
    %164 = arith.divf %162, %163 : vector<8x128xf32>
    %165 = vector.extract_strided_slice %148 {offsets = [0, 128], sizes = [8, 128], strides = [1, 1]} : vector<8x384xf32> to vector<8x128xf32>
    %166 = vector.extract_strided_slice %156 {offsets = [0, 128], sizes = [8, 128], strides = [1, 1]} : vector<8x384xf32> to vector<8x128xf32>
    %167 = arith.addf %165, %166 : vector<8x128xf32>
    %168 = arith.negf %167 : vector<8x128xf32>
    %169 = math.exp %168 : vector<8x128xf32>
    %cst_67 = arith.constant 1.000000e+00 : f32
    %170 = vector.broadcast %cst_67 : f32 to vector<8x128xf32>
    %171 = arith.addf %170, %169 : vector<8x128xf32>
    %172 = arith.divf %170, %171 : vector<8x128xf32>
    %173 = vector.extract_strided_slice %148 {offsets = [0, 256], sizes = [8, 128], strides = [1, 1]} : vector<8x384xf32> to vector<8x128xf32>
    %174 = vector.extract_strided_slice %156 {offsets = [0, 256], sizes = [8, 128], strides = [1, 1]} : vector<8x384xf32> to vector<8x128xf32>
    %175 = arith.mulf %164, %174 : vector<8x128xf32>
    %176 = arith.addf %173, %175 : vector<8x128xf32>
    %177 = math.tanh %176 : vector<8x128xf32>
    %cst_68 = arith.constant 1.000000e+00 : f32
    %178 = vector.broadcast %cst_68 : f32 to vector<8x128xf32>
    %179 = arith.subf %178, %172 : vector<8x128xf32>
    %180 = arith.mulf %179, %177 : vector<8x128xf32>
    %181 = arith.mulf %172, %101 : vector<8x128xf32>
    %182 = arith.addf %180, %181 : vector<8x128xf32>
    %183 = arith.index_cast %107 : i32 to index
    %c0_69 = arith.constant 0 : index
    %184 = vector.load %arg19[%183, %c0_69] : memref<64x128xf32, #tpu.memory_space<vmem>>, vector<8x128xf32>
    tpu.vector_store %arg19[%183, %c0_69], %146 {strides = array<i32>} : memref<64x128xf32, #tpu.memory_space<vmem>>, vector<8x128xf32>,
    %185 = arith.index_cast %110 : i32 to index
    %c0_70 = arith.constant 0 : index
    %186 = vector.load %arg20[%185, %c0_70] : memref<64x128xf32, #tpu.memory_space<vmem>>, vector<8x128xf32>
    tpu.vector_store %arg20[%185, %c0_70], %182 {strides = array<i32>} : memref<64x128xf32, #tpu.memory_space<vmem>>, vector<8x128xf32>,
    %c2_i32 = arith.constant 2 : i32
    %c8_i32_71 = arith.constant 8 : i32
    %187 = arith.muli %c2_i32, %c8_i32_71 : i32
    %188 = tpu.assume_multiple %187, 8 : i32
    %c7_i32_72 = arith.constant 7 : i32
    %189 = arith.subi %c7_i32_72, %c2_i32 : i32
    %c8_i32_73 = arith.constant 8 : i32
    %190 = arith.muli %189, %c8_i32_73 : i32
    %191 = tpu.assume_multiple %190, 8 : i32
    %192 = arith.index_cast %188 : i32 to index
    %c0_74 = arith.constant 0 : index
    %193 = vector.load %arg17[%192, %c0_74] : memref<64x384xf32, #tpu.memory_space<vmem>>, vector<8x384xf32>
    %194 = arith.truncf %146 : vector<8x128xf32> to vector<8x128xbf16>
    %c0_75 = arith.constant 0 : index
    %c0_76 = arith.constant 0 : index
    %c0_77 = arith.constant 0 : index
    %195 = vector.load %arg5[%c0_75, %c0_76, %c0_77] : memref<1x128x384xbf16, #tpu.memory_space<vmem>>, vector<1x128x384xbf16>
    %196 = vector.shape_cast %195 : vector<1x128x384xbf16> to vector<128x384xbf16>
    %cst_78 = arith.constant dense<0.000000e+00> : vector<8x384xf32>
    %197 = tpu.matmul %194, %196, %cst_78 {dimension_numbers = #tpu.dot_dimension_numbers<[1], [0], [0], [1], [0, 0, 1, 1], [], []>} : vector<8x128xbf16>, vector<128x384xbf16>, vector<8x384xf32> -> vector<8x384xf32>
    %c0_79 = arith.constant 0 : index
    %c0_80 = arith.constant 0 : index
    %c0_81 = arith.constant 0 : index
    %198 = vector.load %arg7[%c0_79, %c0_80, %c0_81] : memref<1x1x384xf32, #tpu.memory_space<vmem>>, vector<1x1x384xf32>
    %199 = vector.shape_cast %198 : vector<1x1x384xf32> to vector<1x384xf32>
    %200 = vector.broadcast %199 : vector<1x384xf32> to vector<8x384xf32>
    %201 = arith.addf %197, %200 : vector<8x384xf32>
    %202 = vector.extract_strided_slice %193 {offsets = [0, 0], sizes = [8, 128], strides = [1, 1]} : vector<8x384xf32> to vector<8x128xf32>
    %203 = vector.extract_strided_slice %201 {offsets = [0, 0], sizes = [8, 128], strides = [1, 1]} : vector<8x384xf32> to vector<8x128xf32>
    %204 = arith.addf %202, %203 : vector<8x128xf32>
    %205 = arith.negf %204 : vector<8x128xf32>
    %206 = math.exp %205 : vector<8x128xf32>
    %cst_82 = arith.constant 1.000000e+00 : f32
    %207 = vector.broadcast %cst_82 : f32 to vector<8x128xf32>
    %208 = arith.addf %207, %206 : vector<8x128xf32>
    %209 = arith.divf %207, %208 : vector<8x128xf32>
    %210 = vector.extract_strided_slice %193 {offsets = [0, 128], sizes = [8, 128], strides = [1, 1]} : vector<8x384xf32> to vector<8x128xf32>
    %211 = vector.extract_strided_slice %201 {offsets = [0, 128], sizes = [8, 128], strides = [1, 1]} : vector<8x384xf32> to vector<8x128xf32>
    %212 = arith.addf %210, %211 : vector<8x128xf32>
    %213 = arith.negf %212 : vector<8x128xf32>
    %214 = math.exp %213 : vector<8x128xf32>
    %cst_83 = arith.constant 1.000000e+00 : f32
    %215 = vector.broadcast %cst_83 : f32 to vector<8x128xf32>
    %216 = arith.addf %215, %214 : vector<8x128xf32>
    %217 = arith.divf %215, %216 : vector<8x128xf32>
    %218 = vector.extract_strided_slice %193 {offsets = [0, 256], sizes = [8, 128], strides = [1, 1]} : vector<8x384xf32> to vector<8x128xf32>
    %219 = vector.extract_strided_slice %201 {offsets = [0, 256], sizes = [8, 128], strides = [1, 1]} : vector<8x384xf32> to vector<8x128xf32>
    %220 = arith.mulf %209, %219 : vector<8x128xf32>
    %221 = arith.addf %218, %220 : vector<8x128xf32>
    %222 = math.tanh %221 : vector<8x128xf32>
    %cst_84 = arith.constant 1.000000e+00 : f32
    %223 = vector.broadcast %cst_84 : f32 to vector<8x128xf32>
    %224 = arith.subf %223, %217 : vector<8x128xf32>
    %225 = arith.mulf %224, %222 : vector<8x128xf32>
    %226 = arith.mulf %217, %146 : vector<8x128xf32>
    %227 = arith.addf %225, %226 : vector<8x128xf32>
    %228 = arith.index_cast %191 : i32 to index
    %c0_85 = arith.constant 0 : index
    %229 = vector.load %arg18[%228, %c0_85] : memref<64x384xf32, #tpu.memory_space<vmem>>, vector<8x384xf32>
    %230 = arith.truncf %182 : vector<8x128xf32> to vector<8x128xbf16>
    %c0_86 = arith.constant 0 : index
    %c0_87 = arith.constant 0 : index
    %c0_88 = arith.constant 0 : index
    %231 = vector.load %arg9[%c0_86, %c0_87, %c0_88] : memref<1x128x384xbf16, #tpu.memory_space<vmem>>, vector<1x128x384xbf16>
    %232 = vector.shape_cast %231 : vector<1x128x384xbf16> to vector<128x384xbf16>
    %cst_89 = arith.constant dense<0.000000e+00> : vector<8x384xf32>
    %233 = tpu.matmul %230, %232, %cst_89 {dimension_numbers = #tpu.dot_dimension_numbers<[1], [0], [0], [1], [0, 0, 1, 1], [], []>} : vector<8x128xbf16>, vector<128x384xbf16>, vector<8x384xf32> -> vector<8x384xf32>
    %c0_90 = arith.constant 0 : index
    %c0_91 = arith.constant 0 : index
    %c0_92 = arith.constant 0 : index
    %234 = vector.load %arg11[%c0_90, %c0_91, %c0_92] : memref<1x1x384xf32, #tpu.memory_space<vmem>>, vector<1x1x384xf32>
    %235 = vector.shape_cast %234 : vector<1x1x384xf32> to vector<1x384xf32>
    %236 = vector.broadcast %235 : vector<1x384xf32> to vector<8x384xf32>
    %237 = arith.addf %233, %236 : vector<8x384xf32>
    %238 = vector.extract_strided_slice %229 {offsets = [0, 0], sizes = [8, 128], strides = [1, 1]} : vector<8x384xf32> to vector<8x128xf32>
    %239 = vector.extract_strided_slice %237 {offsets = [0, 0], sizes = [8, 128], strides = [1, 1]} : vector<8x384xf32> to vector<8x128xf32>
    %240 = arith.addf %238, %239 : vector<8x128xf32>
    %241 = arith.negf %240 : vector<8x128xf32>
    %242 = math.exp %241 : vector<8x128xf32>
    %cst_93 = arith.constant 1.000000e+00 : f32
    %243 = vector.broadcast %cst_93 : f32 to vector<8x128xf32>
    %244 = arith.addf %243, %242 : vector<8x128xf32>
    %245 = arith.divf %243, %244 : vector<8x128xf32>
    %246 = vector.extract_strided_slice %229 {offsets = [0, 128], sizes = [8, 128], strides = [1, 1]} : vector<8x384xf32> to vector<8x128xf32>
    %247 = vector.extract_strided_slice %237 {offsets = [0, 128], sizes = [8, 128], strides = [1, 1]} : vector<8x384xf32> to vector<8x128xf32>
    %248 = arith.addf %246, %247 : vector<8x128xf32>
    %249 = arith.negf %248 : vector<8x128xf32>
    %250 = math.exp %249 : vector<8x128xf32>
    %cst_94 = arith.constant 1.000000e+00 : f32
    %251 = vector.broadcast %cst_94 : f32 to vector<8x128xf32>
    %252 = arith.addf %251, %250 : vector<8x128xf32>
    %253 = arith.divf %251, %252 : vector<8x128xf32>
    %254 = vector.extract_strided_slice %229 {offsets = [0, 256], sizes = [8, 128], strides = [1, 1]} : vector<8x384xf32> to vector<8x128xf32>
    %255 = vector.extract_strided_slice %237 {offsets = [0, 256], sizes = [8, 128], strides = [1, 1]} : vector<8x384xf32> to vector<8x128xf32>
    %256 = arith.mulf %245, %255 : vector<8x128xf32>
    %257 = arith.addf %254, %256 : vector<8x128xf32>
    %258 = math.tanh %257 : vector<8x128xf32>
    %cst_95 = arith.constant 1.000000e+00 : f32
    %259 = vector.broadcast %cst_95 : f32 to vector<8x128xf32>
    %260 = arith.subf %259, %253 : vector<8x128xf32>
    %261 = arith.mulf %260, %258 : vector<8x128xf32>
    %262 = arith.mulf %253, %182 : vector<8x128xf32>
    %263 = arith.addf %261, %262 : vector<8x128xf32>
    %264 = arith.index_cast %188 : i32 to index
    %c0_96 = arith.constant 0 : index
    %265 = vector.load %arg19[%264, %c0_96] : memref<64x128xf32, #tpu.memory_space<vmem>>, vector<8x128xf32>
    tpu.vector_store %arg19[%264, %c0_96], %227 {strides = array<i32>} : memref<64x128xf32, #tpu.memory_space<vmem>>, vector<8x128xf32>,
    %266 = arith.index_cast %191 : i32 to index
    %c0_97 = arith.constant 0 : index
    %267 = vector.load %arg20[%266, %c0_97] : memref<64x128xf32, #tpu.memory_space<vmem>>, vector<8x128xf32>
    tpu.vector_store %arg20[%266, %c0_97], %263 {strides = array<i32>} : memref<64x128xf32, #tpu.memory_space<vmem>>, vector<8x128xf32>,
    %c3_i32 = arith.constant 3 : i32
    %c8_i32_98 = arith.constant 8 : i32
    %268 = arith.muli %c3_i32, %c8_i32_98 : i32
    %269 = tpu.assume_multiple %268, 8 : i32
    %c7_i32_99 = arith.constant 7 : i32
    %270 = arith.subi %c7_i32_99, %c3_i32 : i32
    %c8_i32_100 = arith.constant 8 : i32
    %271 = arith.muli %270, %c8_i32_100 : i32
    %272 = tpu.assume_multiple %271, 8 : i32
    %273 = arith.index_cast %269 : i32 to index
    %c0_101 = arith.constant 0 : index
    %274 = vector.load %arg17[%273, %c0_101] : memref<64x384xf32, #tpu.memory_space<vmem>>, vector<8x384xf32>
    %275 = arith.truncf %227 : vector<8x128xf32> to vector<8x128xbf16>
    %c0_102 = arith.constant 0 : index
    %c0_103 = arith.constant 0 : index
    %c0_104 = arith.constant 0 : index
    %276 = vector.load %arg5[%c0_102, %c0_103, %c0_104] : memref<1x128x384xbf16, #tpu.memory_space<vmem>>, vector<1x128x384xbf16>
    %277 = vector.shape_cast %276 : vector<1x128x384xbf16> to vector<128x384xbf16>
    %cst_105 = arith.constant dense<0.000000e+00> : vector<8x384xf32>
    %278 = tpu.matmul %275, %277, %cst_105 {dimension_numbers = #tpu.dot_dimension_numbers<[1], [0], [0], [1], [0, 0, 1, 1], [], []>} : vector<8x128xbf16>, vector<128x384xbf16>, vector<8x384xf32> -> vector<8x384xf32>
    %c0_106 = arith.constant 0 : index
    %c0_107 = arith.constant 0 : index
    %c0_108 = arith.constant 0 : index
    %279 = vector.load %arg7[%c0_106, %c0_107, %c0_108] : memref<1x1x384xf32, #tpu.memory_space<vmem>>, vector<1x1x384xf32>
    %280 = vector.shape_cast %279 : vector<1x1x384xf32> to vector<1x384xf32>
    %281 = vector.broadcast %280 : vector<1x384xf32> to vector<8x384xf32>
    %282 = arith.addf %278, %281 : vector<8x384xf32>
    %283 = vector.extract_strided_slice %274 {offsets = [0, 0], sizes = [8, 128], strides = [1, 1]} : vector<8x384xf32> to vector<8x128xf32>
    %284 = vector.extract_strided_slice %282 {offsets = [0, 0], sizes = [8, 128], strides = [1, 1]} : vector<8x384xf32> to vector<8x128xf32>
    %285 = arith.addf %283, %284 : vector<8x128xf32>
    %286 = arith.negf %285 : vector<8x128xf32>
    %287 = math.exp %286 : vector<8x128xf32>
    %cst_109 = arith.constant 1.000000e+00 : f32
    %288 = vector.broadcast %cst_109 : f32 to vector<8x128xf32>
    %289 = arith.addf %288, %287 : vector<8x128xf32>
    %290 = arith.divf %288, %289 : vector<8x128xf32>
    %291 = vector.extract_strided_slice %274 {offsets = [0, 128], sizes = [8, 128], strides = [1, 1]} : vector<8x384xf32> to vector<8x128xf32>
    %292 = vector.extract_strided_slice %282 {offsets = [0, 128], sizes = [8, 128], strides = [1, 1]} : vector<8x384xf32> to vector<8x128xf32>
    %293 = arith.addf %291, %292 : vector<8x128xf32>
    %294 = arith.negf %293 : vector<8x128xf32>
    %295 = math.exp %294 : vector<8x128xf32>
    %cst_110 = arith.constant 1.000000e+00 : f32
    %296 = vector.broadcast %cst_110 : f32 to vector<8x128xf32>
    %297 = arith.addf %296, %295 : vector<8x128xf32>
    %298 = arith.divf %296, %297 : vector<8x128xf32>
    %299 = vector.extract_strided_slice %274 {offsets = [0, 256], sizes = [8, 128], strides = [1, 1]} : vector<8x384xf32> to vector<8x128xf32>
    %300 = vector.extract_strided_slice %282 {offsets = [0, 256], sizes = [8, 128], strides = [1, 1]} : vector<8x384xf32> to vector<8x128xf32>
    %301 = arith.mulf %290, %300 : vector<8x128xf32>
    %302 = arith.addf %299, %301 : vector<8x128xf32>
    %303 = math.tanh %302 : vector<8x128xf32>
    %cst_111 = arith.constant 1.000000e+00 : f32
    %304 = vector.broadcast %cst_111 : f32 to vector<8x128xf32>
    %305 = arith.subf %304, %298 : vector<8x128xf32>
    %306 = arith.mulf %305, %303 : vector<8x128xf32>
    %307 = arith.mulf %298, %227 : vector<8x128xf32>
    %308 = arith.addf %306, %307 : vector<8x128xf32>
    %309 = arith.index_cast %272 : i32 to index
    %c0_112 = arith.constant 0 : index
    %310 = vector.load %arg18[%309, %c0_112] : memref<64x384xf32, #tpu.memory_space<vmem>>, vector<8x384xf32>
    %311 = arith.truncf %263 : vector<8x128xf32> to vector<8x128xbf16>
    %c0_113 = arith.constant 0 : index
    %c0_114 = arith.constant 0 : index
    %c0_115 = arith.constant 0 : index
    %312 = vector.load %arg9[%c0_113, %c0_114, %c0_115] : memref<1x128x384xbf16, #tpu.memory_space<vmem>>, vector<1x128x384xbf16>
    %313 = vector.shape_cast %312 : vector<1x128x384xbf16> to vector<128x384xbf16>
    %cst_116 = arith.constant dense<0.000000e+00> : vector<8x384xf32>
    %314 = tpu.matmul %311, %313, %cst_116 {dimension_numbers = #tpu.dot_dimension_numbers<[1], [0], [0], [1], [0, 0, 1, 1], [], []>} : vector<8x128xbf16>, vector<128x384xbf16>, vector<8x384xf32> -> vector<8x384xf32>
    %c0_117 = arith.constant 0 : index
    %c0_118 = arith.constant 0 : index
    %c0_119 = arith.constant 0 : index
    %315 = vector.load %arg11[%c0_117, %c0_118, %c0_119] : memref<1x1x384xf32, #tpu.memory_space<vmem>>, vector<1x1x384xf32>
    %316 = vector.shape_cast %315 : vector<1x1x384xf32> to vector<1x384xf32>
    %317 = vector.broadcast %316 : vector<1x384xf32> to vector<8x384xf32>
    %318 = arith.addf %314, %317 : vector<8x384xf32>
    %319 = vector.extract_strided_slice %310 {offsets = [0, 0], sizes = [8, 128], strides = [1, 1]} : vector<8x384xf32> to vector<8x128xf32>
    %320 = vector.extract_strided_slice %318 {offsets = [0, 0], sizes = [8, 128], strides = [1, 1]} : vector<8x384xf32> to vector<8x128xf32>
    %321 = arith.addf %319, %320 : vector<8x128xf32>
    %322 = arith.negf %321 : vector<8x128xf32>
    %323 = math.exp %322 : vector<8x128xf32>
    %cst_120 = arith.constant 1.000000e+00 : f32
    %324 = vector.broadcast %cst_120 : f32 to vector<8x128xf32>
    %325 = arith.addf %324, %323 : vector<8x128xf32>
    %326 = arith.divf %324, %325 : vector<8x128xf32>
    %327 = vector.extract_strided_slice %310 {offsets = [0, 128], sizes = [8, 128], strides = [1, 1]} : vector<8x384xf32> to vector<8x128xf32>
    %328 = vector.extract_strided_slice %318 {offsets = [0, 128], sizes = [8, 128], strides = [1, 1]} : vector<8x384xf32> to vector<8x128xf32>
    %329 = arith.addf %327, %328 : vector<8x128xf32>
    %330 = arith.negf %329 : vector<8x128xf32>
    %331 = math.exp %330 : vector<8x128xf32>
    %cst_121 = arith.constant 1.000000e+00 : f32
    %332 = vector.broadcast %cst_121 : f32 to vector<8x128xf32>
    %333 = arith.addf %332, %331 : vector<8x128xf32>
    %334 = arith.divf %332, %333 : vector<8x128xf32>
    %335 = vector.extract_strided_slice %310 {offsets = [0, 256], sizes = [8, 128], strides = [1, 1]} : vector<8x384xf32> to vector<8x128xf32>
    %336 = vector.extract_strided_slice %318 {offsets = [0, 256], sizes = [8, 128], strides = [1, 1]} : vector<8x384xf32> to vector<8x128xf32>
    %337 = arith.mulf %326, %336 : vector<8x128xf32>
    %338 = arith.addf %335, %337 : vector<8x128xf32>
    %339 = math.tanh %338 : vector<8x128xf32>
    %cst_122 = arith.constant 1.000000e+00 : f32
    %340 = vector.broadcast %cst_122 : f32 to vector<8x128xf32>
    %341 = arith.subf %340, %334 : vector<8x128xf32>
    %342 = arith.mulf %341, %339 : vector<8x128xf32>
    %343 = arith.mulf %334, %263 : vector<8x128xf32>
    %344 = arith.addf %342, %343 : vector<8x128xf32>
    %345 = arith.index_cast %269 : i32 to index
    %c0_123 = arith.constant 0 : index
    %346 = vector.load %arg19[%345, %c0_123] : memref<64x128xf32, #tpu.memory_space<vmem>>, vector<8x128xf32>
    tpu.vector_store %arg19[%345, %c0_123], %308 {strides = array<i32>} : memref<64x128xf32, #tpu.memory_space<vmem>>, vector<8x128xf32>,
    %347 = arith.index_cast %272 : i32 to index
    %c0_124 = arith.constant 0 : index
    %348 = vector.load %arg20[%347, %c0_124] : memref<64x128xf32, #tpu.memory_space<vmem>>, vector<8x128xf32>
    tpu.vector_store %arg20[%347, %c0_124], %344 {strides = array<i32>} : memref<64x128xf32, #tpu.memory_space<vmem>>, vector<8x128xf32>,
    %c4_i32 = arith.constant 4 : i32
    %c8_i32_125 = arith.constant 8 : i32
    %349 = arith.muli %c4_i32, %c8_i32_125 : i32
    %350 = tpu.assume_multiple %349, 8 : i32
    %c7_i32_126 = arith.constant 7 : i32
    %351 = arith.subi %c7_i32_126, %c4_i32 : i32
    %c8_i32_127 = arith.constant 8 : i32
    %352 = arith.muli %351, %c8_i32_127 : i32
    %353 = tpu.assume_multiple %352, 8 : i32
    %354 = arith.index_cast %350 : i32 to index
    %c0_128 = arith.constant 0 : index
    %355 = vector.load %arg17[%354, %c0_128] : memref<64x384xf32, #tpu.memory_space<vmem>>, vector<8x384xf32>
    %356 = arith.truncf %308 : vector<8x128xf32> to vector<8x128xbf16>
    %c0_129 = arith.constant 0 : index
    %c0_130 = arith.constant 0 : index
    %c0_131 = arith.constant 0 : index
    %357 = vector.load %arg5[%c0_129, %c0_130, %c0_131] : memref<1x128x384xbf16, #tpu.memory_space<vmem>>, vector<1x128x384xbf16>
    %358 = vector.shape_cast %357 : vector<1x128x384xbf16> to vector<128x384xbf16>
    %cst_132 = arith.constant dense<0.000000e+00> : vector<8x384xf32>
    %359 = tpu.matmul %356, %358, %cst_132 {dimension_numbers = #tpu.dot_dimension_numbers<[1], [0], [0], [1], [0, 0, 1, 1], [], []>} : vector<8x128xbf16>, vector<128x384xbf16>, vector<8x384xf32> -> vector<8x384xf32>
    %c0_133 = arith.constant 0 : index
    %c0_134 = arith.constant 0 : index
    %c0_135 = arith.constant 0 : index
    %360 = vector.load %arg7[%c0_133, %c0_134, %c0_135] : memref<1x1x384xf32, #tpu.memory_space<vmem>>, vector<1x1x384xf32>
    %361 = vector.shape_cast %360 : vector<1x1x384xf32> to vector<1x384xf32>
    %362 = vector.broadcast %361 : vector<1x384xf32> to vector<8x384xf32>
    %363 = arith.addf %359, %362 : vector<8x384xf32>
    %364 = vector.extract_strided_slice %355 {offsets = [0, 0], sizes = [8, 128], strides = [1, 1]} : vector<8x384xf32> to vector<8x128xf32>
    %365 = vector.extract_strided_slice %363 {offsets = [0, 0], sizes = [8, 128], strides = [1, 1]} : vector<8x384xf32> to vector<8x128xf32>
    %366 = arith.addf %364, %365 : vector<8x128xf32>
    %367 = arith.negf %366 : vector<8x128xf32>
    %368 = math.exp %367 : vector<8x128xf32>
    %cst_136 = arith.constant 1.000000e+00 : f32
    %369 = vector.broadcast %cst_136 : f32 to vector<8x128xf32>
    %370 = arith.addf %369, %368 : vector<8x128xf32>
    %371 = arith.divf %369, %370 : vector<8x128xf32>
    %372 = vector.extract_strided_slice %355 {offsets = [0, 128], sizes = [8, 128], strides = [1, 1]} : vector<8x384xf32> to vector<8x128xf32>
    %373 = vector.extract_strided_slice %363 {offsets = [0, 128], sizes = [8, 128], strides = [1, 1]} : vector<8x384xf32> to vector<8x128xf32>
    %374 = arith.addf %372, %373 : vector<8x128xf32>
    %375 = arith.negf %374 : vector<8x128xf32>
    %376 = math.exp %375 : vector<8x128xf32>
    %cst_137 = arith.constant 1.000000e+00 : f32
    %377 = vector.broadcast %cst_137 : f32 to vector<8x128xf32>
    %378 = arith.addf %377, %376 : vector<8x128xf32>
    %379 = arith.divf %377, %378 : vector<8x128xf32>
    %380 = vector.extract_strided_slice %355 {offsets = [0, 256], sizes = [8, 128], strides = [1, 1]} : vector<8x384xf32> to vector<8x128xf32>
    %381 = vector.extract_strided_slice %363 {offsets = [0, 256], sizes = [8, 128], strides = [1, 1]} : vector<8x384xf32> to vector<8x128xf32>
    %382 = arith.mulf %371, %381 : vector<8x128xf32>
    %383 = arith.addf %380, %382 : vector<8x128xf32>
    %384 = math.tanh %383 : vector<8x128xf32>
    %cst_138 = arith.constant 1.000000e+00 : f32
    %385 = vector.broadcast %cst_138 : f32 to vector<8x128xf32>
    %386 = arith.subf %385, %379 : vector<8x128xf32>
    %387 = arith.mulf %386, %384 : vector<8x128xf32>
    %388 = arith.mulf %379, %308 : vector<8x128xf32>
    %389 = arith.addf %387, %388 : vector<8x128xf32>
    %390 = arith.index_cast %353 : i32 to index
    %c0_139 = arith.constant 0 : index
    %391 = vector.load %arg18[%390, %c0_139] : memref<64x384xf32, #tpu.memory_space<vmem>>, vector<8x384xf32>
    %392 = arith.truncf %344 : vector<8x128xf32> to vector<8x128xbf16>
    %c0_140 = arith.constant 0 : index
    %c0_141 = arith.constant 0 : index
    %c0_142 = arith.constant 0 : index
    %393 = vector.load %arg9[%c0_140, %c0_141, %c0_142] : memref<1x128x384xbf16, #tpu.memory_space<vmem>>, vector<1x128x384xbf16>
    %394 = vector.shape_cast %393 : vector<1x128x384xbf16> to vector<128x384xbf16>
    %cst_143 = arith.constant dense<0.000000e+00> : vector<8x384xf32>
    %395 = tpu.matmul %392, %394, %cst_143 {dimension_numbers = #tpu.dot_dimension_numbers<[1], [0], [0], [1], [0, 0, 1, 1], [], []>} : vector<8x128xbf16>, vector<128x384xbf16>, vector<8x384xf32> -> vector<8x384xf32>
    %c0_144 = arith.constant 0 : index
    %c0_145 = arith.constant 0 : index
    %c0_146 = arith.constant 0 : index
    %396 = vector.load %arg11[%c0_144, %c0_145, %c0_146] : memref<1x1x384xf32, #tpu.memory_space<vmem>>, vector<1x1x384xf32>
    %397 = vector.shape_cast %396 : vector<1x1x384xf32> to vector<1x384xf32>
    %398 = vector.broadcast %397 : vector<1x384xf32> to vector<8x384xf32>
    %399 = arith.addf %395, %398 : vector<8x384xf32>
    %400 = vector.extract_strided_slice %391 {offsets = [0, 0], sizes = [8, 128], strides = [1, 1]} : vector<8x384xf32> to vector<8x128xf32>
    %401 = vector.extract_strided_slice %399 {offsets = [0, 0], sizes = [8, 128], strides = [1, 1]} : vector<8x384xf32> to vector<8x128xf32>
    %402 = arith.addf %400, %401 : vector<8x128xf32>
    %403 = arith.negf %402 : vector<8x128xf32>
    %404 = math.exp %403 : vector<8x128xf32>
    %cst_147 = arith.constant 1.000000e+00 : f32
    %405 = vector.broadcast %cst_147 : f32 to vector<8x128xf32>
    %406 = arith.addf %405, %404 : vector<8x128xf32>
    %407 = arith.divf %405, %406 : vector<8x128xf32>
    %408 = vector.extract_strided_slice %391 {offsets = [0, 128], sizes = [8, 128], strides = [1, 1]} : vector<8x384xf32> to vector<8x128xf32>
    %409 = vector.extract_strided_slice %399 {offsets = [0, 128], sizes = [8, 128], strides = [1, 1]} : vector<8x384xf32> to vector<8x128xf32>
    %410 = arith.addf %408, %409 : vector<8x128xf32>
    %411 = arith.negf %410 : vector<8x128xf32>
    %412 = math.exp %411 : vector<8x128xf32>
    %cst_148 = arith.constant 1.000000e+00 : f32
    %413 = vector.broadcast %cst_148 : f32 to vector<8x128xf32>
    %414 = arith.addf %413, %412 : vector<8x128xf32>
    %415 = arith.divf %413, %414 : vector<8x128xf32>
    %416 = vector.extract_strided_slice %391 {offsets = [0, 256], sizes = [8, 128], strides = [1, 1]} : vector<8x384xf32> to vector<8x128xf32>
    %417 = vector.extract_strided_slice %399 {offsets = [0, 256], sizes = [8, 128], strides = [1, 1]} : vector<8x384xf32> to vector<8x128xf32>
    %418 = arith.mulf %407, %417 : vector<8x128xf32>
    %419 = arith.addf %416, %418 : vector<8x128xf32>
    %420 = math.tanh %419 : vector<8x128xf32>
    %cst_149 = arith.constant 1.000000e+00 : f32
    %421 = vector.broadcast %cst_149 : f32 to vector<8x128xf32>
    %422 = arith.subf %421, %415 : vector<8x128xf32>
    %423 = arith.mulf %422, %420 : vector<8x128xf32>
    %424 = arith.mulf %415, %344 : vector<8x128xf32>
    %425 = arith.addf %423, %424 : vector<8x128xf32>
    %426 = arith.index_cast %350 : i32 to index
    %c0_150 = arith.constant 0 : index
    %427 = vector.load %arg19[%426, %c0_150] : memref<64x128xf32, #tpu.memory_space<vmem>>, vector<8x128xf32>
    tpu.vector_store %arg19[%426, %c0_150], %389 {strides = array<i32>} : memref<64x128xf32, #tpu.memory_space<vmem>>, vector<8x128xf32>,
    %428 = arith.index_cast %353 : i32 to index
    %c0_151 = arith.constant 0 : index
    %429 = vector.load %arg20[%428, %c0_151] : memref<64x128xf32, #tpu.memory_space<vmem>>, vector<8x128xf32>
    tpu.vector_store %arg20[%428, %c0_151], %425 {strides = array<i32>} : memref<64x128xf32, #tpu.memory_space<vmem>>, vector<8x128xf32>,
    %c5_i32 = arith.constant 5 : i32
    %c8_i32_152 = arith.constant 8 : i32
    %430 = arith.muli %c5_i32, %c8_i32_152 : i32
    %431 = tpu.assume_multiple %430, 8 : i32
    %c7_i32_153 = arith.constant 7 : i32
    %432 = arith.subi %c7_i32_153, %c5_i32 : i32
    %c8_i32_154 = arith.constant 8 : i32
    %433 = arith.muli %432, %c8_i32_154 : i32
    %434 = tpu.assume_multiple %433, 8 : i32
    %435 = arith.index_cast %431 : i32 to index
    %c0_155 = arith.constant 0 : index
    %436 = vector.load %arg17[%435, %c0_155] : memref<64x384xf32, #tpu.memory_space<vmem>>, vector<8x384xf32>
    %437 = arith.truncf %389 : vector<8x128xf32> to vector<8x128xbf16>
    %c0_156 = arith.constant 0 : index
    %c0_157 = arith.constant 0 : index
    %c0_158 = arith.constant 0 : index
    %438 = vector.load %arg5[%c0_156, %c0_157, %c0_158] : memref<1x128x384xbf16, #tpu.memory_space<vmem>>, vector<1x128x384xbf16>
    %439 = vector.shape_cast %438 : vector<1x128x384xbf16> to vector<128x384xbf16>
    %cst_159 = arith.constant dense<0.000000e+00> : vector<8x384xf32>
    %440 = tpu.matmul %437, %439, %cst_159 {dimension_numbers = #tpu.dot_dimension_numbers<[1], [0], [0], [1], [0, 0, 1, 1], [], []>} : vector<8x128xbf16>, vector<128x384xbf16>, vector<8x384xf32> -> vector<8x384xf32>
    %c0_160 = arith.constant 0 : index
    %c0_161 = arith.constant 0 : index
    %c0_162 = arith.constant 0 : index
    %441 = vector.load %arg7[%c0_160, %c0_161, %c0_162] : memref<1x1x384xf32, #tpu.memory_space<vmem>>, vector<1x1x384xf32>
    %442 = vector.shape_cast %441 : vector<1x1x384xf32> to vector<1x384xf32>
    %443 = vector.broadcast %442 : vector<1x384xf32> to vector<8x384xf32>
    %444 = arith.addf %440, %443 : vector<8x384xf32>
    %445 = vector.extract_strided_slice %436 {offsets = [0, 0], sizes = [8, 128], strides = [1, 1]} : vector<8x384xf32> to vector<8x128xf32>
    %446 = vector.extract_strided_slice %444 {offsets = [0, 0], sizes = [8, 128], strides = [1, 1]} : vector<8x384xf32> to vector<8x128xf32>
    %447 = arith.addf %445, %446 : vector<8x128xf32>
    %448 = arith.negf %447 : vector<8x128xf32>
    %449 = math.exp %448 : vector<8x128xf32>
    %cst_163 = arith.constant 1.000000e+00 : f32
    %450 = vector.broadcast %cst_163 : f32 to vector<8x128xf32>
    %451 = arith.addf %450, %449 : vector<8x128xf32>
    %452 = arith.divf %450, %451 : vector<8x128xf32>
    %453 = vector.extract_strided_slice %436 {offsets = [0, 128], sizes = [8, 128], strides = [1, 1]} : vector<8x384xf32> to vector<8x128xf32>
    %454 = vector.extract_strided_slice %444 {offsets = [0, 128], sizes = [8, 128], strides = [1, 1]} : vector<8x384xf32> to vector<8x128xf32>
    %455 = arith.addf %453, %454 : vector<8x128xf32>
    %456 = arith.negf %455 : vector<8x128xf32>
    %457 = math.exp %456 : vector<8x128xf32>
    %cst_164 = arith.constant 1.000000e+00 : f32
    %458 = vector.broadcast %cst_164 : f32 to vector<8x128xf32>
    %459 = arith.addf %458, %457 : vector<8x128xf32>
    %460 = arith.divf %458, %459 : vector<8x128xf32>
    %461 = vector.extract_strided_slice %436 {offsets = [0, 256], sizes = [8, 128], strides = [1, 1]} : vector<8x384xf32> to vector<8x128xf32>
    %462 = vector.extract_strided_slice %444 {offsets = [0, 256], sizes = [8, 128], strides = [1, 1]} : vector<8x384xf32> to vector<8x128xf32>
    %463 = arith.mulf %452, %462 : vector<8x128xf32>
    %464 = arith.addf %461, %463 : vector<8x128xf32>
    %465 = math.tanh %464 : vector<8x128xf32>
    %cst_165 = arith.constant 1.000000e+00 : f32
    %466 = vector.broadcast %cst_165 : f32 to vector<8x128xf32>
    %467 = arith.subf %466, %460 : vector<8x128xf32>
    %468 = arith.mulf %467, %465 : vector<8x128xf32>
    %469 = arith.mulf %460, %389 : vector<8x128xf32>
    %470 = arith.addf %468, %469 : vector<8x128xf32>
    %471 = arith.index_cast %434 : i32 to index
    %c0_166 = arith.constant 0 : index
    %472 = vector.load %arg18[%471, %c0_166] : memref<64x384xf32, #tpu.memory_space<vmem>>, vector<8x384xf32>
    %473 = arith.truncf %425 : vector<8x128xf32> to vector<8x128xbf16>
    %c0_167 = arith.constant 0 : index
    %c0_168 = arith.constant 0 : index
    %c0_169 = arith.constant 0 : index
    %474 = vector.load %arg9[%c0_167, %c0_168, %c0_169] : memref<1x128x384xbf16, #tpu.memory_space<vmem>>, vector<1x128x384xbf16>
    %475 = vector.shape_cast %474 : vector<1x128x384xbf16> to vector<128x384xbf16>
    %cst_170 = arith.constant dense<0.000000e+00> : vector<8x384xf32>
    %476 = tpu.matmul %473, %475, %cst_170 {dimension_numbers = #tpu.dot_dimension_numbers<[1], [0], [0], [1], [0, 0, 1, 1], [], []>} : vector<8x128xbf16>, vector<128x384xbf16>, vector<8x384xf32> -> vector<8x384xf32>
    %c0_171 = arith.constant 0 : index
    %c0_172 = arith.constant 0 : index
    %c0_173 = arith.constant 0 : index
    %477 = vector.load %arg11[%c0_171, %c0_172, %c0_173] : memref<1x1x384xf32, #tpu.memory_space<vmem>>, vector<1x1x384xf32>
    %478 = vector.shape_cast %477 : vector<1x1x384xf32> to vector<1x384xf32>
    %479 = vector.broadcast %478 : vector<1x384xf32> to vector<8x384xf32>
    %480 = arith.addf %476, %479 : vector<8x384xf32>
    %481 = vector.extract_strided_slice %472 {offsets = [0, 0], sizes = [8, 128], strides = [1, 1]} : vector<8x384xf32> to vector<8x128xf32>
    %482 = vector.extract_strided_slice %480 {offsets = [0, 0], sizes = [8, 128], strides = [1, 1]} : vector<8x384xf32> to vector<8x128xf32>
    %483 = arith.addf %481, %482 : vector<8x128xf32>
    %484 = arith.negf %483 : vector<8x128xf32>
    %485 = math.exp %484 : vector<8x128xf32>
    %cst_174 = arith.constant 1.000000e+00 : f32
    %486 = vector.broadcast %cst_174 : f32 to vector<8x128xf32>
    %487 = arith.addf %486, %485 : vector<8x128xf32>
    %488 = arith.divf %486, %487 : vector<8x128xf32>
    %489 = vector.extract_strided_slice %472 {offsets = [0, 128], sizes = [8, 128], strides = [1, 1]} : vector<8x384xf32> to vector<8x128xf32>
    %490 = vector.extract_strided_slice %480 {offsets = [0, 128], sizes = [8, 128], strides = [1, 1]} : vector<8x384xf32> to vector<8x128xf32>
    %491 = arith.addf %489, %490 : vector<8x128xf32>
    %492 = arith.negf %491 : vector<8x128xf32>
    %493 = math.exp %492 : vector<8x128xf32>
    %cst_175 = arith.constant 1.000000e+00 : f32
    %494 = vector.broadcast %cst_175 : f32 to vector<8x128xf32>
    %495 = arith.addf %494, %493 : vector<8x128xf32>
    %496 = arith.divf %494, %495 : vector<8x128xf32>
    %497 = vector.extract_strided_slice %472 {offsets = [0, 256], sizes = [8, 128], strides = [1, 1]} : vector<8x384xf32> to vector<8x128xf32>
    %498 = vector.extract_strided_slice %480 {offsets = [0, 256], sizes = [8, 128], strides = [1, 1]} : vector<8x384xf32> to vector<8x128xf32>
    %499 = arith.mulf %488, %498 : vector<8x128xf32>
    %500 = arith.addf %497, %499 : vector<8x128xf32>
    %501 = math.tanh %500 : vector<8x128xf32>
    %cst_176 = arith.constant 1.000000e+00 : f32
    %502 = vector.broadcast %cst_176 : f32 to vector<8x128xf32>
    %503 = arith.subf %502, %496 : vector<8x128xf32>
    %504 = arith.mulf %503, %501 : vector<8x128xf32>
    %505 = arith.mulf %496, %425 : vector<8x128xf32>
    %506 = arith.addf %504, %505 : vector<8x128xf32>
    %507 = arith.index_cast %431 : i32 to index
    %c0_177 = arith.constant 0 : index
    %508 = vector.load %arg19[%507, %c0_177] : memref<64x128xf32, #tpu.memory_space<vmem>>, vector<8x128xf32>
    tpu.vector_store %arg19[%507, %c0_177], %470 {strides = array<i32>} : memref<64x128xf32, #tpu.memory_space<vmem>>, vector<8x128xf32>,
    %509 = arith.index_cast %434 : i32 to index
    %c0_178 = arith.constant 0 : index
    %510 = vector.load %arg20[%509, %c0_178] : memref<64x128xf32, #tpu.memory_space<vmem>>, vector<8x128xf32>
    tpu.vector_store %arg20[%509, %c0_178], %506 {strides = array<i32>} : memref<64x128xf32, #tpu.memory_space<vmem>>, vector<8x128xf32>,
    %c6_i32 = arith.constant 6 : i32
    %c8_i32_179 = arith.constant 8 : i32
    %511 = arith.muli %c6_i32, %c8_i32_179 : i32
    %512 = tpu.assume_multiple %511, 8 : i32
    %c7_i32_180 = arith.constant 7 : i32
    %513 = arith.subi %c7_i32_180, %c6_i32 : i32
    %c8_i32_181 = arith.constant 8 : i32
    %514 = arith.muli %513, %c8_i32_181 : i32
    %515 = tpu.assume_multiple %514, 8 : i32
    %516 = arith.index_cast %512 : i32 to index
    %c0_182 = arith.constant 0 : index
    %517 = vector.load %arg17[%516, %c0_182] : memref<64x384xf32, #tpu.memory_space<vmem>>, vector<8x384xf32>
    %518 = arith.truncf %470 : vector<8x128xf32> to vector<8x128xbf16>
    %c0_183 = arith.constant 0 : index
    %c0_184 = arith.constant 0 : index
    %c0_185 = arith.constant 0 : index
    %519 = vector.load %arg5[%c0_183, %c0_184, %c0_185] : memref<1x128x384xbf16, #tpu.memory_space<vmem>>, vector<1x128x384xbf16>
    %520 = vector.shape_cast %519 : vector<1x128x384xbf16> to vector<128x384xbf16>
    %cst_186 = arith.constant dense<0.000000e+00> : vector<8x384xf32>
    %521 = tpu.matmul %518, %520, %cst_186 {dimension_numbers = #tpu.dot_dimension_numbers<[1], [0], [0], [1], [0, 0, 1, 1], [], []>} : vector<8x128xbf16>, vector<128x384xbf16>, vector<8x384xf32> -> vector<8x384xf32>
    %c0_187 = arith.constant 0 : index
    %c0_188 = arith.constant 0 : index
    %c0_189 = arith.constant 0 : index
    %522 = vector.load %arg7[%c0_187, %c0_188, %c0_189] : memref<1x1x384xf32, #tpu.memory_space<vmem>>, vector<1x1x384xf32>
    %523 = vector.shape_cast %522 : vector<1x1x384xf32> to vector<1x384xf32>
    %524 = vector.broadcast %523 : vector<1x384xf32> to vector<8x384xf32>
    %525 = arith.addf %521, %524 : vector<8x384xf32>
    %526 = vector.extract_strided_slice %517 {offsets = [0, 0], sizes = [8, 128], strides = [1, 1]} : vector<8x384xf32> to vector<8x128xf32>
    %527 = vector.extract_strided_slice %525 {offsets = [0, 0], sizes = [8, 128], strides = [1, 1]} : vector<8x384xf32> to vector<8x128xf32>
    %528 = arith.addf %526, %527 : vector<8x128xf32>
    %529 = arith.negf %528 : vector<8x128xf32>
    %530 = math.exp %529 : vector<8x128xf32>
    %cst_190 = arith.constant 1.000000e+00 : f32
    %531 = vector.broadcast %cst_190 : f32 to vector<8x128xf32>
    %532 = arith.addf %531, %530 : vector<8x128xf32>
    %533 = arith.divf %531, %532 : vector<8x128xf32>
    %534 = vector.extract_strided_slice %517 {offsets = [0, 128], sizes = [8, 128], strides = [1, 1]} : vector<8x384xf32> to vector<8x128xf32>
    %535 = vector.extract_strided_slice %525 {offsets = [0, 128], sizes = [8, 128], strides = [1, 1]} : vector<8x384xf32> to vector<8x128xf32>
    %536 = arith.addf %534, %535 : vector<8x128xf32>
    %537 = arith.negf %536 : vector<8x128xf32>
    %538 = math.exp %537 : vector<8x128xf32>
    %cst_191 = arith.constant 1.000000e+00 : f32
    %539 = vector.broadcast %cst_191 : f32 to vector<8x128xf32>
    %540 = arith.addf %539, %538 : vector<8x128xf32>
    %541 = arith.divf %539, %540 : vector<8x128xf32>
    %542 = vector.extract_strided_slice %517 {offsets = [0, 256], sizes = [8, 128], strides = [1, 1]} : vector<8x384xf32> to vector<8x128xf32>
    %543 = vector.extract_strided_slice %525 {offsets = [0, 256], sizes = [8, 128], strides = [1, 1]} : vector<8x384xf32> to vector<8x128xf32>
    %544 = arith.mulf %533, %543 : vector<8x128xf32>
    %545 = arith.addf %542, %544 : vector<8x128xf32>
    %546 = math.tanh %545 : vector<8x128xf32>
    %cst_192 = arith.constant 1.000000e+00 : f32
    %547 = vector.broadcast %cst_192 : f32 to vector<8x128xf32>
    %548 = arith.subf %547, %541 : vector<8x128xf32>
    %549 = arith.mulf %548, %546 : vector<8x128xf32>
    %550 = arith.mulf %541, %470 : vector<8x128xf32>
    %551 = arith.addf %549, %550 : vector<8x128xf32>
    %552 = arith.index_cast %515 : i32 to index
    %c0_193 = arith.constant 0 : index
    %553 = vector.load %arg18[%552, %c0_193] : memref<64x384xf32, #tpu.memory_space<vmem>>, vector<8x384xf32>
    %554 = arith.truncf %506 : vector<8x128xf32> to vector<8x128xbf16>
    %c0_194 = arith.constant 0 : index
    %c0_195 = arith.constant 0 : index
    %c0_196 = arith.constant 0 : index
    %555 = vector.load %arg9[%c0_194, %c0_195, %c0_196] : memref<1x128x384xbf16, #tpu.memory_space<vmem>>, vector<1x128x384xbf16>
    %556 = vector.shape_cast %555 : vector<1x128x384xbf16> to vector<128x384xbf16>
    %cst_197 = arith.constant dense<0.000000e+00> : vector<8x384xf32>
    %557 = tpu.matmul %554, %556, %cst_197 {dimension_numbers = #tpu.dot_dimension_numbers<[1], [0], [0], [1], [0, 0, 1, 1], [], []>} : vector<8x128xbf16>, vector<128x384xbf16>, vector<8x384xf32> -> vector<8x384xf32>
    %c0_198 = arith.constant 0 : index
    %c0_199 = arith.constant 0 : index
    %c0_200 = arith.constant 0 : index
    %558 = vector.load %arg11[%c0_198, %c0_199, %c0_200] : memref<1x1x384xf32, #tpu.memory_space<vmem>>, vector<1x1x384xf32>
    %559 = vector.shape_cast %558 : vector<1x1x384xf32> to vector<1x384xf32>
    %560 = vector.broadcast %559 : vector<1x384xf32> to vector<8x384xf32>
    %561 = arith.addf %557, %560 : vector<8x384xf32>
    %562 = vector.extract_strided_slice %553 {offsets = [0, 0], sizes = [8, 128], strides = [1, 1]} : vector<8x384xf32> to vector<8x128xf32>
    %563 = vector.extract_strided_slice %561 {offsets = [0, 0], sizes = [8, 128], strides = [1, 1]} : vector<8x384xf32> to vector<8x128xf32>
    %564 = arith.addf %562, %563 : vector<8x128xf32>
    %565 = arith.negf %564 : vector<8x128xf32>
    %566 = math.exp %565 : vector<8x128xf32>
    %cst_201 = arith.constant 1.000000e+00 : f32
    %567 = vector.broadcast %cst_201 : f32 to vector<8x128xf32>
    %568 = arith.addf %567, %566 : vector<8x128xf32>
    %569 = arith.divf %567, %568 : vector<8x128xf32>
    %570 = vector.extract_strided_slice %553 {offsets = [0, 128], sizes = [8, 128], strides = [1, 1]} : vector<8x384xf32> to vector<8x128xf32>
    %571 = vector.extract_strided_slice %561 {offsets = [0, 128], sizes = [8, 128], strides = [1, 1]} : vector<8x384xf32> to vector<8x128xf32>
    %572 = arith.addf %570, %571 : vector<8x128xf32>
    %573 = arith.negf %572 : vector<8x128xf32>
    %574 = math.exp %573 : vector<8x128xf32>
    %cst_202 = arith.constant 1.000000e+00 : f32
    %575 = vector.broadcast %cst_202 : f32 to vector<8x128xf32>
    %576 = arith.addf %575, %574 : vector<8x128xf32>
    %577 = arith.divf %575, %576 : vector<8x128xf32>
    %578 = vector.extract_strided_slice %553 {offsets = [0, 256], sizes = [8, 128], strides = [1, 1]} : vector<8x384xf32> to vector<8x128xf32>
    %579 = vector.extract_strided_slice %561 {offsets = [0, 256], sizes = [8, 128], strides = [1, 1]} : vector<8x384xf32> to vector<8x128xf32>
    %580 = arith.mulf %569, %579 : vector<8x128xf32>
    %581 = arith.addf %578, %580 : vector<8x128xf32>
    %582 = math.tanh %581 : vector<8x128xf32>
    %cst_203 = arith.constant 1.000000e+00 : f32
    %583 = vector.broadcast %cst_203 : f32 to vector<8x128xf32>
    %584 = arith.subf %583, %577 : vector<8x128xf32>
    %585 = arith.mulf %584, %582 : vector<8x128xf32>
    %586 = arith.mulf %577, %506 : vector<8x128xf32>
    %587 = arith.addf %585, %586 : vector<8x128xf32>
    %588 = arith.index_cast %512 : i32 to index
    %c0_204 = arith.constant 0 : index
    %589 = vector.load %arg19[%588, %c0_204] : memref<64x128xf32, #tpu.memory_space<vmem>>, vector<8x128xf32>
    tpu.vector_store %arg19[%588, %c0_204], %551 {strides = array<i32>} : memref<64x128xf32, #tpu.memory_space<vmem>>, vector<8x128xf32>,
    %590 = arith.index_cast %515 : i32 to index
    %c0_205 = arith.constant 0 : index
    %591 = vector.load %arg20[%590, %c0_205] : memref<64x128xf32, #tpu.memory_space<vmem>>, vector<8x128xf32>
    tpu.vector_store %arg20[%590, %c0_205], %587 {strides = array<i32>} : memref<64x128xf32, #tpu.memory_space<vmem>>, vector<8x128xf32>,
    %c7_i32_206 = arith.constant 7 : i32
    %c8_i32_207 = arith.constant 8 : i32
    %592 = arith.muli %c7_i32_206, %c8_i32_207 : i32
    %593 = tpu.assume_multiple %592, 8 : i32
    %c7_i32_208 = arith.constant 7 : i32
    %594 = arith.subi %c7_i32_208, %c7_i32_206 : i32
    %c8_i32_209 = arith.constant 8 : i32
    %595 = arith.muli %594, %c8_i32_209 : i32
    %596 = tpu.assume_multiple %595, 8 : i32
    %597 = arith.index_cast %593 : i32 to index
    %c0_210 = arith.constant 0 : index
    %598 = vector.load %arg17[%597, %c0_210] : memref<64x384xf32, #tpu.memory_space<vmem>>, vector<8x384xf32>
    %599 = arith.truncf %551 : vector<8x128xf32> to vector<8x128xbf16>
    %c0_211 = arith.constant 0 : index
    %c0_212 = arith.constant 0 : index
    %c0_213 = arith.constant 0 : index
    %600 = vector.load %arg5[%c0_211, %c0_212, %c0_213] : memref<1x128x384xbf16, #tpu.memory_space<vmem>>, vector<1x128x384xbf16>
    %601 = vector.shape_cast %600 : vector<1x128x384xbf16> to vector<128x384xbf16>
    %cst_214 = arith.constant dense<0.000000e+00> : vector<8x384xf32>
    %602 = tpu.matmul %599, %601, %cst_214 {dimension_numbers = #tpu.dot_dimension_numbers<[1], [0], [0], [1], [0, 0, 1, 1], [], []>} : vector<8x128xbf16>, vector<128x384xbf16>, vector<8x384xf32> -> vector<8x384xf32>
    %c0_215 = arith.constant 0 : index
    %c0_216 = arith.constant 0 : index
    %c0_217 = arith.constant 0 : index
    %603 = vector.load %arg7[%c0_215, %c0_216, %c0_217] : memref<1x1x384xf32, #tpu.memory_space<vmem>>, vector<1x1x384xf32>
    %604 = vector.shape_cast %603 : vector<1x1x384xf32> to vector<1x384xf32>
    %605 = vector.broadcast %604 : vector<1x384xf32> to vector<8x384xf32>
    %606 = arith.addf %602, %605 : vector<8x384xf32>
    %607 = vector.extract_strided_slice %598 {offsets = [0, 0], sizes = [8, 128], strides = [1, 1]} : vector<8x384xf32> to vector<8x128xf32>
    %608 = vector.extract_strided_slice %606 {offsets = [0, 0], sizes = [8, 128], strides = [1, 1]} : vector<8x384xf32> to vector<8x128xf32>
    %609 = arith.addf %607, %608 : vector<8x128xf32>
    %610 = arith.negf %609 : vector<8x128xf32>
    %611 = math.exp %610 : vector<8x128xf32>
    %cst_218 = arith.constant 1.000000e+00 : f32
    %612 = vector.broadcast %cst_218 : f32 to vector<8x128xf32>
    %613 = arith.addf %612, %611 : vector<8x128xf32>
    %614 = arith.divf %612, %613 : vector<8x128xf32>
    %615 = vector.extract_strided_slice %598 {offsets = [0, 128], sizes = [8, 128], strides = [1, 1]} : vector<8x384xf32> to vector<8x128xf32>
    %616 = vector.extract_strided_slice %606 {offsets = [0, 128], sizes = [8, 128], strides = [1, 1]} : vector<8x384xf32> to vector<8x128xf32>
    %617 = arith.addf %615, %616 : vector<8x128xf32>
    %618 = arith.negf %617 : vector<8x128xf32>
    %619 = math.exp %618 : vector<8x128xf32>
    %cst_219 = arith.constant 1.000000e+00 : f32
    %620 = vector.broadcast %cst_219 : f32 to vector<8x128xf32>
    %621 = arith.addf %620, %619 : vector<8x128xf32>
    %622 = arith.divf %620, %621 : vector<8x128xf32>
    %623 = vector.extract_strided_slice %598 {offsets = [0, 256], sizes = [8, 128], strides = [1, 1]} : vector<8x384xf32> to vector<8x128xf32>
    %624 = vector.extract_strided_slice %606 {offsets = [0, 256], sizes = [8, 128], strides = [1, 1]} : vector<8x384xf32> to vector<8x128xf32>
    %625 = arith.mulf %614, %624 : vector<8x128xf32>
    %626 = arith.addf %623, %625 : vector<8x128xf32>
    %627 = math.tanh %626 : vector<8x128xf32>
    %cst_220 = arith.constant 1.000000e+00 : f32
    %628 = vector.broadcast %cst_220 : f32 to vector<8x128xf32>
    %629 = arith.subf %628, %622 : vector<8x128xf32>
    %630 = arith.mulf %629, %627 : vector<8x128xf32>
    %631 = arith.mulf %622, %551 : vector<8x128xf32>
    %632 = arith.addf %630, %631 : vector<8x128xf32>
    %633 = arith.index_cast %596 : i32 to index
    %c0_221 = arith.constant 0 : index
    %634 = vector.load %arg18[%633, %c0_221] : memref<64x384xf32, #tpu.memory_space<vmem>>, vector<8x384xf32>
    %635 = arith.truncf %587 : vector<8x128xf32> to vector<8x128xbf16>
    %c0_222 = arith.constant 0 : index
    %c0_223 = arith.constant 0 : index
    %c0_224 = arith.constant 0 : index
    %636 = vector.load %arg9[%c0_222, %c0_223, %c0_224] : memref<1x128x384xbf16, #tpu.memory_space<vmem>>, vector<1x128x384xbf16>
    %637 = vector.shape_cast %636 : vector<1x128x384xbf16> to vector<128x384xbf16>
    %cst_225 = arith.constant dense<0.000000e+00> : vector<8x384xf32>
    %638 = tpu.matmul %635, %637, %cst_225 {dimension_numbers = #tpu.dot_dimension_numbers<[1], [0], [0], [1], [0, 0, 1, 1], [], []>} : vector<8x128xbf16>, vector<128x384xbf16>, vector<8x384xf32> -> vector<8x384xf32>
    %c0_226 = arith.constant 0 : index
    %c0_227 = arith.constant 0 : index
    %c0_228 = arith.constant 0 : index
    %639 = vector.load %arg11[%c0_226, %c0_227, %c0_228] : memref<1x1x384xf32, #tpu.memory_space<vmem>>, vector<1x1x384xf32>
    %640 = vector.shape_cast %639 : vector<1x1x384xf32> to vector<1x384xf32>
    %641 = vector.broadcast %640 : vector<1x384xf32> to vector<8x384xf32>
    %642 = arith.addf %638, %641 : vector<8x384xf32>
    %643 = vector.extract_strided_slice %634 {offsets = [0, 0], sizes = [8, 128], strides = [1, 1]} : vector<8x384xf32> to vector<8x128xf32>
    %644 = vector.extract_strided_slice %642 {offsets = [0, 0], sizes = [8, 128], strides = [1, 1]} : vector<8x384xf32> to vector<8x128xf32>
    %645 = arith.addf %643, %644 : vector<8x128xf32>
    %646 = arith.negf %645 : vector<8x128xf32>
    %647 = math.exp %646 : vector<8x128xf32>
    %cst_229 = arith.constant 1.000000e+00 : f32
    %648 = vector.broadcast %cst_229 : f32 to vector<8x128xf32>
    %649 = arith.addf %648, %647 : vector<8x128xf32>
    %650 = arith.divf %648, %649 : vector<8x128xf32>
    %651 = vector.extract_strided_slice %634 {offsets = [0, 128], sizes = [8, 128], strides = [1, 1]} : vector<8x384xf32> to vector<8x128xf32>
    %652 = vector.extract_strided_slice %642 {offsets = [0, 128], sizes = [8, 128], strides = [1, 1]} : vector<8x384xf32> to vector<8x128xf32>
    %653 = arith.addf %651, %652 : vector<8x128xf32>
    %654 = arith.negf %653 : vector<8x128xf32>
    %655 = math.exp %654 : vector<8x128xf32>
    %cst_230 = arith.constant 1.000000e+00 : f32
    %656 = vector.broadcast %cst_230 : f32 to vector<8x128xf32>
    %657 = arith.addf %656, %655 : vector<8x128xf32>
    %658 = arith.divf %656, %657 : vector<8x128xf32>
    %659 = vector.extract_strided_slice %634 {offsets = [0, 256], sizes = [8, 128], strides = [1, 1]} : vector<8x384xf32> to vector<8x128xf32>
    %660 = vector.extract_strided_slice %642 {offsets = [0, 256], sizes = [8, 128], strides = [1, 1]} : vector<8x384xf32> to vector<8x128xf32>
    %661 = arith.mulf %650, %660 : vector<8x128xf32>
    %662 = arith.addf %659, %661 : vector<8x128xf32>
    %663 = math.tanh %662 : vector<8x128xf32>
    %cst_231 = arith.constant 1.000000e+00 : f32
    %664 = vector.broadcast %cst_231 : f32 to vector<8x128xf32>
    %665 = arith.subf %664, %658 : vector<8x128xf32>
    %666 = arith.mulf %665, %663 : vector<8x128xf32>
    %667 = arith.mulf %658, %587 : vector<8x128xf32>
    %668 = arith.addf %666, %667 : vector<8x128xf32>
    %669 = arith.index_cast %593 : i32 to index
    %c0_232 = arith.constant 0 : index
    %670 = vector.load %arg19[%669, %c0_232] : memref<64x128xf32, #tpu.memory_space<vmem>>, vector<8x128xf32>
    tpu.vector_store %arg19[%669, %c0_232], %632 {strides = array<i32>} : memref<64x128xf32, #tpu.memory_space<vmem>>, vector<8x128xf32>,
    %671 = arith.index_cast %596 : i32 to index
    %c0_233 = arith.constant 0 : index
    %672 = vector.load %arg20[%671, %c0_233] : memref<64x128xf32, #tpu.memory_space<vmem>>, vector<8x128xf32>
    tpu.vector_store %arg20[%671, %c0_233], %668 {strides = array<i32>} : memref<64x128xf32, #tpu.memory_space<vmem>>, vector<8x128xf32>,
    %c8_i32_234 = arith.constant 8 : i32
    %c0_235 = arith.constant 0 : index
    %c0_236 = arith.constant 0 : index
    %673 = vector.load %arg19[%c0_235, %c0_236] : memref<64x128xf32, #tpu.memory_space<vmem>>, vector<64x128xf32>
    %c0_237 = arith.constant 0 : index
    %c0_238 = arith.constant 0 : index
    %c0_239 = arith.constant 0 : index
    %674 = vector.load %arg12[%c0_237, %c0_238, %c0_239] : memref<1x128x1xf32, #tpu.memory_space<vmem>>, vector<1x128x1xf32>
    %675 = vector.shape_cast %674 : vector<1x128x1xf32> to vector<128x1xf32>
    %cst_240 = arith.constant dense<0.000000e+00> : vector<64x1xf32>
    %676 = tpu.matmul %673, %675, %cst_240 {dimension_numbers = #tpu.dot_dimension_numbers<[1], [0], [0], [1], [0, 0, 1, 1], [], []>} : vector<64x128xf32>, vector<128x1xf32>, vector<64x1xf32> -> vector<64x1xf32>
    %c0_241 = arith.constant 0 : index
    %c0_242 = arith.constant 0 : index
    %677 = vector.load %arg20[%c0_241, %c0_242] : memref<64x128xf32, #tpu.memory_space<vmem>>, vector<64x128xf32>
    %c0_243 = arith.constant 0 : index
    %c0_244 = arith.constant 0 : index
    %c0_245 = arith.constant 0 : index
    %678 = vector.load %arg13[%c0_243, %c0_244, %c0_245] : memref<1x128x1xf32, #tpu.memory_space<vmem>>, vector<1x128x1xf32>
    %679 = vector.shape_cast %678 : vector<1x128x1xf32> to vector<128x1xf32>
    %cst_246 = arith.constant dense<0.000000e+00> : vector<64x1xf32>
    %680 = tpu.matmul %677, %679, %cst_246 {dimension_numbers = #tpu.dot_dimension_numbers<[1], [0], [0], [1], [0, 0, 1, 1], [], []>} : vector<64x128xf32>, vector<128x1xf32>, vector<64x1xf32> -> vector<64x1xf32>
    %681 = arith.addf %676, %680 : vector<64x1xf32>
    %c0_247 = arith.constant 0 : index
    %c0_248 = arith.constant 0 : index
    %c0_249 = arith.constant 0 : index
    %682 = vector.load %arg14[%c0_247, %c0_248, %c0_249] : memref<1x1x1xf32, #tpu.memory_space<vmem>>, vector<1x1x1xf32>
    %683 = vector.shape_cast %682 : vector<1x1x1xf32> to vector<1x1xf32>
    %684 = vector.broadcast %683 : vector<1x1xf32> to vector<64x1xf32>
    %685 = arith.addf %681, %684 : vector<64x1xf32>
    %686 = arith.minimumf %685, %3 : vector<64x1xf32>
    %c0_250 = arith.constant 0 : index
    %c0_251 = arith.constant 0 : index
    %c0_252 = arith.constant 0 : index
    %687 = vector.load %arg15[%c0_250, %c0_251, %c0_252] : memref<1x64x1xf32, #tpu.memory_space<vmem>>, vector<1x64x1xf32>
    %688 = vector.shape_cast %687 : vector<1x64x1xf32> to vector<64x1xf32>
    %689 = vector.shape_cast %686 : vector<64x1xf32> to vector<1x64x1xf32>
    tpu.vector_store %arg15[%c0_250, %c0_251, %c0_252], %689 {strides = array<i32>} : memref<1x64x1xf32, #tpu.memory_space<vmem>>, vector<1x64x1xf32>,
    %c0_253 = arith.constant 0 : index
    %690 = memref.load %arg1[%c0_253] : memref<1xi32, #tpu.memory_space<smem>>
    %c0_i32_254 = arith.constant 0 : i32
    %691 = arith.cmpi ne, %690, %c0_i32_254 : i32
    %692 = arith.extui %691 : i1 to i32
    %c0_i32_255 = arith.constant 0 : i32
    %693 = arith.cmpi ne, %692, %c0_i32_255 : i32
    scf.if %693 {
      %698 = arith.subf %3, %686 : vector<64x1xf32>
      %c0_259 = arith.constant 0 : index
      %c0_260 = arith.constant 0 : index
      %699 = vector.load %arg16[%c0_259, %c0_260] : memref<64x1xf32, #tpu.memory_space<vmem>>, vector<64x1xf32>
      tpu.vector_store %arg16[%c0_259, %c0_260], %698 {strides = array<i32>} : memref<64x1xf32, #tpu.memory_space<vmem>>, vector<64x1xf32>,
    } else {
    }
    %c0_256 = arith.constant 0 : index
    %694 = memref.load %arg1[%c0_256] : memref<1xi32, #tpu.memory_space<smem>>
    %c0_i32_257 = arith.constant 0 : i32
    %695 = arith.cmpi eq, %694, %c0_i32_257 : i32
    %696 = arith.extui %695 : i1 to i32
    %c0_i32_258 = arith.constant 0 : i32
    %697 = arith.cmpi ne, %696, %c0_i32_258 : i32
    scf.if %697 {
      %c0_259 = arith.constant 0 : index
      %c0_260 = arith.constant 0 : index
      %c0_261 = arith.constant 0 : index
      %698 = vector.load %arg3[%c0_259, %c0_260, %c0_261] : memref<1x64x1xf32, #tpu.memory_space<vmem>>, vector<1x64x1xf32>
      %699 = vector.shape_cast %698 : vector<1x64x1xf32> to vector<64x1xf32>
      %700 = arith.subf %3, %699 : vector<64x1xf32>
      %c0_262 = arith.constant 0 : index
      %c0_263 = arith.constant 0 : index
      %701 = vector.load %arg16[%c0_262, %c0_263] : memref<64x1xf32, #tpu.memory_space<vmem>>, vector<64x1xf32>
      tpu.vector_store %arg16[%c0_262, %c0_263], %700 {strides = array<i32>} : memref<64x1xf32, #tpu.memory_space<vmem>>, vector<64x1xf32>,
    } else {
    }
    return
  }
  func.func @transform_0(%arg0: i32, %arg1: memref<1xi32, #tpu.memory_space<smem>>) -> (i32, i32) {
    %c0_i32 = arith.constant 0 : i32
    %c0_i32_0 = arith.constant 0 : i32
    %c0_i32_1 = arith.constant 0 : i32
    return %c0_i32, %c0_i32_0 : i32, i32
  }
  func.func @transform_1(%arg0: i32, %arg1: memref<1xi32, #tpu.memory_space<smem>>) -> (i32, i32, i32) {
    %c0_i32 = arith.constant 0 : i32
    %c0_i32_0 = arith.constant 0 : i32
    %c0_i32_1 = arith.constant 0 : i32
    return %arg0, %c0_i32, %c0_i32_0 : i32, i32, i32
  }
  func.func @transform_2(%arg0: i32, %arg1: memref<1xi32, #tpu.memory_space<smem>>) -> (i32, i32, i32) {
    %c0_i32 = arith.constant 0 : i32
    %c0_i32_0 = arith.constant 0 : i32
    %c0_i32_1 = arith.constant 0 : i32
    return %arg0, %c0_i32, %c0_i32_0 : i32, i32, i32
  }
  func.func @transform_3(%arg0: i32, %arg1: memref<1xi32, #tpu.memory_space<smem>>) -> (i32, i32, i32) {
    %c0_i32 = arith.constant 0 : i32
    %c0_i32_0 = arith.constant 0 : i32
    %c0_i32_1 = arith.constant 0 : i32
    return %arg0, %c0_i32, %c0_i32_0 : i32, i32, i32
  }
  func.func @transform_4(%arg0: i32, %arg1: memref<1xi32, #tpu.memory_space<smem>>) -> (i32, i32, i32) {
    %c0_i32 = arith.constant 0 : i32
    %c0_i32_0 = arith.constant 0 : i32
    %c0_i32_1 = arith.constant 0 : i32
    return %arg0, %c0_i32, %c0_i32_0 : i32, i32, i32
  }
  func.func @transform_5(%arg0: i32, %arg1: memref<1xi32, #tpu.memory_space<smem>>) -> (i32, i32, i32) {
    %c0_i32 = arith.constant 0 : i32
    %c0_i32_0 = arith.constant 0 : i32
    %c0_i32_1 = arith.constant 0 : i32
    return %arg0, %c0_i32, %c0_i32_0 : i32, i32, i32
  }
  func.func @transform_6(%arg0: i32, %arg1: memref<1xi32, #tpu.memory_space<smem>>) -> (i32, i32, i32) {
    %c0_i32 = arith.constant 0 : i32
    %c0_i32_0 = arith.constant 0 : i32
    %c0_i32_1 = arith.constant 0 : i32
    return %arg0, %c0_i32, %c0_i32_0 : i32, i32, i32
  }
  func.func @transform_7(%arg0: i32, %arg1: memref<1xi32, #tpu.memory_space<smem>>) -> (i32, i32, i32) {
    %c0_i32 = arith.constant 0 : i32
    %c0_i32_0 = arith.constant 0 : i32
    %c0_i32_1 = arith.constant 0 : i32
    return %arg0, %c0_i32, %c0_i32_0 : i32, i32, i32
  }
  func.func @transform_8(%arg0: i32, %arg1: memref<1xi32, #tpu.memory_space<smem>>) -> (i32, i32, i32) {
    %c0_i32 = arith.constant 0 : i32
    %c0_i32_0 = arith.constant 0 : i32
    %c0_i32_1 = arith.constant 0 : i32
    return %arg0, %c0_i32, %c0_i32_0 : i32, i32, i32
  }
  func.func @transform_9(%arg0: i32, %arg1: memref<1xi32, #tpu.memory_space<smem>>) -> (i32, i32, i32) {
    %c0_i32 = arith.constant 0 : i32
    %c0_i32_0 = arith.constant 0 : i32
    %c0_i32_1 = arith.constant 0 : i32
    return %arg0, %c0_i32, %c0_i32_0 : i32, i32, i32
  }
  func.func @transform_10(%arg0: i32, %arg1: memref<1xi32, #tpu.memory_space<smem>>) -> (i32, i32, i32) {
    %c0_i32 = arith.constant 0 : i32
    %c0_i32_0 = arith.constant 0 : i32
    %c0_i32_1 = arith.constant 0 : i32
    return %arg0, %c0_i32, %c0_i32_0 : i32, i32, i32
  }
  func.func @transform_11(%arg0: i32, %arg1: memref<1xi32, #tpu.memory_space<smem>>) -> (i32, i32, i32) {
    %c0_i32 = arith.constant 0 : i32
    %c0_i32_0 = arith.constant 0 : i32
    %c0_i32_1 = arith.constant 0 : i32
    return %arg0, %c0_i32, %c0_i32_0 : i32, i32, i32
  }
  func.func @transform_12(%arg0: i32, %arg1: memref<1xi32, #tpu.memory_space<smem>>) -> (i32, i32, i32) {
    %c0_i32 = arith.constant 0 : i32
    %c0_i32_0 = arith.constant 0 : i32
    %c0_i32_1 = arith.constant 0 : i32
    return %arg0, %c0_i32, %c0_i32_0 : i32, i32, i32
  }
  func.func @transform_13(%arg0: i32, %arg1: memref<1xi32, #tpu.memory_space<smem>>) -> (i32, i32, i32) {
    %c0_i32 = arith.constant 0 : i32
    %c0_i32_0 = arith.constant 0 : i32
    %c0_i32_1 = arith.constant 0 : i32
    return %arg0, %c0_i32, %c0_i32_0 : i32, i32, i32
  }
}

</mosaic_0001>

<llo_original>
// kernel: tpu_custom_call.1
$region0: #{tpu_custom_call.1}
  #allocation0 [shape = 'u32[]', space=smem, size = 0x4, offset = 0x4, fixed_abs, tag = 'smem constant byte address 0x4 - core index']
  #allocation1 [shape = 'u32[144,128]{1,0:T(1,128)}', space=vmem, size = 0x12000, scoped, tag = 'internal scratch']
  #allocation2 [shape = 'f32[64,1]{1,0:T(8,128)}', space=vmem, size = 0x8000, scoped, tag = 'scratch operand']
  #allocation3 [shape = 'f32[64,384]{1,0:T(8,128)}', space=vmem, size = 0x18000, scoped, tag = 'scratch operand']
  #allocation4 [shape = 'f32[64,384]{1,0:T(8,128)}', space=vmem, size = 0x18000, scoped, tag = 'scratch operand']
  #allocation5 [shape = 'f32[64,128]{1,0:T(8,128)}', space=vmem, size = 0x8000, scoped, tag = 'scratch operand']
  #allocation6 [shape = 'f32[64,128]{1,0:T(8,128)}', space=vmem, size = 0x8000, scoped, tag = 'scratch operand']
  #allocation7 [shape = 's32[1]{0}', space=sflag, size = 0x4, scoped, tag = 'scoped memory for tpu_custom_call.1']
  #allocation8 [shape = 's32[1]{0:T(128)S(6)}', space=smem, size = 0x200, scoped, tag = 'prefetched SMEM operand 0']
  %s0 = inlined_call_operand.<no memory space> [shape: s32[1], index: 0, kind: input, shape index: {}]
  %s1 = inlined_call_operand.vmem [shape: f32[64,1], index: 1, kind: input, shape index: {}]
  %s2 = inlined_call_operand.vmem [shape: f32[3,64,1], index: 2, kind: input, shape index: {}]
  %s3 = inlined_call_operand.vmem [shape: f32[3,1,384], index: 3, kind: input, shape index: {}]
  %s4 = inlined_call_operand.vmem [shape: bf16[3,128,384], index: 4, kind: input, shape index: {}]
  %s5 = inlined_call_operand.vmem [shape: f32[3,1,384], index: 5, kind: input, shape index: {}]
  %s6 = inlined_call_operand.vmem [shape: f32[3,1,384], index: 6, kind: input, shape index: {}]
  %s7 = inlined_call_operand.vmem [shape: f32[3,1,384], index: 7, kind: input, shape index: {}]
  %s8 = inlined_call_operand.hbm [shape: bf16[3,128,384], index: 8, kind: input, shape index: {}]
  %s9 = inlined_call_operand.vmem [shape: f32[3,1,384], index: 9, kind: input, shape index: {}]
  %s10 = inlined_call_operand.vmem [shape: f32[3,1,384], index: 10, kind: input, shape index: {}]
  %s11 = inlined_call_operand.vmem [shape: f32[3,128,1], index: 11, kind: input, shape index: {}]
  %s12 = inlined_call_operand.vmem [shape: f32[3,128,1], index: 12, kind: input, shape index: {}]
  %s13 = inlined_call_operand.vmem [shape: f32[3,1,1], index: 13, kind: input, shape index: {}]
  %s14 = inlined_call_operand.vmem [shape: f32[3,64,1], index: 14, kind: output, shape index: {}]
  %s15 = sld [smem:[#allocation0]]
  $region101: #{tpu_custom_call.1} parent=0
    _
  %s17 = ssub.s32 1, %s15
  %s18 = scalar_select 0, %s17, %s15
  %19 = sst [smem:[#allocation8]] %s0
  $region1: #{tpu_custom_call.1} parent=0
    #allocation9 [shape = 'u8[196608]{0}', space=vmem, size = 0x30000, scoped, tag = 'input window, operand 8']
    #allocation10 [shape = 's32[2]{0}', space=sflag, size = 0x8, scoped, tag = 'scoped memory for tpu_custom_call.1']
    %20 = vsyncpa [#allocation10], 0
    %s21 = scalar_lea.sflag [#allocation10], 1
    %22 = vsyncpa %s21, 0
    loop: start=0, step=1, limit=5
    $region2: #{tpu_custom_call.1} parent=1 // loop_pre_header
      _
    $region3: #{tpu_custom_call.1} parent=1 // loop_header
      %s24 = sphi 0, %s28
      %p25 = scmp.ge.s32.totalorder %s24, 5
      %s32 = sphi 0, %s32
      %s34 = sphi 0, %s32
      %s35 = sphi 0, %s34
      %s49 = sphi 0, %s35
      %s55 = sphi 0, %s57
      %s58 = sphi 0, %s55
      %s59 = sphi 0, %s58
      %s75 = sphi 0, %s59
      %s81 = sphi 0, %s83
      %s84 = sphi 0, %s81
      %s85 = sphi 0, %s84
      %s101 = sphi 0, %s85
      %s107 = sphi 0, %s109
      %s110 = sphi 0, %s107
      %s111 = sphi 0, %s110
      %s127 = sphi 0, %s111
      %s133 = sphi 0, %s135
      %s136 = sphi 0, %s133
      %s137 = sphi 0, %s136
      %s153 = sphi 0, %s137
      %s159 = sphi 0, %s161
      %s162 = sphi 0, %s159
      %s163 = sphi 0, %s162
      %s179 = sphi 0, %s163
      %s185 = sphi 0, %s187
      %s188 = sphi 0, %s185
      %s189 = sphi 0, %s188
      %s205 = sphi 0, %s189
      %s211 = sphi 0, %s213
      %s214 = sphi 0, %s211
      %s215 = sphi 0, %s214
      %s231 = sphi 0, %s215
      %s237 = sphi 0, %s239
      %s240 = sphi 0, %s237
      %s241 = sphi 0, %s240
      %s257 = sphi 0, %s241
      %s263 = sphi 0, %s265
      %s266 = sphi 0, %s263
      %s267 = sphi 0, %s266
      %s283 = sphi 0, %s267
      %s289 = sphi 0, %s291
      %s292 = sphi 0, %s289
      %s293 = sphi 0, %s292
      %s309 = sphi 0, %s293
      %s315 = sphi 0, %s317
      %s318 = sphi 0, %s315
      %s319 = sphi 0, %s318
      %s335 = sphi 0, %s319
      %s341 = sphi 0, %s343
      %s344 = sphi 0, %s341
      %s345 = sphi 0, %s344
      %s361 = sphi 0, %s345
      %s367 = sphi 0, %s369
      %s370 = sphi 0, %s367
      %s371 = sphi 0, %s370
      %s387 = sphi 0, %s371
    $region4: #{tpu_custom_call.1} parent=1 // loop_header_branch
      %27 = sbr.rel (%p25) target = $region8
    $region5: #{tpu_custom_call.1} parent=1 // loop_body
      %s29 = ssub.s32 %s24, 1
      %s30 = ssub.s32 %s24, 2
      %s31 = sadd.s32 %s24, 1
      %s33 = sadd.s32 %s32, 1
      %p36 = scmp.eq.s32.totalorder %s24, 2
      %p37 = scmp.ne.s32.totalorder %s32, %s34
      %p38 = scmp.eq.s32.totalorder %s24, 0
      %p39 = por %p37, %p38
      %p40 = scmp.ne.s32.totalorder %s32, %s34
      %p41 = scmp.eq.s32.totalorder %s29, 2
      %p42 = por %p40, %p41
      %p43 = scmp.ne.s32.totalorder %s34, %s35
      %p44 = scmp.eq.s32.totalorder %s29, 0
      %p45 = por %p43, %p44
      %p46 = scmp.ne.s32.totalorder %s34, %s35
      %p47 = scmp.eq.s32.totalorder %s30, 2
      %p48 = por %p46, %p47
      %p50 = scmp.ne.s32.totalorder %s35, %s49
      %p51 = scmp.eq.s32.totalorder %s30, 0
      %p52 = por %p50, %p51
      %s53 = ssub.s32 %s24, %s31
      %p54 = scmp.eq.s32.totalorder %s53, 0
      %s56 = sadd.s32 %s55, 1
      %s57 = scalar_select %p54, %s55, %s56
      %p60 = pneg %p54
      %p61 = scmp.eq.s32.totalorder %s24, 2
      %p62 = por %p60, %p61
      %p63 = scmp.ne.s32.totalorder %s55, %s58
      %p64 = scmp.eq.s32.totalorder %s24, 0
      %p65 = por %p63, %p64
      %p66 = scmp.ne.s32.totalorder %s55, %s58
      %p67 = scmp.eq.s32.totalorder %s29, 2
      %p68 = por %p66, %p67
      %p69 = scmp.ne.s32.totalorder %s58, %s59
      %p70 = scmp.eq.s32.totalorder %s29, 0
      %p71 = por %p69, %p70
      %p72 = scmp.ne.s32.totalorder %s58, %s59
      %p73 = scmp.eq.s32.totalorder %s30, 2
      %p74 = por %p72, %p73
      %p76 = scmp.ne.s32.totalorder %s59, %s75
      %p77 = scmp.eq.s32.totalorder %s30, 0
      %p78 = por %p76, %p77
      %s79 = ssub.s32 %s24, %s31
      %p80 = scmp.eq.s32.totalorder %s79, 0
      %s82 = sadd.s32 %s81, 1
      %s83 = scalar_select %p80, %s81, %s82
      %p86 = pneg %p80
      %p87 = scmp.eq.s32.totalorder %s24, 2
      %p88 = por %p86, %p87
      %p89 = scmp.ne.s32.totalorder %s81, %s84
      %p90 = scmp.eq.s32.totalorder %s24, 0
      %p91 = por %p89, %p90
      %p92 = scmp.ne.s32.totalorder %s81, %s84
      %p93 = scmp.eq.s32.totalorder %s29, 2
      %p94 = por %p92, %p93
      %p95 = scmp.ne.s32.totalorder %s84, %s85
      %p96 = scmp.eq.s32.totalorder %s29, 0
      %p97 = por %p95, %p96
      %p98 = scmp.ne.s32.totalorder %s84, %s85
      %p99 = scmp.eq.s32.totalorder %s30, 2
      %p100 = por %p98, %p99
      %p102 = scmp.ne.s32.totalorder %s85, %s101
      %p103 = scmp.eq.s32.totalorder %s30, 0
      %p104 = por %p102, %p103
      %s105 = ssub.s32 %s24, %s31
      %p106 = scmp.eq.s32.totalorder %s105, 0
      %s108 = sadd.s32 %s107, 1
      %s109 = scalar_select %p106, %s107, %s108
      %p112 = pneg %p106
      %p113 = scmp.eq.s32.totalorder %s24, 2
      %p114 = por %p112, %p113
      %p115 = scmp.ne.s32.totalorder %s107, %s110
      %p116 = scmp.eq.s32.totalorder %s24, 0
      %p117 = por %p115, %p116
      %p118 = scmp.ne.s32.totalorder %s107, %s110
      %p119 = scmp.eq.s32.totalorder %s29, 2
      %p120 = por %p118, %p119
      %p121 = scmp.ne.s32.totalorder %s110, %s111
      %p122 = scmp.eq.s32.totalorder %s29, 0
      %p123 = por %p121, %p122
      %p124 = scmp.ne.s32.totalorder %s110, %s111
      %p125 = scmp.eq.s32.totalorder %s30, 2
      %p126 = por %p124, %p125
      %p128 = scmp.ne.s32.totalorder %s111, %s127
      %p129 = scmp.eq.s32.totalorder %s30, 0
      %p130 = por %p128, %p129
      %s131 = ssub.s32 %s24, %s31
      %p132 = scmp.eq.s32.totalorder %s131, 0
      %s134 = sadd.s32 %s133, 1
      %s135 = scalar_select %p132, %s133, %s134
      %p138 = pneg %p132
      %p139 = scmp.eq.s32.totalorder %s24, 2
      %p140 = por %p138, %p139
      %p141 = scmp.ne.s32.totalorder %s133, %s136
      %p142 = scmp.eq.s32.totalorder %s24, 0
      %p143 = por %p141, %p142
      %p144 = scmp.ne.s32.totalorder %s133, %s136
      %p145 = scmp.eq.s32.totalorder %s29, 2
      %p146 = por %p144, %p145
      %p147 = scmp.ne.s32.totalorder %s136, %s137
      %p148 = scmp.eq.s32.totalorder %s29, 0
      %p149 = por %p147, %p148
      %p150 = scmp.ne.s32.totalorder %s136, %s137
      %p151 = scmp.eq.s32.totalorder %s30, 2
      %p152 = por %p150, %p151
      %p154 = scmp.ne.s32.totalorder %s137, %s153
      %p155 = scmp.eq.s32.totalorder %s30, 0
      %p156 = por %p154, %p155
      %s157 = ssub.s32 %s24, %s31
      %p158 = scmp.eq.s32.totalorder %s157, 0
      %s160 = sadd.s32 %s159, 1
      %s161 = scalar_select %p158, %s159, %s160
      %p164 = pneg %p158
      %p165 = scmp.eq.s32.totalorder %s24, 2
      %p166 = por %p164, %p165
      %p167 = scmp.ne.s32.totalorder %s159, %s162
      %p168 = scmp.eq.s32.totalorder %s24, 0
      %p169 = por %p167, %p168
      %p170 = scmp.ne.s32.totalorder %s159, %s162
      %p171 = scmp.eq.s32.totalorder %s29, 2
      %p172 = por %p170, %p171
      %p173 = scmp.ne.s32.totalorder %s162, %s163
      %p174 = scmp.eq.s32.totalorder %s29, 0
      %p175 = por %p173, %p174
      %p176 = scmp.ne.s32.totalorder %s162, %s163
      %p177 = scmp.eq.s32.totalorder %s30, 2
      %p178 = por %p176, %p177
      %p180 = scmp.ne.s32.totalorder %s163, %s179
      %p181 = scmp.eq.s32.totalorder %s30, 0
      %p182 = por %p180, %p181
      %s183 = ssub.s32 %s24, %s31
      %p184 = scmp.eq.s32.totalorder %s183, 0
      %s186 = sadd.s32 %s185, 1
      %s187 = scalar_select %p184, %s185, %s186
      %p190 = pneg %p184
      %p191 = scmp.eq.s32.totalorder %s24, 2
      %p192 = por %p190, %p191
      %p193 = scmp.ne.s32.totalorder %s185, %s188
      %p194 = scmp.eq.s32.totalorder %s24, 0
      %p195 = por %p193, %p194
      %p196 = scmp.ne.s32.totalorder %s185, %s188
      %p197 = scmp.eq.s32.totalorder %s29, 2
      %p198 = por %p196, %p197
      %p199 = scmp.ne.s32.totalorder %s188, %s189
      %p200 = scmp.eq.s32.totalorder %s29, 0
      %p201 = por %p199, %p200
      %p202 = scmp.ne.s32.totalorder %s188, %s189
      %p203 = scmp.eq.s32.totalorder %s30, 2
      %p204 = por %p202, %p203
      %p206 = scmp.ne.s32.totalorder %s189, %s205
      %p207 = scmp.eq.s32.totalorder %s30, 0
      %p208 = por %p206, %p207
      %s209 = ssub.s32 %s24, %s31
      %p210 = scmp.eq.s32.totalorder %s209, 0
      %s212 = sadd.s32 %s211, 1
      %s213 = scalar_select %p210, %s211, %s212
      %p216 = pneg %p210
      %p217 = scmp.eq.s32.totalorder %s24, 2
      %p218 = por %p216, %p217
      %p219 = scmp.ne.s32.totalorder %s211, %s214
      %p220 = scmp.eq.s32.totalorder %s24, 0
      %p221 = por %p219, %p220
      %p222 = scmp.ne.s32.totalorder %s211, %s214
      %p223 = scmp.eq.s32.totalorder %s29, 2
      %p224 = por %p222, %p223
      %p225 = scmp.ne.s32.totalorder %s214, %s215
      %p226 = scmp.eq.s32.totalorder %s29, 0
      %p227 = por %p225, %p226
      %p228 = scmp.ne.s32.totalorder %s214, %s215
      %p229 = scmp.eq.s32.totalorder %s30, 2
      %p230 = por %p228, %p229
      %p232 = scmp.ne.s32.totalorder %s215, %s231
      %p233 = scmp.eq.s32.totalorder %s30, 0
      %p234 = por %p232, %p233
      %s235 = ssub.s32 %s24, %s31
      %p236 = scmp.eq.s32.totalorder %s235, 0
      %s238 = sadd.s32 %s237, 1
      %s239 = scalar_select %p236, %s237, %s238
      %p242 = pneg %p236
      %p243 = scmp.eq.s32.totalorder %s24, 2
      %p244 = por %p242, %p243
      %p245 = scmp.ne.s32.totalorder %s237, %s240
      %p246 = scmp.eq.s32.totalorder %s24, 0
      %p247 = por %p245, %p246
      %p248 = scmp.ne.s32.totalorder %s237, %s240
      %p249 = scmp.eq.s32.totalorder %s29, 2
      %p250 = por %p248, %p249
      %p251 = scmp.ne.s32.totalorder %s240, %s241
      %p252 = scmp.eq.s32.totalorder %s29, 0
      %p253 = por %p251, %p252
      %p254 = scmp.ne.s32.totalorder %s240, %s241
      %p255 = scmp.eq.s32.totalorder %s30, 2
      %p256 = por %p254, %p255
      %p258 = scmp.ne.s32.totalorder %s241, %s257
      %p259 = scmp.eq.s32.totalorder %s30, 0
      %p260 = por %p258, %p259
      %s261 = ssub.s32 %s24, %s31
      %p262 = scmp.eq.s32.totalorder %s261, 0
      %s264 = sadd.s32 %s263, 1
      %s265 = scalar_select %p262, %s263, %s264
      %p268 = pneg %p262
      %p269 = scmp.eq.s32.totalorder %s24, 2
      %p270 = por %p268, %p269
      %p271 = scmp.ne.s32.totalorder %s263, %s266
      %p272 = scmp.eq.s32.totalorder %s24, 0
      %p273 = por %p271, %p272
      %p274 = scmp.ne.s32.totalorder %s263, %s266
      %p275 = scmp.eq.s32.totalorder %s29, 2
      %p276 = por %p274, %p275
      %p277 = scmp.ne.s32.totalorder %s266, %s267
      %p278 = scmp.eq.s32.totalorder %s29, 0
      %p279 = por %p277, %p278
      %p280 = scmp.ne.s32.totalorder %s266, %s267
      %p281 = scmp.eq.s32.totalorder %s30, 2
      %p282 = por %p280, %p281
      %p284 = scmp.ne.s32.totalorder %s267, %s283
      %p285 = scmp.eq.s32.totalorder %s30, 0
      %p286 = por %p284, %p285
      %s287 = ssub.s32 %s24, %s31
      %p288 = scmp.eq.s32.totalorder %s287, 0
      %s290 = sadd.s32 %s289, 1
      %s291 = scalar_select %p288, %s289, %s290
      %p294 = pneg %p288
      %p295 = scmp.eq.s32.totalorder %s24, 2
      %p296 = por %p294, %p295
      %p297 = scmp.ne.s32.totalorder %s289, %s292
      %p298 = scmp.eq.s32.totalorder %s24, 0
      %p299 = por %p297, %p298
      %p300 = scmp.ne.s32.totalorder %s289, %s292
      %p301 = scmp.eq.s32.totalorder %s29, 2
      %p302 = por %p300, %p301
      %p303 = scmp.ne.s32.totalorder %s292, %s293
      %p304 = scmp.eq.s32.totalorder %s29, 0
      %p305 = por %p303, %p304
      %p306 = scmp.ne.s32.totalorder %s292, %s293
      %p307 = scmp.eq.s32.totalorder %s30, 2
      %p308 = por %p306, %p307
      %p310 = scmp.ne.s32.totalorder %s293, %s309
      %p311 = scmp.eq.s32.totalorder %s30, 0
      %p312 = por %p310, %p311
      %s313 = ssub.s32 %s24, %s31
      %p314 = scmp.eq.s32.totalorder %s313, 0
      %s316 = sadd.s32 %s315, 1
      %s317 = scalar_select %p314, %s315, %s316
      %p320 = pneg %p314
      %p321 = scmp.eq.s32.totalorder %s24, 2
      %p322 = por %p320, %p321
      %p323 = scmp.ne.s32.totalorder %s315, %s318
      %p324 = scmp.eq.s32.totalorder %s24, 0
      %p325 = por %p323, %p324
      %p326 = scmp.ne.s32.totalorder %s315, %s318
      %p327 = scmp.eq.s32.totalorder %s29, 2
      %p328 = por %p326, %p327
      %p329 = scmp.ne.s32.totalorder %s318, %s319
      %p330 = scmp.eq.s32.totalorder %s29, 0
      %p331 = por %p329, %p330
      %p332 = scmp.ne.s32.totalorder %s318, %s319
      %p333 = scmp.eq.s32.totalorder %s30, 2
      %p334 = por %p332, %p333
      %p336 = scmp.ne.s32.totalorder %s319, %s335
      %p337 = scmp.eq.s32.totalorder %s30, 0
      %p338 = por %p336, %p337
      %s339 = ssub.s32 %s24, %s31
      %p340 = scmp.eq.s32.totalorder %s339, 0
      %s342 = sadd.s32 %s341, 1
      %s343 = scalar_select %p340, %s341, %s342
      %p346 = pneg %p340
      %p347 = scmp.eq.s32.totalorder %s24, 2
      %p348 = por %p346, %p347
      %p349 = scmp.ne.s32.totalorder %s341, %s344
      %p350 = scmp.eq.s32.totalorder %s24, 0
      %p351 = por %p349, %p350
      %p352 = scmp.ne.s32.totalorder %s341, %s344
      %p353 = scmp.eq.s32.totalorder %s29, 2
      %p354 = por %p352, %p353
      %p355 = scmp.ne.s32.totalorder %s344, %s345
      %p356 = scmp.eq.s32.totalorder %s29, 0
      %p357 = por %p355, %p356
      %p358 = scmp.ne.s32.totalorder %s344, %s345
      %p359 = scmp.eq.s32.totalorder %s30, 2
      %p360 = por %p358, %p359
      %p362 = scmp.ne.s32.totalorder %s345, %s361
      %p363 = scmp.eq.s32.totalorder %s30, 0
      %p364 = por %p362, %p363
      %s365 = ssub.s32 %s24, %s31
      %p366 = scmp.eq.s32.totalorder %s365, 0
      %s368 = sadd.s32 %s367, 1
      %s369 = scalar_select %p366, %s367, %s368
      %p372 = pneg %p366
      %p373 = scmp.eq.s32.totalorder %s24, 2
      %p374 = por %p372, %p373
      %p375 = scmp.ne.s32.totalorder %s367, %s370
      %p376 = scmp.eq.s32.totalorder %s24, 0
      %p377 = por %p375, %p376
      %p378 = scmp.ne.s32.totalorder %s367, %s370
      %p379 = scmp.eq.s32.totalorder %s29, 2
      %p380 = por %p378, %p379
      %p381 = scmp.ne.s32.totalorder %s370, %s371
      %p382 = scmp.eq.s32.totalorder %s29, 0
      %p383 = por %p381, %p382
      %p384 = scmp.ne.s32.totalorder %s370, %s371
      %p385 = scmp.eq.s32.totalorder %s30, 2
      %p386 = por %p384, %p385
      %p388 = scmp.ne.s32.totalorder %s371, %s387
      %p389 = scmp.eq.s32.totalorder %s30, 0
      %p390 = por %p388, %p389
      %p391 = scmp.le.s32.totalorder 1, %s24
      %p392 = scmp.lt.s32.totalorder %s24, 4
      %p393 = pnand %p391, %p392
      %p394 = pneg %p393
      // Predicated region
      $region9: #{tpu_custom_call.1} parent=5 // pred_check
        _
      $region10: #{tpu_custom_call.1} parent=5 // pred_check_branch
        %396 = sbr.rel (%p393) target = $region12
      $region11: #{tpu_custom_call.1} parent=5 // pred_region
        %s397 = ssub.s32 %s24, 1
        // Predicated region
        $region13: #{tpu_custom_call.1} parent=11 // pred_check
          %p398 = pneg %p45
        $region14: #{tpu_custom_call.1} parent=11 // pred_check_branch
          %400 = sbr.rel (%p398) target = $region16
        $region15: #{tpu_custom_call.1} parent=11 // pred_region
          _
        $region16: #{tpu_custom_call.1} parent=11 // pred_fallthru
          _
      $region12: #{tpu_custom_call.1} parent=5 // pred_fallthru
        _
      %p401 = scmp.lt.s32.totalorder %s24, 3
      // Predicated region
      $region17: #{tpu_custom_call.1} parent=5 // pred_check
        %p402 = pneg %p401
      $region18: #{tpu_custom_call.1} parent=5 // pred_check_branch
        %404 = sbr.rel (%p402) target = $region20
      $region19: #{tpu_custom_call.1} parent=5 // pred_region
        // Predicated region
        $region21: #{tpu_custom_call.1} parent=19 // pred_check
          %p405 = pneg %p65
        $region22: #{tpu_custom_call.1} parent=19 // pred_check_branch
          %407 = sbr.rel (%p405) target = $region24
        $region23: #{tpu_custom_call.1} parent=19 // pred_region
          %p408 = scmp.lt.s32.totalorder %s24, 2
          %s409 = scalar_select %p408, %s24, 2
          %s410 = smul.addr %s409, 8
          %s411 = smul.addr %s410, 8
          %s412 = scalar_lea.vmem %s2, %s411
        $region24: #{tpu_custom_call.1} parent=19 // pred_fallthru
          _
        // Predicated region
        $region25: #{tpu_custom_call.1} parent=19 // pred_check
          %p413 = pneg %p91
        $region26: #{tpu_custom_call.1} parent=19 // pred_check_branch
          %415 = sbr.rel (%p413) target = $region28
        $region27: #{tpu_custom_call.1} parent=19 // pred_region
          %p416 = scmp.lt.s32.totalorder %s24, 2
          %s417 = scalar_select %p416, %s24, 2
          %s418 = smul.addr %s417, 3
          %s419 = scalar_lea.vmem %s3, %s418
        $region28: #{tpu_custom_call.1} parent=19 // pred_fallthru
          _
        // Predicated region
        $region29: #{tpu_custom_call.1} parent=19 // pred_check
          %p420 = pneg %p117
        $region30: #{tpu_custom_call.1} parent=19 // pred_check_branch
          %422 = sbr.rel (%p420) target = $region32
        $region31: #{tpu_custom_call.1} parent=19 // pred_region
          %p423 = scmp.lt.s32.totalorder %s24, 2
          %s424 = scalar_select %p423, %s24, 2
          %s425 = smul.addr %s424, 48
          %s426 = smul.addr %s425, 4
          %s427 = scalar_lea.vmem %s4, %s426
        $region32: #{tpu_custom_call.1} parent=19 // pred_fallthru
          _
        // Predicated region
        $region33: #{tpu_custom_call.1} parent=19 // pred_check
          %p428 = pneg %p143
        $region34: #{tpu_custom_call.1} parent=19 // pred_check_branch
          %430 = sbr.rel (%p428) target = $region36
        $region35: #{tpu_custom_call.1} parent=19 // pred_region
          %p431 = scmp.lt.s32.totalorder %s24, 2
          %s432 = scalar_select %p431, %s24, 2
          %s433 = smul.addr %s432, 3
          %s434 = scalar_lea.vmem %s5, %s433
        $region36: #{tpu_custom_call.1} parent=19 // pred_fallthru
          _
        // Predicated region
        $region37: #{tpu_custom_call.1} parent=19 // pred_check
          %p435 = pneg %p169
        $region38: #{tpu_custom_call.1} parent=19 // pred_check_branch
          %437 = sbr.rel (%p435) target = $region40
        $region39: #{tpu_custom_call.1} parent=19 // pred_region
          %p438 = scmp.lt.s32.totalorder %s24, 2
          %s439 = scalar_select %p438, %s24, 2
          %s440 = smul.addr %s439, 3
          %s441 = scalar_lea.vmem %s6, %s440
        $region40: #{tpu_custom_call.1} parent=19 // pred_fallthru
          _
        // Predicated region
        $region41: #{tpu_custom_call.1} parent=19 // pred_check
          %p442 = pneg %p195
        $region42: #{tpu_custom_call.1} parent=19 // pred_check_branch
          %444 = sbr.rel (%p442) target = $region44
        $region43: #{tpu_custom_call.1} parent=19 // pred_region
          %p445 = scmp.lt.s32.totalorder %s24, 2
          %s446 = scalar_select %p445, %s24, 2
          %s447 = smul.addr %s446, 3
          %s448 = scalar_lea.vmem %s7, %s447
        $region44: #{tpu_custom_call.1} parent=19 // pred_fallthru
          _
        // Predicated region
        $region45: #{tpu_custom_call.1} parent=19 // pred_check
          %p449 = pneg %p221
        $region46: #{tpu_custom_call.1} parent=19 // pred_check_branch
          %451 = sbr.rel (%p449) target = $region48
        $region47: #{tpu_custom_call.1} parent=19 // pred_region
          %s452 = sand.u32 %s211, 1
          %s453 = scalar_lea.sflag [#allocation10], %s452
          %s454 = sand.u32 %s211, 1
          %s455 = smul.addr %s454, 192
          %s456 = scalar_lea.vmem [#allocation9], %s455
          %s458 = ssub.s32 3072, 3072
          %459 = vsyncadd %s453, %s458
          %s460 = smul.addr %s24, 48
          %s461 = smul.addr %s460, 64
          %s462 = scalar_lea.hbm %s8, %s461
          %s463 = sshll.u32 %s456, 4
          %s464 = int_to_ptr.vmem [resolvable:$true] %s463
          %469 = dma.hbm_to_vmem [thread:$0]  %s462, 3072, %s464, %s453, 192, 192, 12
        $region48: #{tpu_custom_call.1} parent=19 // pred_fallthru
          _
        // Predicated region
        $region49: #{tpu_custom_call.1} parent=19 // pred_check
          %p470 = pneg %p247
        $region50: #{tpu_custom_call.1} parent=19 // pred_check_branch
          %472 = sbr.rel (%p470) target = $region52
        $region51: #{tpu_custom_call.1} parent=19 // pred_region
          %p473 = scmp.lt.s32.totalorder %s24, 2
          %s474 = scalar_select %p473, %s24, 2
          %s475 = smul.addr %s474, 3
          %s476 = scalar_lea.vmem %s9, %s475
        $region52: #{tpu_custom_call.1} parent=19 // pred_fallthru
          _
        // Predicated region
        $region53: #{tpu_custom_call.1} parent=19 // pred_check
          %p477 = pneg %p273
        $region54: #{tpu_custom_call.1} parent=19 // pred_check_branch
          %479 = sbr.rel (%p477) target = $region56
        $region55: #{tpu_custom_call.1} parent=19 // pred_region
          %p480 = scmp.lt.s32.totalorder %s24, 2
          %s481 = scalar_select %p480, %s24, 2
          %s482 = smul.addr %s481, 3
          %s483 = scalar_lea.vmem %s10, %s482
        $region56: #{tpu_custom_call.1} parent=19 // pred_fallthru
          _
        // Predicated region
        $region57: #{tpu_custom_call.1} parent=19 // pred_check
          %p484 = pneg %p299
        $region58: #{tpu_custom_call.1} parent=19 // pred_check_branch
          %486 = sbr.rel (%p484) target = $region60
        $region59: #{tpu_custom_call.1} parent=19 // pred_region
          %p487 = scmp.lt.s32.totalorder %s24, 2
          %s488 = scalar_select %p487, %s24, 2
          %s489 = smul.addr %s488, 16
          %s490 = smul.addr %s489, 8
          %s491 = scalar_lea.vmem %s11, %s490
        $region60: #{tpu_custom_call.1} parent=19 // pred_fallthru
          _
        // Predicated region
        $region61: #{tpu_custom_call.1} parent=19 // pred_check
          %p492 = pneg %p325
        $region62: #{tpu_custom_call.1} parent=19 // pred_check_branch
          %494 = sbr.rel (%p492) target = $region64
        $region63: #{tpu_custom_call.1} parent=19 // pred_region
          %p495 = scmp.lt.s32.totalorder %s24, 2
          %s496 = scalar_select %p495, %s24, 2
          %s497 = smul.addr %s496, 16
          %s498 = smul.addr %s497, 8
          %s499 = scalar_lea.vmem %s12, %s498
        $region64: #{tpu_custom_call.1} parent=19 // pred_fallthru
          _
        // Predicated region
        $region65: #{tpu_custom_call.1} parent=19 // pred_check
          %p500 = pneg %p351
        $region66: #{tpu_custom_call.1} parent=19 // pred_check_branch
          %502 = sbr.rel (%p500) target = $region68
        $region67: #{tpu_custom_call.1} parent=19 // pred_region
          %p503 = scmp.lt.s32.totalorder %s24, 2
          %s504 = scalar_select %p503, %s24, 2
          %s505 = scalar_lea.vmem %s13, %s504
        $region68: #{tpu_custom_call.1} parent=19 // pred_fallthru
          _
      $region20: #{tpu_custom_call.1} parent=5 // pred_fallthru
        _
      %p506 = scmp.le.s32.totalorder 1, %s24
      %p507 = scmp.lt.s32.totalorder %s24, 4
      %p508 = pnand %p506, %p507
      %p509 = pneg %p508
      // Predicated region
      $region69: #{tpu_custom_call.1} parent=5 // pred_check
        _
      $region70: #{tpu_custom_call.1} parent=5 // pred_check_branch
        %511 = sbr.rel (%p508) target = $region72
      $region71: #{tpu_custom_call.1} parent=5 // pred_region
        %s512 = ssub.s32 %s24, 1
        %s513 = sand.u32 %s214, 1
        %s514 = scalar_lea.sflag [#allocation10], %s513
        %s515 = sand.u32 %s214, 1
        %s516 = smul.addr %s515, 192
        %s517 = scalar_lea.vmem [#allocation9], %s516
        // Predicated region
        $region73: #{tpu_custom_call.1} parent=71 // pred_check
          %p518 = pneg %p227
        $region74: #{tpu_custom_call.1} parent=71 // pred_check_branch
          %520 = sbr.rel (%p518) target = $region76
        $region75: #{tpu_custom_call.1} parent=71 // pred_region
          %521 = dma.done %s514, 3072
        $region76: #{tpu_custom_call.1} parent=71 // pred_fallthru
          _
        %p522 = pneg %p45
        %p523 = pneg %p42
        %p524 = scmp.lt.s32.totalorder %s29, 2
        %s525 = scalar_select %p524, %s29, 2
        %s526 = smul.addr %s525, 8
        %s527 = smul.addr %s526, 8
        %s528 = scalar_lea.vmem %s2, %s527
        %p529 = pneg %p71
        %p530 = pneg %p68
        %p531 = scmp.lt.s32.totalorder %s29, 2
        %s532 = scalar_select %p531, %s29, 2
        %s533 = smul.addr %s532, 3
        %s534 = scalar_lea.vmem %s3, %s533
        %p535 = pneg %p97
        %p536 = pneg %p94
        %p537 = scmp.lt.s32.totalorder %s29, 2
        %s538 = scalar_select %p537, %s29, 2
        %s539 = smul.addr %s538, 48
        %s540 = smul.addr %s539, 4
        %s541 = scalar_lea.vmem %s4, %s540
        %p542 = pneg %p123
        %p543 = pneg %p120
        %p544 = scmp.lt.s32.totalorder %s29, 2
        %s545 = scalar_select %p544, %s29, 2
        %s546 = smul.addr %s545, 3
        %s547 = scalar_lea.vmem %s5, %s546
        %p548 = pneg %p149
        %p549 = pneg %p146
        %p550 = scmp.lt.s32.totalorder %s29, 2
        %s551 = scalar_select %p550, %s29, 2
        %s552 = smul.addr %s551, 3
        %s553 = scalar_lea.vmem %s6, %s552
        %p554 = pneg %p175
        %p555 = pneg %p172
        %p556 = scmp.lt.s32.totalorder %s29, 2
        %s557 = scalar_select %p556, %s29, 2
        %s558 = smul.addr %s557, 3
        %s559 = scalar_lea.vmem %s7, %s558
        %p560 = pneg %p201
        %p561 = pneg %p198
        %s562 = sand.u32 %s214, 1
        %s563 = scalar_lea.sflag [#allocation10], %s562
        %s564 = sand.u32 %s214, 1
        %s565 = smul.addr %s564, 192
        %s566 = scalar_lea.vmem [#allocation9], %s565
        %p567 = pneg %p227
        %p568 = pneg %p224
        %p569 = scmp.lt.s32.totalorder %s29, 2
        %s570 = scalar_select %p569, %s29, 2
        %s571 = smul.addr %s570, 3
        %s572 = scalar_lea.vmem %s9, %s571
        %p573 = pneg %p253
        %p574 = pneg %p250
        %p575 = scmp.lt.s32.totalorder %s29, 2
        %s576 = scalar_select %p575, %s29, 2
        %s577 = smul.addr %s576, 3
        %s578 = scalar_lea.vmem %s10, %s577
        %p579 = pneg %p279
        %p580 = pneg %p276
        %p581 = scmp.lt.s32.totalorder %s29, 2
        %s582 = scalar_select %p581, %s29, 2
        %s583 = smul.addr %s582, 16
        %s584 = smul.addr %s583, 8
        %s585 = scalar_lea.vmem %s11, %s584
        %p586 = pneg %p305
        %p587 = pneg %p302
        %p588 = scmp.lt.s32.totalorder %s29, 2
        %s589 = scalar_select %p588, %s29, 2
        %s590 = smul.addr %s589, 16
        %s591 = smul.addr %s590, 8
        %s592 = scalar_lea.vmem %s12, %s591
        %p593 = pneg %p331
        %p594 = pneg %p328
        %p595 = scmp.lt.s32.totalorder %s29, 2
        %s596 = scalar_select %p595, %s29, 2
        %s597 = scalar_lea.vmem %s13, %s596
        %p598 = pneg %p357
        %p599 = pneg %p354
        %p600 = pneg %p383
        %p601 = pneg %p380
        %p602 = scmp.lt.s32.totalorder %s29, 2
        %s603 = scalar_select %p602, %s29, 2
        %s604 = smul.addr %s603, 8
        %s605 = smul.addr %s604, 8
        %s606 = scalar_lea.vmem %s14, %s605
        %p607 = scmp.lt.s32.totalorder %s29, 2
        %s608 = scalar_select %p607, %s29, 2
        %s609 = smul.addr %s608, 8
        %s610 = smul.addr %s609, 8
        %s611 = scalar_lea.vmem %s2, %s610
        %p612 = scmp.lt.s32.totalorder %s29, 2
        %s613 = scalar_select %p612, %s29, 2
        %s614 = smul.addr %s613, 3
        %s615 = scalar_lea.vmem %s3, %s614
        %p616 = scmp.lt.s32.totalorder %s29, 2
        %s617 = scalar_select %p616, %s29, 2
        %s618 = smul.addr %s617, 48
        %s619 = smul.addr %s618, 4
        %s620 = scalar_lea.vmem %s4, %s619
        %p621 = scmp.lt.s32.totalorder %s29, 2
        %s622 = scalar_select %p621, %s29, 2
        %s623 = smul.addr %s622, 3
        %s624 = scalar_lea.vmem %s5, %s623
        %p625 = scmp.lt.s32.totalorder %s29, 2
        %s626 = scalar_select %p625, %s29, 2
        %s627 = smul.addr %s626, 3
        %s628 = scalar_lea.vmem %s6, %s627
        %p629 = scmp.lt.s32.totalorder %s29, 2
        %s630 = scalar_select %p629, %s29, 2
        %s631 = smul.addr %s630, 3
        %s632 = scalar_lea.vmem %s7, %s631
        %p633 = scmp.lt.s32.totalorder %s29, 2
        %s634 = scalar_select %p633, %s29, 2
        %s635 = smul.addr %s634, 3
        %s636 = scalar_lea.vmem %s9, %s635
        %p637 = scmp.lt.s32.totalorder %s29, 2
        %s638 = scalar_select %p637, %s29, 2
        %s639 = smul.addr %s638, 3
        %s640 = scalar_lea.vmem %s10, %s639
        %p641 = scmp.lt.s32.totalorder %s29, 2
        %s642 = scalar_select %p641, %s29, 2
        %s643 = smul.addr %s642, 16
        %s644 = smul.addr %s643, 8
        %s645 = scalar_lea.vmem %s11, %s644
        %p646 = scmp.lt.s32.totalorder %s29, 2
        %s647 = scalar_select %p646, %s29, 2
        %s648 = smul.addr %s647, 16
        %s649 = smul.addr %s648, 8
        %s650 = scalar_lea.vmem %s12, %s649
        %p651 = scmp.lt.s32.totalorder %s29, 2
        %s652 = scalar_select %p651, %s29, 2
        %s653 = scalar_lea.vmem %s13, %s652
        %p654 = scmp.lt.s32.totalorder %s29, 2
        %s655 = scalar_select %p654, %s29, 2
        %s656 = smul.addr %s655, 8
        %s657 = smul.addr %s656, 8
        %s658 = scalar_lea.vmem %s14, %s657
        %p660 = scmp.eq.s32.totalorder %s29, 0
        // Predicated region
        $region77: #{tpu_custom_call.1} parent=71 // pred_check
          %p661 = pneg %p660
        $region78: #{tpu_custom_call.1} parent=71 // pred_check_branch
          %663 = sbr.rel (%p661) target = $region80
        $region79: #{tpu_custom_call.1} parent=71 // pred_region
          %v664 = vld [vmem:[%s1] sm:$0xff]
          %v665 = vld [vmem:[%s1 + $0x8] sm:$0xff]
          %v666 = vld [vmem:[%s1 + $0x10] sm:$0xff]
          %v667 = vld [vmem:[%s1 + $0x18] sm:$0xff]
          %v668 = vld [vmem:[%s1 + $0x20] sm:$0xff]
          %v669 = vld [vmem:[%s1 + $0x28] sm:$0xff]
          %v670 = vld [vmem:[%s1 + $0x30] sm:$0xff]
          %v671 = vld [vmem:[%s1 + $0x38] sm:$0xff]
          %vm672 = vcmask 7168
          %673 = vst.msk [vmem:[#allocation2] sm:$0xff] %vm672, %v664
          %674 = vst.msk [vmem:[#allocation2 + $0x8] sm:$0xff] %vm672, %v665
          %675 = vst.msk [vmem:[#allocation2 + $0x10] sm:$0xff] %vm672, %v666
          %676 = vst.msk [vmem:[#allocation2 + $0x18] sm:$0xff] %vm672, %v667
          %677 = vst.msk [vmem:[#allocation2 + $0x20] sm:$0xff] %vm672, %v668
          %678 = vst.msk [vmem:[#allocation2 + $0x28] sm:$0xff] %vm672, %v669
          %679 = vst.msk [vmem:[#allocation2 + $0x30] sm:$0xff] %vm672, %v670
          %680 = vst.msk [vmem:[#allocation2 + $0x38] sm:$0xff] %vm672, %v671
        $region80: #{tpu_custom_call.1} parent=71 // pred_fallthru
          _
        %v681 = vld [vmem:[#allocation2] sm:$0xff]
        %v682 = vld [vmem:[#allocation2 + $0x8] sm:$0xff]
        %v683 = vld [vmem:[#allocation2 + $0x10] sm:$0xff]
        %v684 = vld [vmem:[#allocation2 + $0x18] sm:$0xff]
        %v685 = vld [vmem:[#allocation2 + $0x20] sm:$0xff]
        %v686 = vld [vmem:[#allocation2 + $0x28] sm:$0xff]
        %v687 = vld [vmem:[#allocation2 + $0x30] sm:$0xff]
        %v688 = vld [vmem:[#allocation2 + $0x38] sm:$0xff]
        %v689 = vld [vmem:[%s615] sm:$0x7]
        %691 = vset.pattern.permute.xlu0 0
        %692 = vperm.xlu0 %691, %v681
        %v693 = vpop.permute.xlu0 %692
        %696 = vset.pattern.permute.xlu0 0
        %697 = vperm.xlu0 %696, %v682
        %v698 = vpop.permute.xlu0 %697
        %701 = vset.pattern.permute.xlu0 0
        %702 = vperm.xlu0 %701, %v683
        %v703 = vpop.permute.xlu0 %702
        %706 = vset.pattern.permute.xlu0 0
        %707 = vperm.xlu0 %706, %v684
        %v708 = vpop.permute.xlu0 %707
        %711 = vset.pattern.permute.xlu0 0
        %712 = vperm.xlu0 %711, %v685
        %v713 = vpop.permute.xlu0 %712
        %716 = vset.pattern.permute.xlu0 0
        %717 = vperm.xlu0 %716, %v686
        %v718 = vpop.permute.xlu0 %717
        %721 = vset.pattern.permute.xlu0 0
        %722 = vperm.xlu0 %721, %v687
        %v723 = vpop.permute.xlu0 %722
        %726 = vset.pattern.permute.xlu0 0
        %727 = vperm.xlu0 %726, %v688
        %v728 = vpop.permute.xlu0 %727
        %v731 = vlaneseq
        %v732 = vshrl.u32 %v731, 7
        %v733 = vsub.s32 0, %v732
        %v734 = vrot.slane %v689, %v733
        %v735 = vlaneseq
        %v736 = vshrl.u32 %v735, 7
        %v737 = vsub.s32 1, %v736
        %v738 = vrot.slane %v689, %v737
        %v739 = vlaneseq
        %v740 = vshrl.u32 %v739, 7
        %v741 = vsub.s32 2, %v740
        %v742 = vrot.slane %v689, %v741
        %v746 = vmul.f32 %v693, %v734
        %v747 = vmul.f32 %v693, %v738
        %v748 = vmul.f32 %v693, %v742
        %v749 = vmul.f32 %v698, %v734
        %v750 = vmul.f32 %v698, %v738
        %v751 = vmul.f32 %v698, %v742
        %v752 = vmul.f32 %v703, %v734
        %v753 = vmul.f32 %v703, %v738
        %v754 = vmul.f32 %v703, %v742
        %v755 = vmul.f32 %v708, %v734
        %v756 = vmul.f32 %v708, %v738
        %v757 = vmul.f32 %v708, %v742
        %v758 = vmul.f32 %v713, %v734
        %v759 = vmul.f32 %v713, %v738
        %v760 = vmul.f32 %v713, %v742
        %v761 = vmul.f32 %v718, %v734
        %v762 = vmul.f32 %v718, %v738
        %v763 = vmul.f32 %v718, %v742
        %v764 = vmul.f32 %v723, %v734
        %v765 = vmul.f32 %v723, %v738
        %v766 = vmul.f32 %v723, %v742
        %v767 = vmul.f32 %v728, %v734
        %v768 = vmul.f32 %v728, %v738
        %v769 = vmul.f32 %v728, %v742
        %v770 = vld [vmem:[%s624] sm:$0x7]
        %v772 = vlaneseq
        %v773 = vshrl.u32 %v772, 7
        %v774 = vsub.s32 0, %v773
        %v775 = vrot.slane %v770, %v774
        %v776 = vlaneseq
        %v777 = vshrl.u32 %v776, 7
        %v778 = vsub.s32 1, %v777
        %v779 = vrot.slane %v770, %v778
        %v780 = vlaneseq
        %v781 = vshrl.u32 %v780, 7
        %v782 = vsub.s32 2, %v781
        %v783 = vrot.slane %v770, %v782
        %v787 = vadd.f32 %v746, %v775
        %v788 = vadd.f32 %v747, %v779
        %v789 = vadd.f32 %v748, %v783
        %v790 = vadd.f32 %v749, %v775
        %v791 = vadd.f32 %v750, %v779
        %v792 = vadd.f32 %v751, %v783
        %v793 = vadd.f32 %v752, %v775
        %v794 = vadd.f32 %v753, %v779
        %v795 = vadd.f32 %v754, %v783
        %v796 = vadd.f32 %v755, %v775
        %v797 = vadd.f32 %v756, %v779
        %v798 = vadd.f32 %v757, %v783
        %v799 = vadd.f32 %v758, %v775
        %v800 = vadd.f32 %v759, %v779
        %v801 = vadd.f32 %v760, %v783
        %v802 = vadd.f32 %v761, %v775
        %v803 = vadd.f32 %v762, %v779
        %v804 = vadd.f32 %v763, %v783
        %v805 = vadd.f32 %v764, %v775
        %v806 = vadd.f32 %v765, %v779
        %v807 = vadd.f32 %v766, %v783
        %v808 = vadd.f32 %v767, %v775
        %v809 = vadd.f32 %v768, %v779
        %v810 = vadd.f32 %v769, %v783
        %811 = vst [vmem:[#allocation3] sm:$0xff] %v787
        %812 = vst [vmem:[#allocation3 + $0x8] sm:$0xff] %v788
        %813 = vst [vmem:[#allocation3 + $0x10] sm:$0xff] %v789
        %814 = vst [vmem:[#allocation3 + $0x18] sm:$0xff] %v790
        %815 = vst [vmem:[#allocation3 + $0x20] sm:$0xff] %v791
        %816 = vst [vmem:[#allocation3 + $0x28] sm:$0xff] %v792
        %817 = vst [vmem:[#allocation3 + $0x30] sm:$0xff] %v793
        %818 = vst [vmem:[#allocation3 + $0x38] sm:$0xff] %v794
        %819 = vst [vmem:[#allocation3 + $0x40] sm:$0xff] %v795
        %820 = vst [vmem:[#allocation3 + $0x48] sm:$0xff] %v796
        %821 = vst [vmem:[#allocation3 + $0x50] sm:$0xff] %v797
        %822 = vst [vmem:[#allocation3 + $0x58] sm:$0xff] %v798
        %823 = vst [vmem:[#allocation3 + $0x60] sm:$0xff] %v799
        %824 = vst [vmem:[#allocation3 + $0x68] sm:$0xff] %v800
        %825 = vst [vmem:[#allocation3 + $0x70] sm:$0xff] %v801
        %826 = vst [vmem:[#allocation3 + $0x78] sm:$0xff] %v802
        %827 = vst [vmem:[#allocation3 + $0x80] sm:$0xff] %v803
        %828 = vst [vmem:[#allocation3 + $0x88] sm:$0xff] %v804
        %829 = vst [vmem:[#allocation3 + $0x90] sm:$0xff] %v805
        %830 = vst [vmem:[#allocation3 + $0x98] sm:$0xff] %v806
        %831 = vst [vmem:[#allocation3 + $0xa0] sm:$0xff] %v807
        %832 = vst [vmem:[#allocation3 + $0xa8] sm:$0xff] %v808
        %833 = vst [vmem:[#allocation3 + $0xb0] sm:$0xff] %v809
        %834 = vst [vmem:[#allocation3 + $0xb8] sm:$0xff] %v810
        %v835 = vld [vmem:[%s632] sm:$0x7]
        %v837 = vlaneseq
        %v838 = vshrl.u32 %v837, 7
        %v839 = vsub.s32 0, %v838
        %v840 = vrot.slane %v835, %v839
        %v841 = vlaneseq
        %v842 = vshrl.u32 %v841, 7
        %v843 = vsub.s32 1, %v842
        %v844 = vrot.slane %v835, %v843
        %v845 = vlaneseq
        %v846 = vshrl.u32 %v845, 7
        %v847 = vsub.s32 2, %v846
        %v848 = vrot.slane %v835, %v847
        %v852 = vmul.f32 %v693, %v840
        %v853 = vmul.f32 %v693, %v844
        %v854 = vmul.f32 %v693, %v848
        %v855 = vmul.f32 %v698, %v840
        %v856 = vmul.f32 %v698, %v844
        %v857 = vmul.f32 %v698, %v848
        %v858 = vmul.f32 %v703, %v840
        %v859 = vmul.f32 %v703, %v844
        %v860 = vmul.f32 %v703, %v848
        %v861 = vmul.f32 %v708, %v840
        %v862 = vmul.f32 %v708, %v844
        %v863 = vmul.f32 %v708, %v848
        %v864 = vmul.f32 %v713, %v840
        %v865 = vmul.f32 %v713, %v844
        %v866 = vmul.f32 %v713, %v848
        %v867 = vmul.f32 %v718, %v840
        %v868 = vmul.f32 %v718, %v844
        %v869 = vmul.f32 %v718, %v848
        %v870 = vmul.f32 %v723, %v840
        %v871 = vmul.f32 %v723, %v844
        %v872 = vmul.f32 %v723, %v848
        %v873 = vmul.f32 %v728, %v840
        %v874 = vmul.f32 %v728, %v844
        %v875 = vmul.f32 %v728, %v848
        %v876 = vld [vmem:[%s636] sm:$0x7]
        %v878 = vlaneseq
        %v879 = vshrl.u32 %v878, 7
        %v880 = vsub.s32 0, %v879
        %v881 = vrot.slane %v876, %v880
        %v882 = vlaneseq
        %v883 = vshrl.u32 %v882, 7
        %v884 = vsub.s32 1, %v883
        %v885 = vrot.slane %v876, %v884
        %v886 = vlaneseq
        %v887 = vshrl.u32 %v886, 7
        %v888 = vsub.s32 2, %v887
        %v889 = vrot.slane %v876, %v888
        %v893 = vadd.f32 %v852, %v881
        %v894 = vadd.f32 %v853, %v885
        %v895 = vadd.f32 %v854, %v889
        %v896 = vadd.f32 %v855, %v881
        %v897 = vadd.f32 %v856, %v885
        %v898 = vadd.f32 %v857, %v889
        %v899 = vadd.f32 %v858, %v881
        %v900 = vadd.f32 %v859, %v885
        %v901 = vadd.f32 %v860, %v889
        %v902 = vadd.f32 %v861, %v881
        %v903 = vadd.f32 %v862, %v885
        %v904 = vadd.f32 %v863, %v889
        %v905 = vadd.f32 %v864, %v881
        %v906 = vadd.f32 %v865, %v885
        %v907 = vadd.f32 %v866, %v889
        %v908 = vadd.f32 %v867, %v881
        %v909 = vadd.f32 %v868, %v885
        %v910 = vadd.f32 %v869, %v889
        %v911 = vadd.f32 %v870, %v881
        %v912 = vadd.f32 %v871, %v885
        %v913 = vadd.f32 %v872, %v889
        %v914 = vadd.f32 %v873, %v881
        %v915 = vadd.f32 %v874, %v885
        %v916 = vadd.f32 %v875, %v889
        %917 = vst [vmem:[#allocation4] sm:$0xff] %v893
        %918 = vst [vmem:[#allocation4 + $0x8] sm:$0xff] %v894
        %919 = vst [vmem:[#allocation4 + $0x10] sm:$0xff] %v895
        %920 = vst [vmem:[#allocation4 + $0x18] sm:$0xff] %v896
        %921 = vst [vmem:[#allocation4 + $0x20] sm:$0xff] %v897
        %922 = vst [vmem:[#allocation4 + $0x28] sm:$0xff] %v898
        %923 = vst [vmem:[#allocation4 + $0x30] sm:$0xff] %v899
        %924 = vst [vmem:[#allocation4 + $0x38] sm:$0xff] %v900
        %925 = vst [vmem:[#allocation4 + $0x40] sm:$0xff] %v901
        %926 = vst [vmem:[#allocation4 + $0x48] sm:$0xff] %v902
        %927 = vst [vmem:[#allocation4 + $0x50] sm:$0xff] %v903
        %928 = vst [vmem:[#allocation4 + $0x58] sm:$0xff] %v904
        %929 = vst [vmem:[#allocation4 + $0x60] sm:$0xff] %v905
        %930 = vst [vmem:[#allocation4 + $0x68] sm:$0xff] %v906
        %931 = vst [vmem:[#allocation4 + $0x70] sm:$0xff] %v907
        %932 = vst [vmem:[#allocation4 + $0x78] sm:$0xff] %v908
        %933 = vst [vmem:[#allocation4 + $0x80] sm:$0xff] %v909
        %934 = vst [vmem:[#allocation4 + $0x88] sm:$0xff] %v910
        %935 = vst [vmem:[#allocation4 + $0x90] sm:$0xff] %v911
        %936 = vst [vmem:[#allocation4 + $0x98] sm:$0xff] %v912
        %937 = vst [vmem:[#allocation4 + $0xa0] sm:$0xff] %v913
        %938 = vst [vmem:[#allocation4 + $0xa8] sm:$0xff] %v914
        %939 = vst [vmem:[#allocation4 + $0xb0] sm:$0xff] %v915
        %940 = vst [vmem:[#allocation4 + $0xb8] sm:$0xff] %v916
        %s941 = smul.u32 0, 3
        %s942 = smul.addr %s941, 8
        %s943 = scalar_lea.vmem [#allocation3], %s942
        %v944 = vld [vmem:[%s943] sm:$0xff]
        %v945 = vld [vmem:[%s943 + $0x8] sm:$0xff]
        %v946 = vld [vmem:[%s943 + $0x10] sm:$0xff]
        %v947 = vld [vmem:[%s620] sm:$0xff]
        %v948 = vld [vmem:[%s620 + $0x8] sm:$0xf]
        %v949 = vld [vmem:[%s620 + $0xc] sm:$0xff]
        %v950 = vld [vmem:[%s620 + $0x14] sm:$0xf]
        %v951 = vld [vmem:[%s620 + $0x18] sm:$0xff]
        %v952 = vld [vmem:[%s620 + $0x20] sm:$0xf]
        %v953 = vld [vmem:[%s620 + $0x24] sm:$0xff]
        %v954 = vld [vmem:[%s620 + $0x2c] sm:$0xf]
        %v955 = vld [vmem:[%s620 + $0x30] sm:$0xff]
        %v956 = vld [vmem:[%s620 + $0x38] sm:$0xf]
        %v957 = vld [vmem:[%s620 + $0x3c] sm:$0xff]
        %v958 = vld [vmem:[%s620 + $0x44] sm:$0xf]
        %v959 = vld [vmem:[%s620 + $0x48] sm:$0xff]
        %v960 = vld [vmem:[%s620 + $0x50] sm:$0xf]
        %v961 = vld [vmem:[%s620 + $0x54] sm:$0xff]
        %v962 = vld [vmem:[%s620 + $0x5c] sm:$0xf]
        %v963 = vld [vmem:[%s620 + $0x60] sm:$0xff]
        %v964 = vld [vmem:[%s620 + $0x68] sm:$0xf]
        %v965 = vld [vmem:[%s620 + $0x6c] sm:$0xff]
        %v966 = vld [vmem:[%s620 + $0x74] sm:$0xf]
        %v967 = vld [vmem:[%s620 + $0x78] sm:$0xff]
        %v968 = vld [vmem:[%s620 + $0x80] sm:$0xf]
        %v969 = vld [vmem:[%s620 + $0x84] sm:$0xff]
        %v970 = vld [vmem:[%s620 + $0x8c] sm:$0xf]
        %v971 = vld [vmem:[%s620 + $0x90] sm:$0xff]
        %v972 = vld [vmem:[%s620 + $0x98] sm:$0xf]
        %v973 = vld [vmem:[%s620 + $0x9c] sm:$0xff]
        %v974 = vld [vmem:[%s620 + $0xa4] sm:$0xf]
        %v975 = vld [vmem:[%s620 + $0xa8] sm:$0xff]
        %v976 = vld [vmem:[%s620 + $0xb0] sm:$0xf]
        %v977 = vld [vmem:[%s620 + $0xb4] sm:$0xff]
        %v978 = vld [vmem:[%s620 + $0xbc] sm:$0xf]
        %v979 = vld [vmem:[%s628] sm:$0x7]
        %v981 = vlaneseq
        %v982 = vshrl.u32 %v981, 7
        %v983 = vsub.s32 0, %v982
        %v984 = vrot.slane %v979, %v983
        %v985 = vlaneseq
        %v986 = vshrl.u32 %v985, 7
        %v987 = vsub.s32 1, %v986
        %v988 = vrot.slane %v979, %v987
        %v989 = vlaneseq
        %v990 = vshrl.u32 %v989, 7
        %v991 = vsub.s32 2, %v990
        %v992 = vrot.slane %v979, %v991
        %v1028 = vunpack.c.l.b16 %v947
        %v1029 = vunpack.c.h.b16 %v947
        %v1030 = vunpack.c.l.b16 %v948
        %v1031 = vunpack.c.l.b16 %v949
        %v1032 = vunpack.c.h.b16 %v949
        %v1033 = vunpack.c.l.b16 %v950
        %v1034 = vunpack.c.l.b16 %v951
        %v1035 = vunpack.c.h.b16 %v951
        %v1036 = vunpack.c.l.b16 %v952
        %v1037 = vunpack.c.l.b16 %v953
        %v1038 = vunpack.c.h.b16 %v953
        %v1039 = vunpack.c.l.b16 %v954
        %v1040 = vunpack.c.l.b16 %v955
        %v1041 = vunpack.c.h.b16 %v955
        %v1042 = vunpack.c.l.b16 %v956
        %v1043 = vunpack.c.l.b16 %v957
        %v1044 = vunpack.c.h.b16 %v957
        %v1045 = vunpack.c.l.b16 %v958
        %v1046 = vunpack.c.l.b16 %v959
        %v1047 = vunpack.c.h.b16 %v959
        %v1048 = vunpack.c.l.b16 %v960
        %v1049 = vunpack.c.l.b16 %v961
        %v1050 = vunpack.c.h.b16 %v961
        %v1051 = vunpack.c.l.b16 %v962
        %v1052 = vunpack.c.l.b16 %v963
        %v1053 = vunpack.c.h.b16 %v963
        %v1054 = vunpack.c.l.b16 %v964
        %v1055 = vunpack.c.l.b16 %v965
        %v1056 = vunpack.c.h.b16 %v965
        %v1057 = vunpack.c.l.b16 %v966
        %v1058 = vunpack.c.l.b16 %v967
        %v1059 = vunpack.c.h.b16 %v967
        %v1060 = vunpack.c.l.b16 %v968
        %v1061 = vunpack.c.l.b16 %v969
        %v1062 = vunpack.c.h.b16 %v969
        %v1063 = vunpack.c.l.b16 %v970
        %v1064 = vunpack.c.l.b16 %v971
        %v1065 = vunpack.c.h.b16 %v971
        %v1066 = vunpack.c.l.b16 %v972
        %v1067 = vunpack.c.l.b16 %v973
        %v1068 = vunpack.c.h.b16 %v973
        %v1069 = vunpack.c.l.b16 %v974
        %v1070 = vunpack.c.l.b16 %v975
        %v1071 = vunpack.c.h.b16 %v975
        %v1072 = vunpack.c.l.b16 %v976
        %v1073 = vunpack.c.l.b16 %v977
        %v1074 = vunpack.c.h.b16 %v977
        %v1075 = vunpack.c.l.b16 %v978
        %v1076 = vpack.c.b16 %v1031, %v1028
        %v1077 = vpack.c.b16 %v1032, %v1029
        %v1078 = vpack.c.b16 %v1033, %v1030
        %v1079 = vpack.c.b16 %v1037, %v1034
        %v1080 = vpack.c.b16 %v1038, %v1035
        %v1081 = vpack.c.b16 %v1039, %v1036
        %v1082 = vpack.c.b16 %v1043, %v1040
        %v1083 = vpack.c.b16 %v1044, %v1041
        %v1084 = vpack.c.b16 %v1045, %v1042
        %v1085 = vpack.c.b16 %v1049, %v1046
        %v1086 = vpack.c.b16 %v1050, %v1047
        %v1087 = vpack.c.b16 %v1051, %v1048
        %v1088 = vpack.c.b16 %v1055, %v1052
        %v1089 = vpack.c.b16 %v1056, %v1053
        %v1090 = vpack.c.b16 %v1057, %v1054
        %v1091 = vpack.c.b16 %v1061, %v1058
        %v1092 = vpack.c.b16 %v1062, %v1059
        %v1093 = vpack.c.b16 %v1063, %v1060
        %v1094 = vpack.c.b16 %v1067, %v1064
        %v1095 = vpack.c.b16 %v1068, %v1065
        %v1096 = vpack.c.b16 %v1069, %v1066
        %v1097 = vpack.c.b16 %v1073, %v1070
        %v1098 = vpack.c.b16 %v1074, %v1071
        %v1099 = vpack.c.b16 %v1075, %v1072
        %1124 = vmatprep.subr.bf16.mxu0 %v1077
        %1125 = vmatpush1.bf16.msra.mxu0 %v1076
        %1126 = vmatprep.subr.bf16.mxu0 %v1080
        %1127 = vmatpush1.bf16.msra.mxu0 %v1079
        %1128 = vmatprep.subr.bf16.mxu0 %v1083
        %1129 = vmatpush1.bf16.msra.mxu0 %v1082
        %1130 = vmatprep.subr.bf16.mxu0 %v1086
        %1131 = vmatpush1.bf16.msra.mxu0 %v1085
        %1132 = vmatprep.subr.bf16.mxu0 %v1089
        %1133 = vmatpush1.bf16.msra.mxu0 %v1088
        %1134 = vmatprep.subr.bf16.mxu0 %v1092
        %1135 = vmatpush1.bf16.msra.mxu0 %v1091
        %1136 = vmatprep.subr.bf16.mxu0 %v1095
        %1137 = vmatpush1.bf16.msra.mxu0 %v1094
        %1138 = vmatprep.subr.bf16.mxu0 %v1098
        %1139 = vmatpush1.bf16.msra.mxu0 %v1097
        %1140 = vmatprep.subr.bf16.mxu0 0
        %1141 = vmatpush1.bf16.msra.mxu0 0
        %1142 = vmatprep.subr.bf16.mxu0 0
        %1143 = vmatpush1.bf16.msra.mxu0 0
        %1144 = vmatprep.subr.bf16.mxu0 0
        %1145 = vmatpush1.bf16.msra.mxu0 0
        %1146 = vmatprep.subr.bf16.mxu0 0
        %1147 = vmatpush1.bf16.msra.mxu0 0
        %1148 = vmatprep.subr.bf16.mxu0 0
        %1149 = vmatpush1.bf16.msra.mxu0 0
        %1150 = vmatprep.subr.bf16.mxu0 0
        %1151 = vmatpush1.bf16.msra.mxu0 0
        %1152 = vmatprep.subr.bf16.mxu0 0
        %1153 = vmatpush1.bf16.msra.mxu0 0
        %1154 = vmatprep.subr.bf16.mxu0 0
        %1155 = vmatpush1.bf16.msra.mxu0 0
        %1156 = vmatprep.mubr.bf16.mxu0 0
        %1157 = vmatmul.mubr.bf16.gmra.mrb[0].mxu0 0
        %v1158 = vpop.f32.mrb[0].mxu0
        %v1159 = vadd.f32 %v984, %v1158
        %v1160 = vpop.f32.mrb[0].mxu0
        %v1161 = vadd.f32 %v988, %v1160
        %v1162 = vpop.f32.mrb[0].mxu0
        %v1163 = vpop.f32.mrb[0].mxu0
        %1164 = vdwg.mxu0
        %1165 = vmatprep.subr.bf16.mxu0 0
        %1166 = vmatpush1.bf16.msra.mxu0 %v1078
        %1167 = vmatprep.subr.bf16.mxu0 0
        %1168 = vmatpush1.bf16.msra.mxu0 %v1081
        %1169 = vmatprep.subr.bf16.mxu0 0
        %1170 = vmatpush1.bf16.msra.mxu0 %v1084
        %1171 = vmatprep.subr.bf16.mxu0 0
        %1172 = vmatpush1.bf16.msra.mxu0 %v1087
        %1173 = vmatprep.subr.bf16.mxu0 0
        %1174 = vmatpush1.bf16.msra.mxu0 %v1090
        %1175 = vmatprep.subr.bf16.mxu0 0
        %1176 = vmatpush1.bf16.msra.mxu0 %v1093
        %1177 = vmatprep.subr.bf16.mxu0 0
        %1178 = vmatpush1.bf16.msra.mxu0 %v1096
        %1179 = vmatprep.subr.bf16.mxu0 0
        %1180 = vmatpush1.bf16.msra.mxu0 %v1099
        %1181 = vmatprep.subr.bf16.mxu0 0
        %1182 = vmatpush1.bf16.msra.mxu0 0
        %1183 = vmatprep.subr.bf16.mxu0 0
        %1184 = vmatpush1.bf16.msra.mxu0 0
        %1185 = vmatprep.subr.bf16.mxu0 0
        %1186 = vmatpush1.bf16.msra.mxu0 0
        %1187 = vmatprep.subr.bf16.mxu0 0
        %1188 = vmatpush1.bf16.msra.mxu0 0
        %1189 = vmatprep.subr.bf16.mxu0 0
        %1190 = vmatpush1.bf16.msra.mxu0 0
        %1191 = vmatprep.subr.bf16.mxu0 0
        %1192 = vmatpush1.bf16.msra.mxu0 0
        %1193 = vmatprep.subr.bf16.mxu0 0
        %1194 = vmatpush1.bf16.msra.mxu0 0
        %1195 = vmatprep.subr.bf16.mxu0 0
        %1196 = vmatpush1.bf16.msra.mxu0 0
        %1197 = vmatprep.mubr.bf16.mxu0 0
        %1198 = vmatmul.mubr.bf16.gmra.mrb[0].mxu0 0
        %v1199 = vpop.f32.mrb[0].mxu0
        %v1200 = vadd.f32 %v992, %v1199
        %v1201 = vpop.f32.mrb[0].mxu0
        %v1202 = vpop.f32.mrb[0].mxu0
        %v1203 = vpop.f32.mrb[0].mxu0
        %1204 = vdwg.mxu0
        %v1205 = vadd.f32 %v944, %v1159
        %v1206 = vxor.u32 %v1205, 2147483648
        %v1207 = vmul.f32 %v1206, 1.442695
        %v1208 = vpow.pop %v1207
        %v1209 = vadd.f32 %v1208, 1.0
        %v1210 = vrcp.pop %v1209
        %v1211 = vmul.f32 1.0, %v1210
        %v1212 = vadd.f32 %v945, %v1161
        %v1213 = vxor.u32 %v1212, 2147483648
        %v1214 = vmul.f32 %v1213, 1.442695
        %v1215 = vpow.pop %v1214
        %v1216 = vadd.f32 %v1215, 1.0
        %v1217 = vrcp.pop %v1216
        %v1218 = vmul.f32 1.0, %v1217
        %v1219 = vmul.f32 %v1211, %v1200
        %v1220 = vadd.f32 %v946, %v1219
        %v1221 = vtanh.pop %v1220
        %v1222 = vsub.f32 1.0, %v1218
        %v1223 = vmul.f32 %v1222, %v1221
        %v1224 = vmul.f32 %v1218, 0.0
        %v1225 = vadd.f32 %v1223, %v1224
        %s1226 = smul.u32 7, 3
        %s1227 = smul.addr %s1226, 8
        %s1228 = scalar_lea.vmem [#allocation4], %s1227
        %v1229 = vld [vmem:[%s1228] sm:$0xff]
        %v1230 = vld [vmem:[%s1228 + $0x8] sm:$0xff]
        %v1231 = vld [vmem:[%s1228 + $0x10] sm:$0xff]
        %v1232 = vld [vmem:[%s517] sm:$0xff]
        %v1233 = vld [vmem:[%s517 + $0x8] sm:$0xf]
        %v1234 = vld [vmem:[%s517 + $0xc] sm:$0xff]
        %v1235 = vld [vmem:[%s517 + $0x14] sm:$0xf]
        %v1236 = vld [vmem:[%s517 + $0x18] sm:$0xff]
        %v1237 = vld [vmem:[%s517 + $0x20] sm:$0xf]
        %v1238 = vld [vmem:[%s517 + $0x24] sm:$0xff]
        %v1239 = vld [vmem:[%s517 + $0x2c] sm:$0xf]
        %v1240 = vld [vmem:[%s517 + $0x30] sm:$0xff]
        %v1241 = vld [vmem:[%s517 + $0x38] sm:$0xf]
        %v1242 = vld [vmem:[%s517 + $0x3c] sm:$0xff]
        %v1243 = vld [vmem:[%s517 + $0x44] sm:$0xf]
        %v1244 = vld [vmem:[%s517 + $0x48] sm:$0xff]
        %v1245 = vld [vmem:[%s517 + $0x50] sm:$0xf]
        %v1246 = vld [vmem:[%s517 + $0x54] sm:$0xff]
        %v1247 = vld [vmem:[%s517 + $0x5c] sm:$0xf]
        %v1248 = vld [vmem:[%s517 + $0x60] sm:$0xff]
        %v1249 = vld [vmem:[%s517 + $0x68] sm:$0xf]
        %v1250 = vld [vmem:[%s517 + $0x6c] sm:$0xff]
        %v1251 = vld [vmem:[%s517 + $0x74] sm:$0xf]
        %v1252 = vld [vmem:[%s517 + $0x78] sm:$0xff]
        %v1253 = vld [vmem:[%s517 + $0x80] sm:$0xf]
        %v1254 = vld [vmem:[%s517 + $0x84] sm:$0xff]
        %v1255 = vld [vmem:[%s517 + $0x8c] sm:$0xf]
        %v1256 = vld [vmem:[%s517 + $0x90] sm:$0xff]
        %v1257 = vld [vmem:[%s517 + $0x98] sm:$0xf]
        %v1258 = vld [vmem:[%s517 + $0x9c] sm:$0xff]
        %v1259 = vld [vmem:[%s517 + $0xa4] sm:$0xf]
        %v1260 = vld [vmem:[%s517 + $0xa8] sm:$0xff]
        %v1261 = vld [vmem:[%s517 + $0xb0] sm:$0xf]
        %v1262 = vld [vmem:[%s517 + $0xb4] sm:$0xff]
        %v1263 = vld [vmem:[%s517 + $0xbc] sm:$0xf]
        %v1264 = vld [vmem:[%s640] sm:$0x7]
        %v1266 = vlaneseq
        %v1267 = vshrl.u32 %v1266, 7
        %v1268 = vsub.s32 0, %v1267
        %v1269 = vrot.slane %v1264, %v1268
        %v1270 = vlaneseq
        %v1271 = vshrl.u32 %v1270, 7
        %v1272 = vsub.s32 1, %v1271
        %v1273 = vrot.slane %v1264, %v1272
        %v1274 = vlaneseq
        %v1275 = vshrl.u32 %v1274, 7
        %v1276 = vsub.s32 2, %v1275
        %v1277 = vrot.slane %v1264, %v1276
        %v1313 = vunpack.c.l.b16 %v1232
        %v1314 = vunpack.c.h.b16 %v1232
        %v1315 = vunpack.c.l.b16 %v1233
        %v1316 = vunpack.c.l.b16 %v1234
        %v1317 = vunpack.c.h.b16 %v1234
        %v1318 = vunpack.c.l.b16 %v1235
        %v1319 = vunpack.c.l.b16 %v1236
        %v1320 = vunpack.c.h.b16 %v1236
        %v1321 = vunpack.c.l.b16 %v1237
        %v1322 = vunpack.c.l.b16 %v1238
        %v1323 = vunpack.c.h.b16 %v1238
        %v1324 = vunpack.c.l.b16 %v1239
        %v1325 = vunpack.c.l.b16 %v1240
        %v1326 = vunpack.c.h.b16 %v1240
        %v1327 = vunpack.c.l.b16 %v1241
        %v1328 = vunpack.c.l.b16 %v1242
        %v1329 = vunpack.c.h.b16 %v1242
        %v1330 = vunpack.c.l.b16 %v1243
        %v1331 = vunpack.c.l.b16 %v1244
        %v1332 = vunpack.c.h.b16 %v1244
        %v1333 = vunpack.c.l.b16 %v1245
        %v1334 = vunpack.c.l.b16 %v1246
        %v1335 = vunpack.c.h.b16 %v1246
        %v1336 = vunpack.c.l.b16 %v1247
        %v1337 = vunpack.c.l.b16 %v1248
        %v1338 = vunpack.c.h.b16 %v1248
        %v1339 = vunpack.c.l.b16 %v1249
        %v1340 = vunpack.c.l.b16 %v1250
        %v1341 = vunpack.c.h.b16 %v1250
        %v1342 = vunpack.c.l.b16 %v1251
        %v1343 = vunpack.c.l.b16 %v1252
        %v1344 = vunpack.c.h.b16 %v1252
        %v1345 = vunpack.c.l.b16 %v1253
        %v1346 = vunpack.c.l.b16 %v1254
        %v1347 = vunpack.c.h.b16 %v1254
        %v1348 = vunpack.c.l.b16 %v1255
        %v1349 = vunpack.c.l.b16 %v1256
        %v1350 = vunpack.c.h.b16 %v1256
        %v1351 = vunpack.c.l.b16 %v1257
        %v1352 = vunpack.c.l.b16 %v1258
        %v1353 = vunpack.c.h.b16 %v1258
        %v1354 = vunpack.c.l.b16 %v1259
        %v1355 = vunpack.c.l.b16 %v1260
        %v1356 = vunpack.c.h.b16 %v1260
        %v1357 = vunpack.c.l.b16 %v1261
        %v1358 = vunpack.c.l.b16 %v1262
        %v1359 = vunpack.c.h.b16 %v1262
        %v1360 = vunpack.c.l.b16 %v1263
        %v1361 = vpack.c.b16 %v1316, %v1313
        %v1362 = vpack.c.b16 %v1317, %v1314
        %v1363 = vpack.c.b16 %v1318, %v1315
        %v1364 = vpack.c.b16 %v1322, %v1319
        %v1365 = vpack.c.b16 %v1323, %v1320
        %v1366 = vpack.c.b16 %v1324, %v1321
        %v1367 = vpack.c.b16 %v1328, %v1325
        %v1368 = vpack.c.b16 %v1329, %v1326
        %v1369 = vpack.c.b16 %v1330, %v1327
        %v1370 = vpack.c.b16 %v1334, %v1331
        %v1371 = vpack.c.b16 %v1335, %v1332
        %v1372 = vpack.c.b16 %v1336, %v1333
        %v1373 = vpack.c.b16 %v1340, %v1337
        %v1374 = vpack.c.b16 %v1341, %v1338
        %v1375 = vpack.c.b16 %v1342, %v1339
        %v1376 = vpack.c.b16 %v1346, %v1343
        %v1377 = vpack.c.b16 %v1347, %v1344
        %v1378 = vpack.c.b16 %v1348, %v1345
        %v1379 = vpack.c.b16 %v1352, %v1349
        %v1380 = vpack.c.b16 %v1353, %v1350
        %v1381 = vpack.c.b16 %v1354, %v1351
        %v1382 = vpack.c.b16 %v1358, %v1355
        %v1383 = vpack.c.b16 %v1359, %v1356
        %v1384 = vpack.c.b16 %v1360, %v1357
        %1409 = vmatprep.subr.bf16.mxu0 %v1362
        %1410 = vmatpush1.bf16.msra.mxu0 %v1361
        %1411 = vmatprep.subr.bf16.mxu0 %v1365
        %1412 = vmatpush1.bf16.msra.mxu0 %v1364
        %1413 = vmatprep.subr.bf16.mxu0 %v1368
        %1414 = vmatpush1.bf16.msra.mxu0 %v1367
        %1415 = vmatprep.subr.bf16.mxu0 %v1371
        %1416 = vmatpush1.bf16.msra.mxu0 %v1370
        %1417 = vmatprep.subr.bf16.mxu0 %v1374
        %1418 = vmatpush1.bf16.msra.mxu0 %v1373
        %1419 = vmatprep.subr.bf16.mxu0 %v1377
        %1420 = vmatpush1.bf16.msra.mxu0 %v1376
        %1421 = vmatprep.subr.bf16.mxu0 %v1380
        %1422 = vmatpush1.bf16.msra.mxu0 %v1379
        %1423 = vmatprep.subr.bf16.mxu0 %v1383
        %1424 = vmatpush1.bf16.msra.mxu0 %v1382
        %1425 = vmatprep.subr.bf16.mxu0 0
        %1426 = vmatpush1.bf16.msra.mxu0 0
        %1427 = vmatprep.subr.bf16.mxu0 0
        %1428 = vmatpush1.bf16.msra.mxu0 0
        %1429 = vmatprep.subr.bf16.mxu0 0
        %1430 = vmatpush1.bf16.msra.mxu0 0
        %1431 = vmatprep.subr.bf16.mxu0 0
        %1432 = vmatpush1.bf16.msra.mxu0 0
        %1433 = vmatprep.subr.bf16.mxu0 0
        %1434 = vmatpush1.bf16.msra.mxu0 0
        %1435 = vmatprep.subr.bf16.mxu0 0
        %1436 = vmatpush1.bf16.msra.mxu0 0
        %1437 = vmatprep.subr.bf16.mxu0 0
        %1438 = vmatpush1.bf16.msra.mxu0 0
        %1439 = vmatprep.subr.bf16.mxu0 0
        %1440 = vmatpush1.bf16.msra.mxu0 0
        %1441 = vmatprep.mubr.bf16.mxu0 0
        %1442 = vmatmul.mubr.bf16.gmra.mrb[0].mxu0 0
        %v1443 = vpop.f32.mrb[0].mxu0
        %v1444 = vadd.f32 %v1269, %v1443
        %v1445 = vpop.f32.mrb[0].mxu0
        %v1446 = vadd.f32 %v1273, %v1445
        %v1447 = vpop.f32.mrb[0].mxu0
        %v1448 = vpop.f32.mrb[0].mxu0
        %1449 = vdwg.mxu0
        %1450 = vmatprep.subr.bf16.mxu0 0
        %1451 = vmatpush1.bf16.msra.mxu0 %v1363
        %1452 = vmatprep.subr.bf16.mxu0 0
        %1453 = vmatpush1.bf16.msra.mxu0 %v1366
        %1454 = vmatprep.subr.bf16.mxu0 0
        %1455 = vmatpush1.bf16.msra.mxu0 %v1369
        %1456 = vmatprep.subr.bf16.mxu0 0
        %1457 = vmatpush1.bf16.msra.mxu0 %v1372
        %1458 = vmatprep.subr.bf16.mxu0 0
        %1459 = vmatpush1.bf16.msra.mxu0 %v1375
        %1460 = vmatprep.subr.bf16.mxu0 0
        %1461 = vmatpush1.bf16.msra.mxu0 %v1378
        %1462 = vmatprep.subr.bf16.mxu0 0
        %1463 = vmatpush1.bf16.msra.mxu0 %v1381
        %1464 = vmatprep.subr.bf16.mxu0 0
        %1465 = vmatpush1.bf16.msra.mxu0 %v1384
        %1466 = vmatprep.subr.bf16.mxu0 0
        %1467 = vmatpush1.bf16.msra.mxu0 0
        %1468 = vmatprep.subr.bf16.mxu0 0
        %1469 = vmatpush1.bf16.msra.mxu0 0
        %1470 = vmatprep.subr.bf16.mxu0 0
        %1471 = vmatpush1.bf16.msra.mxu0 0
        %1472 = vmatprep.subr.bf16.mxu0 0
        %1473 = vmatpush1.bf16.msra.mxu0 0
        %1474 = vmatprep.subr.bf16.mxu0 0
        %1475 = vmatpush1.bf16.msra.mxu0 0
        %1476 = vmatprep.subr.bf16.mxu0 0
        %1477 = vmatpush1.bf16.msra.mxu0 0
        %1478 = vmatprep.subr.bf16.mxu0 0
        %1479 = vmatpush1.bf16.msra.mxu0 0
        %1480 = vmatprep.subr.bf16.mxu0 0
        %1481 = vmatpush1.bf16.msra.mxu0 0
        %1482 = vmatprep.mubr.bf16.mxu0 0
        %1483 = vmatmul.mubr.bf16.gmra.mrb[0].mxu0 0
        %v1484 = vpop.f32.mrb[0].mxu0
        %v1485 = vadd.f32 %v1277, %v1484
        %v1486 = vpop.f32.mrb[0].mxu0
        %v1487 = vpop.f32.mrb[0].mxu0
        %v1488 = vpop.f32.mrb[0].mxu0
        %1489 = vdwg.mxu0
        %v1490 = vadd.f32 %v1229, %v1444
        %v1491 = vxor.u32 %v1490, 2147483648
        %v1492 = vmul.f32 %v1491, 1.442695
        %v1493 = vpow.pop %v1492
        %v1494 = vadd.f32 %v1493, 1.0
        %v1495 = vrcp.pop %v1494
        %v1496 = vmul.f32 1.0, %v1495
        %v1497 = vadd.f32 %v1230, %v1446
        %v1498 = vxor.u32 %v1497, 2147483648
        %v1499 = vmul.f32 %v1498, 1.442695
        %v1500 = vpow.pop %v1499
        %v1501 = vadd.f32 %v1500, 1.0
        %v1502 = vrcp.pop %v1501
        %v1503 = vmul.f32 1.0, %v1502
        %v1504 = vmul.f32 %v1496, %v1485
        %v1505 = vadd.f32 %v1231, %v1504
        %v1506 = vtanh.pop %v1505
        %v1507 = vsub.f32 1.0, %v1503
        %v1508 = vmul.f32 %v1507, %v1506
        %v1509 = vmul.f32 %v1503, 0.0
        %v1510 = vadd.f32 %v1508, %v1509
        %1511 = vst [vmem:[#allocation5] sm:$0xff] %v1225
        %s1512 = scalar_lea.vmem [#allocation6], 56
        %1513 = vst [vmem:[%s1512] sm:$0xff] %v1510
        %s1514 = smul.u32 1, 3
        %s1515 = smul.addr %s1514, 8
        %s1516 = scalar_lea.vmem [#allocation3], %s1515
        %v1517 = vld [vmem:[%s1516] sm:$0xff]
        %v1518 = vld [vmem:[%s1516 + $0x8] sm:$0xff]
        %v1519 = vld [vmem:[%s1516 + $0x10] sm:$0xff]
        %v1520 = vpack.c.bf16 %v1225, %v1225
        %v1521 = vld [vmem:[%s620] sm:$0xff]
        %v1522 = vld [vmem:[%s620 + $0x8] sm:$0xf]
        %v1523 = vld [vmem:[%s620 + $0xc] sm:$0xff]
        %v1524 = vld [vmem:[%s620 + $0x14] sm:$0xf]
        %v1525 = vld [vmem:[%s620 + $0x18] sm:$0xff]
        %v1526 = vld [vmem:[%s620 + $0x20] sm:$0xf]
        %v1527 = vld [vmem:[%s620 + $0x24] sm:$0xff]
        %v1528 = vld [vmem:[%s620 + $0x2c] sm:$0xf]
        %v1529 = vld [vmem:[%s620 + $0x30] sm:$0xff]
        %v1530 = vld [vmem:[%s620 + $0x38] sm:$0xf]
        %v1531 = vld [vmem:[%s620 + $0x3c] sm:$0xff]
        %v1532 = vld [vmem:[%s620 + $0x44] sm:$0xf]
        %v1533 = vld [vmem:[%s620 + $0x48] sm:$0xff]
        %v1534 = vld [vmem:[%s620 + $0x50] sm:$0xf]
        %v1535 = vld [vmem:[%s620 + $0x54] sm:$0xff]
        %v1536 = vld [vmem:[%s620 + $0x5c] sm:$0xf]
        %v1537 = vld [vmem:[%s620 + $0x60] sm:$0xff]
        %v1538 = vld [vmem:[%s620 + $0x68] sm:$0xf]
        %v1539 = vld [vmem:[%s620 + $0x6c] sm:$0xff]
        %v1540 = vld [vmem:[%s620 + $0x74] sm:$0xf]
        %v1541 = vld [vmem:[%s620 + $0x78] sm:$0xff]
        %v1542 = vld [vmem:[%s620 + $0x80] sm:$0xf]
        %v1543 = vld [vmem:[%s620 + $0x84] sm:$0xff]
        %v1544 = vld [vmem:[%s620 + $0x8c] sm:$0xf]
        %v1545 = vld [vmem:[%s620 + $0x90] sm:$0xff]
        %v1546 = vld [vmem:[%s620 + $0x98] sm:$0xf]
        %v1547 = vld [vmem:[%s620 + $0x9c] sm:$0xff]
        %v1548 = vld [vmem:[%s620 + $0xa4] sm:$0xf]
        %v1549 = vld [vmem:[%s620 + $0xa8] sm:$0xff]
        %v1550 = vld [vmem:[%s620 + $0xb0] sm:$0xf]
        %v1551 = vld [vmem:[%s620 + $0xb4] sm:$0xff]
        %v1552 = vld [vmem:[%s620 + $0xbc] sm:$0xf]
        %v1553 = vld [vmem:[%s628] sm:$0x7]
        %v1555 = vlaneseq
        %v1556 = vshrl.u32 %v1555, 7
        %v1557 = vsub.s32 0, %v1556
        %v1558 = vrot.slane %v1553, %v1557
        %v1559 = vlaneseq
        %v1560 = vshrl.u32 %v1559, 7
        %v1561 = vsub.s32 1, %v1560
        %v1562 = vrot.slane %v1553, %v1561
        %v1563 = vlaneseq
        %v1564 = vshrl.u32 %v1563, 7
        %v1565 = vsub.s32 2, %v1564
        %v1566 = vrot.slane %v1553, %v1565
        %v1602 = vunpack.c.l.b16 %v1521
        %v1603 = vunpack.c.h.b16 %v1521
        %v1604 = vunpack.c.l.b16 %v1522
        %v1605 = vunpack.c.l.b16 %v1523
        %v1606 = vunpack.c.h.b16 %v1523
        %v1607 = vunpack.c.l.b16 %v1524
        %v1608 = vunpack.c.l.b16 %v1525
        %v1609 = vunpack.c.h.b16 %v1525
        %v1610 = vunpack.c.l.b16 %v1526
        %v1611 = vunpack.c.l.b16 %v1527
        %v1612 = vunpack.c.h.b16 %v1527
        %v1613 = vunpack.c.l.b16 %v1528
        %v1614 = vunpack.c.l.b16 %v1529
        %v1615 = vunpack.c.h.b16 %v1529
        %v1616 = vunpack.c.l.b16 %v1530
        %v1617 = vunpack.c.l.b16 %v1531
        %v1618 = vunpack.c.h.b16 %v1531
        %v1619 = vunpack.c.l.b16 %v1532
        %v1620 = vunpack.c.l.b16 %v1533
        %v1621 = vunpack.c.h.b16 %v1533
        %v1622 = vunpack.c.l.b16 %v1534
        %v1623 = vunpack.c.l.b16 %v1535
        %v1624 = vunpack.c.h.b16 %v1535
        %v1625 = vunpack.c.l.b16 %v1536
        %v1626 = vunpack.c.l.b16 %v1537
        %v1627 = vunpack.c.h.b16 %v1537
        %v1628 = vunpack.c.l.b16 %v1538
        %v1629 = vunpack.c.l.b16 %v1539
        %v1630 = vunpack.c.h.b16 %v1539
        %v1631 = vunpack.c.l.b16 %v1540
        %v1632 = vunpack.c.l.b16 %v1541
        %v1633 = vunpack.c.h.b16 %v1541
        %v1634 = vunpack.c.l.b16 %v1542
        %v1635 = vunpack.c.l.b16 %v1543
        %v1636 = vunpack.c.h.b16 %v1543
        %v1637 = vunpack.c.l.b16 %v1544
        %v1638 = vunpack.c.l.b16 %v1545
        %v1639 = vunpack.c.h.b16 %v1545
        %v1640 = vunpack.c.l.b16 %v1546
        %v1641 = vunpack.c.l.b16 %v1547
        %v1642 = vunpack.c.h.b16 %v1547
        %v1643 = vunpack.c.l.b16 %v1548
        %v1644 = vunpack.c.l.b16 %v1549
        %v1645 = vunpack.c.h.b16 %v1549
        %v1646 = vunpack.c.l.b16 %v1550
        %v1647 = vunpack.c.l.b16 %v1551
        %v1648 = vunpack.c.h.b16 %v1551
        %v1649 = vunpack.c.l.b16 %v1552
        %v1650 = vpack.c.b16 %v1605, %v1602
        %v1651 = vpack.c.b16 %v1606, %v1603
        %v1652 = vpack.c.b16 %v1607, %v1604
        %v1653 = vpack.c.b16 %v1611, %v1608
        %v1654 = vpack.c.b16 %v1612, %v1609
        %v1655 = vpack.c.b16 %v1613, %v1610
        %v1656 = vpack.c.b16 %v1617, %v1614
        %v1657 = vpack.c.b16 %v1618, %v1615
        %v1658 = vpack.c.b16 %v1619, %v1616
        %v1659 = vpack.c.b16 %v1623, %v1620
        %v1660 = vpack.c.b16 %v1624, %v1621
        %v1661 = vpack.c.b16 %v1625, %v1622
        %v1662 = vpack.c.b16 %v1629, %v1626
        %v1663 = vpack.c.b16 %v1630, %v1627
        %v1664 = vpack.c.b16 %v1631, %v1628
        %v1665 = vpack.c.b16 %v1635, %v1632
        %v1666 = vpack.c.b16 %v1636, %v1633
        %v1667 = vpack.c.b16 %v1637, %v1634
        %v1668 = vpack.c.b16 %v1641, %v1638
        %v1669 = vpack.c.b16 %v1642, %v1639
        %v1670 = vpack.c.b16 %v1643, %v1640
        %v1671 = vpack.c.b16 %v1647, %v1644
        %v1672 = vpack.c.b16 %v1648, %v1645
        %v1673 = vpack.c.b16 %v1649, %v1646
        %1698 = vmatprep.subr.bf16.mxu0 %v1651
        %1699 = vmatpush1.bf16.msra.mxu0 %v1650
        %1700 = vmatprep.subr.bf16.mxu0 %v1654
        %1701 = vmatpush1.bf16.msra.mxu0 %v1653
        %1702 = vmatprep.subr.bf16.mxu0 %v1657
        %1703 = vmatpush1.bf16.msra.mxu0 %v1656
        %1704 = vmatprep.subr.bf16.mxu0 %v1660
        %1705 = vmatpush1.bf16.msra.mxu0 %v1659
        %1706 = vmatprep.subr.bf16.mxu0 %v1663
        %1707 = vmatpush1.bf16.msra.mxu0 %v1662
        %1708 = vmatprep.subr.bf16.mxu0 %v1666
        %1709 = vmatpush1.bf16.msra.mxu0 %v1665
        %1710 = vmatprep.subr.bf16.mxu0 %v1669
        %1711 = vmatpush1.bf16.msra.mxu0 %v1668
        %1712 = vmatprep.subr.bf16.mxu0 %v1672
        %1713 = vmatpush1.bf16.msra.mxu0 %v1671
        %1714 = vmatprep.subr.bf16.mxu0 0
        %1715 = vmatpush1.bf16.msra.mxu0 0
        %1716 = vmatprep.subr.bf16.mxu0 0
        %1717 = vmatpush1.bf16.msra.mxu0 0
        %1718 = vmatprep.subr.bf16.mxu0 0
        %1719 = vmatpush1.bf16.msra.mxu0 0
        %1720 = vmatprep.subr.bf16.mxu0 0
        %1721 = vmatpush1.bf16.msra.mxu0 0
        %1722 = vmatprep.subr.bf16.mxu0 0
        %1723 = vmatpush1.bf16.msra.mxu0 0
        %1724 = vmatprep.subr.bf16.mxu0 0
        %1725 = vmatpush1.bf16.msra.mxu0 0
        %1726 = vmatprep.subr.bf16.mxu0 0
        %1727 = vmatpush1.bf16.msra.mxu0 0
        %1728 = vmatprep.subr.bf16.mxu0 0
        %1729 = vmatpush1.bf16.msra.mxu0 0
        %1730 = vmatprep.mubr.bf16.mxu0 0
        %1731 = vmatmul.mubr.bf16.gmra.mrb[0].mxu0 %v1520
        %v1732 = vpop.f32.mrb[0].mxu0
        %v1733 = vadd.f32 %v1558, %v1732
        %v1734 = vpop.f32.mrb[0].mxu0
        %v1735 = vadd.f32 %v1562, %v1734
        %v1736 = vpop.f32.mrb[0].mxu0
        %v1737 = vpop.f32.mrb[0].mxu0
        %1738 = vdwg.mxu0
        %1739 = vmatprep.subr.bf16.mxu0 0
        %1740 = vmatpush1.bf16.msra.mxu0 %v1652
        %1741 = vmatprep.subr.bf16.mxu0 0
        %1742 = vmatpush1.bf16.msra.mxu0 %v1655
        %1743 = vmatprep.subr.bf16.mxu0 0
        %1744 = vmatpush1.bf16.msra.mxu0 %v1658
        %1745 = vmatprep.subr.bf16.mxu0 0
        %1746 = vmatpush1.bf16.msra.mxu0 %v1661
        %1747 = vmatprep.subr.bf16.mxu0 0
        %1748 = vmatpush1.bf16.msra.mxu0 %v1664
        %1749 = vmatprep.subr.bf16.mxu0 0
        %1750 = vmatpush1.bf16.msra.mxu0 %v1667
        %1751 = vmatprep.subr.bf16.mxu0 0
        %1752 = vmatpush1.bf16.msra.mxu0 %v1670
        %1753 = vmatprep.subr.bf16.mxu0 0
        %1754 = vmatpush1.bf16.msra.mxu0 %v1673
        %1755 = vmatprep.subr.bf16.mxu0 0
        %1756 = vmatpush1.bf16.msra.mxu0 0
        %1757 = vmatprep.subr.bf16.mxu0 0
        %1758 = vmatpush1.bf16.msra.mxu0 0
        %1759 = vmatprep.subr.bf16.mxu0 0
        %1760 = vmatpush1.bf16.msra.mxu0 0
        %1761 = vmatprep.subr.bf16.mxu0 0
        %1762 = vmatpush1.bf16.msra.mxu0 0
        %1763 = vmatprep.subr.bf16.mxu0 0
        %1764 = vmatpush1.bf16.msra.mxu0 0
        %1765 = vmatprep.subr.bf16.mxu0 0
        %1766 = vmatpush1.bf16.msra.mxu0 0
        %1767 = vmatprep.subr.bf16.mxu0 0
        %1768 = vmatpush1.bf16.msra.mxu0 0
        %1769 = vmatprep.subr.bf16.mxu0 0
        %1770 = vmatpush1.bf16.msra.mxu0 0
        %1771 = vmatprep.mubr.bf16.mxu0 0
        %1772 = vmatmul.mubr.bf16.gmra.mrb[0].mxu0 %v1520
        %v1773 = vpop.f32.mrb[0].mxu0
        %v1774 = vadd.f32 %v1566, %v1773
        %v1775 = vpop.f32.mrb[0].mxu0
        %v1776 = vpop.f32.mrb[0].mxu0
        %v1777 = vpop.f32.mrb[0].mxu0
        %1778 = vdwg.mxu0
        %v1779 = vadd.f32 %v1517, %v1733
        %v1780 = vxor.u32 %v1779, 2147483648
        %v1781 = vmul.f32 %v1780, 1.442695
        %v1782 = vpow.pop %v1781
        %v1783 = vadd.f32 %v1782, 1.0
        %v1784 = vrcp.pop %v1783
        %v1785 = vmul.f32 1.0, %v1784
        %v1786 = vadd.f32 %v1518, %v1735
        %v1787 = vxor.u32 %v1786, 2147483648
        %v1788 = vmul.f32 %v1787, 1.442695
        %v1789 = vpow.pop %v1788
        %v1790 = vadd.f32 %v1789, 1.0
        %v1791 = vrcp.pop %v1790
        %v1792 = vmul.f32 1.0, %v1791
        %v1793 = vmul.f32 %v1785, %v1774
        %v1794 = vadd.f32 %v1519, %v1793
        %v1795 = vtanh.pop %v1794
        %v1796 = vsub.f32 1.0, %v1792
        %v1797 = vmul.f32 %v1796, %v1795
        %v1798 = vmul.f32 %v1792, %v1225
        %v1799 = vadd.f32 %v1797, %v1798
        %s1800 = smul.u32 6, 3
        %s1801 = smul.addr %s1800, 8
        %s1802 = scalar_lea.vmem [#allocation4], %s1801
        %v1803 = vld [vmem:[%s1802] sm:$0xff]
        %v1804 = vld [vmem:[%s1802 + $0x8] sm:$0xff]
        %v1805 = vld [vmem:[%s1802 + $0x10] sm:$0xff]
        %v1806 = vpack.c.bf16 %v1510, %v1510
        %v1807 = vld [vmem:[%s517] sm:$0xff]
        %v1808 = vld [vmem:[%s517 + $0x8] sm:$0xf]
        %v1809 = vld [vmem:[%s517 + $0xc] sm:$0xff]
        %v1810 = vld [vmem:[%s517 + $0x14] sm:$0xf]
        %v1811 = vld [vmem:[%s517 + $0x18] sm:$0xff]
        %v1812 = vld [vmem:[%s517 + $0x20] sm:$0xf]
        %v1813 = vld [vmem:[%s517 + $0x24] sm:$0xff]
        %v1814 = vld [vmem:[%s517 + $0x2c] sm:$0xf]
        %v1815 = vld [vmem:[%s517 + $0x30] sm:$0xff]
        %v1816 = vld [vmem:[%s517 + $0x38] sm:$0xf]
        %v1817 = vld [vmem:[%s517 + $0x3c] sm:$0xff]
        %v1818 = vld [vmem:[%s517 + $0x44] sm:$0xf]
        %v1819 = vld [vmem:[%s517 + $0x48] sm:$0xff]
        %v1820 = vld [vmem:[%s517 + $0x50] sm:$0xf]
        %v1821 = vld [vmem:[%s517 + $0x54] sm:$0xff]
        %v1822 = vld [vmem:[%s517 + $0x5c] sm:$0xf]
        %v1823 = vld [vmem:[%s517 + $0x60] sm:$0xff]
        %v1824 = vld [vmem:[%s517 + $0x68] sm:$0xf]
        %v1825 = vld [vmem:[%s517 + $0x6c] sm:$0xff]
        %v1826 = vld [vmem:[%s517 + $0x74] sm:$0xf]
        %v1827 = vld [vmem:[%s517 + $0x78] sm:$0xff]
        %v1828 = vld [vmem:[%s517 + $0x80] sm:$0xf]
        %v1829 = vld [vmem:[%s517 + $0x84] sm:$0xff]
        %v1830 = vld [vmem:[%s517 + $0x8c] sm:$0xf]
        %v1831 = vld [vmem:[%s517 + $0x90] sm:$0xff]
        %v1832 = vld [vmem:[%s517 + $0x98] sm:$0xf]
        %v1833 = vld [vmem:[%s517 + $0x9c] sm:$0xff]
        %v1834 = vld [vmem:[%s517 + $0xa4] sm:$0xf]
        %v1835 = vld [vmem:[%s517 + $0xa8] sm:$0xff]
        %v1836 = vld [vmem:[%s517 + $0xb0] sm:$0xf]
        %v1837 = vld [vmem:[%s517 + $0xb4] sm:$0xff]
        %v1838 = vld [vmem:[%s517 + $0xbc] sm:$0xf]
        %v1839 = vld [vmem:[%s640] sm:$0x7]
        %v1841 = vlaneseq
        %v1842 = vshrl.u32 %v1841, 7
        %v1843 = vsub.s32 0, %v1842
        %v1844 = vrot.slane %v1839, %v1843
        %v1845 = vlaneseq
        %v1846 = vshrl.u32 %v1845, 7
        %v1847 = vsub.s32 1, %v1846
        %v1848 = vrot.slane %v1839, %v1847
        %v1849 = vlaneseq
        %v1850 = vshrl.u32 %v1849, 7
        %v1851 = vsub.s32 2, %v1850
        %v1852 = vrot.slane %v1839, %v1851
        %v1888 = vunpack.c.l.b16 %v1807
        %v1889 = vunpack.c.h.b16 %v1807
        %v1890 = vunpack.c.l.b16 %v1808
        %v1891 = vunpack.c.l.b16 %v1809
        %v1892 = vunpack.c.h.b16 %v1809
        %v1893 = vunpack.c.l.b16 %v1810
        %v1894 = vunpack.c.l.b16 %v1811
        %v1895 = vunpack.c.h.b16 %v1811
        %v1896 = vunpack.c.l.b16 %v1812
        %v1897 = vunpack.c.l.b16 %v1813
        %v1898 = vunpack.c.h.b16 %v1813
        %v1899 = vunpack.c.l.b16 %v1814
        %v1900 = vunpack.c.l.b16 %v1815
        %v1901 = vunpack.c.h.b16 %v1815
        %v1902 = vunpack.c.l.b16 %v1816
        %v1903 = vunpack.c.l.b16 %v1817
        %v1904 = vunpack.c.h.b16 %v1817
        %v1905 = vunpack.c.l.b16 %v1818
        %v1906 = vunpack.c.l.b16 %v1819
        %v1907 = vunpack.c.h.b16 %v1819
        %v1908 = vunpack.c.l.b16 %v1820
        %v1909 = vunpack.c.l.b16 %v1821
        %v1910 = vunpack.c.h.b16 %v1821
        %v1911 = vunpack.c.l.b16 %v1822
        %v1912 = vunpack.c.l.b16 %v1823
        %v1913 = vunpack.c.h.b16 %v1823
        %v1914 = vunpack.c.l.b16 %v1824
        %v1915 = vunpack.c.l.b16 %v1825
        %v1916 = vunpack.c.h.b16 %v1825
        %v1917 = vunpack.c.l.b16 %v1826
        %v1918 = vunpack.c.l.b16 %v1827
        %v1919 = vunpack.c.h.b16 %v1827
        %v1920 = vunpack.c.l.b16 %v1828
        %v1921 = vunpack.c.l.b16 %v1829
        %v1922 = vunpack.c.h.b16 %v1829
        %v1923 = vunpack.c.l.b16 %v1830
        %v1924 = vunpack.c.l.b16 %v1831
        %v1925 = vunpack.c.h.b16 %v1831
        %v1926 = vunpack.c.l.b16 %v1832
        %v1927 = vunpack.c.l.b16 %v1833
        %v1928 = vunpack.c.h.b16 %v1833
        %v1929 = vunpack.c.l.b16 %v1834
        %v1930 = vunpack.c.l.b16 %v1835
        %v1931 = vunpack.c.h.b16 %v1835
        %v1932 = vunpack.c.l.b16 %v1836
        %v1933 = vunpack.c.l.b16 %v1837
        %v1934 = vunpack.c.h.b16 %v1837
        %v1935 = vunpack.c.l.b16 %v1838
        %v1936 = vpack.c.b16 %v1891, %v1888
        %v1937 = vpack.c.b16 %v1892, %v1889
        %v1938 = vpack.c.b16 %v1893, %v1890
        %v1939 = vpack.c.b16 %v1897, %v1894
        %v1940 = vpack.c.b16 %v1898, %v1895
        %v1941 = vpack.c.b16 %v1899, %v1896
        %v1942 = vpack.c.b16 %v1903, %v1900
        %v1943 = vpack.c.b16 %v1904, %v1901
        %v1944 = vpack.c.b16 %v1905, %v1902
        %v1945 = vpack.c.b16 %v1909, %v1906
        %v1946 = vpack.c.b16 %v1910, %v1907
        %v1947 = vpack.c.b16 %v1911, %v1908
        %v1948 = vpack.c.b16 %v1915, %v1912
        %v1949 = vpack.c.b16 %v1916, %v1913
        %v1950 = vpack.c.b16 %v1917, %v1914
        %v1951 = vpack.c.b16 %v1921, %v1918
        %v1952 = vpack.c.b16 %v1922, %v1919
        %v1953 = vpack.c.b16 %v1923, %v1920
        %v1954 = vpack.c.b16 %v1927, %v1924
        %v1955 = vpack.c.b16 %v1928, %v1925
        %v1956 = vpack.c.b16 %v1929, %v1926
        %v1957 = vpack.c.b16 %v1933, %v1930
        %v1958 = vpack.c.b16 %v1934, %v1931
        %v1959 = vpack.c.b16 %v1935, %v1932
        %1984 = vmatprep.subr.bf16.mxu0 %v1937
        %1985 = vmatpush1.bf16.msra.mxu0 %v1936
        %1986 = vmatprep.subr.bf16.mxu0 %v1940
        %1987 = vmatpush1.bf16.msra.mxu0 %v1939
        %1988 = vmatprep.subr.bf16.mxu0 %v1943
        %1989 = vmatpush1.bf16.msra.mxu0 %v1942
        %1990 = vmatprep.subr.bf16.mxu0 %v1946
        %1991 = vmatpush1.bf16.msra.mxu0 %v1945
        %1992 = vmatprep.subr.bf16.mxu0 %v1949
        %1993 = vmatpush1.bf16.msra.mxu0 %v1948
        %1994 = vmatprep.subr.bf16.mxu0 %v1952
        %1995 = vmatpush1.bf16.msra.mxu0 %v1951
        %1996 = vmatprep.subr.bf16.mxu0 %v1955
        %1997 = vmatpush1.bf16.msra.mxu0 %v1954
        %1998 = vmatprep.subr.bf16.mxu0 %v1958
        %1999 = vmatpush1.bf16.msra.mxu0 %v1957
        %2000 = vmatprep.subr.bf16.mxu0 0
        %2001 = vmatpush1.bf16.msra.mxu0 0
        %2002 = vmatprep.subr.bf16.mxu0 0
        %2003 = vmatpush1.bf16.msra.mxu0 0
        %2004 = vmatprep.subr.bf16.mxu0 0
        %2005 = vmatpush1.bf16.msra.mxu0 0
        %2006 = vmatprep.subr.bf16.mxu0 0
        %2007 = vmatpush1.bf16.msra.mxu0 0
        %2008 = vmatprep.subr.bf16.mxu0 0
        %2009 = vmatpush1.bf16.msra.mxu0 0
        %2010 = vmatprep.subr.bf16.mxu0 0
        %2011 = vmatpush1.bf16.msra.mxu0 0
        %2012 = vmatprep.subr.bf16.mxu0 0
        %2013 = vmatpush1.bf16.msra.mxu0 0
        %2014 = vmatprep.subr.bf16.mxu0 0
        %2015 = vmatpush1.bf16.msra.mxu0 0
        %2016 = vmatprep.mubr.bf16.mxu0 0
        %2017 = vmatmul.mubr.bf16.gmra.mrb[0].mxu0 %v1806
        %v2018 = vpop.f32.mrb[0].mxu0
        %v2019 = vadd.f32 %v1844, %v2018
        %v2020 = vpop.f32.mrb[0].mxu0
        %v2021 = vadd.f32 %v1848, %v2020
        %v2022 = vpop.f32.mrb[0].mxu0
        %v2023 = vpop.f32.mrb[0].mxu0
        %2024 = vdwg.mxu0
        %2025 = vmatprep.subr.bf16.mxu0 0
        %2026 = vmatpush1.bf16.msra.mxu0 %v1938
        %2027 = vmatprep.subr.bf16.mxu0 0
        %2028 = vmatpush1.bf16.msra.mxu0 %v1941
        %2029 = vmatprep.subr.bf16.mxu0 0
        %2030 = vmatpush1.bf16.msra.mxu0 %v1944
        %2031 = vmatprep.subr.bf16.mxu0 0
        %2032 = vmatpush1.bf16.msra.mxu0 %v1947
        %2033 = vmatprep.subr.bf16.mxu0 0
        %2034 = vmatpush1.bf16.msra.mxu0 %v1950
        %2035 = vmatprep.subr.bf16.mxu0 0
        %2036 = vmatpush1.bf16.msra.mxu0 %v1953
        %2037 = vmatprep.subr.bf16.mxu0 0
        %2038 = vmatpush1.bf16.msra.mxu0 %v1956
        %2039 = vmatprep.subr.bf16.mxu0 0
        %2040 = vmatpush1.bf16.msra.mxu0 %v1959
        %2041 = vmatprep.subr.bf16.mxu0 0
        %2042 = vmatpush1.bf16.msra.mxu0 0
        %2043 = vmatprep.subr.bf16.mxu0 0
        %2044 = vmatpush1.bf16.msra.mxu0 0
        %2045 = vmatprep.subr.bf16.mxu0 0
        %2046 = vmatpush1.bf16.msra.mxu0 0
        %2047 = vmatprep.subr.bf16.mxu0 0
        %2048 = vmatpush1.bf16.msra.mxu0 0
        %2049 = vmatprep.subr.bf16.mxu0 0
        %2050 = vmatpush1.bf16.msra.mxu0 0
        %2051 = vmatprep.subr.bf16.mxu0 0
        %2052 = vmatpush1.bf16.msra.mxu0 0
        %2053 = vmatprep.subr.bf16.mxu0 0
        %2054 = vmatpush1.bf16.msra.mxu0 0
        %2055 = vmatprep.subr.bf16.mxu0 0
        %2056 = vmatpush1.bf16.msra.mxu0 0
        %2057 = vmatprep.mubr.bf16.mxu0 0
        %2058 = vmatmul.mubr.bf16.gmra.mrb[0].mxu0 %v1806
        %v2059 = vpop.f32.mrb[0].mxu0
        %v2060 = vadd.f32 %v1852, %v2059
        %v2061 = vpop.f32.mrb[0].mxu0
        %v2062 = vpop.f32.mrb[0].mxu0
        %v2063 = vpop.f32.mrb[0].mxu0
        %2064 = vdwg.mxu0
        %v2065 = vadd.f32 %v1803, %v2019
        %v2066 = vxor.u32 %v2065, 2147483648
        %v2067 = vmul.f32 %v2066, 1.442695
        %v2068 = vpow.pop %v2067
        %v2069 = vadd.f32 %v2068, 1.0
        %v2070 = vrcp.pop %v2069
        %v2071 = vmul.f32 1.0, %v2070
        %v2072 = vadd.f32 %v1804, %v2021
        %v2073 = vxor.u32 %v2072, 2147483648
        %v2074 = vmul.f32 %v2073, 1.442695
        %v2075 = vpow.pop %v2074
        %v2076 = vadd.f32 %v2075, 1.0
        %v2077 = vrcp.pop %v2076
        %v2078 = vmul.f32 1.0, %v2077
        %v2079 = vmul.f32 %v2071, %v2060
        %v2080 = vadd.f32 %v1805, %v2079
        %v2081 = vtanh.pop %v2080
        %v2082 = vsub.f32 1.0, %v2078
        %v2083 = vmul.f32 %v2082, %v2081
        %v2084 = vmul.f32 %v2078, %v1510
        %v2085 = vadd.f32 %v2083, %v2084
        %s2086 = scalar_lea.vmem [#allocation5], 8
        %2087 = vst [vmem:[%s2086] sm:$0xff] %v1799
        %s2088 = scalar_lea.vmem [#allocation6], 48
        %2089 = vst [vmem:[%s2088] sm:$0xff] %v2085
        %s2090 = smul.u32 2, 3
        %s2091 = smul.addr %s2090, 8
        %s2092 = scalar_lea.vmem [#allocation3], %s2091
        %v2093 = vld [vmem:[%s2092] sm:$0xff]
        %v2094 = vld [vmem:[%s2092 + $0x8] sm:$0xff]
        %v2095 = vld [vmem:[%s2092 + $0x10] sm:$0xff]
        %v2096 = vpack.c.bf16 %v1799, %v1799
        %v2097 = vld [vmem:[%s620] sm:$0xff]
        %v2098 = vld [vmem:[%s620 + $0x8] sm:$0xf]
        %v2099 = vld [vmem:[%s620 + $0xc] sm:$0xff]
        %v2100 = vld [vmem:[%s620 + $0x14] sm:$0xf]
        %v2101 = vld [vmem:[%s620 + $0x18] sm:$0xff]
        %v2102 = vld [vmem:[%s620 + $0x20] sm:$0xf]
        %v2103 = vld [vmem:[%s620 + $0x24] sm:$0xff]
        %v2104 = vld [vmem:[%s620 + $0x2c] sm:$0xf]
        %v2105 = vld [vmem:[%s620 + $0x30] sm:$0xff]
        %v2106 = vld [vmem:[%s620 + $0x38] sm:$0xf]
        %v2107 = vld [vmem:[%s620 + $0x3c] sm:$0xff]
        %v2108 = vld [vmem:[%s620 + $0x44] sm:$0xf]
        %v2109 = vld [vmem:[%s620 + $0x48] sm:$0xff]
        %v2110 = vld [vmem:[%s620 + $0x50] sm:$0xf]
        %v2111 = vld [vmem:[%s620 + $0x54] sm:$0xff]
        %v2112 = vld [vmem:[%s620 + $0x5c] sm:$0xf]
        %v2113 = vld [vmem:[%s620 + $0x60] sm:$0xff]
        %v2114 = vld [vmem:[%s620 + $0x68] sm:$0xf]
        %v2115 = vld [vmem:[%s620 + $0x6c] sm:$0xff]
        %v2116 = vld [vmem:[%s620 + $0x74] sm:$0xf]
        %v2117 = vld [vmem:[%s620 + $0x78] sm:$0xff]
        %v2118 = vld [vmem:[%s620 + $0x80] sm:$0xf]
        %v2119 = vld [vmem:[%s620 + $0x84] sm:$0xff]
        %v2120 = vld [vmem:[%s620 + $0x8c] sm:$0xf]
        %v2121 = vld [vmem:[%s620 + $0x90] sm:$0xff]
        %v2122 = vld [vmem:[%s620 + $0x98] sm:$0xf]
        %v2123 = vld [vmem:[%s620 + $0x9c] sm:$0xff]
        %v2124 = vld [vmem:[%s620 + $0xa4] sm:$0xf]
        %v2125 = vld [vmem:[%s620 + $0xa8] sm:$0xff]
        %v2126 = vld [vmem:[%s620 + $0xb0] sm:$0xf]
        %v2127 = vld [vmem:[%s620 + $0xb4] sm:$0xff]
        %v2128 = vld [vmem:[%s620 + $0xbc] sm:$0xf]
        %v2129 = vld [vmem:[%s628] sm:$0x7]
        %v2131 = vlaneseq
        %v2132 = vshrl.u32 %v2131, 7
        %v2133 = vsub.s32 0, %v2132
        %v2134 = vrot.slane %v2129, %v2133
        %v2135 = vlaneseq
        %v2136 = vshrl.u32 %v2135, 7
        %v2137 = vsub.s32 1, %v2136
        %v2138 = vrot.slane %v2129, %v2137
        %v2139 = vlaneseq
        %v2140 = vshrl.u32 %v2139, 7
        %v2141 = vsub.s32 2, %v2140
        %v2142 = vrot.slane %v2129, %v2141
        %v2178 = vunpack.c.l.b16 %v2097
        %v2179 = vunpack.c.h.b16 %v2097
        %v2180 = vunpack.c.l.b16 %v2098
        %v2181 = vunpack.c.l.b16 %v2099
        %v2182 = vunpack.c.h.b16 %v2099
        %v2183 = vunpack.c.l.b16 %v2100
        %v2184 = vunpack.c.l.b16 %v2101
        %v2185 = vunpack.c.h.b16 %v2101
        %v2186 = vunpack.c.l.b16 %v2102
        %v2187 = vunpack.c.l.b16 %v2103
        %v2188 = vunpack.c.h.b16 %v2103
        %v2189 = vunpack.c.l.b16 %v2104
        %v2190 = vunpack.c.l.b16 %v2105
        %v2191 = vunpack.c.h.b16 %v2105
        %v2192 = vunpack.c.l.b16 %v2106
        %v2193 = vunpack.c.l.b16 %v2107
        %v2194 = vunpack.c.h.b16 %v2107
        %v2195 = vunpack.c.l.b16 %v2108
        %v2196 = vunpack.c.l.b16 %v2109
        %v2197 = vunpack.c.h.b16 %v2109
        %v2198 = vunpack.c.l.b16 %v2110
        %v2199 = vunpack.c.l.b16 %v2111
        %v2200 = vunpack.c.h.b16 %v2111
        %v2201 = vunpack.c.l.b16 %v2112
        %v2202 = vunpack.c.l.b16 %v2113
        %v2203 = vunpack.c.h.b16 %v2113
        %v2204 = vunpack.c.l.b16 %v2114
        %v2205 = vunpack.c.l.b16 %v2115
        %v2206 = vunpack.c.h.b16 %v2115
        %v2207 = vunpack.c.l.b16 %v2116
        %v2208 = vunpack.c.l.b16 %v2117
        %v2209 = vunpack.c.h.b16 %v2117
        %v2210 = vunpack.c.l.b16 %v2118
        %v2211 = vunpack.c.l.b16 %v2119
        %v2212 = vunpack.c.h.b16 %v2119
        %v2213 = vunpack.c.l.b16 %v2120
        %v2214 = vunpack.c.l.b16 %v2121
        %v2215 = vunpack.c.h.b16 %v2121
        %v2216 = vunpack.c.l.b16 %v2122
        %v2217 = vunpack.c.l.b16 %v2123
        %v2218 = vunpack.c.h.b16 %v2123
        %v2219 = vunpack.c.l.b16 %v2124
        %v2220 = vunpack.c.l.b16 %v2125
        %v2221 = vunpack.c.h.b16 %v2125
        %v2222 = vunpack.c.l.b16 %v2126
        %v2223 = vunpack.c.l.b16 %v2127
        %v2224 = vunpack.c.h.b16 %v2127
        %v2225 = vunpack.c.l.b16 %v2128
        %v2226 = vpack.c.b16 %v2181, %v2178
        %v2227 = vpack.c.b16 %v2182, %v2179
        %v2228 = vpack.c.b16 %v2183, %v2180
        %v2229 = vpack.c.b16 %v2187, %v2184
        %v2230 = vpack.c.b16 %v2188, %v2185
        %v2231 = vpack.c.b16 %v2189, %v2186
        %v2232 = vpack.c.b16 %v2193, %v2190
        %v2233 = vpack.c.b16 %v2194, %v2191
        %v2234 = vpack.c.b16 %v2195, %v2192
        %v2235 = vpack.c.b16 %v2199, %v2196
        %v2236 = vpack.c.b16 %v2200, %v2197
        %v2237 = vpack.c.b16 %v2201, %v2198
        %v2238 = vpack.c.b16 %v2205, %v2202
        %v2239 = vpack.c.b16 %v2206, %v2203
        %v2240 = vpack.c.b16 %v2207, %v2204
        %v2241 = vpack.c.b16 %v2211, %v2208
        %v2242 = vpack.c.b16 %v2212, %v2209
        %v2243 = vpack.c.b16 %v2213, %v2210
        %v2244 = vpack.c.b16 %v2217, %v2214
        %v2245 = vpack.c.b16 %v2218, %v2215
        %v2246 = vpack.c.b16 %v2219, %v2216
        %v2247 = vpack.c.b16 %v2223, %v2220
        %v2248 = vpack.c.b16 %v2224, %v2221
        %v2249 = vpack.c.b16 %v2225, %v2222
        %2274 = vmatprep.subr.bf16.mxu0 %v2227
        %2275 = vmatpush1.bf16.msra.mxu0 %v2226
        %2276 = vmatprep.subr.bf16.mxu0 %v2230
        %2277 = vmatpush1.bf16.msra.mxu0 %v2229
        %2278 = vmatprep.subr.bf16.mxu0 %v2233
        %2279 = vmatpush1.bf16.msra.mxu0 %v2232
        %2280 = vmatprep.subr.bf16.mxu0 %v2236
        %2281 = vmatpush1.bf16.msra.mxu0 %v2235
        %2282 = vmatprep.subr.bf16.mxu0 %v2239
        %2283 = vmatpush1.bf16.msra.mxu0 %v2238
        %2284 = vmatprep.subr.bf16.mxu0 %v2242
        %2285 = vmatpush1.bf16.msra.mxu0 %v2241
        %2286 = vmatprep.subr.bf16.mxu0 %v2245
        %2287 = vmatpush1.bf16.msra.mxu0 %v2244
        %2288 = vmatprep.subr.bf16.mxu0 %v2248
        %2289 = vmatpush1.bf16.msra.mxu0 %v2247
        %2290 = vmatprep.subr.bf16.mxu0 0
        %2291 = vmatpush1.bf16.msra.mxu0 0
        %2292 = vmatprep.subr.bf16.mxu0 0
        %2293 = vmatpush1.bf16.msra.mxu0 0
        %2294 = vmatprep.subr.bf16.mxu0 0
        %2295 = vmatpush1.bf16.msra.mxu0 0
        %2296 = vmatprep.subr.bf16.mxu0 0
        %2297 = vmatpush1.bf16.msra.mxu0 0
        %2298 = vmatprep.subr.bf16.mxu0 0
        %2299 = vmatpush1.bf16.msra.mxu0 0
        %2300 = vmatprep.subr.bf16.mxu0 0
        %2301 = vmatpush1.bf16.msra.mxu0 0
        %2302 = vmatprep.subr.bf16.mxu0 0
        %2303 = vmatpush1.bf16.msra.mxu0 0
        %2304 = vmatprep.subr.bf16.mxu0 0
        %2305 = vmatpush1.bf16.msra.mxu0 0
        %2306 = vmatprep.mubr.bf16.mxu0 0
        %2307 = vmatmul.mubr.bf16.gmra.mrb[0].mxu0 %v2096
        %v2308 = vpop.f32.mrb[0].mxu0
        %v2309 = vadd.f32 %v2134, %v2308
        %v2310 = vpop.f32.mrb[0].mxu0
        %v2311 = vadd.f32 %v2138, %v2310
        %v2312 = vpop.f32.mrb[0].mxu0
        %v2313 = vpop.f32.mrb[0].mxu0
        %2314 = vdwg.mxu0
        %2315 = vmatprep.subr.bf16.mxu0 0
        %2316 = vmatpush1.bf16.msra.mxu0 %v2228
        %2317 = vmatprep.subr.bf16.mxu0 0
        %2318 = vmatpush1.bf16.msra.mxu0 %v2231
        %2319 = vmatprep.subr.bf16.mxu0 0
        %2320 = vmatpush1.bf16.msra.mxu0 %v2234
        %2321 = vmatprep.subr.bf16.mxu0 0
        %2322 = vmatpush1.bf16.msra.mxu0 %v2237
        %2323 = vmatprep.subr.bf16.mxu0 0
        %2324 = vmatpush1.bf16.msra.mxu0 %v2240
        %2325 = vmatprep.subr.bf16.mxu0 0
        %2326 = vmatpush1.bf16.msra.mxu0 %v2243
        %2327 = vmatprep.subr.bf16.mxu0 0
        %2328 = vmatpush1.bf16.msra.mxu0 %v2246
        %2329 = vmatprep.subr.bf16.mxu0 0
        %2330 = vmatpush1.bf16.msra.mxu0 %v2249
        %2331 = vmatprep.subr.bf16.mxu0 0
        %2332 = vmatpush1.bf16.msra.mxu0 0
        %2333 = vmatprep.subr.bf16.mxu0 0
        %2334 = vmatpush1.bf16.msra.mxu0 0
        %2335 = vmatprep.subr.bf16.mxu0 0
        %2336 = vmatpush1.bf16.msra.mxu0 0
        %2337 = vmatprep.subr.bf16.mxu0 0
        %2338 = vmatpush1.bf16.msra.mxu0 0
        %2339 = vmatprep.subr.bf16.mxu0 0
        %2340 = vmatpush1.bf16.msra.mxu0 0
        %2341 = vmatprep.subr.bf16.mxu0 0
        %2342 = vmatpush1.bf16.msra.mxu0 0
        %2343 = vmatprep.subr.bf16.mxu0 0
        %2344 = vmatpush1.bf16.msra.mxu0 0
        %2345 = vmatprep.subr.bf16.mxu0 0
        %2346 = vmatpush1.bf16.msra.mxu0 0
        %2347 = vmatprep.mubr.bf16.mxu0 0
        %2348 = vmatmul.mubr.bf16.gmra.mrb[0].mxu0 %v2096
        %v2349 = vpop.f32.mrb[0].mxu0
        %v2350 = vadd.f32 %v2142, %v2349
        %v2351 = vpop.f32.mrb[0].mxu0
        %v2352 = vpop.f32.mrb[0].mxu0
        %v2353 = vpop.f32.mrb[0].mxu0
        %2354 = vdwg.mxu0
        %v2355 = vadd.f32 %v2093, %v2309
        %v2356 = vxor.u32 %v2355, 2147483648
        %v2357 = vmul.f32 %v2356, 1.442695
        %v2358 = vpow.pop %v2357
        %v2359 = vadd.f32 %v2358, 1.0
        %v2360 = vrcp.pop %v2359
        %v2361 = vmul.f32 1.0, %v2360
        %v2362 = vadd.f32 %v2094, %v2311
        %v2363 = vxor.u32 %v2362, 2147483648
        %v2364 = vmul.f32 %v2363, 1.442695
        %v2365 = vpow.pop %v2364
        %v2366 = vadd.f32 %v2365, 1.0
        %v2367 = vrcp.pop %v2366
        %v2368 = vmul.f32 1.0, %v2367
        %v2369 = vmul.f32 %v2361, %v2350
        %v2370 = vadd.f32 %v2095, %v2369
        %v2371 = vtanh.pop %v2370
        %v2372 = vsub.f32 1.0, %v2368
        %v2373 = vmul.f32 %v2372, %v2371
        %v2374 = vmul.f32 %v2368, %v1799
        %v2375 = vadd.f32 %v2373, %v2374
        %s2376 = smul.u32 5, 3
        %s2377 = smul.addr %s2376, 8
        %s2378 = scalar_lea.vmem [#allocation4], %s2377
        %v2379 = vld [vmem:[%s2378] sm:$0xff]
        %v2380 = vld [vmem:[%s2378 + $0x8] sm:$0xff]
        %v2381 = vld [vmem:[%s2378 + $0x10] sm:$0xff]
        %v2382 = vpack.c.bf16 %v2085, %v2085
        %v2383 = vld [vmem:[%s517] sm:$0xff]
        %v2384 = vld [vmem:[%s517 + $0x8] sm:$0xf]
        %v2385 = vld [vmem:[%s517 + $0xc] sm:$0xff]
        %v2386 = vld [vmem:[%s517 + $0x14] sm:$0xf]
        %v2387 = vld [vmem:[%s517 + $0x18] sm:$0xff]
        %v2388 = vld [vmem:[%s517 + $0x20] sm:$0xf]
        %v2389 = vld [vmem:[%s517 + $0x24] sm:$0xff]
        %v2390 = vld [vmem:[%s517 + $0x2c] sm:$0xf]
        %v2391 = vld [vmem:[%s517 + $0x30] sm:$0xff]
        %v2392 = vld [vmem:[%s517 + $0x38] sm:$0xf]
        %v2393 = vld [vmem:[%s517 + $0x3c] sm:$0xff]
        %v2394 = vld [vmem:[%s517 + $0x44] sm:$0xf]
        %v2395 = vld [vmem:[%s517 + $0x48] sm:$0xff]
        %v2396 = vld [vmem:[%s517 + $0x50] sm:$0xf]
        %v2397 = vld [vmem:[%s517 + $0x54] sm:$0xff]
        %v2398 = vld [vmem:[%s517 + $0x5c] sm:$0xf]
        %v2399 = vld [vmem:[%s517 + $0x60] sm:$0xff]
        %v2400 = vld [vmem:[%s517 + $0x68] sm:$0xf]
        %v2401 = vld [vmem:[%s517 + $0x6c] sm:$0xff]
        %v2402 = vld [vmem:[%s517 + $0x74] sm:$0xf]
        %v2403 = vld [vmem:[%s517 + $0x78] sm:$0xff]
        %v2404 = vld [vmem:[%s517 + $0x80] sm:$0xf]
        %v2405 = vld [vmem:[%s517 + $0x84] sm:$0xff]
        %v2406 = vld [vmem:[%s517 + $0x8c] sm:$0xf]
        %v2407 = vld [vmem:[%s517 + $0x90] sm:$0xff]
        %v2408 = vld [vmem:[%s517 + $0x98] sm:$0xf]
        %v2409 = vld [vmem:[%s517 + $0x9c] sm:$0xff]
        %v2410 = vld [vmem:[%s517 + $0xa4] sm:$0xf]
        %v2411 = vld [vmem:[%s517 + $0xa8] sm:$0xff]
        %v2412 = vld [vmem:[%s517 + $0xb0] sm:$0xf]
        %v2413 = vld [vmem:[%s517 + $0xb4] sm:$0xff]
        %v2414 = vld [vmem:[%s517 + $0xbc] sm:$0xf]
        %v2415 = vld [vmem:[%s640] sm:$0x7]
        %v2417 = vlaneseq
        %v2418 = vshrl.u32 %v2417, 7
        %v2419 = vsub.s32 0, %v2418
        %v2420 = vrot.slane %v2415, %v2419
        %v2421 = vlaneseq
        %v2422 = vshrl.u32 %v2421, 7
        %v2423 = vsub.s32 1, %v2422
        %v2424 = vrot.slane %v2415, %v2423
        %v2425 = vlaneseq
        %v2426 = vshrl.u32 %v2425, 7
        %v2427 = vsub.s32 2, %v2426
        %v2428 = vrot.slane %v2415, %v2427
        %v2464 = vunpack.c.l.b16 %v2383
        %v2465 = vunpack.c.h.b16 %v2383
        %v2466 = vunpack.c.l.b16 %v2384
        %v2467 = vunpack.c.l.b16 %v2385
        %v2468 = vunpack.c.h.b16 %v2385
        %v2469 = vunpack.c.l.b16 %v2386
        %v2470 = vunpack.c.l.b16 %v2387
        %v2471 = vunpack.c.h.b16 %v2387
        %v2472 = vunpack.c.l.b16 %v2388
        %v2473 = vunpack.c.l.b16 %v2389
        %v2474 = vunpack.c.h.b16 %v2389
        %v2475 = vunpack.c.l.b16 %v2390
        %v2476 = vunpack.c.l.b16 %v2391
        %v2477 = vunpack.c.h.b16 %v2391
        %v2478 = vunpack.c.l.b16 %v2392
        %v2479 = vunpack.c.l.b16 %v2393
        %v2480 = vunpack.c.h.b16 %v2393
        %v2481 = vunpack.c.l.b16 %v2394
        %v2482 = vunpack.c.l.b16 %v2395
        %v2483 = vunpack.c.h.b16 %v2395
        %v2484 = vunpack.c.l.b16 %v2396
        %v2485 = vunpack.c.l.b16 %v2397
        %v2486 = vunpack.c.h.b16 %v2397
        %v2487 = vunpack.c.l.b16 %v2398
        %v2488 = vunpack.c.l.b16 %v2399
        %v2489 = vunpack.c.h.b16 %v2399
        %v2490 = vunpack.c.l.b16 %v2400
        %v2491 = vunpack.c.l.b16 %v2401
        %v2492 = vunpack.c.h.b16 %v2401
        %v2493 = vunpack.c.l.b16 %v2402
        %v2494 = vunpack.c.l.b16 %v2403
        %v2495 = vunpack.c.h.b16 %v2403
        %v2496 = vunpack.c.l.b16 %v2404
        %v2497 = vunpack.c.l.b16 %v2405
        %v2498 = vunpack.c.h.b16 %v2405
        %v2499 = vunpack.c.l.b16 %v2406
        %v2500 = vunpack.c.l.b16 %v2407
        %v2501 = vunpack.c.h.b16 %v2407
        %v2502 = vunpack.c.l.b16 %v2408
        %v2503 = vunpack.c.l.b16 %v2409
        %v2504 = vunpack.c.h.b16 %v2409
        %v2505 = vunpack.c.l.b16 %v2410
        %v2506 = vunpack.c.l.b16 %v2411
        %v2507 = vunpack.c.h.b16 %v2411
        %v2508 = vunpack.c.l.b16 %v2412
        %v2509 = vunpack.c.l.b16 %v2413
        %v2510 = vunpack.c.h.b16 %v2413
        %v2511 = vunpack.c.l.b16 %v2414
        %v2512 = vpack.c.b16 %v2467, %v2464
        %v2513 = vpack.c.b16 %v2468, %v2465
        %v2514 = vpack.c.b16 %v2469, %v2466
        %v2515 = vpack.c.b16 %v2473, %v2470
        %v2516 = vpack.c.b16 %v2474, %v2471
        %v2517 = vpack.c.b16 %v2475, %v2472
        %v2518 = vpack.c.b16 %v2479, %v2476
        %v2519 = vpack.c.b16 %v2480, %v2477
        %v2520 = vpack.c.b16 %v2481, %v2478
        %v2521 = vpack.c.b16 %v2485, %v2482
        %v2522 = vpack.c.b16 %v2486, %v2483
        %v2523 = vpack.c.b16 %v2487, %v2484
        %v2524 = vpack.c.b16 %v2491, %v2488
        %v2525 = vpack.c.b16 %v2492, %v2489
        %v2526 = vpack.c.b16 %v2493, %v2490
        %v2527 = vpack.c.b16 %v2497, %v2494
        %v2528 = vpack.c.b16 %v2498, %v2495
        %v2529 = vpack.c.b16 %v2499, %v2496
        %v2530 = vpack.c.b16 %v2503, %v2500
        %v2531 = vpack.c.b16 %v2504, %v2501
        %v2532 = vpack.c.b16 %v2505, %v2502
        %v2533 = vpack.c.b16 %v2509, %v2506
        %v2534 = vpack.c.b16 %v2510, %v2507
        %v2535 = vpack.c.b16 %v2511, %v2508
        %2560 = vmatprep.subr.bf16.mxu0 %v2513
        %2561 = vmatpush1.bf16.msra.mxu0 %v2512
        %2562 = vmatprep.subr.bf16.mxu0 %v2516
        %2563 = vmatpush1.bf16.msra.mxu0 %v2515
        %2564 = vmatprep.subr.bf16.mxu0 %v2519
        %2565 = vmatpush1.bf16.msra.mxu0 %v2518
        %2566 = vmatprep.subr.bf16.mxu0 %v2522
        %2567 = vmatpush1.bf16.msra.mxu0 %v2521
        %2568 = vmatprep.subr.bf16.mxu0 %v2525
        %2569 = vmatpush1.bf16.msra.mxu0 %v2524
        %2570 = vmatprep.subr.bf16.mxu0 %v2528
        %2571 = vmatpush1.bf16.msra.mxu0 %v2527
        %2572 = vmatprep.subr.bf16.mxu0 %v2531
        %2573 = vmatpush1.bf16.msra.mxu0 %v2530
        %2574 = vmatprep.subr.bf16.mxu0 %v2534
        %2575 = vmatpush1.bf16.msra.mxu0 %v2533
        %2576 = vmatprep.subr.bf16.mxu0 0
        %2577 = vmatpush1.bf16.msra.mxu0 0
        %2578 = vmatprep.subr.bf16.mxu0 0
        %2579 = vmatpush1.bf16.msra.mxu0 0
        %2580 = vmatprep.subr.bf16.mxu0 0
        %2581 = vmatpush1.bf16.msra.mxu0 0
        %2582 = vmatprep.subr.bf16.mxu0 0
        %2583 = vmatpush1.bf16.msra.mxu0 0
        %2584 = vmatprep.subr.bf16.mxu0 0
        %2585 = vmatpush1.bf16.msra.mxu0 0
        %2586 = vmatprep.subr.bf16.mxu0 0
        %2587 = vmatpush1.bf16.msra.mxu0 0
        %2588 = vmatprep.subr.bf16.mxu0 0
        %2589 = vmatpush1.bf16.msra.mxu0 0
        %2590 = vmatprep.subr.bf16.mxu0 0
        %2591 = vmatpush1.bf16.msra.mxu0 0
        %2592 = vmatprep.mubr.bf16.mxu0 0
        %2593 = vmatmul.mubr.bf16.gmra.mrb[0].mxu0 %v2382
        %v2594 = vpop.f32.mrb[0].mxu0
        %v2595 = vadd.f32 %v2420, %v2594
        %v2596 = vpop.f32.mrb[0].mxu0
        %v2597 = vadd.f32 %v2424, %v2596
        %v2598 = vpop.f32.mrb[0].mxu0
        %v2599 = vpop.f32.mrb[0].mxu0
        %2600 = vdwg.mxu0
        %2601 = vmatprep.subr.bf16.mxu0 0
        %2602 = vmatpush1.bf16.msra.mxu0 %v2514
        %2603 = vmatprep.subr.bf16.mxu0 0
        %2604 = vmatpush1.bf16.msra.mxu0 %v2517
        %2605 = vmatprep.subr.bf16.mxu0 0
        %2606 = vmatpush1.bf16.msra.mxu0 %v2520
        %2607 = vmatprep.subr.bf16.mxu0 0
        %2608 = vmatpush1.bf16.msra.mxu0 %v2523
        %2609 = vmatprep.subr.bf16.mxu0 0
        %2610 = vmatpush1.bf16.msra.mxu0 %v2526
        %2611 = vmatprep.subr.bf16.mxu0 0
        %2612 = vmatpush1.bf16.msra.mxu0 %v2529
        %2613 = vmatprep.subr.bf16.mxu0 0
        %2614 = vmatpush1.bf16.msra.mxu0 %v2532
        %2615 = vmatprep.subr.bf16.mxu0 0
        %2616 = vmatpush1.bf16.msra.mxu0 %v2535
        %2617 = vmatprep.subr.bf16.mxu0 0
        %2618 = vmatpush1.bf16.msra.mxu0 0
        %2619 = vmatprep.subr.bf16.mxu0 0
        %2620 = vmatpush1.bf16.msra.mxu0 0
        %2621 = vmatprep.subr.bf16.mxu0 0
        %2622 = vmatpush1.bf16.msra.mxu0 0
        %2623 = vmatprep.subr.bf16.mxu0 0
        %2624 = vmatpush1.bf16.msra.mxu0 0
        %2625 = vmatprep.subr.bf16.mxu0 0
        %2626 = vmatpush1.bf16.msra.mxu0 0
        %2627 = vmatprep.subr.bf16.mxu0 0
        %2628 = vmatpush1.bf16.msra.mxu0 0
        %2629 = vmatprep.subr.bf16.mxu0 0
        %2630 = vmatpush1.bf16.msra.mxu0 0
        %2631 = vmatprep.subr.bf16.mxu0 0
        %2632 = vmatpush1.bf16.msra.mxu0 0
        %2633 = vmatprep.mubr.bf16.mxu0 0
        %2634 = vmatmul.mubr.bf16.gmra.mrb[0].mxu0 %v2382
        %v2635 = vpop.f32.mrb[0].mxu0
        %v2636 = vadd.f32 %v2428, %v2635
        %v2637 = vpop.f32.mrb[0].mxu0
        %v2638 = vpop.f32.mrb[0].mxu0
        %v2639 = vpop.f32.mrb[0].mxu0
        %2640 = vdwg.mxu0
        %v2641 = vadd.f32 %v2379, %v2595
        %v2642 = vxor.u32 %v2641, 2147483648
        %v2643 = vmul.f32 %v2642, 1.442695
        %v2644 = vpow.pop %v2643
        %v2645 = vadd.f32 %v2644, 1.0
        %v2646 = vrcp.pop %v2645
        %v2647 = vmul.f32 1.0, %v2646
        %v2648 = vadd.f32 %v2380, %v2597
        %v2649 = vxor.u32 %v2648, 2147483648
        %v2650 = vmul.f32 %v2649, 1.442695
        %v2651 = vpow.pop %v2650
        %v2652 = vadd.f32 %v2651, 1.0
        %v2653 = vrcp.pop %v2652
        %v2654 = vmul.f32 1.0, %v2653
        %v2655 = vmul.f32 %v2647, %v2636
        %v2656 = vadd.f32 %v2381, %v2655
        %v2657 = vtanh.pop %v2656
        %v2658 = vsub.f32 1.0, %v2654
        %v2659 = vmul.f32 %v2658, %v2657
        %v2660 = vmul.f32 %v2654, %v2085
        %v2661 = vadd.f32 %v2659, %v2660
        %s2662 = scalar_lea.vmem [#allocation5], 16
        %2663 = vst [vmem:[%s2662] sm:$0xff] %v2375
        %s2664 = scalar_lea.vmem [#allocation6], 40
        %2665 = vst [vmem:[%s2664] sm:$0xff] %v2661
        %s2666 = smul.u32 3, 3
        %s2667 = smul.addr %s2666, 8
        %s2668 = scalar_lea.vmem [#allocation3], %s2667
        %v2669 = vld [vmem:[%s2668] sm:$0xff]
        %v2670 = vld [vmem:[%s2668 + $0x8] sm:$0xff]
        %v2671 = vld [vmem:[%s2668 + $0x10] sm:$0xff]
        %v2672 = vpack.c.bf16 %v2375, %v2375
        %v2673 = vld [vmem:[%s620] sm:$0xff]
        %v2674 = vld [vmem:[%s620 + $0x8] sm:$0xf]
        %v2675 = vld [vmem:[%s620 + $0xc] sm:$0xff]
        %v2676 = vld [vmem:[%s620 + $0x14] sm:$0xf]
        %v2677 = vld [vmem:[%s620 + $0x18] sm:$0xff]
        %v2678 = vld [vmem:[%s620 + $0x20] sm:$0xf]
        %v2679 = vld [vmem:[%s620 + $0x24] sm:$0xff]
        %v2680 = vld [vmem:[%s620 + $0x2c] sm:$0xf]
        %v2681 = vld [vmem:[%s620 + $0x30] sm:$0xff]
        %v2682 = vld [vmem:[%s620 + $0x38] sm:$0xf]
        %v2683 = vld [vmem:[%s620 + $0x3c] sm:$0xff]
        %v2684 = vld [vmem:[%s620 + $0x44] sm:$0xf]
        %v2685 = vld [vmem:[%s620 + $0x48] sm:$0xff]
        %v2686 = vld [vmem:[%s620 + $0x50] sm:$0xf]
        %v2687 = vld [vmem:[%s620 + $0x54] sm:$0xff]
        %v2688 = vld [vmem:[%s620 + $0x5c] sm:$0xf]
        %v2689 = vld [vmem:[%s620 + $0x60] sm:$0xff]
        %v2690 = vld [vmem:[%s620 + $0x68] sm:$0xf]
        %v2691 = vld [vmem:[%s620 + $0x6c] sm:$0xff]
        %v2692 = vld [vmem:[%s620 + $0x74] sm:$0xf]
        %v2693 = vld [vmem:[%s620 + $0x78] sm:$0xff]
        %v2694 = vld [vmem:[%s620 + $0x80] sm:$0xf]
        %v2695 = vld [vmem:[%s620 + $0x84] sm:$0xff]
        %v2696 = vld [vmem:[%s620 + $0x8c] sm:$0xf]
        %v2697 = vld [vmem:[%s620 + $0x90] sm:$0xff]
        %v2698 = vld [vmem:[%s620 + $0x98] sm:$0xf]
        %v2699 = vld [vmem:[%s620 + $0x9c] sm:$0xff]
        %v2700 = vld [vmem:[%s620 + $0xa4] sm:$0xf]
        %v2701 = vld [vmem:[%s620 + $0xa8] sm:$0xff]
        %v2702 = vld [vmem:[%s620 + $0xb0] sm:$0xf]
        %v2703 = vld [vmem:[%s620 + $0xb4] sm:$0xff]
        %v2704 = vld [vmem:[%s620 + $0xbc] sm:$0xf]
        %v2705 = vld [vmem:[%s628] sm:$0x7]
        %v2707 = vlaneseq
        %v2708 = vshrl.u32 %v2707, 7
        %v2709 = vsub.s32 0, %v2708
        %v2710 = vrot.slane %v2705, %v2709
        %v2711 = vlaneseq
        %v2712 = vshrl.u32 %v2711, 7
        %v2713 = vsub.s32 1, %v2712
        %v2714 = vrot.slane %v2705, %v2713
        %v2715 = vlaneseq
        %v2716 = vshrl.u32 %v2715, 7
        %v2717 = vsub.s32 2, %v2716
        %v2718 = vrot.slane %v2705, %v2717
        %v2754 = vunpack.c.l.b16 %v2673
        %v2755 = vunpack.c.h.b16 %v2673
        %v2756 = vunpack.c.l.b16 %v2674
        %v2757 = vunpack.c.l.b16 %v2675
        %v2758 = vunpack.c.h.b16 %v2675
        %v2759 = vunpack.c.l.b16 %v2676
        %v2760 = vunpack.c.l.b16 %v2677
        %v2761 = vunpack.c.h.b16 %v2677
        %v2762 = vunpack.c.l.b16 %v2678
        %v2763 = vunpack.c.l.b16 %v2679
        %v2764 = vunpack.c.h.b16 %v2679
        %v2765 = vunpack.c.l.b16 %v2680
        %v2766 = vunpack.c.l.b16 %v2681
        %v2767 = vunpack.c.h.b16 %v2681
        %v2768 = vunpack.c.l.b16 %v2682
        %v2769 = vunpack.c.l.b16 %v2683
        %v2770 = vunpack.c.h.b16 %v2683
        %v2771 = vunpack.c.l.b16 %v2684
        %v2772 = vunpack.c.l.b16 %v2685
        %v2773 = vunpack.c.h.b16 %v2685
        %v2774 = vunpack.c.l.b16 %v2686
        %v2775 = vunpack.c.l.b16 %v2687
        %v2776 = vunpack.c.h.b16 %v2687
        %v2777 = vunpack.c.l.b16 %v2688
        %v2778 = vunpack.c.l.b16 %v2689
        %v2779 = vunpack.c.h.b16 %v2689
        %v2780 = vunpack.c.l.b16 %v2690
        %v2781 = vunpack.c.l.b16 %v2691
        %v2782 = vunpack.c.h.b16 %v2691
        %v2783 = vunpack.c.l.b16 %v2692
        %v2784 = vunpack.c.l.b16 %v2693
        %v2785 = vunpack.c.h.b16 %v2693
        %v2786 = vunpack.c.l.b16 %v2694
        %v2787 = vunpack.c.l.b16 %v2695
        %v2788 = vunpack.c.h.b16 %v2695
        %v2789 = vunpack.c.l.b16 %v2696
        %v2790 = vunpack.c.l.b16 %v2697
        %v2791 = vunpack.c.h.b16 %v2697
        %v2792 = vunpack.c.l.b16 %v2698
        %v2793 = vunpack.c.l.b16 %v2699
        %v2794 = vunpack.c.h.b16 %v2699
        %v2795 = vunpack.c.l.b16 %v2700
        %v2796 = vunpack.c.l.b16 %v2701
        %v2797 = vunpack.c.h.b16 %v2701
        %v2798 = vunpack.c.l.b16 %v2702
        %v2799 = vunpack.c.l.b16 %v2703
        %v2800 = vunpack.c.h.b16 %v2703
        %v2801 = vunpack.c.l.b16 %v2704
        %v2802 = vpack.c.b16 %v2757, %v2754
        %v2803 = vpack.c.b16 %v2758, %v2755
        %v2804 = vpack.c.b16 %v2759, %v2756
        %v2805 = vpack.c.b16 %v2763, %v2760
        %v2806 = vpack.c.b16 %v2764, %v2761
        %v2807 = vpack.c.b16 %v2765, %v2762
        %v2808 = vpack.c.b16 %v2769, %v2766
        %v2809 = vpack.c.b16 %v2770, %v2767
        %v2810 = vpack.c.b16 %v2771, %v2768
        %v2811 = vpack.c.b16 %v2775, %v2772
        %v2812 = vpack.c.b16 %v2776, %v2773
        %v2813 = vpack.c.b16 %v2777, %v2774
        %v2814 = vpack.c.b16 %v2781, %v2778
        %v2815 = vpack.c.b16 %v2782, %v2779
        %v2816 = vpack.c.b16 %v2783, %v2780
        %v2817 = vpack.c.b16 %v2787, %v2784
        %v2818 = vpack.c.b16 %v2788, %v2785
        %v2819 = vpack.c.b16 %v2789, %v2786
        %v2820 = vpack.c.b16 %v2793, %v2790
        %v2821 = vpack.c.b16 %v2794, %v2791
        %v2822 = vpack.c.b16 %v2795, %v2792
        %v2823 = vpack.c.b16 %v2799, %v2796
        %v2824 = vpack.c.b16 %v2800, %v2797
        %v2825 = vpack.c.b16 %v2801, %v2798
        %2850 = vmatprep.subr.bf16.mxu0 %v2803
        %2851 = vmatpush1.bf16.msra.mxu0 %v2802
        %2852 = vmatprep.subr.bf16.mxu0 %v2806
        %2853 = vmatpush1.bf16.msra.mxu0 %v2805
        %2854 = vmatprep.subr.bf16.mxu0 %v2809
        %2855 = vmatpush1.bf16.msra.mxu0 %v2808
        %2856 = vmatprep.subr.bf16.mxu0 %v2812
        %2857 = vmatpush1.bf16.msra.mxu0 %v2811
        %2858 = vmatprep.subr.bf16.mxu0 %v2815
        %2859 = vmatpush1.bf16.msra.mxu0 %v2814
        %2860 = vmatprep.subr.bf16.mxu0 %v2818
        %2861 = vmatpush1.bf16.msra.mxu0 %v2817
        %2862 = vmatprep.subr.bf16.mxu0 %v2821
        %2863 = vmatpush1.bf16.msra.mxu0 %v2820
        %2864 = vmatprep.subr.bf16.mxu0 %v2824
        %2865 = vmatpush1.bf16.msra.mxu0 %v2823
        %2866 = vmatprep.subr.bf16.mxu0 0
        %2867 = vmatpush1.bf16.msra.mxu0 0
        %2868 = vmatprep.subr.bf16.mxu0 0
        %2869 = vmatpush1.bf16.msra.mxu0 0
        %2870 = vmatprep.subr.bf16.mxu0 0
        %2871 = vmatpush1.bf16.msra.mxu0 0
        %2872 = vmatprep.subr.bf16.mxu0 0
        %2873 = vmatpush1.bf16.msra.mxu0 0
        %2874 = vmatprep.subr.bf16.mxu0 0
        %2875 = vmatpush1.bf16.msra.mxu0 0
        %2876 = vmatprep.subr.bf16.mxu0 0
        %2877 = vmatpush1.bf16.msra.mxu0 0
        %2878 = vmatprep.subr.bf16.mxu0 0
        %2879 = vmatpush1.bf16.msra.mxu0 0
        %2880 = vmatprep.subr.bf16.mxu0 0
        %2881 = vmatpush1.bf16.msra.mxu0 0
        %2882 = vmatprep.mubr.bf16.mxu0 0
        %2883 = vmatmul.mubr.bf16.gmra.mrb[0].mxu0 %v2672
        %v2884 = vpop.f32.mrb[0].mxu0
        %v2885 = vadd.f32 %v2710, %v2884
        %v2886 = vpop.f32.mrb[0].mxu0
        %v2887 = vadd.f32 %v2714, %v2886
        %v2888 = vpop.f32.mrb[0].mxu0
        %v2889 = vpop.f32.mrb[0].mxu0
        %2890 = vdwg.mxu0
        %2891 = vmatprep.subr.bf16.mxu0 0
        %2892 = vmatpush1.bf16.msra.mxu0 %v2804
        %2893 = vmatprep.subr.bf16.mxu0 0
        %2894 = vmatpush1.bf16.msra.mxu0 %v2807
        %2895 = vmatprep.subr.bf16.mxu0 0
        %2896 = vmatpush1.bf16.msra.mxu0 %v2810
        %2897 = vmatprep.subr.bf16.mxu0 0
        %2898 = vmatpush1.bf16.msra.mxu0 %v2813
        %2899 = vmatprep.subr.bf16.mxu0 0
        %2900 = vmatpush1.bf16.msra.mxu0 %v2816
        %2901 = vmatprep.subr.bf16.mxu0 0
        %2902 = vmatpush1.bf16.msra.mxu0 %v2819
        %2903 = vmatprep.subr.bf16.mxu0 0
        %2904 = vmatpush1.bf16.msra.mxu0 %v2822
        %2905 = vmatprep.subr.bf16.mxu0 0
        %2906 = vmatpush1.bf16.msra.mxu0 %v2825
        %2907 = vmatprep.subr.bf16.mxu0 0
        %2908 = vmatpush1.bf16.msra.mxu0 0
        %2909 = vmatprep.subr.bf16.mxu0 0
        %2910 = vmatpush1.bf16.msra.mxu0 0
        %2911 = vmatprep.subr.bf16.mxu0 0
        %2912 = vmatpush1.bf16.msra.mxu0 0
        %2913 = vmatprep.subr.bf16.mxu0 0
        %2914 = vmatpush1.bf16.msra.mxu0 0
        %2915 = vmatprep.subr.bf16.mxu0 0
        %2916 = vmatpush1.bf16.msra.mxu0 0
        %2917 = vmatprep.subr.bf16.mxu0 0
        %2918 = vmatpush1.bf16.msra.mxu0 0
        %2919 = vmatprep.subr.bf16.mxu0 0
        %2920 = vmatpush1.bf16.msra.mxu0 0
        %2921 = vmatprep.subr.bf16.mxu0 0
        %2922 = vmatpush1.bf16.msra.mxu0 0
        %2923 = vmatprep.mubr.bf16.mxu0 0
        %2924 = vmatmul.mubr.bf16.gmra.mrb[0].mxu0 %v2672
        %v2925 = vpop.f32.mrb[0].mxu0
        %v2926 = vadd.f32 %v2718, %v2925
        %v2927 = vpop.f32.mrb[0].mxu0
        %v2928 = vpop.f32.mrb[0].mxu0
        %v2929 = vpop.f32.mrb[0].mxu0
        %2930 = vdwg.mxu0
        %v2931 = vadd.f32 %v2669, %v2885
        %v2932 = vxor.u32 %v2931, 2147483648
        %v2933 = vmul.f32 %v2932, 1.442695
        %v2934 = vpow.pop %v2933
        %v2935 = vadd.f32 %v2934, 1.0
        %v2936 = vrcp.pop %v2935
        %v2937 = vmul.f32 1.0, %v2936
        %v2938 = vadd.f32 %v2670, %v2887
        %v2939 = vxor.u32 %v2938, 2147483648
        %v2940 = vmul.f32 %v2939, 1.442695
        %v2941 = vpow.pop %v2940
        %v2942 = vadd.f32 %v2941, 1.0
        %v2943 = vrcp.pop %v2942
        %v2944 = vmul.f32 1.0, %v2943
        %v2945 = vmul.f32 %v2937, %v2926
        %v2946 = vadd.f32 %v2671, %v2945
        %v2947 = vtanh.pop %v2946
        %v2948 = vsub.f32 1.0, %v2944
        %v2949 = vmul.f32 %v2948, %v2947
        %v2950 = vmul.f32 %v2944, %v2375
        %v2951 = vadd.f32 %v2949, %v2950
        %s2952 = smul.u32 4, 3
        %s2953 = smul.addr %s2952, 8
        %s2954 = scalar_lea.vmem [#allocation4], %s2953
        %v2955 = vld [vmem:[%s2954] sm:$0xff]
        %v2956 = vld [vmem:[%s2954 + $0x8] sm:$0xff]
        %v2957 = vld [vmem:[%s2954 + $0x10] sm:$0xff]
        %v2958 = vpack.c.bf16 %v2661, %v2661
        %v2959 = vld [vmem:[%s517] sm:$0xff]
        %v2960 = vld [vmem:[%s517 + $0x8] sm:$0xf]
        %v2961 = vld [vmem:[%s517 + $0xc] sm:$0xff]
        %v2962 = vld [vmem:[%s517 + $0x14] sm:$0xf]
        %v2963 = vld [vmem:[%s517 + $0x18] sm:$0xff]
        %v2964 = vld [vmem:[%s517 + $0x20] sm:$0xf]
        %v2965 = vld [vmem:[%s517 + $0x24] sm:$0xff]
        %v2966 = vld [vmem:[%s517 + $0x2c] sm:$0xf]
        %v2967 = vld [vmem:[%s517 + $0x30] sm:$0xff]
        %v2968 = vld [vmem:[%s517 + $0x38] sm:$0xf]
        %v2969 = vld [vmem:[%s517 + $0x3c] sm:$0xff]
        %v2970 = vld [vmem:[%s517 + $0x44] sm:$0xf]
        %v2971 = vld [vmem:[%s517 + $0x48] sm:$0xff]
        %v2972 = vld [vmem:[%s517 + $0x50] sm:$0xf]
        %v2973 = vld [vmem:[%s517 + $0x54] sm:$0xff]
        %v2974 = vld [vmem:[%s517 + $0x5c] sm:$0xf]
        %v2975 = vld [vmem:[%s517 + $0x60] sm:$0xff]
        %v2976 = vld [vmem:[%s517 + $0x68] sm:$0xf]
        %v2977 = vld [vmem:[%s517 + $0x6c] sm:$0xff]
        %v2978 = vld [vmem:[%s517 + $0x74] sm:$0xf]
        %v2979 = vld [vmem:[%s517 + $0x78] sm:$0xff]
        %v2980 = vld [vmem:[%s517 + $0x80] sm:$0xf]
        %v2981 = vld [vmem:[%s517 + $0x84] sm:$0xff]
        %v2982 = vld [vmem:[%s517 + $0x8c] sm:$0xf]
        %v2983 = vld [vmem:[%s517 + $0x90] sm:$0xff]
        %v2984 = vld [vmem:[%s517 + $0x98] sm:$0xf]
        %v2985 = vld [vmem:[%s517 + $0x9c] sm:$0xff]
        %v2986 = vld [vmem:[%s517 + $0xa4] sm:$0xf]
        %v2987 = vld [vmem:[%s517 + $0xa8] sm:$0xff]
        %v2988 = vld [vmem:[%s517 + $0xb0] sm:$0xf]
        %v2989 = vld [vmem:[%s517 + $0xb4] sm:$0xff]
        %v2990 = vld [vmem:[%s517 + $0xbc] sm:$0xf]
        %v2991 = vld [vmem:[%s640] sm:$0x7]
        %v2993 = vlaneseq
        %v2994 = vshrl.u32 %v2993, 7
        %v2995 = vsub.s32 0, %v2994
        %v2996 = vrot.slane %v2991, %v2995
        %v2997 = vlaneseq
        %v2998 = vshrl.u32 %v2997, 7
        %v2999 = vsub.s32 1, %v2998
        %v3000 = vrot.slane %v2991, %v2999
        %v3001 = vlaneseq
        %v3002 = vshrl.u32 %v3001, 7
        %v3003 = vsub.s32 2, %v3002
        %v3004 = vrot.slane %v2991, %v3003
        %v3040 = vunpack.c.l.b16 %v2959
        %v3041 = vunpack.c.h.b16 %v2959
        %v3042 = vunpack.c.l.b16 %v2960
        %v3043 = vunpack.c.l.b16 %v2961
        %v3044 = vunpack.c.h.b16 %v2961
        %v3045 = vunpack.c.l.b16 %v2962
        %v3046 = vunpack.c.l.b16 %v2963
        %v3047 = vunpack.c.h.b16 %v2963
        %v3048 = vunpack.c.l.b16 %v2964
        %v3049 = vunpack.c.l.b16 %v2965
        %v3050 = vunpack.c.h.b16 %v2965
        %v3051 = vunpack.c.l.b16 %v2966
        %v3052 = vunpack.c.l.b16 %v2967
        %v3053 = vunpack.c.h.b16 %v2967
        %v3054 = vunpack.c.l.b16 %v2968
        %v3055 = vunpack.c.l.b16 %v2969
        %v3056 = vunpack.c.h.b16 %v2969
        %v3057 = vunpack.c.l.b16 %v2970
        %v3058 = vunpack.c.l.b16 %v2971
        %v3059 = vunpack.c.h.b16 %v2971
        %v3060 = vunpack.c.l.b16 %v2972
        %v3061 = vunpack.c.l.b16 %v2973
        %v3062 = vunpack.c.h.b16 %v2973
        %v3063 = vunpack.c.l.b16 %v2974
        %v3064 = vunpack.c.l.b16 %v2975
        %v3065 = vunpack.c.h.b16 %v2975
        %v3066 = vunpack.c.l.b16 %v2976
        %v3067 = vunpack.c.l.b16 %v2977
        %v3068 = vunpack.c.h.b16 %v2977
        %v3069 = vunpack.c.l.b16 %v2978
        %v3070 = vunpack.c.l.b16 %v2979
        %v3071 = vunpack.c.h.b16 %v2979
        %v3072 = vunpack.c.l.b16 %v2980
        %v3073 = vunpack.c.l.b16 %v2981
        %v3074 = vunpack.c.h.b16 %v2981
        %v3075 = vunpack.c.l.b16 %v2982
        %v3076 = vunpack.c.l.b16 %v2983
        %v3077 = vunpack.c.h.b16 %v2983
        %v3078 = vunpack.c.l.b16 %v2984
        %v3079 = vunpack.c.l.b16 %v2985
        %v3080 = vunpack.c.h.b16 %v2985
        %v3081 = vunpack.c.l.b16 %v2986
        %v3082 = vunpack.c.l.b16 %v2987
        %v3083 = vunpack.c.h.b16 %v2987
        %v3084 = vunpack.c.l.b16 %v2988
        %v3085 = vunpack.c.l.b16 %v2989
        %v3086 = vunpack.c.h.b16 %v2989
        %v3087 = vunpack.c.l.b16 %v2990
        %v3088 = vpack.c.b16 %v3043, %v3040
        %v3089 = vpack.c.b16 %v3044, %v3041
        %v3090 = vpack.c.b16 %v3045, %v3042
        %v3091 = vpack.c.b16 %v3049, %v3046
        %v3092 = vpack.c.b16 %v3050, %v3047
        %v3093 = vpack.c.b16 %v3051, %v3048
        %v3094 = vpack.c.b16 %v3055, %v3052
        %v3095 = vpack.c.b16 %v3056, %v3053
        %v3096 = vpack.c.b16 %v3057, %v3054
        %v3097 = vpack.c.b16 %v3061, %v3058
        %v3098 = vpack.c.b16 %v3062, %v3059
        %v3099 = vpack.c.b16 %v3063, %v3060
        %v3100 = vpack.c.b16 %v3067, %v3064
        %v3101 = vpack.c.b16 %v3068, %v3065
        %v3102 = vpack.c.b16 %v3069, %v3066
        %v3103 = vpack.c.b16 %v3073, %v3070
        %v3104 = vpack.c.b16 %v3074, %v3071
        %v3105 = vpack.c.b16 %v3075, %v3072
        %v3106 = vpack.c.b16 %v3079, %v3076
        %v3107 = vpack.c.b16 %v3080, %v3077
        %v3108 = vpack.c.b16 %v3081, %v3078
        %v3109 = vpack.c.b16 %v3085, %v3082
        %v3110 = vpack.c.b16 %v3086, %v3083
        %v3111 = vpack.c.b16 %v3087, %v3084
        %3136 = vmatprep.subr.bf16.mxu0 %v3089
        %3137 = vmatpush1.bf16.msra.mxu0 %v3088
        %3138 = vmatprep.subr.bf16.mxu0 %v3092
        %3139 = vmatpush1.bf16.msra.mxu0 %v3091
        %3140 = vmatprep.subr.bf16.mxu0 %v3095
        %3141 = vmatpush1.bf16.msra.mxu0 %v3094
        %3142 = vmatprep.subr.bf16.mxu0 %v3098
        %3143 = vmatpush1.bf16.msra.mxu0 %v3097
        %3144 = vmatprep.subr.bf16.mxu0 %v3101
        %3145 = vmatpush1.bf16.msra.mxu0 %v3100
        %3146 = vmatprep.subr.bf16.mxu0 %v3104
        %3147 = vmatpush1.bf16.msra.mxu0 %v3103
        %3148 = vmatprep.subr.bf16.mxu0 %v3107
        %3149 = vmatpush1.bf16.msra.mxu0 %v3106
        %3150 = vmatprep.subr.bf16.mxu0 %v3110
        %3151 = vmatpush1.bf16.msra.mxu0 %v3109
        %3152 = vmatprep.subr.bf16.mxu0 0
        %3153 = vmatpush1.bf16.msra.mxu0 0
        %3154 = vmatprep.subr.bf16.mxu0 0
        %3155 = vmatpush1.bf16.msra.mxu0 0
        %3156 = vmatprep.subr.bf16.mxu0 0
        %3157 = vmatpush1.bf16.msra.mxu0 0
        %3158 = vmatprep.subr.bf16.mxu0 0
        %3159 = vmatpush1.bf16.msra.mxu0 0
        %3160 = vmatprep.subr.bf16.mxu0 0
        %3161 = vmatpush1.bf16.msra.mxu0 0
        %3162 = vmatprep.subr.bf16.mxu0 0
        %3163 = vmatpush1.bf16.msra.mxu0 0
        %3164 = vmatprep.subr.bf16.mxu0 0
        %3165 = vmatpush1.bf16.msra.mxu0 0
        %3166 = vmatprep.subr.bf16.mxu0 0
        %3167 = vmatpush1.bf16.msra.mxu0 0
        %3168 = vmatprep.mubr.bf16.mxu0 0
        %3169 = vmatmul.mubr.bf16.gmra.mrb[0].mxu0 %v2958
        %v3170 = vpop.f32.mrb[0].mxu0
        %v3171 = vadd.f32 %v2996, %v3170
        %v3172 = vpop.f32.mrb[0].mxu0
        %v3173 = vadd.f32 %v3000, %v3172
        %v3174 = vpop.f32.mrb[0].mxu0
        %v3175 = vpop.f32.mrb[0].mxu0
        %3176 = vdwg.mxu0
        %3177 = vmatprep.subr.bf16.mxu0 0
        %3178 = vmatpush1.bf16.msra.mxu0 %v3090
        %3179 = vmatprep.subr.bf16.mxu0 0
        %3180 = vmatpush1.bf16.msra.mxu0 %v3093
        %3181 = vmatprep.subr.bf16.mxu0 0
        %3182 = vmatpush1.bf16.msra.mxu0 %v3096
        %3183 = vmatprep.subr.bf16.mxu0 0
        %3184 = vmatpush1.bf16.msra.mxu0 %v3099
        %3185 = vmatprep.subr.bf16.mxu0 0
        %3186 = vmatpush1.bf16.msra.mxu0 %v3102
        %3187 = vmatprep.subr.bf16.mxu0 0
        %3188 = vmatpush1.bf16.msra.mxu0 %v3105
        %3189 = vmatprep.subr.bf16.mxu0 0
        %3190 = vmatpush1.bf16.msra.mxu0 %v3108
        %3191 = vmatprep.subr.bf16.mxu0 0
        %3192 = vmatpush1.bf16.msra.mxu0 %v3111
        %3193 = vmatprep.subr.bf16.mxu0 0
        %3194 = vmatpush1.bf16.msra.mxu0 0
        %3195 = vmatprep.subr.bf16.mxu0 0
        %3196 = vmatpush1.bf16.msra.mxu0 0
        %3197 = vmatprep.subr.bf16.mxu0 0
        %3198 = vmatpush1.bf16.msra.mxu0 0
        %3199 = vmatprep.subr.bf16.mxu0 0
        %3200 = vmatpush1.bf16.msra.mxu0 0
        %3201 = vmatprep.subr.bf16.mxu0 0
        %3202 = vmatpush1.bf16.msra.mxu0 0
        %3203 = vmatprep.subr.bf16.mxu0 0
        %3204 = vmatpush1.bf16.msra.mxu0 0
        %3205 = vmatprep.subr.bf16.mxu0 0
        %3206 = vmatpush1.bf16.msra.mxu0 0
        %3207 = vmatprep.subr.bf16.mxu0 0
        %3208 = vmatpush1.bf16.msra.mxu0 0
        %3209 = vmatprep.mubr.bf16.mxu0 0
        %3210 = vmatmul.mubr.bf16.gmra.mrb[0].mxu0 %v2958
        %v3211 = vpop.f32.mrb[0].mxu0
        %v3212 = vadd.f32 %v3004, %v3211
        %v3213 = vpop.f32.mrb[0].mxu0
        %v3214 = vpop.f32.mrb[0].mxu0
        %v3215 = vpop.f32.mrb[0].mxu0
        %3216 = vdwg.mxu0
        %v3217 = vadd.f32 %v2955, %v3171
        %v3218 = vxor.u32 %v3217, 2147483648
        %v3219 = vmul.f32 %v3218, 1.442695
        %v3220 = vpow.pop %v3219
        %v3221 = vadd.f32 %v3220, 1.0
        %v3222 = vrcp.pop %v3221
        %v3223 = vmul.f32 1.0, %v3222
        %v3224 = vadd.f32 %v2956, %v3173
        %v3225 = vxor.u32 %v3224, 2147483648
        %v3226 = vmul.f32 %v3225, 1.442695
        %v3227 = vpow.pop %v3226
        %v3228 = vadd.f32 %v3227, 1.0
        %v3229 = vrcp.pop %v3228
        %v3230 = vmul.f32 1.0, %v3229
        %v3231 = vmul.f32 %v3223, %v3212
        %v3232 = vadd.f32 %v2957, %v3231
        %v3233 = vtanh.pop %v3232
        %v3234 = vsub.f32 1.0, %v3230
        %v3235 = vmul.f32 %v3234, %v3233
        %v3236 = vmul.f32 %v3230, %v2661
        %v3237 = vadd.f32 %v3235, %v3236
        %s3238 = scalar_lea.vmem [#allocation5], 24
        %3239 = vst [vmem:[%s3238] sm:$0xff] %v2951
        %s3240 = scalar_lea.vmem [#allocation6], 32
        %3241 = vst [vmem:[%s3240] sm:$0xff] %v3237
        %s3242 = smul.addr %s2952, 8
        %s3243 = scalar_lea.vmem [#allocation3], %s3242
        %v3244 = vld [vmem:[%s3243] sm:$0xff]
        %v3245 = vld [vmem:[%s3243 + $0x8] sm:$0xff]
        %v3246 = vld [vmem:[%s3243 + $0x10] sm:$0xff]
        %v3247 = vpack.c.bf16 %v2951, %v2951
        %v3248 = vld [vmem:[%s620] sm:$0xff]
        %v3249 = vld [vmem:[%s620 + $0x8] sm:$0xf]
        %v3250 = vld [vmem:[%s620 + $0xc] sm:$0xff]
        %v3251 = vld [vmem:[%s620 + $0x14] sm:$0xf]
        %v3252 = vld [vmem:[%s620 + $0x18] sm:$0xff]
        %v3253 = vld [vmem:[%s620 + $0x20] sm:$0xf]
        %v3254 = vld [vmem:[%s620 + $0x24] sm:$0xff]
        %v3255 = vld [vmem:[%s620 + $0x2c] sm:$0xf]
        %v3256 = vld [vmem:[%s620 + $0x30] sm:$0xff]
        %v3257 = vld [vmem:[%s620 + $0x38] sm:$0xf]
        %v3258 = vld [vmem:[%s620 + $0x3c] sm:$0xff]
        %v3259 = vld [vmem:[%s620 + $0x44] sm:$0xf]
        %v3260 = vld [vmem:[%s620 + $0x48] sm:$0xff]
        %v3261 = vld [vmem:[%s620 + $0x50] sm:$0xf]
        %v3262 = vld [vmem:[%s620 + $0x54] sm:$0xff]
        %v3263 = vld [vmem:[%s620 + $0x5c] sm:$0xf]
        %v3264 = vld [vmem:[%s620 + $0x60] sm:$0xff]
        %v3265 = vld [vmem:[%s620 + $0x68] sm:$0xf]
        %v3266 = vld [vmem:[%s620 + $0x6c] sm:$0xff]
        %v3267 = vld [vmem:[%s620 + $0x74] sm:$0xf]
        %v3268 = vld [vmem:[%s620 + $0x78] sm:$0xff]
        %v3269 = vld [vmem:[%s620 + $0x80] sm:$0xf]
        %v3270 = vld [vmem:[%s620 + $0x84] sm:$0xff]
        %v3271 = vld [vmem:[%s620 + $0x8c] sm:$0xf]
        %v3272 = vld [vmem:[%s620 + $0x90] sm:$0xff]
        %v3273 = vld [vmem:[%s620 + $0x98] sm:$0xf]
        %v3274 = vld [vmem:[%s620 + $0x9c] sm:$0xff]
        %v3275 = vld [vmem:[%s620 + $0xa4] sm:$0xf]
        %v3276 = vld [vmem:[%s620 + $0xa8] sm:$0xff]
        %v3277 = vld [vmem:[%s620 + $0xb0] sm:$0xf]
        %v3278 = vld [vmem:[%s620 + $0xb4] sm:$0xff]
        %v3279 = vld [vmem:[%s620 + $0xbc] sm:$0xf]
        %v3280 = vld [vmem:[%s628] sm:$0x7]
        %v3282 = vlaneseq
        %v3283 = vshrl.u32 %v3282, 7
        %v3284 = vsub.s32 0, %v3283
        %v3285 = vrot.slane %v3280, %v3284
        %v3286 = vlaneseq
        %v3287 = vshrl.u32 %v3286, 7
        %v3288 = vsub.s32 1, %v3287
        %v3289 = vrot.slane %v3280, %v3288
        %v3290 = vlaneseq
        %v3291 = vshrl.u32 %v3290, 7
        %v3292 = vsub.s32 2, %v3291
        %v3293 = vrot.slane %v3280, %v3292
        %v3329 = vunpack.c.l.b16 %v3248
        %v3330 = vunpack.c.h.b16 %v3248
        %v3331 = vunpack.c.l.b16 %v3249
        %v3332 = vunpack.c.l.b16 %v3250
        %v3333 = vunpack.c.h.b16 %v3250
        %v3334 = vunpack.c.l.b16 %v3251
        %v3335 = vunpack.c.l.b16 %v3252
        %v3336 = vunpack.c.h.b16 %v3252
        %v3337 = vunpack.c.l.b16 %v3253
        %v3338 = vunpack.c.l.b16 %v3254
        %v3339 = vunpack.c.h.b16 %v3254
        %v3340 = vunpack.c.l.b16 %v3255
        %v3341 = vunpack.c.l.b16 %v3256
        %v3342 = vunpack.c.h.b16 %v3256
        %v3343 = vunpack.c.l.b16 %v3257
        %v3344 = vunpack.c.l.b16 %v3258
        %v3345 = vunpack.c.h.b16 %v3258
        %v3346 = vunpack.c.l.b16 %v3259
        %v3347 = vunpack.c.l.b16 %v3260
        %v3348 = vunpack.c.h.b16 %v3260
        %v3349 = vunpack.c.l.b16 %v3261
        %v3350 = vunpack.c.l.b16 %v3262
        %v3351 = vunpack.c.h.b16 %v3262
        %v3352 = vunpack.c.l.b16 %v3263
        %v3353 = vunpack.c.l.b16 %v3264
        %v3354 = vunpack.c.h.b16 %v3264
        %v3355 = vunpack.c.l.b16 %v3265
        %v3356 = vunpack.c.l.b16 %v3266
        %v3357 = vunpack.c.h.b16 %v3266
        %v3358 = vunpack.c.l.b16 %v3267
        %v3359 = vunpack.c.l.b16 %v3268
        %v3360 = vunpack.c.h.b16 %v3268
        %v3361 = vunpack.c.l.b16 %v3269
        %v3362 = vunpack.c.l.b16 %v3270
        %v3363 = vunpack.c.h.b16 %v3270
        %v3364 = vunpack.c.l.b16 %v3271
        %v3365 = vunpack.c.l.b16 %v3272
        %v3366 = vunpack.c.h.b16 %v3272
        %v3367 = vunpack.c.l.b16 %v3273
        %v3368 = vunpack.c.l.b16 %v3274
        %v3369 = vunpack.c.h.b16 %v3274
        %v3370 = vunpack.c.l.b16 %v3275
        %v3371 = vunpack.c.l.b16 %v3276
        %v3372 = vunpack.c.h.b16 %v3276
        %v3373 = vunpack.c.l.b16 %v3277
        %v3374 = vunpack.c.l.b16 %v3278
        %v3375 = vunpack.c.h.b16 %v3278
        %v3376 = vunpack.c.l.b16 %v3279
        %v3377 = vpack.c.b16 %v3332, %v3329
        %v3378 = vpack.c.b16 %v3333, %v3330
        %v3379 = vpack.c.b16 %v3334, %v3331
        %v3380 = vpack.c.b16 %v3338, %v3335
        %v3381 = vpack.c.b16 %v3339, %v3336
        %v3382 = vpack.c.b16 %v3340, %v3337
        %v3383 = vpack.c.b16 %v3344, %v3341
        %v3384 = vpack.c.b16 %v3345, %v3342
        %v3385 = vpack.c.b16 %v3346, %v3343
        %v3386 = vpack.c.b16 %v3350, %v3347
        %v3387 = vpack.c.b16 %v3351, %v3348
        %v3388 = vpack.c.b16 %v3352, %v3349
        %v3389 = vpack.c.b16 %v3356, %v3353
        %v3390 = vpack.c.b16 %v3357, %v3354
        %v3391 = vpack.c.b16 %v3358, %v3355
        %v3392 = vpack.c.b16 %v3362, %v3359
        %v3393 = vpack.c.b16 %v3363, %v3360
        %v3394 = vpack.c.b16 %v3364, %v3361
        %v3395 = vpack.c.b16 %v3368, %v3365
        %v3396 = vpack.c.b16 %v3369, %v3366
        %v3397 = vpack.c.b16 %v3370, %v3367
        %v3398 = vpack.c.b16 %v3374, %v3371
        %v3399 = vpack.c.b16 %v3375, %v3372
        %v3400 = vpack.c.b16 %v3376, %v3373
        %3425 = vmatprep.subr.bf16.mxu0 %v3378
        %3426 = vmatpush1.bf16.msra.mxu0 %v3377
        %3427 = vmatprep.subr.bf16.mxu0 %v3381
        %3428 = vmatpush1.bf16.msra.mxu0 %v3380
        %3429 = vmatprep.subr.bf16.mxu0 %v3384
        %3430 = vmatpush1.bf16.msra.mxu0 %v3383
        %3431 = vmatprep.subr.bf16.mxu0 %v3387
        %3432 = vmatpush1.bf16.msra.mxu0 %v3386
        %3433 = vmatprep.subr.bf16.mxu0 %v3390
        %3434 = vmatpush1.bf16.msra.mxu0 %v3389
        %3435 = vmatprep.subr.bf16.mxu0 %v3393
        %3436 = vmatpush1.bf16.msra.mxu0 %v3392
        %3437 = vmatprep.subr.bf16.mxu0 %v3396
        %3438 = vmatpush1.bf16.msra.mxu0 %v3395
        %3439 = vmatprep.subr.bf16.mxu0 %v3399
        %3440 = vmatpush1.bf16.msra.mxu0 %v3398
        %3441 = vmatprep.subr.bf16.mxu0 0
        %3442 = vmatpush1.bf16.msra.mxu0 0
        %3443 = vmatprep.subr.bf16.mxu0 0
        %3444 = vmatpush1.bf16.msra.mxu0 0
        %3445 = vmatprep.subr.bf16.mxu0 0
        %3446 = vmatpush1.bf16.msra.mxu0 0
        %3447 = vmatprep.subr.bf16.mxu0 0
        %3448 = vmatpush1.bf16.msra.mxu0 0
        %3449 = vmatprep.subr.bf16.mxu0 0
        %3450 = vmatpush1.bf16.msra.mxu0 0
        %3451 = vmatprep.subr.bf16.mxu0 0
        %3452 = vmatpush1.bf16.msra.mxu0 0
        %3453 = vmatprep.subr.bf16.mxu0 0
        %3454 = vmatpush1.bf16.msra.mxu0 0
        %3455 = vmatprep.subr.bf16.mxu0 0
        %3456 = vmatpush1.bf16.msra.mxu0 0
        %3457 = vmatprep.mubr.bf16.mxu0 0
        %3458 = vmatmul.mubr.bf16.gmra.mrb[0].mxu0 %v3247
        %v3459 = vpop.f32.mrb[0].mxu0
        %v3460 = vadd.f32 %v3285, %v3459
        %v3461 = vpop.f32.mrb[0].mxu0
        %v3462 = vadd.f32 %v3289, %v3461
        %v3463 = vpop.f32.mrb[0].mxu0
        %v3464 = vpop.f32.mrb[0].mxu0
        %3465 = vdwg.mxu0
        %3466 = vmatprep.subr.bf16.mxu0 0
        %3467 = vmatpush1.bf16.msra.mxu0 %v3379
        %3468 = vmatprep.subr.bf16.mxu0 0
        %3469 = vmatpush1.bf16.msra.mxu0 %v3382
        %3470 = vmatprep.subr.bf16.mxu0 0
        %3471 = vmatpush1.bf16.msra.mxu0 %v3385
        %3472 = vmatprep.subr.bf16.mxu0 0
        %3473 = vmatpush1.bf16.msra.mxu0 %v3388
        %3474 = vmatprep.subr.bf16.mxu0 0
        %3475 = vmatpush1.bf16.msra.mxu0 %v3391
        %3476 = vmatprep.subr.bf16.mxu0 0
        %3477 = vmatpush1.bf16.msra.mxu0 %v3394
        %3478 = vmatprep.subr.bf16.mxu0 0
        %3479 = vmatpush1.bf16.msra.mxu0 %v3397
        %3480 = vmatprep.subr.bf16.mxu0 0
        %3481 = vmatpush1.bf16.msra.mxu0 %v3400
        %3482 = vmatprep.subr.bf16.mxu0 0
        %3483 = vmatpush1.bf16.msra.mxu0 0
        %3484 = vmatprep.subr.bf16.mxu0 0
        %3485 = vmatpush1.bf16.msra.mxu0 0
        %3486 = vmatprep.subr.bf16.mxu0 0
        %3487 = vmatpush1.bf16.msra.mxu0 0
        %3488 = vmatprep.subr.bf16.mxu0 0
        %3489 = vmatpush1.bf16.msra.mxu0 0
        %3490 = vmatprep.subr.bf16.mxu0 0
        %3491 = vmatpush1.bf16.msra.mxu0 0
        %3492 = vmatprep.subr.bf16.mxu0 0
        %3493 = vmatpush1.bf16.msra.mxu0 0
        %3494 = vmatprep.subr.bf16.mxu0 0
        %3495 = vmatpush1.bf16.msra.mxu0 0
        %3496 = vmatprep.subr.bf16.mxu0 0
        %3497 = vmatpush1.bf16.msra.mxu0 0
        %3498 = vmatprep.mubr.bf16.mxu0 0
        %3499 = vmatmul.mubr.bf16.gmra.mrb[0].mxu0 %v3247
        %v3500 = vpop.f32.mrb[0].mxu0
        %v3501 = vadd.f32 %v3293, %v3500
        %v3502 = vpop.f32.mrb[0].mxu0
        %v3503 = vpop.f32.mrb[0].mxu0
        %v3504 = vpop.f32.mrb[0].mxu0
        %3505 = vdwg.mxu0
        %v3506 = vadd.f32 %v3244, %v3460
        %v3507 = vxor.u32 %v3506, 2147483648
        %v3508 = vmul.f32 %v3507, 1.442695
        %v3509 = vpow.pop %v3508
        %v3510 = vadd.f32 %v3509, 1.0
        %v3511 = vrcp.pop %v3510
        %v3512 = vmul.f32 1.0, %v3511
        %v3513 = vadd.f32 %v3245, %v3462
        %v3514 = vxor.u32 %v3513, 2147483648
        %v3515 = vmul.f32 %v3514, 1.442695
        %v3516 = vpow.pop %v3515
        %v3517 = vadd.f32 %v3516, 1.0
        %v3518 = vrcp.pop %v3517
        %v3519 = vmul.f32 1.0, %v3518
        %v3520 = vmul.f32 %v3512, %v3501
        %v3521 = vadd.f32 %v3246, %v3520
        %v3522 = vtanh.pop %v3521
        %v3523 = vsub.f32 1.0, %v3519
        %v3524 = vmul.f32 %v3523, %v3522
        %v3525 = vmul.f32 %v3519, %v2951
        %v3526 = vadd.f32 %v3524, %v3525
        %s3527 = smul.addr %s2666, 8
        %s3528 = scalar_lea.vmem [#allocation4], %s3527
        %v3529 = vld [vmem:[%s3528] sm:$0xff]
        %v3530 = vld [vmem:[%s3528 + $0x8] sm:$0xff]
        %v3531 = vld [vmem:[%s3528 + $0x10] sm:$0xff]
        %v3532 = vpack.c.bf16 %v3237, %v3237
        %v3533 = vld [vmem:[%s517] sm:$0xff]
        %v3534 = vld [vmem:[%s517 + $0x8] sm:$0xf]
        %v3535 = vld [vmem:[%s517 + $0xc] sm:$0xff]
        %v3536 = vld [vmem:[%s517 + $0x14] sm:$0xf]
        %v3537 = vld [vmem:[%s517 + $0x18] sm:$0xff]
        %v3538 = vld [vmem:[%s517 + $0x20] sm:$0xf]
        %v3539 = vld [vmem:[%s517 + $0x24] sm:$0xff]
        %v3540 = vld [vmem:[%s517 + $0x2c] sm:$0xf]
        %v3541 = vld [vmem:[%s517 + $0x30] sm:$0xff]
        %v3542 = vld [vmem:[%s517 + $0x38] sm:$0xf]
        %v3543 = vld [vmem:[%s517 + $0x3c] sm:$0xff]
        %v3544 = vld [vmem:[%s517 + $0x44] sm:$0xf]
        %v3545 = vld [vmem:[%s517 + $0x48] sm:$0xff]
        %v3546 = vld [vmem:[%s517 + $0x50] sm:$0xf]
        %v3547 = vld [vmem:[%s517 + $0x54] sm:$0xff]
        %v3548 = vld [vmem:[%s517 + $0x5c] sm:$0xf]
        %v3549 = vld [vmem:[%s517 + $0x60] sm:$0xff]
        %v3550 = vld [vmem:[%s517 + $0x68] sm:$0xf]
        %v3551 = vld [vmem:[%s517 + $0x6c] sm:$0xff]
        %v3552 = vld [vmem:[%s517 + $0x74] sm:$0xf]
        %v3553 = vld [vmem:[%s517 + $0x78] sm:$0xff]
        %v3554 = vld [vmem:[%s517 + $0x80] sm:$0xf]
        %v3555 = vld [vmem:[%s517 + $0x84] sm:$0xff]
        %v3556 = vld [vmem:[%s517 + $0x8c] sm:$0xf]
        %v3557 = vld [vmem:[%s517 + $0x90] sm:$0xff]
        %v3558 = vld [vmem:[%s517 + $0x98] sm:$0xf]
        %v3559 = vld [vmem:[%s517 + $0x9c] sm:$0xff]
        %v3560 = vld [vmem:[%s517 + $0xa4] sm:$0xf]
        %v3561 = vld [vmem:[%s517 + $0xa8] sm:$0xff]
        %v3562 = vld [vmem:[%s517 + $0xb0] sm:$0xf]
        %v3563 = vld [vmem:[%s517 + $0xb4] sm:$0xff]
        %v3564 = vld [vmem:[%s517 + $0xbc] sm:$0xf]
        %v3565 = vld [vmem:[%s640] sm:$0x7]
        %v3567 = vlaneseq
        %v3568 = vshrl.u32 %v3567, 7
        %v3569 = vsub.s32 0, %v3568
        %v3570 = vrot.slane %v3565, %v3569
        %v3571 = vlaneseq
        %v3572 = vshrl.u32 %v3571, 7
        %v3573 = vsub.s32 1, %v3572
        %v3574 = vrot.slane %v3565, %v3573
        %v3575 = vlaneseq
        %v3576 = vshrl.u32 %v3575, 7
        %v3577 = vsub.s32 2, %v3576
        %v3578 = vrot.slane %v3565, %v3577
        %v3614 = vunpack.c.l.b16 %v3533
        %v3615 = vunpack.c.h.b16 %v3533
        %v3616 = vunpack.c.l.b16 %v3534
        %v3617 = vunpack.c.l.b16 %v3535
        %v3618 = vunpack.c.h.b16 %v3535
        %v3619 = vunpack.c.l.b16 %v3536
        %v3620 = vunpack.c.l.b16 %v3537
        %v3621 = vunpack.c.h.b16 %v3537
        %v3622 = vunpack.c.l.b16 %v3538
        %v3623 = vunpack.c.l.b16 %v3539
        %v3624 = vunpack.c.h.b16 %v3539
        %v3625 = vunpack.c.l.b16 %v3540
        %v3626 = vunpack.c.l.b16 %v3541
        %v3627 = vunpack.c.h.b16 %v3541
        %v3628 = vunpack.c.l.b16 %v3542
        %v3629 = vunpack.c.l.b16 %v3543
        %v3630 = vunpack.c.h.b16 %v3543
        %v3631 = vunpack.c.l.b16 %v3544
        %v3632 = vunpack.c.l.b16 %v3545
        %v3633 = vunpack.c.h.b16 %v3545
        %v3634 = vunpack.c.l.b16 %v3546
        %v3635 = vunpack.c.l.b16 %v3547
        %v3636 = vunpack.c.h.b16 %v3547
        %v3637 = vunpack.c.l.b16 %v3548
        %v3638 = vunpack.c.l.b16 %v3549
        %v3639 = vunpack.c.h.b16 %v3549
        %v3640 = vunpack.c.l.b16 %v3550
        %v3641 = vunpack.c.l.b16 %v3551
        %v3642 = vunpack.c.h.b16 %v3551
        %v3643 = vunpack.c.l.b16 %v3552
        %v3644 = vunpack.c.l.b16 %v3553
        %v3645 = vunpack.c.h.b16 %v3553
        %v3646 = vunpack.c.l.b16 %v3554
        %v3647 = vunpack.c.l.b16 %v3555
        %v3648 = vunpack.c.h.b16 %v3555
        %v3649 = vunpack.c.l.b16 %v3556
        %v3650 = vunpack.c.l.b16 %v3557
        %v3651 = vunpack.c.h.b16 %v3557
        %v3652 = vunpack.c.l.b16 %v3558
        %v3653 = vunpack.c.l.b16 %v3559
        %v3654 = vunpack.c.h.b16 %v3559
        %v3655 = vunpack.c.l.b16 %v3560
        %v3656 = vunpack.c.l.b16 %v3561
        %v3657 = vunpack.c.h.b16 %v3561
        %v3658 = vunpack.c.l.b16 %v3562
        %v3659 = vunpack.c.l.b16 %v3563
        %v3660 = vunpack.c.h.b16 %v3563
        %v3661 = vunpack.c.l.b16 %v3564
        %v3662 = vpack.c.b16 %v3617, %v3614
        %v3663 = vpack.c.b16 %v3618, %v3615
        %v3664 = vpack.c.b16 %v3619, %v3616
        %v3665 = vpack.c.b16 %v3623, %v3620
        %v3666 = vpack.c.b16 %v3624, %v3621
        %v3667 = vpack.c.b16 %v3625, %v3622
        %v3668 = vpack.c.b16 %v3629, %v3626
        %v3669 = vpack.c.b16 %v3630, %v3627
        %v3670 = vpack.c.b16 %v3631, %v3628
        %v3671 = vpack.c.b16 %v3635, %v3632
        %v3672 = vpack.c.b16 %v3636, %v3633
        %v3673 = vpack.c.b16 %v3637, %v3634
        %v3674 = vpack.c.b16 %v3641, %v3638
        %v3675 = vpack.c.b16 %v3642, %v3639
        %v3676 = vpack.c.b16 %v3643, %v3640
        %v3677 = vpack.c.b16 %v3647, %v3644
        %v3678 = vpack.c.b16 %v3648, %v3645
        %v3679 = vpack.c.b16 %v3649, %v3646
        %v3680 = vpack.c.b16 %v3653, %v3650
        %v3681 = vpack.c.b16 %v3654, %v3651
        %v3682 = vpack.c.b16 %v3655, %v3652
        %v3683 = vpack.c.b16 %v3659, %v3656
        %v3684 = vpack.c.b16 %v3660, %v3657
        %v3685 = vpack.c.b16 %v3661, %v3658
        %3710 = vmatprep.subr.bf16.mxu0 %v3663
        %3711 = vmatpush1.bf16.msra.mxu0 %v3662
        %3712 = vmatprep.subr.bf16.mxu0 %v3666
        %3713 = vmatpush1.bf16.msra.mxu0 %v3665
        %3714 = vmatprep.subr.bf16.mxu0 %v3669
        %3715 = vmatpush1.bf16.msra.mxu0 %v3668
        %3716 = vmatprep.subr.bf16.mxu0 %v3672
        %3717 = vmatpush1.bf16.msra.mxu0 %v3671
        %3718 = vmatprep.subr.bf16.mxu0 %v3675
        %3719 = vmatpush1.bf16.msra.mxu0 %v3674
        %3720 = vmatprep.subr.bf16.mxu0 %v3678
        %3721 = vmatpush1.bf16.msra.mxu0 %v3677
        %3722 = vmatprep.subr.bf16.mxu0 %v3681
        %3723 = vmatpush1.bf16.msra.mxu0 %v3680
        %3724 = vmatprep.subr.bf16.mxu0 %v3684
        %3725 = vmatpush1.bf16.msra.mxu0 %v3683
        %3726 = vmatprep.subr.bf16.mxu0 0
        %3727 = vmatpush1.bf16.msra.mxu0 0
        %3728 = vmatprep.subr.bf16.mxu0 0
        %3729 = vmatpush1.bf16.msra.mxu0 0
        %3730 = vmatprep.subr.bf16.mxu0 0
        %3731 = vmatpush1.bf16.msra.mxu0 0
        %3732 = vmatprep.subr.bf16.mxu0 0
        %3733 = vmatpush1.bf16.msra.mxu0 0
        %3734 = vmatprep.subr.bf16.mxu0 0
        %3735 = vmatpush1.bf16.msra.mxu0 0
        %3736 = vmatprep.subr.bf16.mxu0 0
        %3737 = vmatpush1.bf16.msra.mxu0 0
        %3738 = vmatprep.subr.bf16.mxu0 0
        %3739 = vmatpush1.bf16.msra.mxu0 0
        %3740 = vmatprep.subr.bf16.mxu0 0
        %3741 = vmatpush1.bf16.msra.mxu0 0
        %3742 = vmatprep.mubr.bf16.mxu0 0
        %3743 = vmatmul.mubr.bf16.gmra.mrb[0].mxu0 %v3532
        %v3744 = vpop.f32.mrb[0].mxu0
        %v3745 = vadd.f32 %v3570, %v3744
        %v3746 = vpop.f32.mrb[0].mxu0
        %v3747 = vadd.f32 %v3574, %v3746
        %v3748 = vpop.f32.mrb[0].mxu0
        %v3749 = vpop.f32.mrb[0].mxu0
        %3750 = vdwg.mxu0
        %3751 = vmatprep.subr.bf16.mxu0 0
        %3752 = vmatpush1.bf16.msra.mxu0 %v3664
        %3753 = vmatprep.subr.bf16.mxu0 0
        %3754 = vmatpush1.bf16.msra.mxu0 %v3667
        %3755 = vmatprep.subr.bf16.mxu0 0
        %3756 = vmatpush1.bf16.msra.mxu0 %v3670
        %3757 = vmatprep.subr.bf16.mxu0 0
        %3758 = vmatpush1.bf16.msra.mxu0 %v3673
        %3759 = vmatprep.subr.bf16.mxu0 0
        %3760 = vmatpush1.bf16.msra.mxu0 %v3676
        %3761 = vmatprep.subr.bf16.mxu0 0
        %3762 = vmatpush1.bf16.msra.mxu0 %v3679
        %3763 = vmatprep.subr.bf16.mxu0 0
        %3764 = vmatpush1.bf16.msra.mxu0 %v3682
        %3765 = vmatprep.subr.bf16.mxu0 0
        %3766 = vmatpush1.bf16.msra.mxu0 %v3685
        %3767 = vmatprep.subr.bf16.mxu0 0
        %3768 = vmatpush1.bf16.msra.mxu0 0
        %3769 = vmatprep.subr.bf16.mxu0 0
        %3770 = vmatpush1.bf16.msra.mxu0 0
        %3771 = vmatprep.subr.bf16.mxu0 0
        %3772 = vmatpush1.bf16.msra.mxu0 0
        %3773 = vmatprep.subr.bf16.mxu0 0
        %3774 = vmatpush1.bf16.msra.mxu0 0
        %3775 = vmatprep.subr.bf16.mxu0 0
        %3776 = vmatpush1.bf16.msra.mxu0 0
        %3777 = vmatprep.subr.bf16.mxu0 0
        %3778 = vmatpush1.bf16.msra.mxu0 0
        %3779 = vmatprep.subr.bf16.mxu0 0
        %3780 = vmatpush1.bf16.msra.mxu0 0
        %3781 = vmatprep.subr.bf16.mxu0 0
        %3782 = vmatpush1.bf16.msra.mxu0 0
        %3783 = vmatprep.mubr.bf16.mxu0 0
        %3784 = vmatmul.mubr.bf16.gmra.mrb[0].mxu0 %v3532
        %v3785 = vpop.f32.mrb[0].mxu0
        %v3786 = vadd.f32 %v3578, %v3785
        %v3787 = vpop.f32.mrb[0].mxu0
        %v3788 = vpop.f32.mrb[0].mxu0
        %v3789 = vpop.f32.mrb[0].mxu0
        %3790 = vdwg.mxu0
        %v3791 = vadd.f32 %v3529, %v3745
        %v3792 = vxor.u32 %v3791, 2147483648
        %v3793 = vmul.f32 %v3792, 1.442695
        %v3794 = vpow.pop %v3793
        %v3795 = vadd.f32 %v3794, 1.0
        %v3796 = vrcp.pop %v3795
        %v3797 = vmul.f32 1.0, %v3796
        %v3798 = vadd.f32 %v3530, %v3747
        %v3799 = vxor.u32 %v3798, 2147483648
        %v3800 = vmul.f32 %v3799, 1.442695
        %v3801 = vpow.pop %v3800
        %v3802 = vadd.f32 %v3801, 1.0
        %v3803 = vrcp.pop %v3802
        %v3804 = vmul.f32 1.0, %v3803
        %v3805 = vmul.f32 %v3797, %v3786
        %v3806 = vadd.f32 %v3531, %v3805
        %v3807 = vtanh.pop %v3806
        %v3808 = vsub.f32 1.0, %v3804
        %v3809 = vmul.f32 %v3808, %v3807
        %v3810 = vmul.f32 %v3804, %v3237
        %v3811 = vadd.f32 %v3809, %v3810
        %s3812 = scalar_lea.vmem [#allocation5], 32
        %3813 = vst [vmem:[%s3812] sm:$0xff] %v3526
        %s3814 = scalar_lea.vmem [#allocation6], 24
        %3815 = vst [vmem:[%s3814] sm:$0xff] %v3811
        %s3816 = smul.addr %s2376, 8
        %s3817 = scalar_lea.vmem [#allocation3], %s3816
        %v3818 = vld [vmem:[%s3817] sm:$0xff]
        %v3819 = vld [vmem:[%s3817 + $0x8] sm:$0xff]
        %v3820 = vld [vmem:[%s3817 + $0x10] sm:$0xff]
        %v3821 = vpack.c.bf16 %v3526, %v3526
        %v3822 = vld [vmem:[%s620] sm:$0xff]
        %v3823 = vld [vmem:[%s620 + $0x8] sm:$0xf]
        %v3824 = vld [vmem:[%s620 + $0xc] sm:$0xff]
        %v3825 = vld [vmem:[%s620 + $0x14] sm:$0xf]
        %v3826 = vld [vmem:[%s620 + $0x18] sm:$0xff]
        %v3827 = vld [vmem:[%s620 + $0x20] sm:$0xf]
        %v3828 = vld [vmem:[%s620 + $0x24] sm:$0xff]
        %v3829 = vld [vmem:[%s620 + $0x2c] sm:$0xf]
        %v3830 = vld [vmem:[%s620 + $0x30] sm:$0xff]
        %v3831 = vld [vmem:[%s620 + $0x38] sm:$0xf]
        %v3832 = vld [vmem:[%s620 + $0x3c] sm:$0xff]
        %v3833 = vld [vmem:[%s620 + $0x44] sm:$0xf]
        %v3834 = vld [vmem:[%s620 + $0x48] sm:$0xff]
        %v3835 = vld [vmem:[%s620 + $0x50] sm:$0xf]
        %v3836 = vld [vmem:[%s620 + $0x54] sm:$0xff]
        %v3837 = vld [vmem:[%s620 + $0x5c] sm:$0xf]
        %v3838 = vld [vmem:[%s620 + $0x60] sm:$0xff]
        %v3839 = vld [vmem:[%s620 + $0x68] sm:$0xf]
        %v3840 = vld [vmem:[%s620 + $0x6c] sm:$0xff]
        %v3841 = vld [vmem:[%s620 + $0x74] sm:$0xf]
        %v3842 = vld [vmem:[%s620 + $0x78] sm:$0xff]
        %v3843 = vld [vmem:[%s620 + $0x80] sm:$0xf]
        %v3844 = vld [vmem:[%s620 + $0x84] sm:$0xff]
        %v3845 = vld [vmem:[%s620 + $0x8c] sm:$0xf]
        %v3846 = vld [vmem:[%s620 + $0x90] sm:$0xff]
        %v3847 = vld [vmem:[%s620 + $0x98] sm:$0xf]
        %v3848 = vld [vmem:[%s620 + $0x9c] sm:$0xff]
        %v3849 = vld [vmem:[%s620 + $0xa4] sm:$0xf]
        %v3850 = vld [vmem:[%s620 + $0xa8] sm:$0xff]
        %v3851 = vld [vmem:[%s620 + $0xb0] sm:$0xf]
        %v3852 = vld [vmem:[%s620 + $0xb4] sm:$0xff]
        %v3853 = vld [vmem:[%s620 + $0xbc] sm:$0xf]
        %v3854 = vld [vmem:[%s628] sm:$0x7]
        %v3856 = vlaneseq
        %v3857 = vshrl.u32 %v3856, 7
        %v3858 = vsub.s32 0, %v3857
        %v3859 = vrot.slane %v3854, %v3858
        %v3860 = vlaneseq
        %v3861 = vshrl.u32 %v3860, 7
        %v3862 = vsub.s32 1, %v3861
        %v3863 = vrot.slane %v3854, %v3862
        %v3864 = vlaneseq
        %v3865 = vshrl.u32 %v3864, 7
        %v3866 = vsub.s32 2, %v3865
        %v3867 = vrot.slane %v3854, %v3866
        %v3903 = vunpack.c.l.b16 %v3822
        %v3904 = vunpack.c.h.b16 %v3822
        %v3905 = vunpack.c.l.b16 %v3823
        %v3906 = vunpack.c.l.b16 %v3824
        %v3907 = vunpack.c.h.b16 %v3824
        %v3908 = vunpack.c.l.b16 %v3825
        %v3909 = vunpack.c.l.b16 %v3826
        %v3910 = vunpack.c.h.b16 %v3826
        %v3911 = vunpack.c.l.b16 %v3827
        %v3912 = vunpack.c.l.b16 %v3828
        %v3913 = vunpack.c.h.b16 %v3828
        %v3914 = vunpack.c.l.b16 %v3829
        %v3915 = vunpack.c.l.b16 %v3830
        %v3916 = vunpack.c.h.b16 %v3830
        %v3917 = vunpack.c.l.b16 %v3831
        %v3918 = vunpack.c.l.b16 %v3832
        %v3919 = vunpack.c.h.b16 %v3832
        %v3920 = vunpack.c.l.b16 %v3833
        %v3921 = vunpack.c.l.b16 %v3834
        %v3922 = vunpack.c.h.b16 %v3834
        %v3923 = vunpack.c.l.b16 %v3835
        %v3924 = vunpack.c.l.b16 %v3836
        %v3925 = vunpack.c.h.b16 %v3836
        %v3926 = vunpack.c.l.b16 %v3837
        %v3927 = vunpack.c.l.b16 %v3838
        %v3928 = vunpack.c.h.b16 %v3838
        %v3929 = vunpack.c.l.b16 %v3839
        %v3930 = vunpack.c.l.b16 %v3840
        %v3931 = vunpack.c.h.b16 %v3840
        %v3932 = vunpack.c.l.b16 %v3841
        %v3933 = vunpack.c.l.b16 %v3842
        %v3934 = vunpack.c.h.b16 %v3842
        %v3935 = vunpack.c.l.b16 %v3843
        %v3936 = vunpack.c.l.b16 %v3844
        %v3937 = vunpack.c.h.b16 %v3844
        %v3938 = vunpack.c.l.b16 %v3845
        %v3939 = vunpack.c.l.b16 %v3846
        %v3940 = vunpack.c.h.b16 %v3846
        %v3941 = vunpack.c.l.b16 %v3847
        %v3942 = vunpack.c.l.b16 %v3848
        %v3943 = vunpack.c.h.b16 %v3848
        %v3944 = vunpack.c.l.b16 %v3849
        %v3945 = vunpack.c.l.b16 %v3850
        %v3946 = vunpack.c.h.b16 %v3850
        %v3947 = vunpack.c.l.b16 %v3851
        %v3948 = vunpack.c.l.b16 %v3852
        %v3949 = vunpack.c.h.b16 %v3852
        %v3950 = vunpack.c.l.b16 %v3853
        %v3951 = vpack.c.b16 %v3906, %v3903
        %v3952 = vpack.c.b16 %v3907, %v3904
        %v3953 = vpack.c.b16 %v3908, %v3905
        %v3954 = vpack.c.b16 %v3912, %v3909
        %v3955 = vpack.c.b16 %v3913, %v3910
        %v3956 = vpack.c.b16 %v3914, %v3911
        %v3957 = vpack.c.b16 %v3918, %v3915
        %v3958 = vpack.c.b16 %v3919, %v3916
        %v3959 = vpack.c.b16 %v3920, %v3917
        %v3960 = vpack.c.b16 %v3924, %v3921
        %v3961 = vpack.c.b16 %v3925, %v3922
        %v3962 = vpack.c.b16 %v3926, %v3923
        %v3963 = vpack.c.b16 %v3930, %v3927
        %v3964 = vpack.c.b16 %v3931, %v3928
        %v3965 = vpack.c.b16 %v3932, %v3929
        %v3966 = vpack.c.b16 %v3936, %v3933
        %v3967 = vpack.c.b16 %v3937, %v3934
        %v3968 = vpack.c.b16 %v3938, %v3935
        %v3969 = vpack.c.b16 %v3942, %v3939
        %v3970 = vpack.c.b16 %v3943, %v3940
        %v3971 = vpack.c.b16 %v3944, %v3941
        %v3972 = vpack.c.b16 %v3948, %v3945
        %v3973 = vpack.c.b16 %v3949, %v3946
        %v3974 = vpack.c.b16 %v3950, %v3947
        %3999 = vmatprep.subr.bf16.mxu0 %v3952
        %4000 = vmatpush1.bf16.msra.mxu0 %v3951
        %4001 = vmatprep.subr.bf16.mxu0 %v3955
        %4002 = vmatpush1.bf16.msra.mxu0 %v3954
        %4003 = vmatprep.subr.bf16.mxu0 %v3958
        %4004 = vmatpush1.bf16.msra.mxu0 %v3957
        %4005 = vmatprep.subr.bf16.mxu0 %v3961
        %4006 = vmatpush1.bf16.msra.mxu0 %v3960
        %4007 = vmatprep.subr.bf16.mxu0 %v3964
        %4008 = vmatpush1.bf16.msra.mxu0 %v3963
        %4009 = vmatprep.subr.bf16.mxu0 %v3967
        %4010 = vmatpush1.bf16.msra.mxu0 %v3966
        %4011 = vmatprep.subr.bf16.mxu0 %v3970
        %4012 = vmatpush1.bf16.msra.mxu0 %v3969
        %4013 = vmatprep.subr.bf16.mxu0 %v3973
        %4014 = vmatpush1.bf16.msra.mxu0 %v3972
        %4015 = vmatprep.subr.bf16.mxu0 0
        %4016 = vmatpush1.bf16.msra.mxu0 0
        %4017 = vmatprep.subr.bf16.mxu0 0
        %4018 = vmatpush1.bf16.msra.mxu0 0
        %4019 = vmatprep.subr.bf16.mxu0 0
        %4020 = vmatpush1.bf16.msra.mxu0 0
        %4021 = vmatprep.subr.bf16.mxu0 0
        %4022 = vmatpush1.bf16.msra.mxu0 0
        %4023 = vmatprep.subr.bf16.mxu0 0
        %4024 = vmatpush1.bf16.msra.mxu0 0
        %4025 = vmatprep.subr.bf16.mxu0 0
        %4026 = vmatpush1.bf16.msra.mxu0 0
        %4027 = vmatprep.subr.bf16.mxu0 0
        %4028 = vmatpush1.bf16.msra.mxu0 0
        %4029 = vmatprep.subr.bf16.mxu0 0
        %4030 = vmatpush1.bf16.msra.mxu0 0
        %4031 = vmatprep.mubr.bf16.mxu0 0
        %4032 = vmatmul.mubr.bf16.gmra.mrb[0].mxu0 %v3821
        %v4033 = vpop.f32.mrb[0].mxu0
        %v4034 = vadd.f32 %v3859, %v4033
        %v4035 = vpop.f32.mrb[0].mxu0
        %v4036 = vadd.f32 %v3863, %v4035
        %v4037 = vpop.f32.mrb[0].mxu0
        %v4038 = vpop.f32.mrb[0].mxu0
        %4039 = vdwg.mxu0
        %4040 = vmatprep.subr.bf16.mxu0 0
        %4041 = vmatpush1.bf16.msra.mxu0 %v3953
        %4042 = vmatprep.subr.bf16.mxu0 0
        %4043 = vmatpush1.bf16.msra.mxu0 %v3956
        %4044 = vmatprep.subr.bf16.mxu0 0
        %4045 = vmatpush1.bf16.msra.mxu0 %v3959
        %4046 = vmatprep.subr.bf16.mxu0 0
        %4047 = vmatpush1.bf16.msra.mxu0 %v3962
        %4048 = vmatprep.subr.bf16.mxu0 0
        %4049 = vmatpush1.bf16.msra.mxu0 %v3965
        %4050 = vmatprep.subr.bf16.mxu0 0
        %4051 = vmatpush1.bf16.msra.mxu0 %v3968
        %4052 = vmatprep.subr.bf16.mxu0 0
        %4053 = vmatpush1.bf16.msra.mxu0 %v3971
        %4054 = vmatprep.subr.bf16.mxu0 0
        %4055 = vmatpush1.bf16.msra.mxu0 %v3974
        %4056 = vmatprep.subr.bf16.mxu0 0
        %4057 = vmatpush1.bf16.msra.mxu0 0
        %4058 = vmatprep.subr.bf16.mxu0 0
        %4059 = vmatpush1.bf16.msra.mxu0 0
        %4060 = vmatprep.subr.bf16.mxu0 0
        %4061 = vmatpush1.bf16.msra.mxu0 0
        %4062 = vmatprep.subr.bf16.mxu0 0
        %4063 = vmatpush1.bf16.msra.mxu0 0
        %4064 = vmatprep.subr.bf16.mxu0 0
        %4065 = vmatpush1.bf16.msra.mxu0 0
        %4066 = vmatprep.subr.bf16.mxu0 0
        %4067 = vmatpush1.bf16.msra.mxu0 0
        %4068 = vmatprep.subr.bf16.mxu0 0
        %4069 = vmatpush1.bf16.msra.mxu0 0
        %4070 = vmatprep.subr.bf16.mxu0 0
        %4071 = vmatpush1.bf16.msra.mxu0 0
        %4072 = vmatprep.mubr.bf16.mxu0 0
        %4073 = vmatmul.mubr.bf16.gmra.mrb[0].mxu0 %v3821
        %v4074 = vpop.f32.mrb[0].mxu0
        %v4075 = vadd.f32 %v3867, %v4074
        %v4076 = vpop.f32.mrb[0].mxu0
        %v4077 = vpop.f32.mrb[0].mxu0
        %v4078 = vpop.f32.mrb[0].mxu0
        %4079 = vdwg.mxu0
        %v4080 = vadd.f32 %v3818, %v4034
        %v4081 = vxor.u32 %v4080, 2147483648
        %v4082 = vmul.f32 %v4081, 1.442695
        %v4083 = vpow.pop %v4082
        %v4084 = vadd.f32 %v4083, 1.0
        %v4085 = vrcp.pop %v4084
        %v4086 = vmul.f32 1.0, %v4085
        %v4087 = vadd.f32 %v3819, %v4036
        %v4088 = vxor.u32 %v4087, 2147483648
        %v4089 = vmul.f32 %v4088, 1.442695
        %v4090 = vpow.pop %v4089
        %v4091 = vadd.f32 %v4090, 1.0
        %v4092 = vrcp.pop %v4091
        %v4093 = vmul.f32 1.0, %v4092
        %v4094 = vmul.f32 %v4086, %v4075
        %v4095 = vadd.f32 %v3820, %v4094
        %v4096 = vtanh.pop %v4095
        %v4097 = vsub.f32 1.0, %v4093
        %v4098 = vmul.f32 %v4097, %v4096
        %v4099 = vmul.f32 %v4093, %v3526
        %v4100 = vadd.f32 %v4098, %v4099
        %s4101 = smul.addr %s2090, 8
        %s4102 = scalar_lea.vmem [#allocation4], %s4101
        %v4103 = vld [vmem:[%s4102] sm:$0xff]
        %v4104 = vld [vmem:[%s4102 + $0x8] sm:$0xff]
        %v4105 = vld [vmem:[%s4102 + $0x10] sm:$0xff]
        %v4106 = vpack.c.bf16 %v3811, %v3811
        %v4107 = vld [vmem:[%s517] sm:$0xff]
        %v4108 = vld [vmem:[%s517 + $0x8] sm:$0xf]
        %v4109 = vld [vmem:[%s517 + $0xc] sm:$0xff]
        %v4110 = vld [vmem:[%s517 + $0x14] sm:$0xf]
        %v4111 = vld [vmem:[%s517 + $0x18] sm:$0xff]
        %v4112 = vld [vmem:[%s517 + $0x20] sm:$0xf]
        %v4113 = vld [vmem:[%s517 + $0x24] sm:$0xff]
        %v4114 = vld [vmem:[%s517 + $0x2c] sm:$0xf]
        %v4115 = vld [vmem:[%s517 + $0x30] sm:$0xff]
        %v4116 = vld [vmem:[%s517 + $0x38] sm:$0xf]
        %v4117 = vld [vmem:[%s517 + $0x3c] sm:$0xff]
        %v4118 = vld [vmem:[%s517 + $0x44] sm:$0xf]
        %v4119 = vld [vmem:[%s517 + $0x48] sm:$0xff]
        %v4120 = vld [vmem:[%s517 + $0x50] sm:$0xf]
        %v4121 = vld [vmem:[%s517 + $0x54] sm:$0xff]
        %v4122 = vld [vmem:[%s517 + $0x5c] sm:$0xf]
        %v4123 = vld [vmem:[%s517 + $0x60] sm:$0xff]
        %v4124 = vld [vmem:[%s517 + $0x68] sm:$0xf]
        %v4125 = vld [vmem:[%s517 + $0x6c] sm:$0xff]
        %v4126 = vld [vmem:[%s517 + $0x74] sm:$0xf]
        %v4127 = vld [vmem:[%s517 + $0x78] sm:$0xff]
        %v4128 = vld [vmem:[%s517 + $0x80] sm:$0xf]
        %v4129 = vld [vmem:[%s517 + $0x84] sm:$0xff]
        %v4130 = vld [vmem:[%s517 + $0x8c] sm:$0xf]
        %v4131 = vld [vmem:[%s517 + $0x90] sm:$0xff]
        %v4132 = vld [vmem:[%s517 + $0x98] sm:$0xf]
        %v4133 = vld [vmem:[%s517 + $0x9c] sm:$0xff]
        %v4134 = vld [vmem:[%s517 + $0xa4] sm:$0xf]
        %v4135 = vld [vmem:[%s517 + $0xa8] sm:$0xff]
        %v4136 = vld [vmem:[%s517 + $0xb0] sm:$0xf]
        %v4137 = vld [vmem:[%s517 + $0xb4] sm:$0xff]
        %v4138 = vld [vmem:[%s517 + $0xbc] sm:$0xf]
        %v4139 = vld [vmem:[%s640] sm:$0x7]
        %v4141 = vlaneseq
        %v4142 = vshrl.u32 %v4141, 7
        %v4143 = vsub.s32 0, %v4142
        %v4144 = vrot.slane %v4139, %v4143
        %v4145 = vlaneseq
        %v4146 = vshrl.u32 %v4145, 7
        %v4147 = vsub.s32 1, %v4146
        %v4148 = vrot.slane %v4139, %v4147
        %v4149 = vlaneseq
        %v4150 = vshrl.u32 %v4149, 7
        %v4151 = vsub.s32 2, %v4150
        %v4152 = vrot.slane %v4139, %v4151
        %v4188 = vunpack.c.l.b16 %v4107
        %v4189 = vunpack.c.h.b16 %v4107
        %v4190 = vunpack.c.l.b16 %v4108
        %v4191 = vunpack.c.l.b16 %v4109
        %v4192 = vunpack.c.h.b16 %v4109
        %v4193 = vunpack.c.l.b16 %v4110
        %v4194 = vunpack.c.l.b16 %v4111
        %v4195 = vunpack.c.h.b16 %v4111
        %v4196 = vunpack.c.l.b16 %v4112
        %v4197 = vunpack.c.l.b16 %v4113
        %v4198 = vunpack.c.h.b16 %v4113
        %v4199 = vunpack.c.l.b16 %v4114
        %v4200 = vunpack.c.l.b16 %v4115
        %v4201 = vunpack.c.h.b16 %v4115
        %v4202 = vunpack.c.l.b16 %v4116
        %v4203 = vunpack.c.l.b16 %v4117
        %v4204 = vunpack.c.h.b16 %v4117
        %v4205 = vunpack.c.l.b16 %v4118
        %v4206 = vunpack.c.l.b16 %v4119
        %v4207 = vunpack.c.h.b16 %v4119
        %v4208 = vunpack.c.l.b16 %v4120
        %v4209 = vunpack.c.l.b16 %v4121
        %v4210 = vunpack.c.h.b16 %v4121
        %v4211 = vunpack.c.l.b16 %v4122
        %v4212 = vunpack.c.l.b16 %v4123
        %v4213 = vunpack.c.h.b16 %v4123
        %v4214 = vunpack.c.l.b16 %v4124
        %v4215 = vunpack.c.l.b16 %v4125
        %v4216 = vunpack.c.h.b16 %v4125
        %v4217 = vunpack.c.l.b16 %v4126
        %v4218 = vunpack.c.l.b16 %v4127
        %v4219 = vunpack.c.h.b16 %v4127
        %v4220 = vunpack.c.l.b16 %v4128
        %v4221 = vunpack.c.l.b16 %v4129
        %v4222 = vunpack.c.h.b16 %v4129
        %v4223 = vunpack.c.l.b16 %v4130
        %v4224 = vunpack.c.l.b16 %v4131
        %v4225 = vunpack.c.h.b16 %v4131
        %v4226 = vunpack.c.l.b16 %v4132
        %v4227 = vunpack.c.l.b16 %v4133
        %v4228 = vunpack.c.h.b16 %v4133
        %v4229 = vunpack.c.l.b16 %v4134
        %v4230 = vunpack.c.l.b16 %v4135
        %v4231 = vunpack.c.h.b16 %v4135
        %v4232 = vunpack.c.l.b16 %v4136
        %v4233 = vunpack.c.l.b16 %v4137
        %v4234 = vunpack.c.h.b16 %v4137
        %v4235 = vunpack.c.l.b16 %v4138
        %v4236 = vpack.c.b16 %v4191, %v4188
        %v4237 = vpack.c.b16 %v4192, %v4189
        %v4238 = vpack.c.b16 %v4193, %v4190
        %v4239 = vpack.c.b16 %v4197, %v4194
        %v4240 = vpack.c.b16 %v4198, %v4195
        %v4241 = vpack.c.b16 %v4199, %v4196
        %v4242 = vpack.c.b16 %v4203, %v4200
        %v4243 = vpack.c.b16 %v4204, %v4201
        %v4244 = vpack.c.b16 %v4205, %v4202
        %v4245 = vpack.c.b16 %v4209, %v4206
        %v4246 = vpack.c.b16 %v4210, %v4207
        %v4247 = vpack.c.b16 %v4211, %v4208
        %v4248 = vpack.c.b16 %v4215, %v4212
        %v4249 = vpack.c.b16 %v4216, %v4213
        %v4250 = vpack.c.b16 %v4217, %v4214
        %v4251 = vpack.c.b16 %v4221, %v4218
        %v4252 = vpack.c.b16 %v4222, %v4219
        %v4253 = vpack.c.b16 %v4223, %v4220
        %v4254 = vpack.c.b16 %v4227, %v4224
        %v4255 = vpack.c.b16 %v4228, %v4225
        %v4256 = vpack.c.b16 %v4229, %v4226
        %v4257 = vpack.c.b16 %v4233, %v4230
        %v4258 = vpack.c.b16 %v4234, %v4231
        %v4259 = vpack.c.b16 %v4235, %v4232
        %4284 = vmatprep.subr.bf16.mxu0 %v4237
        %4285 = vmatpush1.bf16.msra.mxu0 %v4236
        %4286 = vmatprep.subr.bf16.mxu0 %v4240
        %4287 = vmatpush1.bf16.msra.mxu0 %v4239
        %4288 = vmatprep.subr.bf16.mxu0 %v4243
        %4289 = vmatpush1.bf16.msra.mxu0 %v4242
        %4290 = vmatprep.subr.bf16.mxu0 %v4246
        %4291 = vmatpush1.bf16.msra.mxu0 %v4245
        %4292 = vmatprep.subr.bf16.mxu0 %v4249
        %4293 = vmatpush1.bf16.msra.mxu0 %v4248
        %4294 = vmatprep.subr.bf16.mxu0 %v4252
        %4295 = vmatpush1.bf16.msra.mxu0 %v4251
        %4296 = vmatprep.subr.bf16.mxu0 %v4255
        %4297 = vmatpush1.bf16.msra.mxu0 %v4254
        %4298 = vmatprep.subr.bf16.mxu0 %v4258
        %4299 = vmatpush1.bf16.msra.mxu0 %v4257
        %4300 = vmatprep.subr.bf16.mxu0 0
        %4301 = vmatpush1.bf16.msra.mxu0 0
        %4302 = vmatprep.subr.bf16.mxu0 0
        %4303 = vmatpush1.bf16.msra.mxu0 0
        %4304 = vmatprep.subr.bf16.mxu0 0
        %4305 = vmatpush1.bf16.msra.mxu0 0
        %4306 = vmatprep.subr.bf16.mxu0 0
        %4307 = vmatpush1.bf16.msra.mxu0 0
        %4308 = vmatprep.subr.bf16.mxu0 0
        %4309 = vmatpush1.bf16.msra.mxu0 0
        %4310 = vmatprep.subr.bf16.mxu0 0
        %4311 = vmatpush1.bf16.msra.mxu0 0
        %4312 = vmatprep.subr.bf16.mxu0 0
        %4313 = vmatpush1.bf16.msra.mxu0 0
        %4314 = vmatprep.subr.bf16.mxu0 0
        %4315 = vmatpush1.bf16.msra.mxu0 0
        %4316 = vmatprep.mubr.bf16.mxu0 0
        %4317 = vmatmul.mubr.bf16.gmra.mrb[0].mxu0 %v4106
        %v4318 = vpop.f32.mrb[0].mxu0
        %v4319 = vadd.f32 %v4144, %v4318
        %v4320 = vpop.f32.mrb[0].mxu0
        %v4321 = vadd.f32 %v4148, %v4320
        %v4322 = vpop.f32.mrb[0].mxu0
        %v4323 = vpop.f32.mrb[0].mxu0
        %4324 = vdwg.mxu0
        %4325 = vmatprep.subr.bf16.mxu0 0
        %4326 = vmatpush1.bf16.msra.mxu0 %v4238
        %4327 = vmatprep.subr.bf16.mxu0 0
        %4328 = vmatpush1.bf16.msra.mxu0 %v4241
        %4329 = vmatprep.subr.bf16.mxu0 0
        %4330 = vmatpush1.bf16.msra.mxu0 %v4244
        %4331 = vmatprep.subr.bf16.mxu0 0
        %4332 = vmatpush1.bf16.msra.mxu0 %v4247
        %4333 = vmatprep.subr.bf16.mxu0 0
        %4334 = vmatpush1.bf16.msra.mxu0 %v4250
        %4335 = vmatprep.subr.bf16.mxu0 0
        %4336 = vmatpush1.bf16.msra.mxu0 %v4253
        %4337 = vmatprep.subr.bf16.mxu0 0
        %4338 = vmatpush1.bf16.msra.mxu0 %v4256
        %4339 = vmatprep.subr.bf16.mxu0 0
        %4340 = vmatpush1.bf16.msra.mxu0 %v4259
        %4341 = vmatprep.subr.bf16.mxu0 0
        %4342 = vmatpush1.bf16.msra.mxu0 0
        %4343 = vmatprep.subr.bf16.mxu0 0
        %4344 = vmatpush1.bf16.msra.mxu0 0
        %4345 = vmatprep.subr.bf16.mxu0 0
        %4346 = vmatpush1.bf16.msra.mxu0 0
        %4347 = vmatprep.subr.bf16.mxu0 0
        %4348 = vmatpush1.bf16.msra.mxu0 0
        %4349 = vmatprep.subr.bf16.mxu0 0
        %4350 = vmatpush1.bf16.msra.mxu0 0
        %4351 = vmatprep.subr.bf16.mxu0 0
        %4352 = vmatpush1.bf16.msra.mxu0 0
        %4353 = vmatprep.subr.bf16.mxu0 0
        %4354 = vmatpush1.bf16.msra.mxu0 0
        %4355 = vmatprep.subr.bf16.mxu0 0
        %4356 = vmatpush1.bf16.msra.mxu0 0
        %4357 = vmatprep.mubr.bf16.mxu0 0
        %4358 = vmatmul.mubr.bf16.gmra.mrb[0].mxu0 %v4106
        %v4359 = vpop.f32.mrb[0].mxu0
        %v4360 = vadd.f32 %v4152, %v4359
        %v4361 = vpop.f32.mrb[0].mxu0
        %v4362 = vpop.f32.mrb[0].mxu0
        %v4363 = vpop.f32.mrb[0].mxu0
        %4364 = vdwg.mxu0
        %v4365 = vadd.f32 %v4103, %v4319
        %v4366 = vxor.u32 %v4365, 2147483648
        %v4367 = vmul.f32 %v4366, 1.442695
        %v4368 = vpow.pop %v4367
        %v4369 = vadd.f32 %v4368, 1.0
        %v4370 = vrcp.pop %v4369
        %v4371 = vmul.f32 1.0, %v4370
        %v4372 = vadd.f32 %v4104, %v4321
        %v4373 = vxor.u32 %v4372, 2147483648
        %v4374 = vmul.f32 %v4373, 1.442695
        %v4375 = vpow.pop %v4374
        %v4376 = vadd.f32 %v4375, 1.0
        %v4377 = vrcp.pop %v4376
        %v4378 = vmul.f32 1.0, %v4377
        %v4379 = vmul.f32 %v4371, %v4360
        %v4380 = vadd.f32 %v4105, %v4379
        %v4381 = vtanh.pop %v4380
        %v4382 = vsub.f32 1.0, %v4378
        %v4383 = vmul.f32 %v4382, %v4381
        %v4384 = vmul.f32 %v4378, %v3811
        %v4385 = vadd.f32 %v4383, %v4384
        %s4386 = scalar_lea.vmem [#allocation5], 40
        %4387 = vst [vmem:[%s4386] sm:$0xff] %v4100
        %s4388 = scalar_lea.vmem [#allocation6], 16
        %4389 = vst [vmem:[%s4388] sm:$0xff] %v4385
        %s4390 = smul.addr %s1800, 8
        %s4391 = scalar_lea.vmem [#allocation3], %s4390
        %v4392 = vld [vmem:[%s4391] sm:$0xff]
        %v4393 = vld [vmem:[%s4391 + $0x8] sm:$0xff]
        %v4394 = vld [vmem:[%s4391 + $0x10] sm:$0xff]
        %v4395 = vpack.c.bf16 %v4100, %v4100
        %v4396 = vld [vmem:[%s620] sm:$0xff]
        %v4397 = vld [vmem:[%s620 + $0x8] sm:$0xf]
        %v4398 = vld [vmem:[%s620 + $0xc] sm:$0xff]
        %v4399 = vld [vmem:[%s620 + $0x14] sm:$0xf]
        %v4400 = vld [vmem:[%s620 + $0x18] sm:$0xff]
        %v4401 = vld [vmem:[%s620 + $0x20] sm:$0xf]
        %v4402 = vld [vmem:[%s620 + $0x24] sm:$0xff]
        %v4403 = vld [vmem:[%s620 + $0x2c] sm:$0xf]
        %v4404 = vld [vmem:[%s620 + $0x30] sm:$0xff]
        %v4405 = vld [vmem:[%s620 + $0x38] sm:$0xf]
        %v4406 = vld [vmem:[%s620 + $0x3c] sm:$0xff]
        %v4407 = vld [vmem:[%s620 + $0x44] sm:$0xf]
        %v4408 = vld [vmem:[%s620 + $0x48] sm:$0xff]
        %v4409 = vld [vmem:[%s620 + $0x50] sm:$0xf]
        %v4410 = vld [vmem:[%s620 + $0x54] sm:$0xff]
        %v4411 = vld [vmem:[%s620 + $0x5c] sm:$0xf]
        %v4412 = vld [vmem:[%s620 + $0x60] sm:$0xff]
        %v4413 = vld [vmem:[%s620 + $0x68] sm:$0xf]
        %v4414 = vld [vmem:[%s620 + $0x6c] sm:$0xff]
        %v4415 = vld [vmem:[%s620 + $0x74] sm:$0xf]
        %v4416 = vld [vmem:[%s620 + $0x78] sm:$0xff]
        %v4417 = vld [vmem:[%s620 + $0x80] sm:$0xf]
        %v4418 = vld [vmem:[%s620 + $0x84] sm:$0xff]
        %v4419 = vld [vmem:[%s620 + $0x8c] sm:$0xf]
        %v4420 = vld [vmem:[%s620 + $0x90] sm:$0xff]
        %v4421 = vld [vmem:[%s620 + $0x98] sm:$0xf]
        %v4422 = vld [vmem:[%s620 + $0x9c] sm:$0xff]
        %v4423 = vld [vmem:[%s620 + $0xa4] sm:$0xf]
        %v4424 = vld [vmem:[%s620 + $0xa8] sm:$0xff]
        %v4425 = vld [vmem:[%s620 + $0xb0] sm:$0xf]
        %v4426 = vld [vmem:[%s620 + $0xb4] sm:$0xff]
        %v4427 = vld [vmem:[%s620 + $0xbc] sm:$0xf]
        %v4428 = vld [vmem:[%s628] sm:$0x7]
        %v4430 = vlaneseq
        %v4431 = vshrl.u32 %v4430, 7
        %v4432 = vsub.s32 0, %v4431
        %v4433 = vrot.slane %v4428, %v4432
        %v4434 = vlaneseq
        %v4435 = vshrl.u32 %v4434, 7
        %v4436 = vsub.s32 1, %v4435
        %v4437 = vrot.slane %v4428, %v4436
        %v4438 = vlaneseq
        %v4439 = vshrl.u32 %v4438, 7
        %v4440 = vsub.s32 2, %v4439
        %v4441 = vrot.slane %v4428, %v4440
        %v4477 = vunpack.c.l.b16 %v4396
        %v4478 = vunpack.c.h.b16 %v4396
        %v4479 = vunpack.c.l.b16 %v4397
        %v4480 = vunpack.c.l.b16 %v4398
        %v4481 = vunpack.c.h.b16 %v4398
        %v4482 = vunpack.c.l.b16 %v4399
        %v4483 = vunpack.c.l.b16 %v4400
        %v4484 = vunpack.c.h.b16 %v4400
        %v4485 = vunpack.c.l.b16 %v4401
        %v4486 = vunpack.c.l.b16 %v4402
        %v4487 = vunpack.c.h.b16 %v4402
        %v4488 = vunpack.c.l.b16 %v4403
        %v4489 = vunpack.c.l.b16 %v4404
        %v4490 = vunpack.c.h.b16 %v4404
        %v4491 = vunpack.c.l.b16 %v4405
        %v4492 = vunpack.c.l.b16 %v4406
        %v4493 = vunpack.c.h.b16 %v4406
        %v4494 = vunpack.c.l.b16 %v4407
        %v4495 = vunpack.c.l.b16 %v4408
        %v4496 = vunpack.c.h.b16 %v4408
        %v4497 = vunpack.c.l.b16 %v4409
        %v4498 = vunpack.c.l.b16 %v4410
        %v4499 = vunpack.c.h.b16 %v4410
        %v4500 = vunpack.c.l.b16 %v4411
        %v4501 = vunpack.c.l.b16 %v4412
        %v4502 = vunpack.c.h.b16 %v4412
        %v4503 = vunpack.c.l.b16 %v4413
        %v4504 = vunpack.c.l.b16 %v4414
        %v4505 = vunpack.c.h.b16 %v4414
        %v4506 = vunpack.c.l.b16 %v4415
        %v4507 = vunpack.c.l.b16 %v4416
        %v4508 = vunpack.c.h.b16 %v4416
        %v4509 = vunpack.c.l.b16 %v4417
        %v4510 = vunpack.c.l.b16 %v4418
        %v4511 = vunpack.c.h.b16 %v4418
        %v4512 = vunpack.c.l.b16 %v4419
        %v4513 = vunpack.c.l.b16 %v4420
        %v4514 = vunpack.c.h.b16 %v4420
        %v4515 = vunpack.c.l.b16 %v4421
        %v4516 = vunpack.c.l.b16 %v4422
        %v4517 = vunpack.c.h.b16 %v4422
        %v4518 = vunpack.c.l.b16 %v4423
        %v4519 = vunpack.c.l.b16 %v4424
        %v4520 = vunpack.c.h.b16 %v4424
        %v4521 = vunpack.c.l.b16 %v4425
        %v4522 = vunpack.c.l.b16 %v4426
        %v4523 = vunpack.c.h.b16 %v4426
        %v4524 = vunpack.c.l.b16 %v4427
        %v4525 = vpack.c.b16 %v4480, %v4477
        %v4526 = vpack.c.b16 %v4481, %v4478
        %v4527 = vpack.c.b16 %v4482, %v4479
        %v4528 = vpack.c.b16 %v4486, %v4483
        %v4529 = vpack.c.b16 %v4487, %v4484
        %v4530 = vpack.c.b16 %v4488, %v4485
        %v4531 = vpack.c.b16 %v4492, %v4489
        %v4532 = vpack.c.b16 %v4493, %v4490
        %v4533 = vpack.c.b16 %v4494, %v4491
        %v4534 = vpack.c.b16 %v4498, %v4495
        %v4535 = vpack.c.b16 %v4499, %v4496
        %v4536 = vpack.c.b16 %v4500, %v4497
        %v4537 = vpack.c.b16 %v4504, %v4501
        %v4538 = vpack.c.b16 %v4505, %v4502
        %v4539 = vpack.c.b16 %v4506, %v4503
        %v4540 = vpack.c.b16 %v4510, %v4507
        %v4541 = vpack.c.b16 %v4511, %v4508
        %v4542 = vpack.c.b16 %v4512, %v4509
        %v4543 = vpack.c.b16 %v4516, %v4513
        %v4544 = vpack.c.b16 %v4517, %v4514
        %v4545 = vpack.c.b16 %v4518, %v4515
        %v4546 = vpack.c.b16 %v4522, %v4519
        %v4547 = vpack.c.b16 %v4523, %v4520
        %v4548 = vpack.c.b16 %v4524, %v4521
        %4573 = vmatprep.subr.bf16.mxu0 %v4526
        %4574 = vmatpush1.bf16.msra.mxu0 %v4525
        %4575 = vmatprep.subr.bf16.mxu0 %v4529
        %4576 = vmatpush1.bf16.msra.mxu0 %v4528
        %4577 = vmatprep.subr.bf16.mxu0 %v4532
        %4578 = vmatpush1.bf16.msra.mxu0 %v4531
        %4579 = vmatprep.subr.bf16.mxu0 %v4535
        %4580 = vmatpush1.bf16.msra.mxu0 %v4534
        %4581 = vmatprep.subr.bf16.mxu0 %v4538
        %4582 = vmatpush1.bf16.msra.mxu0 %v4537
        %4583 = vmatprep.subr.bf16.mxu0 %v4541
        %4584 = vmatpush1.bf16.msra.mxu0 %v4540
        %4585 = vmatprep.subr.bf16.mxu0 %v4544
        %4586 = vmatpush1.bf16.msra.mxu0 %v4543
        %4587 = vmatprep.subr.bf16.mxu0 %v4547
        %4588 = vmatpush1.bf16.msra.mxu0 %v4546
        %4589 = vmatprep.subr.bf16.mxu0 0
        %4590 = vmatpush1.bf16.msra.mxu0 0
        %4591 = vmatprep.subr.bf16.mxu0 0
        %4592 = vmatpush1.bf16.msra.mxu0 0
        %4593 = vmatprep.subr.bf16.mxu0 0
        %4594 = vmatpush1.bf16.msra.mxu0 0
        %4595 = vmatprep.subr.bf16.mxu0 0
        %4596 = vmatpush1.bf16.msra.mxu0 0
        %4597 = vmatprep.subr.bf16.mxu0 0
        %4598 = vmatpush1.bf16.msra.mxu0 0
        %4599 = vmatprep.subr.bf16.mxu0 0
        %4600 = vmatpush1.bf16.msra.mxu0 0
        %4601 = vmatprep.subr.bf16.mxu0 0
        %4602 = vmatpush1.bf16.msra.mxu0 0
        %4603 = vmatprep.subr.bf16.mxu0 0
        %4604 = vmatpush1.bf16.msra.mxu0 0
        %4605 = vmatprep.mubr.bf16.mxu0 0
        %4606 = vmatmul.mubr.bf16.gmra.mrb[0].mxu0 %v4395
        %v4607 = vpop.f32.mrb[0].mxu0
        %v4608 = vadd.f32 %v4433, %v4607
        %v4609 = vpop.f32.mrb[0].mxu0
        %v4610 = vadd.f32 %v4437, %v4609
        %v4611 = vpop.f32.mrb[0].mxu0
        %v4612 = vpop.f32.mrb[0].mxu0
        %4613 = vdwg.mxu0
        %4614 = vmatprep.subr.bf16.mxu0 0
        %4615 = vmatpush1.bf16.msra.mxu0 %v4527
        %4616 = vmatprep.subr.bf16.mxu0 0
        %4617 = vmatpush1.bf16.msra.mxu0 %v4530
        %4618 = vmatprep.subr.bf16.mxu0 0
        %4619 = vmatpush1.bf16.msra.mxu0 %v4533
        %4620 = vmatprep.subr.bf16.mxu0 0
        %4621 = vmatpush1.bf16.msra.mxu0 %v4536
        %4622 = vmatprep.subr.bf16.mxu0 0
        %4623 = vmatpush1.bf16.msra.mxu0 %v4539
        %4624 = vmatprep.subr.bf16.mxu0 0
        %4625 = vmatpush1.bf16.msra.mxu0 %v4542
        %4626 = vmatprep.subr.bf16.mxu0 0
        %4627 = vmatpush1.bf16.msra.mxu0 %v4545
        %4628 = vmatprep.subr.bf16.mxu0 0
        %4629 = vmatpush1.bf16.msra.mxu0 %v4548
        %4630 = vmatprep.subr.bf16.mxu0 0
        %4631 = vmatpush1.bf16.msra.mxu0 0
        %4632 = vmatprep.subr.bf16.mxu0 0
        %4633 = vmatpush1.bf16.msra.mxu0 0
        %4634 = vmatprep.subr.bf16.mxu0 0
        %4635 = vmatpush1.bf16.msra.mxu0 0
        %4636 = vmatprep.subr.bf16.mxu0 0
        %4637 = vmatpush1.bf16.msra.mxu0 0
        %4638 = vmatprep.subr.bf16.mxu0 0
        %4639 = vmatpush1.bf16.msra.mxu0 0
        %4640 = vmatprep.subr.bf16.mxu0 0
        %4641 = vmatpush1.bf16.msra.mxu0 0
        %4642 = vmatprep.subr.bf16.mxu0 0
        %4643 = vmatpush1.bf16.msra.mxu0 0
        %4644 = vmatprep.subr.bf16.mxu0 0
        %4645 = vmatpush1.bf16.msra.mxu0 0
        %4646 = vmatprep.mubr.bf16.mxu0 0
        %4647 = vmatmul.mubr.bf16.gmra.mrb[0].mxu0 %v4395
        %v4648 = vpop.f32.mrb[0].mxu0
        %v4649 = vadd.f32 %v4441, %v4648
        %v4650 = vpop.f32.mrb[0].mxu0
        %v4651 = vpop.f32.mrb[0].mxu0
        %v4652 = vpop.f32.mrb[0].mxu0
        %4653 = vdwg.mxu0
        %v4654 = vadd.f32 %v4392, %v4608
        %v4655 = vxor.u32 %v4654, 2147483648
        %v4656 = vmul.f32 %v4655, 1.442695
        %v4657 = vpow.pop %v4656
        %v4658 = vadd.f32 %v4657, 1.0
        %v4659 = vrcp.pop %v4658
        %v4660 = vmul.f32 1.0, %v4659
        %v4661 = vadd.f32 %v4393, %v4610
        %v4662 = vxor.u32 %v4661, 2147483648
        %v4663 = vmul.f32 %v4662, 1.442695
        %v4664 = vpow.pop %v4663
        %v4665 = vadd.f32 %v4664, 1.0
        %v4666 = vrcp.pop %v4665
        %v4667 = vmul.f32 1.0, %v4666
        %v4668 = vmul.f32 %v4660, %v4649
        %v4669 = vadd.f32 %v4394, %v4668
        %v4670 = vtanh.pop %v4669
        %v4671 = vsub.f32 1.0, %v4667
        %v4672 = vmul.f32 %v4671, %v4670
        %v4673 = vmul.f32 %v4667, %v4100
        %v4674 = vadd.f32 %v4672, %v4673
        %s4675 = smul.addr %s1514, 8
        %s4676 = scalar_lea.vmem [#allocation4], %s4675
        %v4677 = vld [vmem:[%s4676] sm:$0xff]
        %v4678 = vld [vmem:[%s4676 + $0x8] sm:$0xff]
        %v4679 = vld [vmem:[%s4676 + $0x10] sm:$0xff]
        %v4680 = vpack.c.bf16 %v4385, %v4385
        %v4681 = vld [vmem:[%s517] sm:$0xff]
        %v4682 = vld [vmem:[%s517 + $0x8] sm:$0xf]
        %v4683 = vld [vmem:[%s517 + $0xc] sm:$0xff]
        %v4684 = vld [vmem:[%s517 + $0x14] sm:$0xf]
        %v4685 = vld [vmem:[%s517 + $0x18] sm:$0xff]
        %v4686 = vld [vmem:[%s517 + $0x20] sm:$0xf]
        %v4687 = vld [vmem:[%s517 + $0x24] sm:$0xff]
        %v4688 = vld [vmem:[%s517 + $0x2c] sm:$0xf]
        %v4689 = vld [vmem:[%s517 + $0x30] sm:$0xff]
        %v4690 = vld [vmem:[%s517 + $0x38] sm:$0xf]
        %v4691 = vld [vmem:[%s517 + $0x3c] sm:$0xff]
        %v4692 = vld [vmem:[%s517 + $0x44] sm:$0xf]
        %v4693 = vld [vmem:[%s517 + $0x48] sm:$0xff]
        %v4694 = vld [vmem:[%s517 + $0x50] sm:$0xf]
        %v4695 = vld [vmem:[%s517 + $0x54] sm:$0xff]
        %v4696 = vld [vmem:[%s517 + $0x5c] sm:$0xf]
        %v4697 = vld [vmem:[%s517 + $0x60] sm:$0xff]
        %v4698 = vld [vmem:[%s517 + $0x68] sm:$0xf]
        %v4699 = vld [vmem:[%s517 + $0x6c] sm:$0xff]
        %v4700 = vld [vmem:[%s517 + $0x74] sm:$0xf]
        %v4701 = vld [vmem:[%s517 + $0x78] sm:$0xff]
        %v4702 = vld [vmem:[%s517 + $0x80] sm:$0xf]
        %v4703 = vld [vmem:[%s517 + $0x84] sm:$0xff]
        %v4704 = vld [vmem:[%s517 + $0x8c] sm:$0xf]
        %v4705 = vld [vmem:[%s517 + $0x90] sm:$0xff]
        %v4706 = vld [vmem:[%s517 + $0x98] sm:$0xf]
        %v4707 = vld [vmem:[%s517 + $0x9c] sm:$0xff]
        %v4708 = vld [vmem:[%s517 + $0xa4] sm:$0xf]
        %v4709 = vld [vmem:[%s517 + $0xa8] sm:$0xff]
        %v4710 = vld [vmem:[%s517 + $0xb0] sm:$0xf]
        %v4711 = vld [vmem:[%s517 + $0xb4] sm:$0xff]
        %v4712 = vld [vmem:[%s517 + $0xbc] sm:$0xf]
        %v4713 = vld [vmem:[%s640] sm:$0x7]
        %v4715 = vlaneseq
        %v4716 = vshrl.u32 %v4715, 7
        %v4717 = vsub.s32 0, %v4716
        %v4718 = vrot.slane %v4713, %v4717
        %v4719 = vlaneseq
        %v4720 = vshrl.u32 %v4719, 7
        %v4721 = vsub.s32 1, %v4720
        %v4722 = vrot.slane %v4713, %v4721
        %v4723 = vlaneseq
        %v4724 = vshrl.u32 %v4723, 7
        %v4725 = vsub.s32 2, %v4724
        %v4726 = vrot.slane %v4713, %v4725
        %v4762 = vunpack.c.l.b16 %v4681
        %v4763 = vunpack.c.h.b16 %v4681
        %v4764 = vunpack.c.l.b16 %v4682
        %v4765 = vunpack.c.l.b16 %v4683
        %v4766 = vunpack.c.h.b16 %v4683
        %v4767 = vunpack.c.l.b16 %v4684
        %v4768 = vunpack.c.l.b16 %v4685
        %v4769 = vunpack.c.h.b16 %v4685
        %v4770 = vunpack.c.l.b16 %v4686
        %v4771 = vunpack.c.l.b16 %v4687
        %v4772 = vunpack.c.h.b16 %v4687
        %v4773 = vunpack.c.l.b16 %v4688
        %v4774 = vunpack.c.l.b16 %v4689
        %v4775 = vunpack.c.h.b16 %v4689
        %v4776 = vunpack.c.l.b16 %v4690
        %v4777 = vunpack.c.l.b16 %v4691
        %v4778 = vunpack.c.h.b16 %v4691
        %v4779 = vunpack.c.l.b16 %v4692
        %v4780 = vunpack.c.l.b16 %v4693
        %v4781 = vunpack.c.h.b16 %v4693
        %v4782 = vunpack.c.l.b16 %v4694
        %v4783 = vunpack.c.l.b16 %v4695
        %v4784 = vunpack.c.h.b16 %v4695
        %v4785 = vunpack.c.l.b16 %v4696
        %v4786 = vunpack.c.l.b16 %v4697
        %v4787 = vunpack.c.h.b16 %v4697
        %v4788 = vunpack.c.l.b16 %v4698
        %v4789 = vunpack.c.l.b16 %v4699
        %v4790 = vunpack.c.h.b16 %v4699
        %v4791 = vunpack.c.l.b16 %v4700
        %v4792 = vunpack.c.l.b16 %v4701
        %v4793 = vunpack.c.h.b16 %v4701
        %v4794 = vunpack.c.l.b16 %v4702
        %v4795 = vunpack.c.l.b16 %v4703
        %v4796 = vunpack.c.h.b16 %v4703
        %v4797 = vunpack.c.l.b16 %v4704
        %v4798 = vunpack.c.l.b16 %v4705
        %v4799 = vunpack.c.h.b16 %v4705
        %v4800 = vunpack.c.l.b16 %v4706
        %v4801 = vunpack.c.l.b16 %v4707
        %v4802 = vunpack.c.h.b16 %v4707
        %v4803 = vunpack.c.l.b16 %v4708
        %v4804 = vunpack.c.l.b16 %v4709
        %v4805 = vunpack.c.h.b16 %v4709
        %v4806 = vunpack.c.l.b16 %v4710
        %v4807 = vunpack.c.l.b16 %v4711
        %v4808 = vunpack.c.h.b16 %v4711
        %v4809 = vunpack.c.l.b16 %v4712
        %v4810 = vpack.c.b16 %v4765, %v4762
        %v4811 = vpack.c.b16 %v4766, %v4763
        %v4812 = vpack.c.b16 %v4767, %v4764
        %v4813 = vpack.c.b16 %v4771, %v4768
        %v4814 = vpack.c.b16 %v4772, %v4769
        %v4815 = vpack.c.b16 %v4773, %v4770
        %v4816 = vpack.c.b16 %v4777, %v4774
        %v4817 = vpack.c.b16 %v4778, %v4775
        %v4818 = vpack.c.b16 %v4779, %v4776
        %v4819 = vpack.c.b16 %v4783, %v4780
        %v4820 = vpack.c.b16 %v4784, %v4781
        %v4821 = vpack.c.b16 %v4785, %v4782
        %v4822 = vpack.c.b16 %v4789, %v4786
        %v4823 = vpack.c.b16 %v4790, %v4787
        %v4824 = vpack.c.b16 %v4791, %v4788
        %v4825 = vpack.c.b16 %v4795, %v4792
        %v4826 = vpack.c.b16 %v4796, %v4793
        %v4827 = vpack.c.b16 %v4797, %v4794
        %v4828 = vpack.c.b16 %v4801, %v4798
        %v4829 = vpack.c.b16 %v4802, %v4799
        %v4830 = vpack.c.b16 %v4803, %v4800
        %v4831 = vpack.c.b16 %v4807, %v4804
        %v4832 = vpack.c.b16 %v4808, %v4805
        %v4833 = vpack.c.b16 %v4809, %v4806
        %4858 = vmatprep.subr.bf16.mxu0 %v4811
        %4859 = vmatpush1.bf16.msra.mxu0 %v4810
        %4860 = vmatprep.subr.bf16.mxu0 %v4814
        %4861 = vmatpush1.bf16.msra.mxu0 %v4813
        %4862 = vmatprep.subr.bf16.mxu0 %v4817
        %4863 = vmatpush1.bf16.msra.mxu0 %v4816
        %4864 = vmatprep.subr.bf16.mxu0 %v4820
        %4865 = vmatpush1.bf16.msra.mxu0 %v4819
        %4866 = vmatprep.subr.bf16.mxu0 %v4823
        %4867 = vmatpush1.bf16.msra.mxu0 %v4822
        %4868 = vmatprep.subr.bf16.mxu0 %v4826
        %4869 = vmatpush1.bf16.msra.mxu0 %v4825
        %4870 = vmatprep.subr.bf16.mxu0 %v4829
        %4871 = vmatpush1.bf16.msra.mxu0 %v4828
        %4872 = vmatprep.subr.bf16.mxu0 %v4832
        %4873 = vmatpush1.bf16.msra.mxu0 %v4831
        %4874 = vmatprep.subr.bf16.mxu0 0
        %4875 = vmatpush1.bf16.msra.mxu0 0
        %4876 = vmatprep.subr.bf16.mxu0 0
        %4877 = vmatpush1.bf16.msra.mxu0 0
        %4878 = vmatprep.subr.bf16.mxu0 0
        %4879 = vmatpush1.bf16.msra.mxu0 0
        %4880 = vmatprep.subr.bf16.mxu0 0
        %4881 = vmatpush1.bf16.msra.mxu0 0
        %4882 = vmatprep.subr.bf16.mxu0 0
        %4883 = vmatpush1.bf16.msra.mxu0 0
        %4884 = vmatprep.subr.bf16.mxu0 0
        %4885 = vmatpush1.bf16.msra.mxu0 0
        %4886 = vmatprep.subr.bf16.mxu0 0
        %4887 = vmatpush1.bf16.msra.mxu0 0
        %4888 = vmatprep.subr.bf16.mxu0 0
        %4889 = vmatpush1.bf16.msra.mxu0 0
        %4890 = vmatprep.mubr.bf16.mxu0 0
        %4891 = vmatmul.mubr.bf16.gmra.mrb[0].mxu0 %v4680
        %v4892 = vpop.f32.mrb[0].mxu0
        %v4893 = vadd.f32 %v4718, %v4892
        %v4894 = vpop.f32.mrb[0].mxu0
        %v4895 = vadd.f32 %v4722, %v4894
        %v4896 = vpop.f32.mrb[0].mxu0
        %v4897 = vpop.f32.mrb[0].mxu0
        %4898 = vdwg.mxu0
        %4899 = vmatprep.subr.bf16.mxu0 0
        %4900 = vmatpush1.bf16.msra.mxu0 %v4812
        %4901 = vmatprep.subr.bf16.mxu0 0
        %4902 = vmatpush1.bf16.msra.mxu0 %v4815
        %4903 = vmatprep.subr.bf16.mxu0 0
        %4904 = vmatpush1.bf16.msra.mxu0 %v4818
        %4905 = vmatprep.subr.bf16.mxu0 0
        %4906 = vmatpush1.bf16.msra.mxu0 %v4821
        %4907 = vmatprep.subr.bf16.mxu0 0
        %4908 = vmatpush1.bf16.msra.mxu0 %v4824
        %4909 = vmatprep.subr.bf16.mxu0 0
        %4910 = vmatpush1.bf16.msra.mxu0 %v4827
        %4911 = vmatprep.subr.bf16.mxu0 0
        %4912 = vmatpush1.bf16.msra.mxu0 %v4830
        %4913 = vmatprep.subr.bf16.mxu0 0
        %4914 = vmatpush1.bf16.msra.mxu0 %v4833
        %4915 = vmatprep.subr.bf16.mxu0 0
        %4916 = vmatpush1.bf16.msra.mxu0 0
        %4917 = vmatprep.subr.bf16.mxu0 0
        %4918 = vmatpush1.bf16.msra.mxu0 0
        %4919 = vmatprep.subr.bf16.mxu0 0
        %4920 = vmatpush1.bf16.msra.mxu0 0
        %4921 = vmatprep.subr.bf16.mxu0 0
        %4922 = vmatpush1.bf16.msra.mxu0 0
        %4923 = vmatprep.subr.bf16.mxu0 0
        %4924 = vmatpush1.bf16.msra.mxu0 0
        %4925 = vmatprep.subr.bf16.mxu0 0
        %4926 = vmatpush1.bf16.msra.mxu0 0
        %4927 = vmatprep.subr.bf16.mxu0 0
        %4928 = vmatpush1.bf16.msra.mxu0 0
        %4929 = vmatprep.subr.bf16.mxu0 0
        %4930 = vmatpush1.bf16.msra.mxu0 0
        %4931 = vmatprep.mubr.bf16.mxu0 0
        %4932 = vmatmul.mubr.bf16.gmra.mrb[0].mxu0 %v4680
        %v4933 = vpop.f32.mrb[0].mxu0
        %v4934 = vadd.f32 %v4726, %v4933
        %v4935 = vpop.f32.mrb[0].mxu0
        %v4936 = vpop.f32.mrb[0].mxu0
        %v4937 = vpop.f32.mrb[0].mxu0
        %4938 = vdwg.mxu0
        %v4939 = vadd.f32 %v4677, %v4893
        %v4940 = vxor.u32 %v4939, 2147483648
        %v4941 = vmul.f32 %v4940, 1.442695
        %v4942 = vpow.pop %v4941
        %v4943 = vadd.f32 %v4942, 1.0
        %v4944 = vrcp.pop %v4943
        %v4945 = vmul.f32 1.0, %v4944
        %v4946 = vadd.f32 %v4678, %v4895
        %v4947 = vxor.u32 %v4946, 2147483648
        %v4948 = vmul.f32 %v4947, 1.442695
        %v4949 = vpow.pop %v4948
        %v4950 = vadd.f32 %v4949, 1.0
        %v4951 = vrcp.pop %v4950
        %v4952 = vmul.f32 1.0, %v4951
        %v4953 = vmul.f32 %v4945, %v4934
        %v4954 = vadd.f32 %v4679, %v4953
        %v4955 = vtanh.pop %v4954
        %v4956 = vsub.f32 1.0, %v4952
        %v4957 = vmul.f32 %v4956, %v4955
        %v4958 = vmul.f32 %v4952, %v4385
        %v4959 = vadd.f32 %v4957, %v4958
        %s4960 = scalar_lea.vmem [#allocation5], 48
        %4961 = vst [vmem:[%s4960] sm:$0xff] %v4674
        %s4962 = scalar_lea.vmem [#allocation6], 8
        %4963 = vst [vmem:[%s4962] sm:$0xff] %v4959
        %s4964 = smul.addr %s1226, 8
        %s4965 = scalar_lea.vmem [#allocation3], %s4964
        %v4966 = vld [vmem:[%s4965] sm:$0xff]
        %v4967 = vld [vmem:[%s4965 + $0x8] sm:$0xff]
        %v4968 = vld [vmem:[%s4965 + $0x10] sm:$0xff]
        %v4969 = vpack.c.bf16 %v4674, %v4674
        %v4970 = vld [vmem:[%s620] sm:$0xff]
        %v4971 = vld [vmem:[%s620 + $0x8] sm:$0xf]
        %v4972 = vld [vmem:[%s620 + $0xc] sm:$0xff]
        %v4973 = vld [vmem:[%s620 + $0x14] sm:$0xf]
        %v4974 = vld [vmem:[%s620 + $0x18] sm:$0xff]
        %v4975 = vld [vmem:[%s620 + $0x20] sm:$0xf]
        %v4976 = vld [vmem:[%s620 + $0x24] sm:$0xff]
        %v4977 = vld [vmem:[%s620 + $0x2c] sm:$0xf]
        %v4978 = vld [vmem:[%s620 + $0x30] sm:$0xff]
        %v4979 = vld [vmem:[%s620 + $0x38] sm:$0xf]
        %v4980 = vld [vmem:[%s620 + $0x3c] sm:$0xff]
        %v4981 = vld [vmem:[%s620 + $0x44] sm:$0xf]
        %v4982 = vld [vmem:[%s620 + $0x48] sm:$0xff]
        %v4983 = vld [vmem:[%s620 + $0x50] sm:$0xf]
        %v4984 = vld [vmem:[%s620 + $0x54] sm:$0xff]
        %v4985 = vld [vmem:[%s620 + $0x5c] sm:$0xf]
        %v4986 = vld [vmem:[%s620 + $0x60] sm:$0xff]
        %v4987 = vld [vmem:[%s620 + $0x68] sm:$0xf]
        %v4988 = vld [vmem:[%s620 + $0x6c] sm:$0xff]
        %v4989 = vld [vmem:[%s620 + $0x74] sm:$0xf]
        %v4990 = vld [vmem:[%s620 + $0x78] sm:$0xff]
        %v4991 = vld [vmem:[%s620 + $0x80] sm:$0xf]
        %v4992 = vld [vmem:[%s620 + $0x84] sm:$0xff]
        %v4993 = vld [vmem:[%s620 + $0x8c] sm:$0xf]
        %v4994 = vld [vmem:[%s620 + $0x90] sm:$0xff]
        %v4995 = vld [vmem:[%s620 + $0x98] sm:$0xf]
        %v4996 = vld [vmem:[%s620 + $0x9c] sm:$0xff]
        %v4997 = vld [vmem:[%s620 + $0xa4] sm:$0xf]
        %v4998 = vld [vmem:[%s620 + $0xa8] sm:$0xff]
        %v4999 = vld [vmem:[%s620 + $0xb0] sm:$0xf]
        %v5000 = vld [vmem:[%s620 + $0xb4] sm:$0xff]
        %v5001 = vld [vmem:[%s620 + $0xbc] sm:$0xf]
        %v5002 = vld [vmem:[%s628] sm:$0x7]
        %v5004 = vlaneseq
        %v5005 = vshrl.u32 %v5004, 7
        %v5006 = vsub.s32 0, %v5005
        %v5007 = vrot.slane %v5002, %v5006
        %v5008 = vlaneseq
        %v5009 = vshrl.u32 %v5008, 7
        %v5010 = vsub.s32 1, %v5009
        %v5011 = vrot.slane %v5002, %v5010
        %v5012 = vlaneseq
        %v5013 = vshrl.u32 %v5012, 7
        %v5014 = vsub.s32 2, %v5013
        %v5015 = vrot.slane %v5002, %v5014
        %v5051 = vunpack.c.l.b16 %v4970
        %v5052 = vunpack.c.h.b16 %v4970
        %v5053 = vunpack.c.l.b16 %v4971
        %v5054 = vunpack.c.l.b16 %v4972
        %v5055 = vunpack.c.h.b16 %v4972
        %v5056 = vunpack.c.l.b16 %v4973
        %v5057 = vunpack.c.l.b16 %v4974
        %v5058 = vunpack.c.h.b16 %v4974
        %v5059 = vunpack.c.l.b16 %v4975
        %v5060 = vunpack.c.l.b16 %v4976
        %v5061 = vunpack.c.h.b16 %v4976
        %v5062 = vunpack.c.l.b16 %v4977
        %v5063 = vunpack.c.l.b16 %v4978
        %v5064 = vunpack.c.h.b16 %v4978
        %v5065 = vunpack.c.l.b16 %v4979
        %v5066 = vunpack.c.l.b16 %v4980
        %v5067 = vunpack.c.h.b16 %v4980
        %v5068 = vunpack.c.l.b16 %v4981
        %v5069 = vunpack.c.l.b16 %v4982
        %v5070 = vunpack.c.h.b16 %v4982
        %v5071 = vunpack.c.l.b16 %v4983
        %v5072 = vunpack.c.l.b16 %v4984
        %v5073 = vunpack.c.h.b16 %v4984
        %v5074 = vunpack.c.l.b16 %v4985
        %v5075 = vunpack.c.l.b16 %v4986
        %v5076 = vunpack.c.h.b16 %v4986
        %v5077 = vunpack.c.l.b16 %v4987
        %v5078 = vunpack.c.l.b16 %v4988
        %v5079 = vunpack.c.h.b16 %v4988
        %v5080 = vunpack.c.l.b16 %v4989
        %v5081 = vunpack.c.l.b16 %v4990
        %v5082 = vunpack.c.h.b16 %v4990
        %v5083 = vunpack.c.l.b16 %v4991
        %v5084 = vunpack.c.l.b16 %v4992
        %v5085 = vunpack.c.h.b16 %v4992
        %v5086 = vunpack.c.l.b16 %v4993
        %v5087 = vunpack.c.l.b16 %v4994
        %v5088 = vunpack.c.h.b16 %v4994
        %v5089 = vunpack.c.l.b16 %v4995
        %v5090 = vunpack.c.l.b16 %v4996
        %v5091 = vunpack.c.h.b16 %v4996
        %v5092 = vunpack.c.l.b16 %v4997
        %v5093 = vunpack.c.l.b16 %v4998
        %v5094 = vunpack.c.h.b16 %v4998
        %v5095 = vunpack.c.l.b16 %v4999
        %v5096 = vunpack.c.l.b16 %v5000
        %v5097 = vunpack.c.h.b16 %v5000
        %v5098 = vunpack.c.l.b16 %v5001
        %v5099 = vpack.c.b16 %v5054, %v5051
        %v5100 = vpack.c.b16 %v5055, %v5052
        %v5101 = vpack.c.b16 %v5056, %v5053
        %v5102 = vpack.c.b16 %v5060, %v5057
        %v5103 = vpack.c.b16 %v5061, %v5058
        %v5104 = vpack.c.b16 %v5062, %v5059
        %v5105 = vpack.c.b16 %v5066, %v5063
        %v5106 = vpack.c.b16 %v5067, %v5064
        %v5107 = vpack.c.b16 %v5068, %v5065
        %v5108 = vpack.c.b16 %v5072, %v5069
        %v5109 = vpack.c.b16 %v5073, %v5070
        %v5110 = vpack.c.b16 %v5074, %v5071
        %v5111 = vpack.c.b16 %v5078, %v5075
        %v5112 = vpack.c.b16 %v5079, %v5076
        %v5113 = vpack.c.b16 %v5080, %v5077
        %v5114 = vpack.c.b16 %v5084, %v5081
        %v5115 = vpack.c.b16 %v5085, %v5082
        %v5116 = vpack.c.b16 %v5086, %v5083
        %v5117 = vpack.c.b16 %v5090, %v5087
        %v5118 = vpack.c.b16 %v5091, %v5088
        %v5119 = vpack.c.b16 %v5092, %v5089
        %v5120 = vpack.c.b16 %v5096, %v5093
        %v5121 = vpack.c.b16 %v5097, %v5094
        %v5122 = vpack.c.b16 %v5098, %v5095
        %5147 = vmatprep.subr.bf16.mxu0 %v5100
        %5148 = vmatpush1.bf16.msra.mxu0 %v5099
        %5149 = vmatprep.subr.bf16.mxu0 %v5103
        %5150 = vmatpush1.bf16.msra.mxu0 %v5102
        %5151 = vmatprep.subr.bf16.mxu0 %v5106
        %5152 = vmatpush1.bf16.msra.mxu0 %v5105
        %5153 = vmatprep.subr.bf16.mxu0 %v5109
        %5154 = vmatpush1.bf16.msra.mxu0 %v5108
        %5155 = vmatprep.subr.bf16.mxu0 %v5112
        %5156 = vmatpush1.bf16.msra.mxu0 %v5111
        %5157 = vmatprep.subr.bf16.mxu0 %v5115
        %5158 = vmatpush1.bf16.msra.mxu0 %v5114
        %5159 = vmatprep.subr.bf16.mxu0 %v5118
        %5160 = vmatpush1.bf16.msra.mxu0 %v5117
        %5161 = vmatprep.subr.bf16.mxu0 %v5121
        %5162 = vmatpush1.bf16.msra.mxu0 %v5120
        %5163 = vmatprep.subr.bf16.mxu0 0
        %5164 = vmatpush1.bf16.msra.mxu0 0
        %5165 = vmatprep.subr.bf16.mxu0 0
        %5166 = vmatpush1.bf16.msra.mxu0 0
        %5167 = vmatprep.subr.bf16.mxu0 0
        %5168 = vmatpush1.bf16.msra.mxu0 0
        %5169 = vmatprep.subr.bf16.mxu0 0
        %5170 = vmatpush1.bf16.msra.mxu0 0
        %5171 = vmatprep.subr.bf16.mxu0 0
        %5172 = vmatpush1.bf16.msra.mxu0 0
        %5173 = vmatprep.subr.bf16.mxu0 0
        %5174 = vmatpush1.bf16.msra.mxu0 0
        %5175 = vmatprep.subr.bf16.mxu0 0
        %5176 = vmatpush1.bf16.msra.mxu0 0
        %5177 = vmatprep.subr.bf16.mxu0 0
        %5178 = vmatpush1.bf16.msra.mxu0 0
        %5179 = vmatprep.mubr.bf16.mxu0 0
        %5180 = vmatmul.mubr.bf16.gmra.mrb[0].mxu0 %v4969
        %v5181 = vpop.f32.mrb[0].mxu0
        %v5182 = vadd.f32 %v5007, %v5181
        %v5183 = vpop.f32.mrb[0].mxu0
        %v5184 = vadd.f32 %v5011, %v5183
        %v5185 = vpop.f32.mrb[0].mxu0
        %v5186 = vpop.f32.mrb[0].mxu0
        %5187 = vdwg.mxu0
        %5188 = vmatprep.subr.bf16.mxu0 0
        %5189 = vmatpush1.bf16.msra.mxu0 %v5101
        %5190 = vmatprep.subr.bf16.mxu0 0
        %5191 = vmatpush1.bf16.msra.mxu0 %v5104
        %5192 = vmatprep.subr.bf16.mxu0 0
        %5193 = vmatpush1.bf16.msra.mxu0 %v5107
        %5194 = vmatprep.subr.bf16.mxu0 0
        %5195 = vmatpush1.bf16.msra.mxu0 %v5110
        %5196 = vmatprep.subr.bf16.mxu0 0
        %5197 = vmatpush1.bf16.msra.mxu0 %v5113
        %5198 = vmatprep.subr.bf16.mxu0 0
        %5199 = vmatpush1.bf16.msra.mxu0 %v5116
        %5200 = vmatprep.subr.bf16.mxu0 0
        %5201 = vmatpush1.bf16.msra.mxu0 %v5119
        %5202 = vmatprep.subr.bf16.mxu0 0
        %5203 = vmatpush1.bf16.msra.mxu0 %v5122
        %5204 = vmatprep.subr.bf16.mxu0 0
        %5205 = vmatpush1.bf16.msra.mxu0 0
        %5206 = vmatprep.subr.bf16.mxu0 0
        %5207 = vmatpush1.bf16.msra.mxu0 0
        %5208 = vmatprep.subr.bf16.mxu0 0
        %5209 = vmatpush1.bf16.msra.mxu0 0
        %5210 = vmatprep.subr.bf16.mxu0 0
        %5211 = vmatpush1.bf16.msra.mxu0 0
        %5212 = vmatprep.subr.bf16.mxu0 0
        %5213 = vmatpush1.bf16.msra.mxu0 0
        %5214 = vmatprep.subr.bf16.mxu0 0
        %5215 = vmatpush1.bf16.msra.mxu0 0
        %5216 = vmatprep.subr.bf16.mxu0 0
        %5217 = vmatpush1.bf16.msra.mxu0 0
        %5218 = vmatprep.subr.bf16.mxu0 0
        %5219 = vmatpush1.bf16.msra.mxu0 0
        %5220 = vmatprep.mubr.bf16.mxu0 0
        %5221 = vmatmul.mubr.bf16.gmra.mrb[0].mxu0 %v4969
        %v5222 = vpop.f32.mrb[0].mxu0
        %v5223 = vadd.f32 %v5015, %v5222
        %v5224 = vpop.f32.mrb[0].mxu0
        %v5225 = vpop.f32.mrb[0].mxu0
        %v5226 = vpop.f32.mrb[0].mxu0
        %5227 = vdwg.mxu0
        %v5228 = vadd.f32 %v4966, %v5182
        %v5229 = vxor.u32 %v5228, 2147483648
        %v5230 = vmul.f32 %v5229, 1.442695
        %v5231 = vpow.pop %v5230
        %v5232 = vadd.f32 %v5231, 1.0
        %v5233 = vrcp.pop %v5232
        %v5234 = vmul.f32 1.0, %v5233
        %v5235 = vadd.f32 %v4967, %v5184
        %v5236 = vxor.u32 %v5235, 2147483648
        %v5237 = vmul.f32 %v5236, 1.442695
        %v5238 = vpow.pop %v5237
        %v5239 = vadd.f32 %v5238, 1.0
        %v5240 = vrcp.pop %v5239
        %v5241 = vmul.f32 1.0, %v5240
        %v5242 = vmul.f32 %v5234, %v5223
        %v5243 = vadd.f32 %v4968, %v5242
        %v5244 = vtanh.pop %v5243
        %v5245 = vsub.f32 1.0, %v5241
        %v5246 = vmul.f32 %v5245, %v5244
        %v5247 = vmul.f32 %v5241, %v4674
        %v5248 = vadd.f32 %v5246, %v5247
        %s5249 = smul.addr %s941, 8
        %s5250 = scalar_lea.vmem [#allocation4], %s5249
        %v5251 = vld [vmem:[%s5250] sm:$0xff]
        %v5252 = vld [vmem:[%s5250 + $0x8] sm:$0xff]
        %v5253 = vld [vmem:[%s5250 + $0x10] sm:$0xff]
        %v5254 = vpack.c.bf16 %v4959, %v4959
        %v5255 = vld [vmem:[%s517] sm:$0xff]
        %v5256 = vld [vmem:[%s517 + $0x8] sm:$0xf]
        %v5257 = vld [vmem:[%s517 + $0xc] sm:$0xff]
        %v5258 = vld [vmem:[%s517 + $0x14] sm:$0xf]
        %v5259 = vld [vmem:[%s517 + $0x18] sm:$0xff]
        %v5260 = vld [vmem:[%s517 + $0x20] sm:$0xf]
        %v5261 = vld [vmem:[%s517 + $0x24] sm:$0xff]
        %v5262 = vld [vmem:[%s517 + $0x2c] sm:$0xf]
        %v5263 = vld [vmem:[%s517 + $0x30] sm:$0xff]
        %v5264 = vld [vmem:[%s517 + $0x38] sm:$0xf]
        %v5265 = vld [vmem:[%s517 + $0x3c] sm:$0xff]
        %v5266 = vld [vmem:[%s517 + $0x44] sm:$0xf]
        %v5267 = vld [vmem:[%s517 + $0x48] sm:$0xff]
        %v5268 = vld [vmem:[%s517 + $0x50] sm:$0xf]
        %v5269 = vld [vmem:[%s517 + $0x54] sm:$0xff]
        %v5270 = vld [vmem:[%s517 + $0x5c] sm:$0xf]
        %v5271 = vld [vmem:[%s517 + $0x60] sm:$0xff]
        %v5272 = vld [vmem:[%s517 + $0x68] sm:$0xf]
        %v5273 = vld [vmem:[%s517 + $0x6c] sm:$0xff]
        %v5274 = vld [vmem:[%s517 + $0x74] sm:$0xf]
        %v5275 = vld [vmem:[%s517 + $0x78] sm:$0xff]
        %v5276 = vld [vmem:[%s517 + $0x80] sm:$0xf]
        %v5277 = vld [vmem:[%s517 + $0x84] sm:$0xff]
        %v5278 = vld [vmem:[%s517 + $0x8c] sm:$0xf]
        %v5279 = vld [vmem:[%s517 + $0x90] sm:$0xff]
        %v5280 = vld [vmem:[%s517 + $0x98] sm:$0xf]
        %v5281 = vld [vmem:[%s517 + $0x9c] sm:$0xff]
        %v5282 = vld [vmem:[%s517 + $0xa4] sm:$0xf]
        %v5283 = vld [vmem:[%s517 + $0xa8] sm:$0xff]
        %v5284 = vld [vmem:[%s517 + $0xb0] sm:$0xf]
        %v5285 = vld [vmem:[%s517 + $0xb4] sm:$0xff]
        %v5286 = vld [vmem:[%s517 + $0xbc] sm:$0xf]
        %v5287 = vld [vmem:[%s640] sm:$0x7]
        %v5289 = vlaneseq
        %v5290 = vshrl.u32 %v5289, 7
        %v5291 = vsub.s32 0, %v5290
        %v5292 = vrot.slane %v5287, %v5291
        %v5293 = vlaneseq
        %v5294 = vshrl.u32 %v5293, 7
        %v5295 = vsub.s32 1, %v5294
        %v5296 = vrot.slane %v5287, %v5295
        %v5297 = vlaneseq
        %v5298 = vshrl.u32 %v5297, 7
        %v5299 = vsub.s32 2, %v5298
        %v5300 = vrot.slane %v5287, %v5299
        %v5336 = vunpack.c.l.b16 %v5255
        %v5337 = vunpack.c.h.b16 %v5255
        %v5338 = vunpack.c.l.b16 %v5256
        %v5339 = vunpack.c.l.b16 %v5257
        %v5340 = vunpack.c.h.b16 %v5257
        %v5341 = vunpack.c.l.b16 %v5258
        %v5342 = vunpack.c.l.b16 %v5259
        %v5343 = vunpack.c.h.b16 %v5259
        %v5344 = vunpack.c.l.b16 %v5260
        %v5345 = vunpack.c.l.b16 %v5261
        %v5346 = vunpack.c.h.b16 %v5261
        %v5347 = vunpack.c.l.b16 %v5262
        %v5348 = vunpack.c.l.b16 %v5263
        %v5349 = vunpack.c.h.b16 %v5263
        %v5350 = vunpack.c.l.b16 %v5264
        %v5351 = vunpack.c.l.b16 %v5265
        %v5352 = vunpack.c.h.b16 %v5265
        %v5353 = vunpack.c.l.b16 %v5266
        %v5354 = vunpack.c.l.b16 %v5267
        %v5355 = vunpack.c.h.b16 %v5267
        %v5356 = vunpack.c.l.b16 %v5268
        %v5357 = vunpack.c.l.b16 %v5269
        %v5358 = vunpack.c.h.b16 %v5269
        %v5359 = vunpack.c.l.b16 %v5270
        %v5360 = vunpack.c.l.b16 %v5271
        %v5361 = vunpack.c.h.b16 %v5271
        %v5362 = vunpack.c.l.b16 %v5272
        %v5363 = vunpack.c.l.b16 %v5273
        %v5364 = vunpack.c.h.b16 %v5273
        %v5365 = vunpack.c.l.b16 %v5274
        %v5366 = vunpack.c.l.b16 %v5275
        %v5367 = vunpack.c.h.b16 %v5275
        %v5368 = vunpack.c.l.b16 %v5276
        %v5369 = vunpack.c.l.b16 %v5277
        %v5370 = vunpack.c.h.b16 %v5277
        %v5371 = vunpack.c.l.b16 %v5278
        %v5372 = vunpack.c.l.b16 %v5279
        %v5373 = vunpack.c.h.b16 %v5279
        %v5374 = vunpack.c.l.b16 %v5280
        %v5375 = vunpack.c.l.b16 %v5281
        %v5376 = vunpack.c.h.b16 %v5281
        %v5377 = vunpack.c.l.b16 %v5282
        %v5378 = vunpack.c.l.b16 %v5283
        %v5379 = vunpack.c.h.b16 %v5283
        %v5380 = vunpack.c.l.b16 %v5284
        %v5381 = vunpack.c.l.b16 %v5285
        %v5382 = vunpack.c.h.b16 %v5285
        %v5383 = vunpack.c.l.b16 %v5286
        %v5384 = vpack.c.b16 %v5339, %v5336
        %v5385 = vpack.c.b16 %v5340, %v5337
        %v5386 = vpack.c.b16 %v5341, %v5338
        %v5387 = vpack.c.b16 %v5345, %v5342
        %v5388 = vpack.c.b16 %v5346, %v5343
        %v5389 = vpack.c.b16 %v5347, %v5344
        %v5390 = vpack.c.b16 %v5351, %v5348
        %v5391 = vpack.c.b16 %v5352, %v5349
        %v5392 = vpack.c.b16 %v5353, %v5350
        %v5393 = vpack.c.b16 %v5357, %v5354
        %v5394 = vpack.c.b16 %v5358, %v5355
        %v5395 = vpack.c.b16 %v5359, %v5356
        %v5396 = vpack.c.b16 %v5363, %v5360
        %v5397 = vpack.c.b16 %v5364, %v5361
        %v5398 = vpack.c.b16 %v5365, %v5362
        %v5399 = vpack.c.b16 %v5369, %v5366
        %v5400 = vpack.c.b16 %v5370, %v5367
        %v5401 = vpack.c.b16 %v5371, %v5368
        %v5402 = vpack.c.b16 %v5375, %v5372
        %v5403 = vpack.c.b16 %v5376, %v5373
        %v5404 = vpack.c.b16 %v5377, %v5374
        %v5405 = vpack.c.b16 %v5381, %v5378
        %v5406 = vpack.c.b16 %v5382, %v5379
        %v5407 = vpack.c.b16 %v5383, %v5380
        %5432 = vmatprep.subr.bf16.mxu0 %v5385
        %5433 = vmatpush1.bf16.msra.mxu0 %v5384
        %5434 = vmatprep.subr.bf16.mxu0 %v5388
        %5435 = vmatpush1.bf16.msra.mxu0 %v5387
        %5436 = vmatprep.subr.bf16.mxu0 %v5391
        %5437 = vmatpush1.bf16.msra.mxu0 %v5390
        %5438 = vmatprep.subr.bf16.mxu0 %v5394
        %5439 = vmatpush1.bf16.msra.mxu0 %v5393
        %5440 = vmatprep.subr.bf16.mxu0 %v5397
        %5441 = vmatpush1.bf16.msra.mxu0 %v5396
        %5442 = vmatprep.subr.bf16.mxu0 %v5400
        %5443 = vmatpush1.bf16.msra.mxu0 %v5399
        %5444 = vmatprep.subr.bf16.mxu0 %v5403
        %5445 = vmatpush1.bf16.msra.mxu0 %v5402
        %5446 = vmatprep.subr.bf16.mxu0 %v5406
        %5447 = vmatpush1.bf16.msra.mxu0 %v5405
        %5448 = vmatprep.subr.bf16.mxu0 0
        %5449 = vmatpush1.bf16.msra.mxu0 0
        %5450 = vmatprep.subr.bf16.mxu0 0
        %5451 = vmatpush1.bf16.msra.mxu0 0
        %5452 = vmatprep.subr.bf16.mxu0 0
        %5453 = vmatpush1.bf16.msra.mxu0 0
        %5454 = vmatprep.subr.bf16.mxu0 0
        %5455 = vmatpush1.bf16.msra.mxu0 0
        %5456 = vmatprep.subr.bf16.mxu0 0
        %5457 = vmatpush1.bf16.msra.mxu0 0
        %5458 = vmatprep.subr.bf16.mxu0 0
        %5459 = vmatpush1.bf16.msra.mxu0 0
        %5460 = vmatprep.subr.bf16.mxu0 0
        %5461 = vmatpush1.bf16.msra.mxu0 0
        %5462 = vmatprep.subr.bf16.mxu0 0
        %5463 = vmatpush1.bf16.msra.mxu0 0
        %5464 = vmatprep.mubr.bf16.mxu0 0
        %5465 = vmatmul.mubr.bf16.gmra.mrb[0].mxu0 %v5254
        %v5466 = vpop.f32.mrb[0].mxu0
        %v5467 = vadd.f32 %v5292, %v5466
        %v5468 = vpop.f32.mrb[0].mxu0
        %v5469 = vadd.f32 %v5296, %v5468
        %v5470 = vpop.f32.mrb[0].mxu0
        %v5471 = vpop.f32.mrb[0].mxu0
        %5472 = vdwg.mxu0
        %5473 = vmatprep.subr.bf16.mxu0 0
        %5474 = vmatpush1.bf16.msra.mxu0 %v5386
        %5475 = vmatprep.subr.bf16.mxu0 0
        %5476 = vmatpush1.bf16.msra.mxu0 %v5389
        %5477 = vmatprep.subr.bf16.mxu0 0
        %5478 = vmatpush1.bf16.msra.mxu0 %v5392
        %5479 = vmatprep.subr.bf16.mxu0 0
        %5480 = vmatpush1.bf16.msra.mxu0 %v5395
        %5481 = vmatprep.subr.bf16.mxu0 0
        %5482 = vmatpush1.bf16.msra.mxu0 %v5398
        %5483 = vmatprep.subr.bf16.mxu0 0
        %5484 = vmatpush1.bf16.msra.mxu0 %v5401
        %5485 = vmatprep.subr.bf16.mxu0 0
        %5486 = vmatpush1.bf16.msra.mxu0 %v5404
        %5487 = vmatprep.subr.bf16.mxu0 0
        %5488 = vmatpush1.bf16.msra.mxu0 %v5407
        %5489 = vmatprep.subr.bf16.mxu0 0
        %5490 = vmatpush1.bf16.msra.mxu0 0
        %5491 = vmatprep.subr.bf16.mxu0 0
        %5492 = vmatpush1.bf16.msra.mxu0 0
        %5493 = vmatprep.subr.bf16.mxu0 0
        %5494 = vmatpush1.bf16.msra.mxu0 0
        %5495 = vmatprep.subr.bf16.mxu0 0
        %5496 = vmatpush1.bf16.msra.mxu0 0
        %5497 = vmatprep.subr.bf16.mxu0 0
        %5498 = vmatpush1.bf16.msra.mxu0 0
        %5499 = vmatprep.subr.bf16.mxu0 0
        %5500 = vmatpush1.bf16.msra.mxu0 0
        %5501 = vmatprep.subr.bf16.mxu0 0
        %5502 = vmatpush1.bf16.msra.mxu0 0
        %5503 = vmatprep.subr.bf16.mxu0 0
        %5504 = vmatpush1.bf16.msra.mxu0 0
        %5505 = vmatprep.mubr.bf16.mxu0 0
        %5506 = vmatmul.mubr.bf16.gmra.mrb[0].mxu0 %v5254
        %v5507 = vpop.f32.mrb[0].mxu0
        %v5508 = vadd.f32 %v5300, %v5507
        %v5509 = vpop.f32.mrb[0].mxu0
        %v5510 = vpop.f32.mrb[0].mxu0
        %v5511 = vpop.f32.mrb[0].mxu0
        %5512 = vdwg.mxu0
        %v5513 = vadd.f32 %v5251, %v5467
        %v5514 = vxor.u32 %v5513, 2147483648
        %v5515 = vmul.f32 %v5514, 1.442695
        %v5516 = vpow.pop %v5515
        %v5517 = vadd.f32 %v5516, 1.0
        %v5518 = vrcp.pop %v5517
        %v5519 = vmul.f32 1.0, %v5518
        %v5520 = vadd.f32 %v5252, %v5469
        %v5521 = vxor.u32 %v5520, 2147483648
        %v5522 = vmul.f32 %v5521, 1.442695
        %v5523 = vpow.pop %v5522
        %v5524 = vadd.f32 %v5523, 1.0
        %v5525 = vrcp.pop %v5524
        %v5526 = vmul.f32 1.0, %v5525
        %v5527 = vmul.f32 %v5519, %v5508
        %v5528 = vadd.f32 %v5253, %v5527
        %v5529 = vtanh.pop %v5528
        %v5530 = vsub.f32 1.0, %v5526
        %v5531 = vmul.f32 %v5530, %v5529
        %v5532 = vmul.f32 %v5526, %v4959
        %v5533 = vadd.f32 %v5531, %v5532
        %s5534 = scalar_lea.vmem [#allocation5], 56
        %5535 = vst [vmem:[%s5534] sm:$0xff] %v5248
        %5536 = vst [vmem:[#allocation6] sm:$0xff] %v5533
        %v5537 = vld [vmem:[#allocation5] sm:$0xff]
        %v5538 = vld [vmem:[#allocation5 + $0x8] sm:$0xff]
        %v5539 = vld [vmem:[#allocation5 + $0x10] sm:$0xff]
        %v5540 = vld [vmem:[#allocation5 + $0x18] sm:$0xff]
        %v5541 = vld [vmem:[#allocation5 + $0x20] sm:$0xff]
        %v5542 = vld [vmem:[#allocation5 + $0x28] sm:$0xff]
        %v5543 = vld [vmem:[#allocation5 + $0x30] sm:$0xff]
        %v5544 = vld [vmem:[#allocation5 + $0x38] sm:$0xff]
        %v5545 = vld [vmem:[%s645] sm:$0xff]
        %v5546 = vld [vmem:[%s645 + $0x8] sm:$0xff]
        %v5547 = vld [vmem:[%s645 + $0x10] sm:$0xff]
        %v5548 = vld [vmem:[%s645 + $0x18] sm:$0xff]
        %v5549 = vld [vmem:[%s645 + $0x20] sm:$0xff]
        %v5550 = vld [vmem:[%s645 + $0x28] sm:$0xff]
        %v5551 = vld [vmem:[%s645 + $0x30] sm:$0xff]
        %v5552 = vld [vmem:[%s645 + $0x38] sm:$0xff]
        %v5553 = vld [vmem:[%s645 + $0x40] sm:$0xff]
        %v5554 = vld [vmem:[%s645 + $0x48] sm:$0xff]
        %v5555 = vld [vmem:[%s645 + $0x50] sm:$0xff]
        %v5556 = vld [vmem:[%s645 + $0x58] sm:$0xff]
        %v5557 = vld [vmem:[%s645 + $0x60] sm:$0xff]
        %v5558 = vld [vmem:[%s645 + $0x68] sm:$0xff]
        %v5559 = vld [vmem:[%s645 + $0x70] sm:$0xff]
        %v5560 = vld [vmem:[%s645 + $0x78] sm:$0xff]
        %v5561 = vld [vmem:[#allocation6] sm:$0xff]
        %v5562 = vld [vmem:[#allocation6 + $0x8] sm:$0xff]
        %v5563 = vld [vmem:[#allocation6 + $0x10] sm:$0xff]
        %v5564 = vld [vmem:[#allocation6 + $0x18] sm:$0xff]
        %v5565 = vld [vmem:[#allocation6 + $0x20] sm:$0xff]
        %v5566 = vld [vmem:[#allocation6 + $0x28] sm:$0xff]
        %v5567 = vld [vmem:[#allocation6 + $0x30] sm:$0xff]
        %v5568 = vld [vmem:[#allocation6 + $0x38] sm:$0xff]
        %v5569 = vld [vmem:[%s650] sm:$0xff]
        %v5570 = vld [vmem:[%s650 + $0x8] sm:$0xff]
        %v5571 = vld [vmem:[%s650 + $0x10] sm:$0xff]
        %v5572 = vld [vmem:[%s650 + $0x18] sm:$0xff]
        %v5573 = vld [vmem:[%s650 + $0x20] sm:$0xff]
        %v5574 = vld [vmem:[%s650 + $0x28] sm:$0xff]
        %v5575 = vld [vmem:[%s650 + $0x30] sm:$0xff]
        %v5576 = vld [vmem:[%s650 + $0x38] sm:$0xff]
        %v5577 = vld [vmem:[%s650 + $0x40] sm:$0xff]
        %v5578 = vld [vmem:[%s650 + $0x48] sm:$0xff]
        %v5579 = vld [vmem:[%s650 + $0x50] sm:$0xff]
        %v5580 = vld [vmem:[%s650 + $0x58] sm:$0xff]
        %v5581 = vld [vmem:[%s650 + $0x60] sm:$0xff]
        %v5582 = vld [vmem:[%s650 + $0x68] sm:$0xff]
        %v5583 = vld [vmem:[%s650 + $0x70] sm:$0xff]
        %v5584 = vld [vmem:[%s650 + $0x78] sm:$0xff]
        %5585 = vmatprep.subr.mxu0 0.0
        %5586 = vmatpush1.msra.mxu0 %v5569
        %5587 = vmatprep.subr.mxu0 0.0
        %5588 = vmatpush1.msra.mxu0 %v5570
        %5589 = vmatprep.subr.mxu0 0.0
        %5590 = vmatpush1.msra.mxu0 %v5571
        %5591 = vmatprep.subr.mxu0 0.0
        %5592 = vmatpush1.msra.mxu0 %v5572
        %5593 = vmatprep.subr.mxu0 0.0
        %5594 = vmatpush1.msra.mxu0 %v5573
        %5595 = vmatprep.subr.mxu0 0.0
        %5596 = vmatpush1.msra.mxu0 %v5574
        %5597 = vmatprep.subr.mxu0 0.0
        %5598 = vmatpush1.msra.mxu0 %v5575
        %5599 = vmatprep.subr.mxu0 0.0
        %5600 = vmatpush1.msra.mxu0 %v5576
        %5601 = vmatprep.subr.mxu0 0.0
        %5602 = vmatpush1.msra.mxu0 %v5577
        %5603 = vmatprep.subr.mxu0 0.0
        %5604 = vmatpush1.msra.mxu0 %v5578
        %5605 = vmatprep.subr.mxu0 0.0
        %5606 = vmatpush1.msra.mxu0 %v5579
        %5607 = vmatprep.subr.mxu0 0.0
        %5608 = vmatpush1.msra.mxu0 %v5580
        %5609 = vmatprep.subr.mxu0 0.0
        %5610 = vmatpush1.msra.mxu0 %v5581
        %5611 = vmatprep.subr.mxu0 0.0
        %5612 = vmatpush1.msra.mxu0 %v5582
        %5613 = vmatprep.subr.mxu0 0.0
        %5614 = vmatpush1.msra.mxu0 %v5583
        %5615 = vmatprep.subr.mxu0 0.0
        %5616 = vmatpush1.msra.mxu0 %v5584
        %5617 = vmatprep.subr.mxu0 0.0
        %5618 = vmatpush1.msra.mxu0 0.0
        %5619 = vmatprep.subr.mxu0 0.0
        %5620 = vmatpush1.msra.mxu0 0.0
        %5621 = vmatprep.subr.mxu0 0.0
        %5622 = vmatpush1.msra.mxu0 0.0
        %5623 = vmatprep.subr.mxu0 0.0
        %5624 = vmatpush1.msra.mxu0 0.0
        %5625 = vmatprep.subr.mxu0 0.0
        %5626 = vmatpush1.msra.mxu0 0.0
        %5627 = vmatprep.subr.mxu0 0.0
        %5628 = vmatpush1.msra.mxu0 0.0
        %5629 = vmatprep.subr.mxu0 0.0
        %5630 = vmatpush1.msra.mxu0 0.0
        %5631 = vmatprep.subr.mxu0 0.0
        %5632 = vmatpush1.msra.mxu0 0.0
        %5633 = vmatprep.subr.mxu0 0.0
        %5634 = vmatpush1.msra.mxu0 0.0
        %5635 = vmatprep.subr.mxu0 0.0
        %5636 = vmatpush1.msra.mxu0 0.0
        %5637 = vmatprep.subr.mxu0 0.0
        %5638 = vmatpush1.msra.mxu0 0.0
        %5639 = vmatprep.subr.mxu0 0.0
        %5640 = vmatpush1.msra.mxu0 0.0
        %5641 = vmatprep.subr.mxu0 0.0
        %5642 = vmatpush1.msra.mxu0 0.0
        %5643 = vmatprep.subr.mxu0 0.0
        %5644 = vmatpush1.msra.mxu0 0.0
        %5645 = vmatprep.subr.mxu0 0.0
        %5646 = vmatpush1.msra.mxu0 0.0
        %5647 = vmatprep.subr.mxu0 0.0
        %5648 = vmatpush1.msra.mxu0 0.0
        %5649 = vmatprep.mubr.f32.mxu0 0.0
        %5650 = vmatmul.mubr.f32.gmra.mrb[0].mxu0 %v5561
        %v5651 = vpop.f32.mrb[0].mxu0
        %v5652 = vadd.f32 0.0, %v5651
        %v5653 = vpop.f32.mrb[0].mxu0
        %5654 = vmatprep.mubr.f32.mxu0 0.0
        %5655 = vmatmul.mubr.f32.gmra.mrb[0].mxu0 %v5562
        %v5656 = vpop.f32.mrb[0].mxu0
        %v5657 = vadd.f32 0.0, %v5656
        %v5658 = vpop.f32.mrb[0].mxu0
        %5659 = vmatprep.mubr.f32.mxu0 0.0
        %5660 = vmatmul.mubr.f32.gmra.mrb[0].mxu0 %v5563
        %v5661 = vpop.f32.mrb[0].mxu0
        %v5662 = vadd.f32 0.0, %v5661
        %v5663 = vpop.f32.mrb[0].mxu0
        %5664 = vmatprep.mubr.f32.mxu0 0.0
        %5665 = vmatmul.mubr.f32.gmra.mrb[0].mxu0 %v5564
        %v5666 = vpop.f32.mrb[0].mxu0
        %v5667 = vadd.f32 0.0, %v5666
        %v5668 = vpop.f32.mrb[0].mxu0
        %5669 = vmatprep.mubr.f32.mxu0 0.0
        %5670 = vmatmul.mubr.f32.gmra.mrb[0].mxu0 %v5565
        %v5671 = vpop.f32.mrb[0].mxu0
        %v5672 = vadd.f32 0.0, %v5671
        %v5673 = vpop.f32.mrb[0].mxu0
        %5674 = vmatprep.mubr.f32.mxu0 0.0
        %5675 = vmatmul.mubr.f32.gmra.mrb[0].mxu0 %v5566
        %v5676 = vpop.f32.mrb[0].mxu0
        %v5677 = vadd.f32 0.0, %v5676
        %v5678 = vpop.f32.mrb[0].mxu0
        %5679 = vmatprep.mubr.f32.mxu0 0.0
        %5680 = vmatmul.mubr.f32.gmra.mrb[0].mxu0 %v5567
        %v5681 = vpop.f32.mrb[0].mxu0
        %v5682 = vadd.f32 0.0, %v5681
        %v5683 = vpop.f32.mrb[0].mxu0
        %5684 = vmatprep.mubr.f32.mxu0 0.0
        %5685 = vmatmul.mubr.f32.gmra.mrb[0].mxu0 %v5568
        %v5686 = vpop.f32.mrb[0].mxu0
        %v5687 = vadd.f32 0.0, %v5686
        %v5688 = vpop.f32.mrb[0].mxu0
        %5689 = vdwg.mxu0
        %5690 = vmatprep.subr.mxu0 0.0
        %5691 = vmatpush1.msra.mxu0 %v5545
        %5692 = vmatprep.subr.mxu0 0.0
        %5693 = vmatpush1.msra.mxu0 %v5546
        %5694 = vmatprep.subr.mxu0 0.0
        %5695 = vmatpush1.msra.mxu0 %v5547
        %5696 = vmatprep.subr.mxu0 0.0
        %5697 = vmatpush1.msra.mxu0 %v5548
        %5698 = vmatprep.subr.mxu0 0.0
        %5699 = vmatpush1.msra.mxu0 %v5549
        %5700 = vmatprep.subr.mxu0 0.0
        %5701 = vmatpush1.msra.mxu0 %v5550
        %5702 = vmatprep.subr.mxu0 0.0
        %5703 = vmatpush1.msra.mxu0 %v5551
        %5704 = vmatprep.subr.mxu0 0.0
        %5705 = vmatpush1.msra.mxu0 %v5552
        %5706 = vmatprep.subr.mxu0 0.0
        %5707 = vmatpush1.msra.mxu0 %v5553
        %5708 = vmatprep.subr.mxu0 0.0
        %5709 = vmatpush1.msra.mxu0 %v5554
        %5710 = vmatprep.subr.mxu0 0.0
        %5711 = vmatpush1.msra.mxu0 %v5555
        %5712 = vmatprep.subr.mxu0 0.0
        %5713 = vmatpush1.msra.mxu0 %v5556
        %5714 = vmatprep.subr.mxu0 0.0
        %5715 = vmatpush1.msra.mxu0 %v5557
        %5716 = vmatprep.subr.mxu0 0.0
        %5717 = vmatpush1.msra.mxu0 %v5558
        %5718 = vmatprep.subr.mxu0 0.0
        %5719 = vmatpush1.msra.mxu0 %v5559
        %5720 = vmatprep.subr.mxu0 0.0
        %5721 = vmatpush1.msra.mxu0 %v5560
        %5722 = vmatprep.subr.mxu0 0.0
        %5723 = vmatpush1.msra.mxu0 0.0
        %5724 = vmatprep.subr.mxu0 0.0
        %5725 = vmatpush1.msra.mxu0 0.0
        %5726 = vmatprep.subr.mxu0 0.0
        %5727 = vmatpush1.msra.mxu0 0.0
        %5728 = vmatprep.subr.mxu0 0.0
        %5729 = vmatpush1.msra.mxu0 0.0
        %5730 = vmatprep.subr.mxu0 0.0
        %5731 = vmatpush1.msra.mxu0 0.0
        %5732 = vmatprep.subr.mxu0 0.0
        %5733 = vmatpush1.msra.mxu0 0.0
        %5734 = vmatprep.subr.mxu0 0.0
        %5735 = vmatpush1.msra.mxu0 0.0
        %5736 = vmatprep.subr.mxu0 0.0
        %5737 = vmatpush1.msra.mxu0 0.0
        %5738 = vmatprep.subr.mxu0 0.0
        %5739 = vmatpush1.msra.mxu0 0.0
        %5740 = vmatprep.subr.mxu0 0.0
        %5741 = vmatpush1.msra.mxu0 0.0
        %5742 = vmatprep.subr.mxu0 0.0
        %5743 = vmatpush1.msra.mxu0 0.0
        %5744 = vmatprep.subr.mxu0 0.0
        %5745 = vmatpush1.msra.mxu0 0.0
        %5746 = vmatprep.subr.mxu0 0.0
        %5747 = vmatpush1.msra.mxu0 0.0
        %5748 = vmatprep.subr.mxu0 0.0
        %5749 = vmatpush1.msra.mxu0 0.0
        %5750 = vmatprep.subr.mxu0 0.0
        %5751 = vmatpush1.msra.mxu0 0.0
        %5752 = vmatprep.subr.mxu0 0.0
        %5753 = vmatpush1.msra.mxu0 0.0
        %5754 = vmatprep.mubr.f32.mxu0 0.0
        %5755 = vmatmul.mubr.f32.gmra.mrb[0].mxu0 %v5537
        %v5756 = vpop.f32.mrb[0].mxu0
        %v5757 = vadd.f32 %v5652, %v5756
        %v5758 = vpop.f32.mrb[0].mxu0
        %5759 = vmatprep.mubr.f32.mxu0 0.0
        %5760 = vmatmul.mubr.f32.gmra.mrb[0].mxu0 %v5538
        %v5761 = vpop.f32.mrb[0].mxu0
        %v5762 = vadd.f32 %v5657, %v5761
        %v5763 = vpop.f32.mrb[0].mxu0
        %5764 = vmatprep.mubr.f32.mxu0 0.0
        %5765 = vmatmul.mubr.f32.gmra.mrb[0].mxu0 %v5539
        %v5766 = vpop.f32.mrb[0].mxu0
        %v5767 = vadd.f32 %v5662, %v5766
        %v5768 = vpop.f32.mrb[0].mxu0
        %5769 = vmatprep.mubr.f32.mxu0 0.0
        %5770 = vmatmul.mubr.f32.gmra.mrb[0].mxu0 %v5540
        %v5771 = vpop.f32.mrb[0].mxu0
        %v5772 = vadd.f32 %v5667, %v5771
        %v5773 = vpop.f32.mrb[0].mxu0
        %5774 = vmatprep.mubr.f32.mxu0 0.0
        %5775 = vmatmul.mubr.f32.gmra.mrb[0].mxu0 %v5541
        %v5776 = vpop.f32.mrb[0].mxu0
        %v5777 = vadd.f32 %v5672, %v5776
        %v5778 = vpop.f32.mrb[0].mxu0
        %5779 = vmatprep.mubr.f32.mxu0 0.0
        %5780 = vmatmul.mubr.f32.gmra.mrb[0].mxu0 %v5542
        %v5781 = vpop.f32.mrb[0].mxu0
        %v5782 = vadd.f32 %v5677, %v5781
        %v5783 = vpop.f32.mrb[0].mxu0
        %5784 = vmatprep.mubr.f32.mxu0 0.0
        %5785 = vmatmul.mubr.f32.gmra.mrb[0].mxu0 %v5543
        %v5786 = vpop.f32.mrb[0].mxu0
        %v5787 = vadd.f32 %v5682, %v5786
        %v5788 = vpop.f32.mrb[0].mxu0
        %5789 = vmatprep.mubr.f32.mxu0 0.0
        %5790 = vmatmul.mubr.f32.gmra.mrb[0].mxu0 %v5544
        %v5791 = vpop.f32.mrb[0].mxu0
        %v5792 = vadd.f32 %v5687, %v5791
        %v5793 = vpop.f32.mrb[0].mxu0
        %5794 = vdwg.mxu0
        %v5795 = vld [vmem:[%s653] sm:$0x1]
        %v5797 = vlaneseq
        %v5798 = vshrl.u32 %v5797, 7
        %v5799 = vsub.s32 0, %v5798
        %v5800 = vrot.slane %v5795, %v5799
        %v5802 = vadd.f32 %v5757, %v5800
        %v5803 = vadd.f32 %v5762, %v5800
        %v5804 = vadd.f32 %v5767, %v5800
        %v5805 = vadd.f32 %v5772, %v5800
        %v5806 = vadd.f32 %v5777, %v5800
        %v5807 = vadd.f32 %v5782, %v5800
        %v5808 = vadd.f32 %v5787, %v5800
        %v5809 = vadd.f32 %v5792, %v5800
        %v5810 = vmin.f32 %v5802, %v681
        %v5811 = vmin.f32 %v5803, %v682
        %v5812 = vmin.f32 %v5804, %v683
        %v5813 = vmin.f32 %v5805, %v684
        %v5814 = vmin.f32 %v5806, %v685
        %v5815 = vmin.f32 %v5807, %v686
        %v5816 = vmin.f32 %v5808, %v687
        %v5817 = vmin.f32 %v5809, %v688
        %vm5818 = vcmask 7168
        %5819 = vst.msk [vmem:[%s658] sm:$0xff] %vm5818, %v5810
        %5820 = vst.msk [vmem:[%s658 + $0x8] sm:$0xff] %vm5818, %v5811
        %5821 = vst.msk [vmem:[%s658 + $0x10] sm:$0xff] %vm5818, %v5812
        %5822 = vst.msk [vmem:[%s658 + $0x18] sm:$0xff] %vm5818, %v5813
        %5823 = vst.msk [vmem:[%s658 + $0x20] sm:$0xff] %vm5818, %v5814
        %5824 = vst.msk [vmem:[%s658 + $0x28] sm:$0xff] %vm5818, %v5815
        %5825 = vst.msk [vmem:[%s658 + $0x30] sm:$0xff] %vm5818, %v5816
        %5826 = vst.msk [vmem:[%s658 + $0x38] sm:$0xff] %vm5818, %v5817
        %s5827 = sld [smem:[#allocation8]]
        %p5828 = scmp.ne.s32.totalorder %s5827, 0
        // Predicated region
        $region81: #{tpu_custom_call.1} parent=71 // pred_check
          %p5829 = pneg %p5828
        $region82: #{tpu_custom_call.1} parent=71 // pred_check_branch
          %5831 = sbr.rel (%p5829) target = $region84
        $region83: #{tpu_custom_call.1} parent=71 // pred_region
          %v5832 = vsub.f32 %v681, %v5810
          %v5833 = vsub.f32 %v682, %v5811
          %v5834 = vsub.f32 %v683, %v5812
          %v5835 = vsub.f32 %v684, %v5813
          %v5836 = vsub.f32 %v685, %v5814
          %v5837 = vsub.f32 %v686, %v5815
          %v5838 = vsub.f32 %v687, %v5816
          %v5839 = vsub.f32 %v688, %v5817
          %5840 = vst.msk [vmem:[#allocation2] sm:$0xff] %vm5818, %v5832
          %5841 = vst.msk [vmem:[#allocation2 + $0x8] sm:$0xff] %vm5818, %v5833
          %5842 = vst.msk [vmem:[#allocation2 + $0x10] sm:$0xff] %vm5818, %v5834
          %5843 = vst.msk [vmem:[#allocation2 + $0x18] sm:$0xff] %vm5818, %v5835
          %5844 = vst.msk [vmem:[#allocation2 + $0x20] sm:$0xff] %vm5818, %v5836
          %5845 = vst.msk [vmem:[#allocation2 + $0x28] sm:$0xff] %vm5818, %v5837
          %5846 = vst.msk [vmem:[#allocation2 + $0x30] sm:$0xff] %vm5818, %v5838
          %5847 = vst.msk [vmem:[#allocation2 + $0x38] sm:$0xff] %vm5818, %v5839
        $region84: #{tpu_custom_call.1} parent=71 // pred_fallthru
          _
        %s5848 = sld [smem:[#allocation8]]
        %p5849 = scmp.eq.s32.totalorder %s5848, 0
        // Predicated region
        $region85: #{tpu_custom_call.1} parent=71 // pred_check
          %p5850 = pneg %p5849
        $region86: #{tpu_custom_call.1} parent=71 // pred_check_branch
          %5852 = sbr.rel (%p5850) target = $region88
        $region87: #{tpu_custom_call.1} parent=71 // pred_region
          %v5853 = vld [vmem:[%s611] sm:$0xff]
          %v5854 = vld [vmem:[%s611 + $0x8] sm:$0xff]
          %v5855 = vld [vmem:[%s611 + $0x10] sm:$0xff]
          %v5856 = vld [vmem:[%s611 + $0x18] sm:$0xff]
          %v5857 = vld [vmem:[%s611 + $0x20] sm:$0xff]
          %v5858 = vld [vmem:[%s611 + $0x28] sm:$0xff]
          %v5859 = vld [vmem:[%s611 + $0x30] sm:$0xff]
          %v5860 = vld [vmem:[%s611 + $0x38] sm:$0xff]
          %v5861 = vsub.f32 %v681, %v5853
          %v5862 = vsub.f32 %v682, %v5854
          %v5863 = vsub.f32 %v683, %v5855
          %v5864 = vsub.f32 %v684, %v5856
          %v5865 = vsub.f32 %v685, %v5857
          %v5866 = vsub.f32 %v686, %v5858
          %v5867 = vsub.f32 %v687, %v5859
          %v5868 = vsub.f32 %v688, %v5860
          %5869 = vst.msk [vmem:[#allocation2] sm:$0xff] %vm5818, %v5861
          %5870 = vst.msk [vmem:[#allocation2 + $0x8] sm:$0xff] %vm5818, %v5862
          %5871 = vst.msk [vmem:[#allocation2 + $0x10] sm:$0xff] %vm5818, %v5863
          %5872 = vst.msk [vmem:[#allocation2 + $0x18] sm:$0xff] %vm5818, %v5864
          %5873 = vst.msk [vmem:[#allocation2 + $0x20] sm:$0xff] %vm5818, %v5865
          %5874 = vst.msk [vmem:[#allocation2 + $0x28] sm:$0xff] %vm5818, %v5866
          %5875 = vst.msk [vmem:[#allocation2 + $0x30] sm:$0xff] %vm5818, %v5867
          %5876 = vst.msk [vmem:[#allocation2 + $0x38] sm:$0xff] %vm5818, %v5868
        $region88: #{tpu_custom_call.1} parent=71 // pred_fallthru
          _
        %p5877 = scmp.lt.s32.totalorder %s29, 2
        %s5878 = scalar_select %p5877, %s29, 2
        %s5879 = smul.addr %s5878, 8
        %s5880 = smul.addr %s5879, 8
        %s5881 = scalar_lea.vmem %s14, %s5880
        // Predicated region
        $region89: #{tpu_custom_call.1} parent=71 // pred_check
          %p5882 = pneg %p380
        $region90: #{tpu_custom_call.1} parent=71 // pred_check_branch
          %5884 = sbr.rel (%p5882) target = $region92
        $region91: #{tpu_custom_call.1} parent=71 // pred_region
          _
        $region92: #{tpu_custom_call.1} parent=71 // pred_fallthru
          _
      $region72: #{tpu_custom_call.1} parent=5 // pred_fallthru
        _
      %p5885 = scmp.le.s32.totalorder 2, %s24
      // Predicated region
      $region93: #{tpu_custom_call.1} parent=5 // pred_check
        %p5886 = pneg %p5885
      $region94: #{tpu_custom_call.1} parent=5 // pred_check_branch
        %5888 = sbr.rel (%p5886) target = $region96
      $region95: #{tpu_custom_call.1} parent=5 // pred_region
        %s5889 = ssub.s32 %s24, 2
        // Predicated region
        $region97: #{tpu_custom_call.1} parent=95 // pred_check
          %p5890 = pneg %p386
        $region98: #{tpu_custom_call.1} parent=95 // pred_check_branch
          %5892 = sbr.rel (%p5890) target = $region100
        $region99: #{tpu_custom_call.1} parent=95 // pred_region
          %p5893 = scmp.lt.s32.totalorder %s30, 2
          %s5894 = scalar_select %p5893, %s30, 2
          %s5895 = smul.addr %s5894, 8
          %s5896 = smul.addr %s5895, 8
          %s5897 = scalar_lea.vmem %s14, %s5896
        $region100: #{tpu_custom_call.1} parent=95 // pred_fallthru
          _
      $region96: #{tpu_custom_call.1} parent=5 // pred_fallthru
        _
    $region6: #{tpu_custom_call.1} parent=1 // loop_footer
      %s28 = sadd.s32 1, %s24
    $region7: #{tpu_custom_call.1} parent=1 // loop_footer_branch
      %23 = sbr.rel target = $region3
    $region8: #{tpu_custom_call.1} parent=1 // loop_exit
      _
    %5898 = vsyncpa [#allocation10], 1
    %s5899 = scalar_lea.sflag [#allocation10], 1
    %5900 = vsyncpa %s5899, 1

</llo_original>
